<compile_context>
chip_gen: v7x
topology: tpu7x:2x2x1
jax: 0.10.0
libtpu: 0.0.40
codegen_flags: <defaults>
</compile_context>

<pallas_src>
import jax
import jax.numpy as jnp
from jax.experimental import pallas as pl
from jax.experimental.pallas import tpu as pltpu


def _bottleneck_kernel(x_ref, mask_ref,
                       w1_ref, s1_ref, b1_ref,
                       w2_ref, s2_ref, b2_ref,
                       w3_ref, s3_ref, b3_ref,
                       out_ref, h1_pad_ref):
    """Fused Bottleneck forward. All channel dims are padded to 128 lanes.

    x_ref      : (N, H+2, Wsp, Cp)   spatially + channel padded input (NHWC)
    mask_ref   : (1, H+2, Wsp, 1)    1.0 on the valid interior, 0.0 on halo
    w1_ref     : (Cp, Wp)            1x1 conv #1
    w2_ref     : (3, 3, Wp, Wp)      3x3 conv (HWIO)
    w3_ref     : (Wp, Cp)            1x1 conv #3
    s*/b*      : (1, C)              folded BatchNorm scale / shift
    out_ref    : (N, H, W, Cp)
    h1_pad_ref : (N, H+2, Wsp, Wp)   VMEM scratch holding the padded h1
    """
    N, Hp2, Wsp, Cp = x_ref.shape
    Wp = w1_ref.shape[1]
    H, W = out_ref.shape[1], out_ref.shape[2]

    # ---- conv1 (1x1) + bn1 + relu, computed over the whole padded grid; the
    # ---- halo is then zeroed with the mask so it acts as conv2's zero pad.
    x_all = x_ref[...].reshape(N * Hp2 * Wsp, Cp)
    h1 = jnp.dot(x_all, w1_ref[...], preferred_element_type=jnp.float32)
    h1 = jnp.maximum(h1 * s1_ref[...] + b1_ref[...], 0.0)
    h1 = h1.reshape(N, Hp2, Wsp, Wp) * mask_ref[...]
    h1_pad_ref[...] = h1                      # full, aligned VMEM store

    # ---- conv2 (3x3, stride 1, pad 1) as 9 shifted matmuls + bn2 + relu
    acc = jnp.zeros((N * H * W, Wp), jnp.float32)
    for dy in range(3):
        for dx in range(3):
            patch = h1_pad_ref[:, dy:dy + H, dx:dx + W, :]
            acc = acc + jnp.dot(patch.reshape(N * H * W, Wp),
                                w2_ref[dy, dx],
                                preferred_element_type=jnp.float32)
    h2 = jnp.maximum(acc * s2_ref[...] + b2_ref[...], 0.0)

    # ---- conv3 (1x1) + bn3 + identity residual + relu
    h3 = jnp.dot(h2, w3_ref[...], preferred_element_type=jnp.float32)
    h3 = h3 * s3_ref[...] + b3_ref[...]
    identity = x_ref[:, 1:H + 1, 1:W + 1, :].reshape(N * H * W, Cp)
    out = jnp.maximum(h3 + identity, 0.0)
    out_ref[...] = out.reshape(N, H, W, Cp).astype(out_ref.dtype)


def _fold_bn(gamma, beta, mean, var, eps=1e-5):
    s = gamma / jnp.sqrt(var + eps)
    return s, beta - mean * s


def _round_up(v, m):
    return (v + m - 1) // m * m


def bottleneck_forward(x, w1, w2, w3, bn1, bn2, bn3, *, eps=1e-5):
    """Bottleneck.forward (eval-mode BN, stride=1, downsample=None).

    x  : (N, H, W, Cin)  NHWC
    w1 : (Cin, width)    1x1 conv weights
    w2 : (3, 3, width, width)  3x3 conv weights (HWIO)
    w3 : (width, Cout)   1x1 conv weights, Cout == Cin (identity shortcut)
    bn*: tuples (gamma, beta, running_mean, running_var)
    """
    N, H, W, Cin = x.shape
    width = w1.shape[1]
    Cout = w3.shape[1]
    assert Cin == Cout, "downsample=None requires inplanes == planes*expansion"

    Cp = _round_up(Cin, 128)          # lane-dense channels for conv1 in / out
    Wp = _round_up(width, 128)        # lane-dense bottleneck width
    Hp2 = H + 2                       # spatial halo rows
    Wsp = _round_up(W + 2, 8)         # halo cols, rounded so reshapes stay
                                      # 8-sublane aligned

    s1, b1 = _fold_bn(*bn1, eps)
    s2, b2 = _fold_bn(*bn2, eps)
    s3, b3 = _fold_bn(*bn3, eps)

    # Channel + spatial-halo zero padding done once in XLA (outside the kernel).
    x_p = jnp.pad(x, ((0, 0), (1, 1), (1, Wsp - W - 1), (0, Cp - Cin)))
    w1_p = jnp.pad(w1, ((0, Cp - Cin), (0, Wp - width)))
    w2_p = jnp.pad(w2, ((0, 0), (0, 0), (0, Wp - width), (0, Wp - width)))
    w3_p = jnp.pad(w3, ((0, Wp - width), (0, Cp - Cout)))
    s1_p = jnp.pad(s1, (0, Wp - width)).reshape(1, Wp)
    b1_p = jnp.pad(b1, (0, Wp - width)).reshape(1, Wp)
    s2_p = jnp.pad(s2, (0, Wp - width)).reshape(1, Wp)
    b2_p = jnp.pad(b2, (0, Wp - width)).reshape(1, Wp)
    s3_p = jnp.pad(s3, (0, Cp - Cout)).reshape(1, Cp)
    b3_p = jnp.pad(b3, (0, Cp - Cout)).reshape(1, Cp)

    # Interior mask: 1 on real pixels, 0 on the halo / extra right pad.
    row = jnp.arange(Hp2).reshape(1, Hp2, 1, 1)
    col = jnp.arange(Wsp).reshape(1, 1, Wsp, 1)
    mask = (((row >= 1) & (row <= H)) & ((col >= 1) & (col <= W))
            ).astype(jnp.float32)

    flops = (2 * N * Hp2 * Wsp * Cp * Wp          # conv1 (over padded grid)
             + 2 * N * H * W * 9 * Wp * Wp        # conv2 (9 taps)
             + 2 * N * H * W * Wp * Cp)           # conv3
    bytes_accessed = 4 * (N * Hp2 * Wsp * Cp + Hp2 * Wsp
                          + Cp * Wp + 2 * Wp
                          + 9 * Wp * Wp + 2 * Wp
                          + Wp * Cp + 2 * Cp
                          + N * H * W * Cp)

    def _full(shape):
        return pl.BlockSpec(shape, lambda i: (0,) * len(shape))

    out_p = pl.pallas_call(
        _bottleneck_kernel,
        out_shape=jax.ShapeDtypeStruct((N, H, W, Cp), x.dtype),
        grid_spec=pltpu.PrefetchScalarGridSpec(
            num_scalar_prefetch=0,
            grid=(1,),                              # single fused grid step
            in_specs=[
                _full(x_p.shape),                   # x (padded)
                _full(mask.shape),                  # halo mask
                _full(w1_p.shape), _full((1, Wp)), _full((1, Wp)),
                _full(w2_p.shape), _full((1, Wp)), _full((1, Wp)),
                _full(w3_p.shape), _full((1, Cp)), _full((1, Cp)),
            ],
            out_specs=_full((N, H, W, Cp)),
            scratch_shapes=[pltpu.VMEM((N, Hp2, Wsp, Wp), jnp.float32)],
        ),
        compiler_params=pltpu.CompilerParams(
            dimension_semantics=("arbitrary",)),
        cost_estimate=pl.CostEstimate(flops=flops, transcendentals=0,
                                      bytes_accessed=bytes_accessed),
    )(x_p, mask, w1_p, s1_p, b1_p, w2_p, s2_p, b2_p, w3_p, s3_p, b3_p)

    return out_p[..., :Cout]


def _reference_forward(x, w1, w2, w3, bn1, bn2, bn3, eps=1e-5):
    """Pure-JAX reference (XLA convolutions), eval-mode BatchNorm."""
    def bn(y, p):
        g, b, m, v = p
        return (y - m) * (g / jnp.sqrt(v + eps)) + b
    dn = ("NHWC", "HWIO", "NHWC")
    h = jax.lax.conv_general_dilated(x, w1[None, None], (1, 1), "VALID",
                                     dimension_numbers=dn)
    h = jax.nn.relu(bn(h, bn1))
    h = jax.lax.conv_general_dilated(h, w2, (1, 1), ((1, 1), (1, 1)),
                                     dimension_numbers=dn)
    h = jax.nn.relu(bn(h, bn2))
    h = jax.lax.conv_general_dilated(h, w3[None, None], (1, 1), "VALID",
                                     dimension_numbers=dn)
    h = bn(h, bn3)
    return jax.nn.relu(h + x)


if __name__ == "__main__":
    # Small Bottleneck config: inplanes=64, planes=16 -> width=16,
    # out_channels = planes*4 = 64 == inplanes, so downsample=None is valid.
    N, H, W = 2, 16, 16
    inplanes, planes = 64, 16
    width = planes                     # base_width=64, groups=1
    cout = planes * 4                  # expansion = 4

    key = jax.random.PRNGKey(0)
    ks = jax.random.split(key, 7)

    x = jax.random.normal(ks[0], (N, H, W, inplanes), jnp.float32)
    w1 = jax.random.normal(ks[1], (inplanes, width), jnp.float32) * 0.1
    w2 = jax.random.normal(ks[2], (3, 3, width, width), jnp.float32) * 0.1
    w3 = jax.random.normal(ks[3], (width, cout), jnp.float32) * 0.1

    def bn_params(k, c):
        k1, k2, k3, k4 = jax.random.split(k, 4)
        gamma = 1.0 + 0.1 * jax.random.normal(k1, (c,), jnp.float32)
        beta = 0.1 * jax.random.normal(k2, (c,), jnp.float32)
        mean = 0.1 * jax.random.normal(k3, (c,), jnp.float32)
        var = 1.0 + 0.1 * jnp.abs(jax.random.normal(k4, (c,), jnp.float32))
        return gamma, beta, mean, var

    bn1 = bn_params(ks[4], width)
    bn2 = bn_params(ks[5], width)
    bn3 = bn_params(ks[6], cout)

    out = bottleneck_forward(x, w1, w2, w3, bn1, bn2, bn3)
    jax.block_until_ready(out)

    ref = _reference_forward(x, w1, w2, w3, bn1, bn2, bn3)
    assert out.shape == (N, H, W, cout), out.shape
    err = float(jnp.max(jnp.abs(out - ref)))
    assert jnp.allclose(out, ref, atol=2e-2, rtol=2e-2), f"max |diff| = {err}"

    print("KERNEL_OK")
</pallas_src>

<mosaic_0001>
module attributes {stable_mosaic.version = 11 : i64} {
  func.func @_bottleneck_kernel(%arg0: i32, %arg1: memref<2x18x24x128xf32, #tpu.memory_space<vmem>>, %arg2: memref<1x18x24x1xf32, #tpu.memory_space<vmem>>, %arg3: memref<128x128xf32, #tpu.memory_space<vmem>>, %arg4: memref<1x128xf32, #tpu.memory_space<vmem>>, %arg5: memref<1x128xf32, #tpu.memory_space<vmem>>, %arg6: memref<3x3x128x128xf32, #tpu.memory_space<vmem>>, %arg7: memref<1x128xf32, #tpu.memory_space<vmem>>, %arg8: memref<1x128xf32, #tpu.memory_space<vmem>>, %arg9: memref<128x128xf32, #tpu.memory_space<vmem>>, %arg10: memref<1x128xf32, #tpu.memory_space<vmem>>, %arg11: memref<1x128xf32, #tpu.memory_space<vmem>>, %arg12: memref<2x16x16x128xf32, #tpu.memory_space<vmem>>, %arg13: memref<2x18x24x128xf32, #tpu.memory_space<vmem>>) attributes {dimension_semantics = [#tpu.dimension_semantics<arbitrary>], iteration_bounds = array<i64: 1>, scalar_prefetch = 0 : i64, scratch_operands = 1 : i64, tpu.core_type = #tpu.core_type<tc>, window_params = [{pipeline_mode = #tpu.pipeline_mode<synchronous>, transform_indices = @transform_0, window_bounds = array<i64: 2, 18, 24, 128>}, {pipeline_mode = #tpu.pipeline_mode<synchronous>, transform_indices = @transform_1, window_bounds = array<i64: 1, 18, 24, 1>}, {pipeline_mode = #tpu.pipeline_mode<synchronous>, transform_indices = @transform_2, window_bounds = array<i64: 128, 128>}, {pipeline_mode = #tpu.pipeline_mode<synchronous>, transform_indices = @transform_3, window_bounds = array<i64: 1, 128>}, {pipeline_mode = #tpu.pipeline_mode<synchronous>, transform_indices = @transform_4, window_bounds = array<i64: 1, 128>}, {pipeline_mode = #tpu.pipeline_mode<synchronous>, transform_indices = @transform_5, window_bounds = array<i64: 3, 3, 128, 128>}, {pipeline_mode = #tpu.pipeline_mode<synchronous>, transform_indices = @transform_6, window_bounds = array<i64: 1, 128>}, {pipeline_mode = #tpu.pipeline_mode<synchronous>, transform_indices = @transform_7, window_bounds = array<i64: 1, 128>}, {pipeline_mode = #tpu.pipeline_mode<synchronous>, transform_indices = @transform_8, window_bounds = array<i64: 128, 128>}, {pipeline_mode = #tpu.pipeline_mode<synchronous>, transform_indices = @transform_9, window_bounds = array<i64: 1, 128>}, {pipeline_mode = #tpu.pipeline_mode<synchronous>, transform_indices = @transform_10, window_bounds = array<i64: 1, 128>}, {pipeline_mode = #tpu.pipeline_mode<synchronous>, transform_indices = @transform_11, window_bounds = array<i64: 2, 16, 16, 128>}]} {
    %c0 = arith.constant 0 : index
    %c0_0 = arith.constant 0 : index
    %c0_1 = arith.constant 0 : index
    %c0_2 = arith.constant 0 : index
    %0 = vector.load %arg1[%c0, %c0_0, %c0_1, %c0_2] : memref<2x18x24x128xf32, #tpu.memory_space<vmem>>, vector<2x18x24x128xf32>
    %1 = vector.shape_cast %0 : vector<2x18x24x128xf32> to vector<864x128xf32>
    %c0_3 = arith.constant 0 : index
    %c0_4 = arith.constant 0 : index
    %2 = vector.load %arg3[%c0_3, %c0_4] : memref<128x128xf32, #tpu.memory_space<vmem>>, vector<128x128xf32>
    %cst = arith.constant dense<0.000000e+00> : vector<864x128xf32>
    %3 = tpu.matmul %1, %2, %cst {dimension_numbers = #tpu.dot_dimension_numbers<[1], [0], [0], [1], [0, 0, 1, 1], [], []>} : vector<864x128xf32>, vector<128x128xf32>, vector<864x128xf32> -> vector<864x128xf32>
    %c0_5 = arith.constant 0 : index
    %c0_6 = arith.constant 0 : index
    %4 = vector.load %arg4[%c0_5, %c0_6] : memref<1x128xf32, #tpu.memory_space<vmem>>, vector<1x128xf32>
    %5 = vector.broadcast %4 : vector<1x128xf32> to vector<864x128xf32>
    %6 = arith.mulf %3, %5 : vector<864x128xf32>
    %c0_7 = arith.constant 0 : index
    %c0_8 = arith.constant 0 : index
    %7 = vector.load %arg5[%c0_7, %c0_8] : memref<1x128xf32, #tpu.memory_space<vmem>>, vector<1x128xf32>
    %8 = vector.broadcast %7 : vector<1x128xf32> to vector<864x128xf32>
    %9 = arith.addf %6, %8 : vector<864x128xf32>
    %cst_9 = arith.constant 0.000000e+00 : f32
    %10 = vector.broadcast %cst_9 : f32 to vector<864x128xf32>
    %11 = arith.maximumf %9, %10 : vector<864x128xf32>
    %12 = vector.shape_cast %11 : vector<864x128xf32> to vector<2x18x24x128xf32>
    %c0_10 = arith.constant 0 : index
    %c0_11 = arith.constant 0 : index
    %c0_12 = arith.constant 0 : index
    %c0_13 = arith.constant 0 : index
    %13 = vector.load %arg2[%c0_10, %c0_11, %c0_12, %c0_13] : memref<1x18x24x1xf32, #tpu.memory_space<vmem>>, vector<1x18x24x1xf32>
    %14 = vector.broadcast %13 : vector<1x18x24x1xf32> to vector<2x18x24x128xf32>
    %15 = arith.mulf %12, %14 : vector<2x18x24x128xf32>
    %c0_14 = arith.constant 0 : index
    %c0_15 = arith.constant 0 : index
    %c0_16 = arith.constant 0 : index
    %c0_17 = arith.constant 0 : index
    %16 = vector.load %arg13[%c0_14, %c0_15, %c0_16, %c0_17] : memref<2x18x24x128xf32, #tpu.memory_space<vmem>>, vector<2x18x24x128xf32>
    tpu.vector_store %arg13[%c0_14, %c0_15, %c0_16, %c0_17], %15 {strides = array<i32>} : memref<2x18x24x128xf32, #tpu.memory_space<vmem>>, vector<2x18x24x128xf32>,
    %cst_18 = arith.constant 0.000000e+00 : f32
    %17 = vector.broadcast %cst_18 : f32 to vector<512x128xf32>
    %c0_19 = arith.constant 0 : index
    %c0_20 = arith.constant 0 : index
    %c0_21 = arith.constant 0 : index
    %c0_22 = arith.constant 0 : index
    %18 = vector.load %arg13[%c0_19, %c0_20, %c0_21, %c0_22] : memref<2x18x24x128xf32, #tpu.memory_space<vmem>>, vector<2x16x16x128xf32>
    %19 = vector.shape_cast %18 : vector<2x16x16x128xf32> to vector<512x128xf32>
    %c0_23 = arith.constant 0 : index
    %c0_24 = arith.constant 0 : index
    %c0_25 = arith.constant 0 : index
    %c0_26 = arith.constant 0 : index
    %20 = vector.load %arg6[%c0_23, %c0_24, %c0_25, %c0_26] : memref<3x3x128x128xf32, #tpu.memory_space<vmem>>, vector<1x1x128x128xf32>
    %21 = vector.shape_cast %20 : vector<1x1x128x128xf32> to vector<128x128xf32>
    %cst_27 = arith.constant dense<0.000000e+00> : vector<512x128xf32>
    %22 = tpu.matmul %19, %21, %cst_27 {dimension_numbers = #tpu.dot_dimension_numbers<[1], [0], [0], [1], [0, 0, 1, 1], [], []>} : vector<512x128xf32>, vector<128x128xf32>, vector<512x128xf32> -> vector<512x128xf32>
    %23 = arith.addf %17, %22 : vector<512x128xf32>
    %c0_28 = arith.constant 0 : index
    %c0_29 = arith.constant 0 : index
    %c1 = arith.constant 1 : index
    %c0_30 = arith.constant 0 : index
    %24 = vector.load %arg13[%c0_28, %c0_29, %c1, %c0_30] : memref<2x18x24x128xf32, #tpu.memory_space<vmem>>, vector<2x16x16x128xf32>
    %25 = vector.shape_cast %24 : vector<2x16x16x128xf32> to vector<512x128xf32>
    %c0_31 = arith.constant 0 : index
    %c1_32 = arith.constant 1 : index
    %c0_33 = arith.constant 0 : index
    %c0_34 = arith.constant 0 : index
    %26 = vector.load %arg6[%c0_31, %c1_32, %c0_33, %c0_34] : memref<3x3x128x128xf32, #tpu.memory_space<vmem>>, vector<1x1x128x128xf32>
    %27 = vector.shape_cast %26 : vector<1x1x128x128xf32> to vector<128x128xf32>
    %cst_35 = arith.constant dense<0.000000e+00> : vector<512x128xf32>
    %28 = tpu.matmul %25, %27, %cst_35 {dimension_numbers = #tpu.dot_dimension_numbers<[1], [0], [0], [1], [0, 0, 1, 1], [], []>} : vector<512x128xf32>, vector<128x128xf32>, vector<512x128xf32> -> vector<512x128xf32>
    %29 = arith.addf %23, %28 : vector<512x128xf32>
    %c0_36 = arith.constant 0 : index
    %c0_37 = arith.constant 0 : index
    %c2 = arith.constant 2 : index
    %c0_38 = arith.constant 0 : index
    %30 = vector.load %arg13[%c0_36, %c0_37, %c2, %c0_38] : memref<2x18x24x128xf32, #tpu.memory_space<vmem>>, vector<2x16x16x128xf32>
    %31 = vector.shape_cast %30 : vector<2x16x16x128xf32> to vector<512x128xf32>
    %c0_39 = arith.constant 0 : index
    %c2_40 = arith.constant 2 : index
    %c0_41 = arith.constant 0 : index
    %c0_42 = arith.constant 0 : index
    %32 = vector.load %arg6[%c0_39, %c2_40, %c0_41, %c0_42] : memref<3x3x128x128xf32, #tpu.memory_space<vmem>>, vector<1x1x128x128xf32>
    %33 = vector.shape_cast %32 : vector<1x1x128x128xf32> to vector<128x128xf32>
    %cst_43 = arith.constant dense<0.000000e+00> : vector<512x128xf32>
    %34 = tpu.matmul %31, %33, %cst_43 {dimension_numbers = #tpu.dot_dimension_numbers<[1], [0], [0], [1], [0, 0, 1, 1], [], []>} : vector<512x128xf32>, vector<128x128xf32>, vector<512x128xf32> -> vector<512x128xf32>
    %35 = arith.addf %29, %34 : vector<512x128xf32>
    %c0_44 = arith.constant 0 : index
    %c1_45 = arith.constant 1 : index
    %c0_46 = arith.constant 0 : index
    %c0_47 = arith.constant 0 : index
    %36 = vector.load %arg13[%c0_44, %c1_45, %c0_46, %c0_47] : memref<2x18x24x128xf32, #tpu.memory_space<vmem>>, vector<2x16x16x128xf32>
    %37 = vector.shape_cast %36 : vector<2x16x16x128xf32> to vector<512x128xf32>
    %c1_48 = arith.constant 1 : index
    %c0_49 = arith.constant 0 : index
    %c0_50 = arith.constant 0 : index
    %c0_51 = arith.constant 0 : index
    %38 = vector.load %arg6[%c1_48, %c0_49, %c0_50, %c0_51] : memref<3x3x128x128xf32, #tpu.memory_space<vmem>>, vector<1x1x128x128xf32>
    %39 = vector.shape_cast %38 : vector<1x1x128x128xf32> to vector<128x128xf32>
    %cst_52 = arith.constant dense<0.000000e+00> : vector<512x128xf32>
    %40 = tpu.matmul %37, %39, %cst_52 {dimension_numbers = #tpu.dot_dimension_numbers<[1], [0], [0], [1], [0, 0, 1, 1], [], []>} : vector<512x128xf32>, vector<128x128xf32>, vector<512x128xf32> -> vector<512x128xf32>
    %41 = arith.addf %35, %40 : vector<512x128xf32>
    %c0_53 = arith.constant 0 : index
    %c1_54 = arith.constant 1 : index
    %c1_55 = arith.constant 1 : index
    %c0_56 = arith.constant 0 : index
    %42 = vector.load %arg13[%c0_53, %c1_54, %c1_55, %c0_56] : memref<2x18x24x128xf32, #tpu.memory_space<vmem>>, vector<2x16x16x128xf32>
    %43 = vector.shape_cast %42 : vector<2x16x16x128xf32> to vector<512x128xf32>
    %c1_57 = arith.constant 1 : index
    %c1_58 = arith.constant 1 : index
    %c0_59 = arith.constant 0 : index
    %c0_60 = arith.constant 0 : index
    %44 = vector.load %arg6[%c1_57, %c1_58, %c0_59, %c0_60] : memref<3x3x128x128xf32, #tpu.memory_space<vmem>>, vector<1x1x128x128xf32>
    %45 = vector.shape_cast %44 : vector<1x1x128x128xf32> to vector<128x128xf32>
    %cst_61 = arith.constant dense<0.000000e+00> : vector<512x128xf32>
    %46 = tpu.matmul %43, %45, %cst_61 {dimension_numbers = #tpu.dot_dimension_numbers<[1], [0], [0], [1], [0, 0, 1, 1], [], []>} : vector<512x128xf32>, vector<128x128xf32>, vector<512x128xf32> -> vector<512x128xf32>
    %47 = arith.addf %41, %46 : vector<512x128xf32>
    %c0_62 = arith.constant 0 : index
    %c1_63 = arith.constant 1 : index
    %c2_64 = arith.constant 2 : index
    %c0_65 = arith.constant 0 : index
    %48 = vector.load %arg13[%c0_62, %c1_63, %c2_64, %c0_65] : memref<2x18x24x128xf32, #tpu.memory_space<vmem>>, vector<2x16x16x128xf32>
    %49 = vector.shape_cast %48 : vector<2x16x16x128xf32> to vector<512x128xf32>
    %c1_66 = arith.constant 1 : index
    %c2_67 = arith.constant 2 : index
    %c0_68 = arith.constant 0 : index
    %c0_69 = arith.constant 0 : index
    %50 = vector.load %arg6[%c1_66, %c2_67, %c0_68, %c0_69] : memref<3x3x128x128xf32, #tpu.memory_space<vmem>>, vector<1x1x128x128xf32>
    %51 = vector.shape_cast %50 : vector<1x1x128x128xf32> to vector<128x128xf32>
    %cst_70 = arith.constant dense<0.000000e+00> : vector<512x128xf32>
    %52 = tpu.matmul %49, %51, %cst_70 {dimension_numbers = #tpu.dot_dimension_numbers<[1], [0], [0], [1], [0, 0, 1, 1], [], []>} : vector<512x128xf32>, vector<128x128xf32>, vector<512x128xf32> -> vector<512x128xf32>
    %53 = arith.addf %47, %52 : vector<512x128xf32>
    %c0_71 = arith.constant 0 : index
    %c2_72 = arith.constant 2 : index
    %c0_73 = arith.constant 0 : index
    %c0_74 = arith.constant 0 : index
    %54 = vector.load %arg13[%c0_71, %c2_72, %c0_73, %c0_74] : memref<2x18x24x128xf32, #tpu.memory_space<vmem>>, vector<2x16x16x128xf32>
    %55 = vector.shape_cast %54 : vector<2x16x16x128xf32> to vector<512x128xf32>
    %c2_75 = arith.constant 2 : index
    %c0_76 = arith.constant 0 : index
    %c0_77 = arith.constant 0 : index
    %c0_78 = arith.constant 0 : index
    %56 = vector.load %arg6[%c2_75, %c0_76, %c0_77, %c0_78] : memref<3x3x128x128xf32, #tpu.memory_space<vmem>>, vector<1x1x128x128xf32>
    %57 = vector.shape_cast %56 : vector<1x1x128x128xf32> to vector<128x128xf32>
    %cst_79 = arith.constant dense<0.000000e+00> : vector<512x128xf32>
    %58 = tpu.matmul %55, %57, %cst_79 {dimension_numbers = #tpu.dot_dimension_numbers<[1], [0], [0], [1], [0, 0, 1, 1], [], []>} : vector<512x128xf32>, vector<128x128xf32>, vector<512x128xf32> -> vector<512x128xf32>
    %59 = arith.addf %53, %58 : vector<512x128xf32>
    %c0_80 = arith.constant 0 : index
    %c2_81 = arith.constant 2 : index
    %c1_82 = arith.constant 1 : index
    %c0_83 = arith.constant 0 : index
    %60 = vector.load %arg13[%c0_80, %c2_81, %c1_82, %c0_83] : memref<2x18x24x128xf32, #tpu.memory_space<vmem>>, vector<2x16x16x128xf32>
    %61 = vector.shape_cast %60 : vector<2x16x16x128xf32> to vector<512x128xf32>
    %c2_84 = arith.constant 2 : index
    %c1_85 = arith.constant 1 : index
    %c0_86 = arith.constant 0 : index
    %c0_87 = arith.constant 0 : index
    %62 = vector.load %arg6[%c2_84, %c1_85, %c0_86, %c0_87] : memref<3x3x128x128xf32, #tpu.memory_space<vmem>>, vector<1x1x128x128xf32>
    %63 = vector.shape_cast %62 : vector<1x1x128x128xf32> to vector<128x128xf32>
    %cst_88 = arith.constant dense<0.000000e+00> : vector<512x128xf32>
    %64 = tpu.matmul %61, %63, %cst_88 {dimension_numbers = #tpu.dot_dimension_numbers<[1], [0], [0], [1], [0, 0, 1, 1], [], []>} : vector<512x128xf32>, vector<128x128xf32>, vector<512x128xf32> -> vector<512x128xf32>
    %65 = arith.addf %59, %64 : vector<512x128xf32>
    %c0_89 = arith.constant 0 : index
    %c2_90 = arith.constant 2 : index
    %c2_91 = arith.constant 2 : index
    %c0_92 = arith.constant 0 : index
    %66 = vector.load %arg13[%c0_89, %c2_90, %c2_91, %c0_92] : memref<2x18x24x128xf32, #tpu.memory_space<vmem>>, vector<2x16x16x128xf32>
    %67 = vector.shape_cast %66 : vector<2x16x16x128xf32> to vector<512x128xf32>
    %c2_93 = arith.constant 2 : index
    %c2_94 = arith.constant 2 : index
    %c0_95 = arith.constant 0 : index
    %c0_96 = arith.constant 0 : index
    %68 = vector.load %arg6[%c2_93, %c2_94, %c0_95, %c0_96] : memref<3x3x128x128xf32, #tpu.memory_space<vmem>>, vector<1x1x128x128xf32>
    %69 = vector.shape_cast %68 : vector<1x1x128x128xf32> to vector<128x128xf32>
    %cst_97 = arith.constant dense<0.000000e+00> : vector<512x128xf32>
    %70 = tpu.matmul %67, %69, %cst_97 {dimension_numbers = #tpu.dot_dimension_numbers<[1], [0], [0], [1], [0, 0, 1, 1], [], []>} : vector<512x128xf32>, vector<128x128xf32>, vector<512x128xf32> -> vector<512x128xf32>
    %71 = arith.addf %65, %70 : vector<512x128xf32>
    %c0_98 = arith.constant 0 : index
    %c0_99 = arith.constant 0 : index
    %72 = vector.load %arg7[%c0_98, %c0_99] : memref<1x128xf32, #tpu.memory_space<vmem>>, vector<1x128xf32>
    %73 = vector.broadcast %72 : vector<1x128xf32> to vector<512x128xf32>
    %74 = arith.mulf %71, %73 : vector<512x128xf32>
    %c0_100 = arith.constant 0 : index
    %c0_101 = arith.constant 0 : index
    %75 = vector.load %arg8[%c0_100, %c0_101] : memref<1x128xf32, #tpu.memory_space<vmem>>, vector<1x128xf32>
    %76 = vector.broadcast %75 : vector<1x128xf32> to vector<512x128xf32>
    %77 = arith.addf %74, %76 : vector<512x128xf32>
    %cst_102 = arith.constant 0.000000e+00 : f32
    %78 = vector.broadcast %cst_102 : f32 to vector<512x128xf32>
    %79 = arith.maximumf %77, %78 : vector<512x128xf32>
    %c0_103 = arith.constant 0 : index
    %c0_104 = arith.constant 0 : index
    %80 = vector.load %arg9[%c0_103, %c0_104] : memref<128x128xf32, #tpu.memory_space<vmem>>, vector<128x128xf32>
    %cst_105 = arith.constant dense<0.000000e+00> : vector<512x128xf32>
    %81 = tpu.matmul %79, %80, %cst_105 {dimension_numbers = #tpu.dot_dimension_numbers<[1], [0], [0], [1], [0, 0, 1, 1], [], []>} : vector<512x128xf32>, vector<128x128xf32>, vector<512x128xf32> -> vector<512x128xf32>
    %c0_106 = arith.constant 0 : index
    %c0_107 = arith.constant 0 : index
    %82 = vector.load %arg10[%c0_106, %c0_107] : memref<1x128xf32, #tpu.memory_space<vmem>>, vector<1x128xf32>
    %83 = vector.broadcast %82 : vector<1x128xf32> to vector<512x128xf32>
    %84 = arith.mulf %81, %83 : vector<512x128xf32>
    %c0_108 = arith.constant 0 : index
    %c0_109 = arith.constant 0 : index
    %85 = vector.load %arg11[%c0_108, %c0_109] : memref<1x128xf32, #tpu.memory_space<vmem>>, vector<1x128xf32>
    %86 = vector.broadcast %85 : vector<1x128xf32> to vector<512x128xf32>
    %87 = arith.addf %84, %86 : vector<512x128xf32>
    %c0_110 = arith.constant 0 : index
    %c1_111 = arith.constant 1 : index
    %c1_112 = arith.constant 1 : index
    %c0_113 = arith.constant 0 : index
    %88 = vector.load %arg1[%c0_110, %c1_111, %c1_112, %c0_113] : memref<2x18x24x128xf32, #tpu.memory_space<vmem>>, vector<2x16x16x128xf32>
    %89 = vector.shape_cast %88 : vector<2x16x16x128xf32> to vector<512x128xf32>
    %90 = arith.addf %87, %89 : vector<512x128xf32>
    %cst_114 = arith.constant 0.000000e+00 : f32
    %91 = vector.broadcast %cst_114 : f32 to vector<512x128xf32>
    %92 = arith.maximumf %90, %91 : vector<512x128xf32>
    %93 = vector.shape_cast %92 : vector<512x128xf32> to vector<2x16x16x128xf32>
    %c0_115 = arith.constant 0 : index
    %c0_116 = arith.constant 0 : index
    %c0_117 = arith.constant 0 : index
    %c0_118 = arith.constant 0 : index
    %94 = vector.load %arg12[%c0_115, %c0_116, %c0_117, %c0_118] : memref<2x16x16x128xf32, #tpu.memory_space<vmem>>, vector<2x16x16x128xf32>
    tpu.vector_store %arg12[%c0_115, %c0_116, %c0_117, %c0_118], %93 {strides = array<i32>} : memref<2x16x16x128xf32, #tpu.memory_space<vmem>>, vector<2x16x16x128xf32>,
    return
  }
  func.func @transform_0(%arg0: i32) -> (i32, i32, i32, i32) {
    %c0_i32 = arith.constant 0 : i32
    %c0_i32_0 = arith.constant 0 : i32
    %c0_i32_1 = arith.constant 0 : i32
    %c0_i32_2 = arith.constant 0 : i32
    %c0_i32_3 = arith.constant 0 : i32
    return %c0_i32, %c0_i32_0, %c0_i32_1, %c0_i32_2 : i32, i32, i32, i32
  }
  func.func @transform_1(%arg0: i32) -> (i32, i32, i32, i32) {
    %c0_i32 = arith.constant 0 : i32
    %c0_i32_0 = arith.constant 0 : i32
    %c0_i32_1 = arith.constant 0 : i32
    %c0_i32_2 = arith.constant 0 : i32
    %c0_i32_3 = arith.constant 0 : i32
    return %c0_i32, %c0_i32_0, %c0_i32_1, %c0_i32_2 : i32, i32, i32, i32
  }
  func.func @transform_2(%arg0: i32) -> (i32, i32) {
    %c0_i32 = arith.constant 0 : i32
    %c0_i32_0 = arith.constant 0 : i32
    %c0_i32_1 = arith.constant 0 : i32
    return %c0_i32, %c0_i32_0 : i32, i32
  }
  func.func @transform_3(%arg0: i32) -> (i32, i32) {
    %c0_i32 = arith.constant 0 : i32
    %c0_i32_0 = arith.constant 0 : i32
    %c0_i32_1 = arith.constant 0 : i32
    return %c0_i32, %c0_i32_0 : i32, i32
  }
  func.func @transform_4(%arg0: i32) -> (i32, i32) {
    %c0_i32 = arith.constant 0 : i32
    %c0_i32_0 = arith.constant 0 : i32
    %c0_i32_1 = arith.constant 0 : i32
    return %c0_i32, %c0_i32_0 : i32, i32
  }
  func.func @transform_5(%arg0: i32) -> (i32, i32, i32, i32) {
    %c0_i32 = arith.constant 0 : i32
    %c0_i32_0 = arith.constant 0 : i32
    %c0_i32_1 = arith.constant 0 : i32
    %c0_i32_2 = arith.constant 0 : i32
    %c0_i32_3 = arith.constant 0 : i32
    return %c0_i32, %c0_i32_0, %c0_i32_1, %c0_i32_2 : i32, i32, i32, i32
  }
  func.func @transform_6(%arg0: i32) -> (i32, i32) {
    %c0_i32 = arith.constant 0 : i32
    %c0_i32_0 = arith.constant 0 : i32
    %c0_i32_1 = arith.constant 0 : i32
    return %c0_i32, %c0_i32_0 : i32, i32
  }
  func.func @transform_7(%arg0: i32) -> (i32, i32) {
    %c0_i32 = arith.constant 0 : i32
    %c0_i32_0 = arith.constant 0 : i32
    %c0_i32_1 = arith.constant 0 : i32
    return %c0_i32, %c0_i32_0 : i32, i32
  }
  func.func @transform_8(%arg0: i32) -> (i32, i32) {
    %c0_i32 = arith.constant 0 : i32
    %c0_i32_0 = arith.constant 0 : i32
    %c0_i32_1 = arith.constant 0 : i32
    return %c0_i32, %c0_i32_0 : i32, i32
  }
  func.func @transform_9(%arg0: i32) -> (i32, i32) {
    %c0_i32 = arith.constant 0 : i32
    %c0_i32_0 = arith.constant 0 : i32
    %c0_i32_1 = arith.constant 0 : i32
    return %c0_i32, %c0_i32_0 : i32, i32
  }
  func.func @transform_10(%arg0: i32) -> (i32, i32) {
    %c0_i32 = arith.constant 0 : i32
    %c0_i32_0 = arith.constant 0 : i32
    %c0_i32_1 = arith.constant 0 : i32
    return %c0_i32, %c0_i32_0 : i32, i32
  }
  func.func @transform_11(%arg0: i32) -> (i32, i32, i32, i32) {
    %c0_i32 = arith.constant 0 : i32
    %c0_i32_0 = arith.constant 0 : i32
    %c0_i32_1 = arith.constant 0 : i32
    %c0_i32_2 = arith.constant 0 : i32
    %c0_i32_3 = arith.constant 0 : i32
    return %c0_i32, %c0_i32_0, %c0_i32_1, %c0_i32_2 : i32, i32, i32, i32
  }
}

</mosaic_0001>

<llo_original>
// kernel: tpu_custom_call.1
$region0: #{tpu_custom_call.1}
  #allocation0 [shape = 'u32[]', space=smem, size = 0x4, offset = 0x4, fixed_abs, tag = 'smem constant byte address 0x4 - core index']
  #allocation1 [shape = 'u32[144,128]{1,0:T(1,128)}', space=vmem, size = 0x12000, scoped, tag = 'internal scratch']
  #allocation2 [shape = 'f32[2,18,24,128]{3,2,1,0:T(8,128)}', space=vmem, size = 0x6c000, scoped, tag = 'scratch operand']
  %s0 = inlined_call_operand.hbm [shape: f32[2,18,24,128], index: 0, kind: input, shape index: {}]
  %s1 = inlined_call_operand.vmem [shape: f32[1,18,24,1], index: 1, kind: input, shape index: {}]
  %s2 = inlined_call_operand.vmem [shape: f32[128,128], index: 2, kind: input, shape index: {}]
  %s3 = inlined_call_operand.vmem [shape: f32[1,128], index: 3, kind: input, shape index: {}]
  %s4 = inlined_call_operand.vmem [shape: f32[1,128], index: 4, kind: input, shape index: {}]
  %s5 = inlined_call_operand.hbm [shape: f32[3,3,128,128], index: 5, kind: input, shape index: {}]
  %s6 = inlined_call_operand.vmem [shape: f32[1,128], index: 6, kind: input, shape index: {}]
  %s7 = inlined_call_operand.vmem [shape: f32[1,128], index: 7, kind: input, shape index: {}]
  %s8 = inlined_call_operand.vmem [shape: f32[128,128], index: 8, kind: input, shape index: {}]
  %s9 = inlined_call_operand.vmem [shape: f32[1,128], index: 9, kind: input, shape index: {}]
  %s10 = inlined_call_operand.vmem [shape: f32[1,128], index: 10, kind: input, shape index: {}]
  %s11 = inlined_call_operand.hbm [shape: f32[2,16,16,128], index: 11, kind: output, shape index: {}]
  %s12 = sld [smem:[#allocation0]]
  $region62: #{tpu_custom_call.1} parent=0
    _
  %s14 = ssub.s32 1, %s12
  %s15 = scalar_select 0, %s14, %s12
  $region1: #{tpu_custom_call.1} parent=0
    #allocation3 [shape = 'u8[442368]{0}', space=vmem, size = 0x6c000, scoped, tag = 'input window, operand 0, single buffered']
    #allocation4 [shape = 's32[1]{0}', space=sflag, size = 0x4, scoped, tag = 'scoped memory for tpu_custom_call.1']
    #allocation5 [shape = 's32[1]{0}', space=sflag, size = 0x4, scoped, tag = 'scoped memory for tpu_custom_call.1']
    #allocation6 [shape = 'u8[589824]{0}', space=vmem, size = 0x90000, scoped, tag = 'input window, operand 5, single buffered']
    #allocation7 [shape = 's32[1]{0}', space=sflag, size = 0x4, scoped, tag = 'scoped memory for tpu_custom_call.1']
    #allocation8 [shape = 'u8[262144]{0}', space=vmem, size = 0x40000, scoped, tag = 'output window, operand 0, single buffered']
    %16 = vsyncpa [#allocation4], 0
    %17 = vsyncpa [#allocation7], 0
    %18 = vsyncpa [#allocation5], 0
    // Predicated region
    $region2: #{tpu_custom_call.1} parent=1 // pred_check
      _
    $region3: #{tpu_custom_call.1} parent=1 // pred_check_branch
      %20 = sbr.rel (0) target = $region5
    $region4: #{tpu_custom_call.1} parent=1 // pred_region
      %s22 = ssub.s32 13824, 13824
      %23 = vsyncadd [#allocation4], %s22
      %s24 = sshll.u32 [#allocation3], 4
      %s25 = int_to_ptr.vmem [resolvable:$true] %s24
      %30 = dma.hbm_to_vmem [thread:$0]  %s0, 13824, %s25, [#allocation4], 128, 128, 8
    $region5: #{tpu_custom_call.1} parent=1 // pred_fallthru
      _
    // Predicated region
    $region6: #{tpu_custom_call.1} parent=1 // pred_check
      _
    $region7: #{tpu_custom_call.1} parent=1 // pred_check_branch
      %32 = sbr.rel (0) target = $region9
    $region8: #{tpu_custom_call.1} parent=1 // pred_region
      _
    $region9: #{tpu_custom_call.1} parent=1 // pred_fallthru
      _
    // Predicated region
    $region10: #{tpu_custom_call.1} parent=1 // pred_check
      _
    $region11: #{tpu_custom_call.1} parent=1 // pred_check_branch
      %34 = sbr.rel (0) target = $region13
    $region12: #{tpu_custom_call.1} parent=1 // pred_region
      _
    $region13: #{tpu_custom_call.1} parent=1 // pred_fallthru
      _
    // Predicated region
    $region14: #{tpu_custom_call.1} parent=1 // pred_check
      _
    $region15: #{tpu_custom_call.1} parent=1 // pred_check_branch
      %36 = sbr.rel (0) target = $region17
    $region16: #{tpu_custom_call.1} parent=1 // pred_region
      _
    $region17: #{tpu_custom_call.1} parent=1 // pred_fallthru
      _
    // Predicated region
    $region18: #{tpu_custom_call.1} parent=1 // pred_check
      _
    $region19: #{tpu_custom_call.1} parent=1 // pred_check_branch
      %38 = sbr.rel (0) target = $region21
    $region20: #{tpu_custom_call.1} parent=1 // pred_region
      _
    $region21: #{tpu_custom_call.1} parent=1 // pred_fallthru
      _
    // Predicated region
    $region22: #{tpu_custom_call.1} parent=1 // pred_check
      _
    $region23: #{tpu_custom_call.1} parent=1 // pred_check_branch
      %40 = sbr.rel (0) target = $region25
    $region24: #{tpu_custom_call.1} parent=1 // pred_region
      %s42 = ssub.s32 18432, 18432
      %43 = vsyncadd [#allocation7], %s42
      %s44 = sshll.u32 [#allocation6], 4
      %s45 = int_to_ptr.vmem [resolvable:$true] %s44
      %50 = dma.hbm_to_vmem [thread:$0]  %s5, 18432, %s45, [#allocation7], 128, 128, 8
    $region25: #{tpu_custom_call.1} parent=1 // pred_fallthru
      _
    // Predicated region
    $region26: #{tpu_custom_call.1} parent=1 // pred_check
      _
    $region27: #{tpu_custom_call.1} parent=1 // pred_check_branch
      %52 = sbr.rel (0) target = $region29
    $region28: #{tpu_custom_call.1} parent=1 // pred_region
      _
    $region29: #{tpu_custom_call.1} parent=1 // pred_fallthru
      _
    // Predicated region
    $region30: #{tpu_custom_call.1} parent=1 // pred_check
      _
    $region31: #{tpu_custom_call.1} parent=1 // pred_check_branch
      %54 = sbr.rel (0) target = $region33
    $region32: #{tpu_custom_call.1} parent=1 // pred_region
      _
    $region33: #{tpu_custom_call.1} parent=1 // pred_fallthru
      _
    // Predicated region
    $region34: #{tpu_custom_call.1} parent=1 // pred_check
      _
    $region35: #{tpu_custom_call.1} parent=1 // pred_check_branch
      %56 = sbr.rel (0) target = $region37
    $region36: #{tpu_custom_call.1} parent=1 // pred_region
      _
    $region37: #{tpu_custom_call.1} parent=1 // pred_fallthru
      _
    // Predicated region
    $region38: #{tpu_custom_call.1} parent=1 // pred_check
      _
    $region39: #{tpu_custom_call.1} parent=1 // pred_check_branch
      %58 = sbr.rel (0) target = $region41
    $region40: #{tpu_custom_call.1} parent=1 // pred_region
      _
    $region41: #{tpu_custom_call.1} parent=1 // pred_fallthru
      _
    // Predicated region
    $region42: #{tpu_custom_call.1} parent=1 // pred_check
      _
    $region43: #{tpu_custom_call.1} parent=1 // pred_check_branch
      %60 = sbr.rel (0) target = $region45
    $region44: #{tpu_custom_call.1} parent=1 // pred_region
      _
    $region45: #{tpu_custom_call.1} parent=1 // pred_fallthru
      _
    // Predicated region
    $region46: #{tpu_custom_call.1} parent=1 // pred_check
      _
    $region47: #{tpu_custom_call.1} parent=1 // pred_check_branch
      %62 = sbr.rel (0) target = $region49
    $region48: #{tpu_custom_call.1} parent=1 // pred_region
      %63 = dma.done [#allocation4], 13824
    $region49: #{tpu_custom_call.1} parent=1 // pred_fallthru
      _
    // Predicated region
    $region50: #{tpu_custom_call.1} parent=1 // pred_check
      _
    $region51: #{tpu_custom_call.1} parent=1 // pred_check_branch
      %65 = sbr.rel (0) target = $region53
    $region52: #{tpu_custom_call.1} parent=1 // pred_region
      %66 = dma.done [#allocation7], 18432
    $region53: #{tpu_custom_call.1} parent=1 // pred_fallthru
      _
    %v67 = vld [vmem:[#allocation3] sm:$0xff]
    %v68 = vld [vmem:[#allocation3 + $0x8] sm:$0xff]
    %v69 = vld [vmem:[#allocation3 + $0x10] sm:$0xff]
    %v70 = vld [vmem:[#allocation3 + $0x18] sm:$0xff]
    %v71 = vld [vmem:[#allocation3 + $0x20] sm:$0xff]
    %v72 = vld [vmem:[#allocation3 + $0x28] sm:$0xff]
    %v73 = vld [vmem:[#allocation3 + $0x30] sm:$0xff]
    %v74 = vld [vmem:[#allocation3 + $0x38] sm:$0xff]
    %v75 = vld [vmem:[#allocation3 + $0x40] sm:$0xff]
    %v76 = vld [vmem:[#allocation3 + $0x48] sm:$0xff]
    %v77 = vld [vmem:[#allocation3 + $0x50] sm:$0xff]
    %v78 = vld [vmem:[#allocation3 + $0x58] sm:$0xff]
    %v79 = vld [vmem:[#allocation3 + $0x60] sm:$0xff]
    %v80 = vld [vmem:[#allocation3 + $0x68] sm:$0xff]
    %v81 = vld [vmem:[#allocation3 + $0x70] sm:$0xff]
    %v82 = vld [vmem:[#allocation3 + $0x78] sm:$0xff]
    %v83 = vld [vmem:[#allocation3 + $0x80] sm:$0xff]
    %v84 = vld [vmem:[#allocation3 + $0x88] sm:$0xff]
    %v85 = vld [vmem:[#allocation3 + $0x90] sm:$0xff]
    %v86 = vld [vmem:[#allocation3 + $0x98] sm:$0xff]
    %v87 = vld [vmem:[#allocation3 + $0xa0] sm:$0xff]
    %v88 = vld [vmem:[#allocation3 + $0xa8] sm:$0xff]
    %v89 = vld [vmem:[#allocation3 + $0xb0] sm:$0xff]
    %v90 = vld [vmem:[#allocation3 + $0xb8] sm:$0xff]
    %v91 = vld [vmem:[#allocation3 + $0xc0] sm:$0xff]
    %v92 = vld [vmem:[#allocation3 + $0xc8] sm:$0xff]
    %v93 = vld [vmem:[#allocation3 + $0xd0] sm:$0xff]
    %v94 = vld [vmem:[#allocation3 + $0xd8] sm:$0xff]
    %v95 = vld [vmem:[#allocation3 + $0xe0] sm:$0xff]
    %v96 = vld [vmem:[#allocation3 + $0xe8] sm:$0xff]
    %v97 = vld [vmem:[#allocation3 + $0xf0] sm:$0xff]
    %v98 = vld [vmem:[#allocation3 + $0xf8] sm:$0xff]
    %v99 = vld [vmem:[#allocation3 + $0x100] sm:$0xff]
    %v100 = vld [vmem:[#allocation3 + $0x108] sm:$0xff]
    %v101 = vld [vmem:[#allocation3 + $0x110] sm:$0xff]
    %v102 = vld [vmem:[#allocation3 + $0x118] sm:$0xff]
    %v103 = vld [vmem:[#allocation3 + $0x120] sm:$0xff]
    %v104 = vld [vmem:[#allocation3 + $0x128] sm:$0xff]
    %v105 = vld [vmem:[#allocation3 + $0x130] sm:$0xff]
    %v106 = vld [vmem:[#allocation3 + $0x138] sm:$0xff]
    %v107 = vld [vmem:[#allocation3 + $0x140] sm:$0xff]
    %v108 = vld [vmem:[#allocation3 + $0x148] sm:$0xff]
    %v109 = vld [vmem:[#allocation3 + $0x150] sm:$0xff]
    %v110 = vld [vmem:[#allocation3 + $0x158] sm:$0xff]
    %v111 = vld [vmem:[#allocation3 + $0x160] sm:$0xff]
    %v112 = vld [vmem:[#allocation3 + $0x168] sm:$0xff]
    %v113 = vld [vmem:[#allocation3 + $0x170] sm:$0xff]
    %v114 = vld [vmem:[#allocation3 + $0x178] sm:$0xff]
    %v115 = vld [vmem:[#allocation3 + $0x180] sm:$0xff]
    %v116 = vld [vmem:[#allocation3 + $0x188] sm:$0xff]
    %v117 = vld [vmem:[#allocation3 + $0x190] sm:$0xff]
    %v118 = vld [vmem:[#allocation3 + $0x198] sm:$0xff]
    %v119 = vld [vmem:[#allocation3 + $0x1a0] sm:$0xff]
    %v120 = vld [vmem:[#allocation3 + $0x1a8] sm:$0xff]
    %v121 = vld [vmem:[#allocation3 + $0x1b0] sm:$0xff]
    %v122 = vld [vmem:[#allocation3 + $0x1b8] sm:$0xff]
    %v123 = vld [vmem:[#allocation3 + $0x1c0] sm:$0xff]
    %v124 = vld [vmem:[#allocation3 + $0x1c8] sm:$0xff]
    %v125 = vld [vmem:[#allocation3 + $0x1d0] sm:$0xff]
    %v126 = vld [vmem:[#allocation3 + $0x1d8] sm:$0xff]
    %v127 = vld [vmem:[#allocation3 + $0x1e0] sm:$0xff]
    %v128 = vld [vmem:[#allocation3 + $0x1e8] sm:$0xff]
    %v129 = vld [vmem:[#allocation3 + $0x1f0] sm:$0xff]
    %v130 = vld [vmem:[#allocation3 + $0x1f8] sm:$0xff]
    %v131 = vld [vmem:[#allocation3 + $0x200] sm:$0xff]
    %v132 = vld [vmem:[#allocation3 + $0x208] sm:$0xff]
    %v133 = vld [vmem:[#allocation3 + $0x210] sm:$0xff]
    %v134 = vld [vmem:[#allocation3 + $0x218] sm:$0xff]
    %v135 = vld [vmem:[#allocation3 + $0x220] sm:$0xff]
    %v136 = vld [vmem:[#allocation3 + $0x228] sm:$0xff]
    %v137 = vld [vmem:[#allocation3 + $0x230] sm:$0xff]
    %v138 = vld [vmem:[#allocation3 + $0x238] sm:$0xff]
    %v139 = vld [vmem:[#allocation3 + $0x240] sm:$0xff]
    %v140 = vld [vmem:[#allocation3 + $0x248] sm:$0xff]
    %v141 = vld [vmem:[#allocation3 + $0x250] sm:$0xff]
    %v142 = vld [vmem:[#allocation3 + $0x258] sm:$0xff]
    %v143 = vld [vmem:[#allocation3 + $0x260] sm:$0xff]
    %v144 = vld [vmem:[#allocation3 + $0x268] sm:$0xff]
    %v145 = vld [vmem:[#allocation3 + $0x270] sm:$0xff]
    %v146 = vld [vmem:[#allocation3 + $0x278] sm:$0xff]
    %v147 = vld [vmem:[#allocation3 + $0x280] sm:$0xff]
    %v148 = vld [vmem:[#allocation3 + $0x288] sm:$0xff]
    %v149 = vld [vmem:[#allocation3 + $0x290] sm:$0xff]
    %v150 = vld [vmem:[#allocation3 + $0x298] sm:$0xff]
    %v151 = vld [vmem:[#allocation3 + $0x2a0] sm:$0xff]
    %v152 = vld [vmem:[#allocation3 + $0x2a8] sm:$0xff]
    %v153 = vld [vmem:[#allocation3 + $0x2b0] sm:$0xff]
    %v154 = vld [vmem:[#allocation3 + $0x2b8] sm:$0xff]
    %v155 = vld [vmem:[#allocation3 + $0x2c0] sm:$0xff]
    %v156 = vld [vmem:[#allocation3 + $0x2c8] sm:$0xff]
    %v157 = vld [vmem:[#allocation3 + $0x2d0] sm:$0xff]
    %v158 = vld [vmem:[#allocation3 + $0x2d8] sm:$0xff]
    %v159 = vld [vmem:[#allocation3 + $0x2e0] sm:$0xff]
    %v160 = vld [vmem:[#allocation3 + $0x2e8] sm:$0xff]
    %v161 = vld [vmem:[#allocation3 + $0x2f0] sm:$0xff]
    %v162 = vld [vmem:[#allocation3 + $0x2f8] sm:$0xff]
    %v163 = vld [vmem:[#allocation3 + $0x300] sm:$0xff]
    %v164 = vld [vmem:[#allocation3 + $0x308] sm:$0xff]
    %v165 = vld [vmem:[#allocation3 + $0x310] sm:$0xff]
    %v166 = vld [vmem:[#allocation3 + $0x318] sm:$0xff]
    %v167 = vld [vmem:[#allocation3 + $0x320] sm:$0xff]
    %v168 = vld [vmem:[#allocation3 + $0x328] sm:$0xff]
    %v169 = vld [vmem:[#allocation3 + $0x330] sm:$0xff]
    %v170 = vld [vmem:[#allocation3 + $0x338] sm:$0xff]
    %v171 = vld [vmem:[#allocation3 + $0x340] sm:$0xff]
    %v172 = vld [vmem:[#allocation3 + $0x348] sm:$0xff]
    %v173 = vld [vmem:[#allocation3 + $0x350] sm:$0xff]
    %v174 = vld [vmem:[#allocation3 + $0x358] sm:$0xff]
    %v175 = vld [vmem:[%s2] sm:$0xff]
    %v176 = vld [vmem:[%s2 + $0x8] sm:$0xff]
    %v177 = vld [vmem:[%s2 + $0x10] sm:$0xff]
    %v178 = vld [vmem:[%s2 + $0x18] sm:$0xff]
    %v179 = vld [vmem:[%s2 + $0x20] sm:$0xff]
    %v180 = vld [vmem:[%s2 + $0x28] sm:$0xff]
    %v181 = vld [vmem:[%s2 + $0x30] sm:$0xff]
    %v182 = vld [vmem:[%s2 + $0x38] sm:$0xff]
    %v183 = vld [vmem:[%s2 + $0x40] sm:$0xff]
    %v184 = vld [vmem:[%s2 + $0x48] sm:$0xff]
    %v185 = vld [vmem:[%s2 + $0x50] sm:$0xff]
    %v186 = vld [vmem:[%s2 + $0x58] sm:$0xff]
    %v187 = vld [vmem:[%s2 + $0x60] sm:$0xff]
    %v188 = vld [vmem:[%s2 + $0x68] sm:$0xff]
    %v189 = vld [vmem:[%s2 + $0x70] sm:$0xff]
    %v190 = vld [vmem:[%s2 + $0x78] sm:$0xff]
    %191 = vmatprep.subr.mxu0 0.0
    %192 = vmatpush1.msra.mxu0 %v175
    %193 = vmatprep.subr.mxu0 0.0
    %194 = vmatpush1.msra.mxu0 %v176
    %195 = vmatprep.subr.mxu0 0.0
    %196 = vmatpush1.msra.mxu0 %v177
    %197 = vmatprep.subr.mxu0 0.0
    %198 = vmatpush1.msra.mxu0 %v178
    %199 = vmatprep.subr.mxu0 0.0
    %200 = vmatpush1.msra.mxu0 %v179
    %201 = vmatprep.subr.mxu0 0.0
    %202 = vmatpush1.msra.mxu0 %v180
    %203 = vmatprep.subr.mxu0 0.0
    %204 = vmatpush1.msra.mxu0 %v181
    %205 = vmatprep.subr.mxu0 0.0
    %206 = vmatpush1.msra.mxu0 %v182
    %207 = vmatprep.subr.mxu0 0.0
    %208 = vmatpush1.msra.mxu0 %v183
    %209 = vmatprep.subr.mxu0 0.0
    %210 = vmatpush1.msra.mxu0 %v184
    %211 = vmatprep.subr.mxu0 0.0
    %212 = vmatpush1.msra.mxu0 %v185
    %213 = vmatprep.subr.mxu0 0.0
    %214 = vmatpush1.msra.mxu0 %v186
    %215 = vmatprep.subr.mxu0 0.0
    %216 = vmatpush1.msra.mxu0 %v187
    %217 = vmatprep.subr.mxu0 0.0
    %218 = vmatpush1.msra.mxu0 %v188
    %219 = vmatprep.subr.mxu0 0.0
    %220 = vmatpush1.msra.mxu0 %v189
    %221 = vmatprep.subr.mxu0 0.0
    %222 = vmatpush1.msra.mxu0 %v190
    %223 = vmatprep.subr.mxu0 0.0
    %224 = vmatpush1.msra.mxu0 0.0
    %225 = vmatprep.subr.mxu0 0.0
    %226 = vmatpush1.msra.mxu0 0.0
    %227 = vmatprep.subr.mxu0 0.0
    %228 = vmatpush1.msra.mxu0 0.0
    %229 = vmatprep.subr.mxu0 0.0
    %230 = vmatpush1.msra.mxu0 0.0
    %231 = vmatprep.subr.mxu0 0.0
    %232 = vmatpush1.msra.mxu0 0.0
    %233 = vmatprep.subr.mxu0 0.0
    %234 = vmatpush1.msra.mxu0 0.0
    %235 = vmatprep.subr.mxu0 0.0
    %236 = vmatpush1.msra.mxu0 0.0
    %237 = vmatprep.subr.mxu0 0.0
    %238 = vmatpush1.msra.mxu0 0.0
    %239 = vmatprep.subr.mxu0 0.0
    %240 = vmatpush1.msra.mxu0 0.0
    %241 = vmatprep.subr.mxu0 0.0
    %242 = vmatpush1.msra.mxu0 0.0
    %243 = vmatprep.subr.mxu0 0.0
    %244 = vmatpush1.msra.mxu0 0.0
    %245 = vmatprep.subr.mxu0 0.0
    %246 = vmatpush1.msra.mxu0 0.0
    %247 = vmatprep.subr.mxu0 0.0
    %248 = vmatpush1.msra.mxu0 0.0
    %249 = vmatprep.subr.mxu0 0.0
    %250 = vmatpush1.msra.mxu0 0.0
    %251 = vmatprep.subr.mxu0 0.0
    %252 = vmatpush1.msra.mxu0 0.0
    %253 = vmatprep.subr.mxu0 0.0
    %254 = vmatpush1.msra.mxu0 0.0
    %255 = vmatprep.mubr.f32.mxu0 0.0
    %256 = vmatmul.mubr.f32.gmra.mrb[0].mxu0 %v67
    %v257 = vpop.f32.mrb[0].mxu0
    %v258 = vadd.f32 0.0, %v257
    %v259 = vpop.f32.mrb[0].mxu0
    %260 = vmatprep.mubr.f32.mxu0 0.0
    %261 = vmatmul.mubr.f32.gmra.mrb[0].mxu0 %v68
    %v262 = vpop.f32.mrb[0].mxu0
    %v263 = vadd.f32 0.0, %v262
    %v264 = vpop.f32.mrb[0].mxu0
    %265 = vmatprep.mubr.f32.mxu0 0.0
    %266 = vmatmul.mubr.f32.gmra.mrb[0].mxu0 %v69
    %v267 = vpop.f32.mrb[0].mxu0
    %v268 = vadd.f32 0.0, %v267
    %v269 = vpop.f32.mrb[0].mxu0
    %270 = vmatprep.mubr.f32.mxu0 0.0
    %271 = vmatmul.mubr.f32.gmra.mrb[0].mxu0 %v70
    %v272 = vpop.f32.mrb[0].mxu0
    %v273 = vadd.f32 0.0, %v272
    %v274 = vpop.f32.mrb[0].mxu0
    %275 = vmatprep.mubr.f32.mxu0 0.0
    %276 = vmatmul.mubr.f32.gmra.mrb[0].mxu0 %v71
    %v277 = vpop.f32.mrb[0].mxu0
    %v278 = vadd.f32 0.0, %v277
    %v279 = vpop.f32.mrb[0].mxu0
    %280 = vmatprep.mubr.f32.mxu0 0.0
    %281 = vmatmul.mubr.f32.gmra.mrb[0].mxu0 %v72
    %v282 = vpop.f32.mrb[0].mxu0
    %v283 = vadd.f32 0.0, %v282
    %v284 = vpop.f32.mrb[0].mxu0
    %285 = vmatprep.mubr.f32.mxu0 0.0
    %286 = vmatmul.mubr.f32.gmra.mrb[0].mxu0 %v73
    %v287 = vpop.f32.mrb[0].mxu0
    %v288 = vadd.f32 0.0, %v287
    %v289 = vpop.f32.mrb[0].mxu0
    %290 = vmatprep.mubr.f32.mxu0 0.0
    %291 = vmatmul.mubr.f32.gmra.mrb[0].mxu0 %v74
    %v292 = vpop.f32.mrb[0].mxu0
    %v293 = vadd.f32 0.0, %v292
    %v294 = vpop.f32.mrb[0].mxu0
    %295 = vmatprep.mubr.f32.mxu0 0.0
    %296 = vmatmul.mubr.f32.gmra.mrb[0].mxu0 %v75
    %v297 = vpop.f32.mrb[0].mxu0
    %v298 = vadd.f32 0.0, %v297
    %v299 = vpop.f32.mrb[0].mxu0
    %300 = vmatprep.mubr.f32.mxu0 0.0
    %301 = vmatmul.mubr.f32.gmra.mrb[0].mxu0 %v76
    %v302 = vpop.f32.mrb[0].mxu0
    %v303 = vadd.f32 0.0, %v302
    %v304 = vpop.f32.mrb[0].mxu0
    %305 = vmatprep.mubr.f32.mxu0 0.0
    %306 = vmatmul.mubr.f32.gmra.mrb[0].mxu0 %v77
    %v307 = vpop.f32.mrb[0].mxu0
    %v308 = vadd.f32 0.0, %v307
    %v309 = vpop.f32.mrb[0].mxu0
    %310 = vmatprep.mubr.f32.mxu0 0.0
    %311 = vmatmul.mubr.f32.gmra.mrb[0].mxu0 %v78
    %v312 = vpop.f32.mrb[0].mxu0
    %v313 = vadd.f32 0.0, %v312
    %v314 = vpop.f32.mrb[0].mxu0
    %315 = vmatprep.mubr.f32.mxu0 0.0
    %316 = vmatmul.mubr.f32.gmra.mrb[0].mxu0 %v79
    %v317 = vpop.f32.mrb[0].mxu0
    %v318 = vadd.f32 0.0, %v317
    %v319 = vpop.f32.mrb[0].mxu0
    %320 = vmatprep.mubr.f32.mxu0 0.0
    %321 = vmatmul.mubr.f32.gmra.mrb[0].mxu0 %v80
    %v322 = vpop.f32.mrb[0].mxu0
    %v323 = vadd.f32 0.0, %v322
    %v324 = vpop.f32.mrb[0].mxu0
    %325 = vmatprep.mubr.f32.mxu0 0.0
    %326 = vmatmul.mubr.f32.gmra.mrb[0].mxu0 %v81
    %v327 = vpop.f32.mrb[0].mxu0
    %v328 = vadd.f32 0.0, %v327
    %v329 = vpop.f32.mrb[0].mxu0
    %330 = vmatprep.mubr.f32.mxu0 0.0
    %331 = vmatmul.mubr.f32.gmra.mrb[0].mxu0 %v82
    %v332 = vpop.f32.mrb[0].mxu0
    %v333 = vadd.f32 0.0, %v332
    %v334 = vpop.f32.mrb[0].mxu0
    %335 = vmatprep.mubr.f32.mxu0 0.0
    %336 = vmatmul.mubr.f32.gmra.mrb[0].mxu0 %v83
    %v337 = vpop.f32.mrb[0].mxu0
    %v338 = vadd.f32 0.0, %v337
    %v339 = vpop.f32.mrb[0].mxu0
    %340 = vmatprep.mubr.f32.mxu0 0.0
    %341 = vmatmul.mubr.f32.gmra.mrb[0].mxu0 %v84
    %v342 = vpop.f32.mrb[0].mxu0
    %v343 = vadd.f32 0.0, %v342
    %v344 = vpop.f32.mrb[0].mxu0
    %345 = vmatprep.mubr.f32.mxu0 0.0
    %346 = vmatmul.mubr.f32.gmra.mrb[0].mxu0 %v85
    %v347 = vpop.f32.mrb[0].mxu0
    %v348 = vadd.f32 0.0, %v347
    %v349 = vpop.f32.mrb[0].mxu0
    %350 = vmatprep.mubr.f32.mxu0 0.0
    %351 = vmatmul.mubr.f32.gmra.mrb[0].mxu0 %v86
    %v352 = vpop.f32.mrb[0].mxu0
    %v353 = vadd.f32 0.0, %v352
    %v354 = vpop.f32.mrb[0].mxu0
    %355 = vmatprep.mubr.f32.mxu0 0.0
    %356 = vmatmul.mubr.f32.gmra.mrb[0].mxu0 %v87
    %v357 = vpop.f32.mrb[0].mxu0
    %v358 = vadd.f32 0.0, %v357
    %v359 = vpop.f32.mrb[0].mxu0
    %360 = vmatprep.mubr.f32.mxu0 0.0
    %361 = vmatmul.mubr.f32.gmra.mrb[0].mxu0 %v88
    %v362 = vpop.f32.mrb[0].mxu0
    %v363 = vadd.f32 0.0, %v362
    %v364 = vpop.f32.mrb[0].mxu0
    %365 = vmatprep.mubr.f32.mxu0 0.0
    %366 = vmatmul.mubr.f32.gmra.mrb[0].mxu0 %v89
    %v367 = vpop.f32.mrb[0].mxu0
    %v368 = vadd.f32 0.0, %v367
    %v369 = vpop.f32.mrb[0].mxu0
    %370 = vmatprep.mubr.f32.mxu0 0.0
    %371 = vmatmul.mubr.f32.gmra.mrb[0].mxu0 %v90
    %v372 = vpop.f32.mrb[0].mxu0
    %v373 = vadd.f32 0.0, %v372
    %v374 = vpop.f32.mrb[0].mxu0
    %375 = vmatprep.mubr.f32.mxu0 0.0
    %376 = vmatmul.mubr.f32.gmra.mrb[0].mxu0 %v91
    %v377 = vpop.f32.mrb[0].mxu0
    %v378 = vadd.f32 0.0, %v377
    %v379 = vpop.f32.mrb[0].mxu0
    %380 = vmatprep.mubr.f32.mxu0 0.0
    %381 = vmatmul.mubr.f32.gmra.mrb[0].mxu0 %v92
    %v382 = vpop.f32.mrb[0].mxu0
    %v383 = vadd.f32 0.0, %v382
    %v384 = vpop.f32.mrb[0].mxu0
    %385 = vmatprep.mubr.f32.mxu0 0.0
    %386 = vmatmul.mubr.f32.gmra.mrb[0].mxu0 %v93
    %v387 = vpop.f32.mrb[0].mxu0
    %v388 = vadd.f32 0.0, %v387
    %v389 = vpop.f32.mrb[0].mxu0
    %390 = vmatprep.mubr.f32.mxu0 0.0
    %391 = vmatmul.mubr.f32.gmra.mrb[0].mxu0 %v94
    %v392 = vpop.f32.mrb[0].mxu0
    %v393 = vadd.f32 0.0, %v392
    %v394 = vpop.f32.mrb[0].mxu0
    %395 = vmatprep.mubr.f32.mxu0 0.0
    %396 = vmatmul.mubr.f32.gmra.mrb[0].mxu0 %v95
    %v397 = vpop.f32.mrb[0].mxu0
    %v398 = vadd.f32 0.0, %v397
    %v399 = vpop.f32.mrb[0].mxu0
    %400 = vmatprep.mubr.f32.mxu0 0.0
    %401 = vmatmul.mubr.f32.gmra.mrb[0].mxu0 %v96
    %v402 = vpop.f32.mrb[0].mxu0
    %v403 = vadd.f32 0.0, %v402
    %v404 = vpop.f32.mrb[0].mxu0
    %405 = vmatprep.mubr.f32.mxu0 0.0
    %406 = vmatmul.mubr.f32.gmra.mrb[0].mxu0 %v97
    %v407 = vpop.f32.mrb[0].mxu0
    %v408 = vadd.f32 0.0, %v407
    %v409 = vpop.f32.mrb[0].mxu0
    %410 = vmatprep.mubr.f32.mxu0 0.0
    %411 = vmatmul.mubr.f32.gmra.mrb[0].mxu0 %v98
    %v412 = vpop.f32.mrb[0].mxu0
    %v413 = vadd.f32 0.0, %v412
    %v414 = vpop.f32.mrb[0].mxu0
    %415 = vmatprep.mubr.f32.mxu0 0.0
    %416 = vmatmul.mubr.f32.gmra.mrb[0].mxu0 %v99
    %v417 = vpop.f32.mrb[0].mxu0
    %v418 = vadd.f32 0.0, %v417
    %v419 = vpop.f32.mrb[0].mxu0
    %420 = vmatprep.mubr.f32.mxu0 0.0
    %421 = vmatmul.mubr.f32.gmra.mrb[0].mxu0 %v100
    %v422 = vpop.f32.mrb[0].mxu0
    %v423 = vadd.f32 0.0, %v422
    %v424 = vpop.f32.mrb[0].mxu0
    %425 = vmatprep.mubr.f32.mxu0 0.0
    %426 = vmatmul.mubr.f32.gmra.mrb[0].mxu0 %v101
    %v427 = vpop.f32.mrb[0].mxu0
    %v428 = vadd.f32 0.0, %v427
    %v429 = vpop.f32.mrb[0].mxu0
    %430 = vmatprep.mubr.f32.mxu0 0.0
    %431 = vmatmul.mubr.f32.gmra.mrb[0].mxu0 %v102
    %v432 = vpop.f32.mrb[0].mxu0
    %v433 = vadd.f32 0.0, %v432
    %v434 = vpop.f32.mrb[0].mxu0
    %435 = vmatprep.mubr.f32.mxu0 0.0
    %436 = vmatmul.mubr.f32.gmra.mrb[0].mxu0 %v103
    %v437 = vpop.f32.mrb[0].mxu0
    %v438 = vadd.f32 0.0, %v437
    %v439 = vpop.f32.mrb[0].mxu0
    %440 = vmatprep.mubr.f32.mxu0 0.0
    %441 = vmatmul.mubr.f32.gmra.mrb[0].mxu0 %v104
    %v442 = vpop.f32.mrb[0].mxu0
    %v443 = vadd.f32 0.0, %v442
    %v444 = vpop.f32.mrb[0].mxu0
    %445 = vmatprep.mubr.f32.mxu0 0.0
    %446 = vmatmul.mubr.f32.gmra.mrb[0].mxu0 %v105
    %v447 = vpop.f32.mrb[0].mxu0
    %v448 = vadd.f32 0.0, %v447
    %v449 = vpop.f32.mrb[0].mxu0
    %450 = vmatprep.mubr.f32.mxu0 0.0
    %451 = vmatmul.mubr.f32.gmra.mrb[0].mxu0 %v106
    %v452 = vpop.f32.mrb[0].mxu0
    %v453 = vadd.f32 0.0, %v452
    %v454 = vpop.f32.mrb[0].mxu0
    %455 = vmatprep.mubr.f32.mxu0 0.0
    %456 = vmatmul.mubr.f32.gmra.mrb[0].mxu0 %v107
    %v457 = vpop.f32.mrb[0].mxu0
    %v458 = vadd.f32 0.0, %v457
    %v459 = vpop.f32.mrb[0].mxu0
    %460 = vmatprep.mubr.f32.mxu0 0.0
    %461 = vmatmul.mubr.f32.gmra.mrb[0].mxu0 %v108
    %v462 = vpop.f32.mrb[0].mxu0
    %v463 = vadd.f32 0.0, %v462
    %v464 = vpop.f32.mrb[0].mxu0
    %465 = vmatprep.mubr.f32.mxu0 0.0
    %466 = vmatmul.mubr.f32.gmra.mrb[0].mxu0 %v109
    %v467 = vpop.f32.mrb[0].mxu0
    %v468 = vadd.f32 0.0, %v467
    %v469 = vpop.f32.mrb[0].mxu0
    %470 = vmatprep.mubr.f32.mxu0 0.0
    %471 = vmatmul.mubr.f32.gmra.mrb[0].mxu0 %v110
    %v472 = vpop.f32.mrb[0].mxu0
    %v473 = vadd.f32 0.0, %v472
    %v474 = vpop.f32.mrb[0].mxu0
    %475 = vmatprep.mubr.f32.mxu0 0.0
    %476 = vmatmul.mubr.f32.gmra.mrb[0].mxu0 %v111
    %v477 = vpop.f32.mrb[0].mxu0
    %v478 = vadd.f32 0.0, %v477
    %v479 = vpop.f32.mrb[0].mxu0
    %480 = vmatprep.mubr.f32.mxu0 0.0
    %481 = vmatmul.mubr.f32.gmra.mrb[0].mxu0 %v112
    %v482 = vpop.f32.mrb[0].mxu0
    %v483 = vadd.f32 0.0, %v482
    %v484 = vpop.f32.mrb[0].mxu0
    %485 = vmatprep.mubr.f32.mxu0 0.0
    %486 = vmatmul.mubr.f32.gmra.mrb[0].mxu0 %v113
    %v487 = vpop.f32.mrb[0].mxu0
    %v488 = vadd.f32 0.0, %v487
    %v489 = vpop.f32.mrb[0].mxu0
    %490 = vmatprep.mubr.f32.mxu0 0.0
    %491 = vmatmul.mubr.f32.gmra.mrb[0].mxu0 %v114
    %v492 = vpop.f32.mrb[0].mxu0
    %v493 = vadd.f32 0.0, %v492
    %v494 = vpop.f32.mrb[0].mxu0
    %495 = vmatprep.mubr.f32.mxu0 0.0
    %496 = vmatmul.mubr.f32.gmra.mrb[0].mxu0 %v115
    %v497 = vpop.f32.mrb[0].mxu0
    %v498 = vadd.f32 0.0, %v497
    %v499 = vpop.f32.mrb[0].mxu0
    %500 = vmatprep.mubr.f32.mxu0 0.0
    %501 = vmatmul.mubr.f32.gmra.mrb[0].mxu0 %v116
    %v502 = vpop.f32.mrb[0].mxu0
    %v503 = vadd.f32 0.0, %v502
    %v504 = vpop.f32.mrb[0].mxu0
    %505 = vmatprep.mubr.f32.mxu0 0.0
    %506 = vmatmul.mubr.f32.gmra.mrb[0].mxu0 %v117
    %v507 = vpop.f32.mrb[0].mxu0
    %v508 = vadd.f32 0.0, %v507
    %v509 = vpop.f32.mrb[0].mxu0
    %510 = vmatprep.mubr.f32.mxu0 0.0
    %511 = vmatmul.mubr.f32.gmra.mrb[0].mxu0 %v118
    %v512 = vpop.f32.mrb[0].mxu0
    %v513 = vadd.f32 0.0, %v512
    %v514 = vpop.f32.mrb[0].mxu0
    %515 = vmatprep.mubr.f32.mxu0 0.0
    %516 = vmatmul.mubr.f32.gmra.mrb[0].mxu0 %v119
    %v517 = vpop.f32.mrb[0].mxu0
    %v518 = vadd.f32 0.0, %v517
    %v519 = vpop.f32.mrb[0].mxu0
    %520 = vmatprep.mubr.f32.mxu0 0.0
    %521 = vmatmul.mubr.f32.gmra.mrb[0].mxu0 %v120
    %v522 = vpop.f32.mrb[0].mxu0
    %v523 = vadd.f32 0.0, %v522
    %v524 = vpop.f32.mrb[0].mxu0
    %525 = vmatprep.mubr.f32.mxu0 0.0
    %526 = vmatmul.mubr.f32.gmra.mrb[0].mxu0 %v121
    %v527 = vpop.f32.mrb[0].mxu0
    %v528 = vadd.f32 0.0, %v527
    %v529 = vpop.f32.mrb[0].mxu0
    %530 = vmatprep.mubr.f32.mxu0 0.0
    %531 = vmatmul.mubr.f32.gmra.mrb[0].mxu0 %v122
    %v532 = vpop.f32.mrb[0].mxu0
    %v533 = vadd.f32 0.0, %v532
    %v534 = vpop.f32.mrb[0].mxu0
    %535 = vmatprep.mubr.f32.mxu0 0.0
    %536 = vmatmul.mubr.f32.gmra.mrb[0].mxu0 %v123
    %v537 = vpop.f32.mrb[0].mxu0
    %v538 = vadd.f32 0.0, %v537
    %v539 = vpop.f32.mrb[0].mxu0
    %540 = vmatprep.mubr.f32.mxu0 0.0
    %541 = vmatmul.mubr.f32.gmra.mrb[0].mxu0 %v124
    %v542 = vpop.f32.mrb[0].mxu0
    %v543 = vadd.f32 0.0, %v542
    %v544 = vpop.f32.mrb[0].mxu0
    %545 = vmatprep.mubr.f32.mxu0 0.0
    %546 = vmatmul.mubr.f32.gmra.mrb[0].mxu0 %v125
    %v547 = vpop.f32.mrb[0].mxu0
    %v548 = vadd.f32 0.0, %v547
    %v549 = vpop.f32.mrb[0].mxu0
    %550 = vmatprep.mubr.f32.mxu0 0.0
    %551 = vmatmul.mubr.f32.gmra.mrb[0].mxu0 %v126
    %v552 = vpop.f32.mrb[0].mxu0
    %v553 = vadd.f32 0.0, %v552
    %v554 = vpop.f32.mrb[0].mxu0
    %555 = vmatprep.mubr.f32.mxu0 0.0
    %556 = vmatmul.mubr.f32.gmra.mrb[0].mxu0 %v127
    %v557 = vpop.f32.mrb[0].mxu0
    %v558 = vadd.f32 0.0, %v557
    %v559 = vpop.f32.mrb[0].mxu0
    %560 = vmatprep.mubr.f32.mxu0 0.0
    %561 = vmatmul.mubr.f32.gmra.mrb[0].mxu0 %v128
    %v562 = vpop.f32.mrb[0].mxu0
    %v563 = vadd.f32 0.0, %v562
    %v564 = vpop.f32.mrb[0].mxu0
    %565 = vmatprep.mubr.f32.mxu0 0.0
    %566 = vmatmul.mubr.f32.gmra.mrb[0].mxu0 %v129
    %v567 = vpop.f32.mrb[0].mxu0
    %v568 = vadd.f32 0.0, %v567
    %v569 = vpop.f32.mrb[0].mxu0
    %570 = vmatprep.mubr.f32.mxu0 0.0
    %571 = vmatmul.mubr.f32.gmra.mrb[0].mxu0 %v130
    %v572 = vpop.f32.mrb[0].mxu0
    %v573 = vadd.f32 0.0, %v572
    %v574 = vpop.f32.mrb[0].mxu0
    %575 = vmatprep.mubr.f32.mxu0 0.0
    %576 = vmatmul.mubr.f32.gmra.mrb[0].mxu0 %v131
    %v577 = vpop.f32.mrb[0].mxu0
    %v578 = vadd.f32 0.0, %v577
    %v579 = vpop.f32.mrb[0].mxu0
    %580 = vmatprep.mubr.f32.mxu0 0.0
    %581 = vmatmul.mubr.f32.gmra.mrb[0].mxu0 %v132
    %v582 = vpop.f32.mrb[0].mxu0
    %v583 = vadd.f32 0.0, %v582
    %v584 = vpop.f32.mrb[0].mxu0
    %585 = vmatprep.mubr.f32.mxu0 0.0
    %586 = vmatmul.mubr.f32.gmra.mrb[0].mxu0 %v133
    %v587 = vpop.f32.mrb[0].mxu0
    %v588 = vadd.f32 0.0, %v587
    %v589 = vpop.f32.mrb[0].mxu0
    %590 = vmatprep.mubr.f32.mxu0 0.0
    %591 = vmatmul.mubr.f32.gmra.mrb[0].mxu0 %v134
    %v592 = vpop.f32.mrb[0].mxu0
    %v593 = vadd.f32 0.0, %v592
    %v594 = vpop.f32.mrb[0].mxu0
    %595 = vmatprep.mubr.f32.mxu0 0.0
    %596 = vmatmul.mubr.f32.gmra.mrb[0].mxu0 %v135
    %v597 = vpop.f32.mrb[0].mxu0
    %v598 = vadd.f32 0.0, %v597
    %v599 = vpop.f32.mrb[0].mxu0
    %600 = vmatprep.mubr.f32.mxu0 0.0
    %601 = vmatmul.mubr.f32.gmra.mrb[0].mxu0 %v136
    %v602 = vpop.f32.mrb[0].mxu0
    %v603 = vadd.f32 0.0, %v602
    %v604 = vpop.f32.mrb[0].mxu0
    %605 = vmatprep.mubr.f32.mxu0 0.0
    %606 = vmatmul.mubr.f32.gmra.mrb[0].mxu0 %v137
    %v607 = vpop.f32.mrb[0].mxu0
    %v608 = vadd.f32 0.0, %v607
    %v609 = vpop.f32.mrb[0].mxu0
    %610 = vmatprep.mubr.f32.mxu0 0.0
    %611 = vmatmul.mubr.f32.gmra.mrb[0].mxu0 %v138
    %v612 = vpop.f32.mrb[0].mxu0
    %v613 = vadd.f32 0.0, %v612
    %v614 = vpop.f32.mrb[0].mxu0
    %615 = vmatprep.mubr.f32.mxu0 0.0
    %616 = vmatmul.mubr.f32.gmra.mrb[0].mxu0 %v139
    %v617 = vpop.f32.mrb[0].mxu0
    %v618 = vadd.f32 0.0, %v617
    %v619 = vpop.f32.mrb[0].mxu0
    %620 = vmatprep.mubr.f32.mxu0 0.0
    %621 = vmatmul.mubr.f32.gmra.mrb[0].mxu0 %v140
    %v622 = vpop.f32.mrb[0].mxu0
    %v623 = vadd.f32 0.0, %v622
    %v624 = vpop.f32.mrb[0].mxu0
    %625 = vmatprep.mubr.f32.mxu0 0.0
    %626 = vmatmul.mubr.f32.gmra.mrb[0].mxu0 %v141
    %v627 = vpop.f32.mrb[0].mxu0
    %v628 = vadd.f32 0.0, %v627
    %v629 = vpop.f32.mrb[0].mxu0
    %630 = vmatprep.mubr.f32.mxu0 0.0
    %631 = vmatmul.mubr.f32.gmra.mrb[0].mxu0 %v142
    %v632 = vpop.f32.mrb[0].mxu0
    %v633 = vadd.f32 0.0, %v632
    %v634 = vpop.f32.mrb[0].mxu0
    %635 = vmatprep.mubr.f32.mxu0 0.0
    %636 = vmatmul.mubr.f32.gmra.mrb[0].mxu0 %v143
    %v637 = vpop.f32.mrb[0].mxu0
    %v638 = vadd.f32 0.0, %v637
    %v639 = vpop.f32.mrb[0].mxu0
    %640 = vmatprep.mubr.f32.mxu0 0.0
    %641 = vmatmul.mubr.f32.gmra.mrb[0].mxu0 %v144
    %v642 = vpop.f32.mrb[0].mxu0
    %v643 = vadd.f32 0.0, %v642
    %v644 = vpop.f32.mrb[0].mxu0
    %645 = vmatprep.mubr.f32.mxu0 0.0
    %646 = vmatmul.mubr.f32.gmra.mrb[0].mxu0 %v145
    %v647 = vpop.f32.mrb[0].mxu0
    %v648 = vadd.f32 0.0, %v647
    %v649 = vpop.f32.mrb[0].mxu0
    %650 = vmatprep.mubr.f32.mxu0 0.0
    %651 = vmatmul.mubr.f32.gmra.mrb[0].mxu0 %v146
    %v652 = vpop.f32.mrb[0].mxu0
    %v653 = vadd.f32 0.0, %v652
    %v654 = vpop.f32.mrb[0].mxu0
    %655 = vmatprep.mubr.f32.mxu0 0.0
    %656 = vmatmul.mubr.f32.gmra.mrb[0].mxu0 %v147
    %v657 = vpop.f32.mrb[0].mxu0
    %v658 = vadd.f32 0.0, %v657
    %v659 = vpop.f32.mrb[0].mxu0
    %660 = vmatprep.mubr.f32.mxu0 0.0
    %661 = vmatmul.mubr.f32.gmra.mrb[0].mxu0 %v148
    %v662 = vpop.f32.mrb[0].mxu0
    %v663 = vadd.f32 0.0, %v662
    %v664 = vpop.f32.mrb[0].mxu0
    %665 = vmatprep.mubr.f32.mxu0 0.0
    %666 = vmatmul.mubr.f32.gmra.mrb[0].mxu0 %v149
    %v667 = vpop.f32.mrb[0].mxu0
    %v668 = vadd.f32 0.0, %v667
    %v669 = vpop.f32.mrb[0].mxu0
    %670 = vmatprep.mubr.f32.mxu0 0.0
    %671 = vmatmul.mubr.f32.gmra.mrb[0].mxu0 %v150
    %v672 = vpop.f32.mrb[0].mxu0
    %v673 = vadd.f32 0.0, %v672
    %v674 = vpop.f32.mrb[0].mxu0
    %675 = vmatprep.mubr.f32.mxu0 0.0
    %676 = vmatmul.mubr.f32.gmra.mrb[0].mxu0 %v151
    %v677 = vpop.f32.mrb[0].mxu0
    %v678 = vadd.f32 0.0, %v677
    %v679 = vpop.f32.mrb[0].mxu0
    %680 = vmatprep.mubr.f32.mxu0 0.0
    %681 = vmatmul.mubr.f32.gmra.mrb[0].mxu0 %v152
    %v682 = vpop.f32.mrb[0].mxu0
    %v683 = vadd.f32 0.0, %v682
    %v684 = vpop.f32.mrb[0].mxu0
    %685 = vmatprep.mubr.f32.mxu0 0.0
    %686 = vmatmul.mubr.f32.gmra.mrb[0].mxu0 %v153
    %v687 = vpop.f32.mrb[0].mxu0
    %v688 = vadd.f32 0.0, %v687
    %v689 = vpop.f32.mrb[0].mxu0
    %690 = vmatprep.mubr.f32.mxu0 0.0
    %691 = vmatmul.mubr.f32.gmra.mrb[0].mxu0 %v154
    %v692 = vpop.f32.mrb[0].mxu0
    %v693 = vadd.f32 0.0, %v692
    %v694 = vpop.f32.mrb[0].mxu0
    %695 = vmatprep.mubr.f32.mxu0 0.0
    %696 = vmatmul.mubr.f32.gmra.mrb[0].mxu0 %v155
    %v697 = vpop.f32.mrb[0].mxu0
    %v698 = vadd.f32 0.0, %v697
    %v699 = vpop.f32.mrb[0].mxu0
    %700 = vmatprep.mubr.f32.mxu0 0.0
    %701 = vmatmul.mubr.f32.gmra.mrb[0].mxu0 %v156
    %v702 = vpop.f32.mrb[0].mxu0
    %v703 = vadd.f32 0.0, %v702
    %v704 = vpop.f32.mrb[0].mxu0
    %705 = vmatprep.mubr.f32.mxu0 0.0
    %706 = vmatmul.mubr.f32.gmra.mrb[0].mxu0 %v157
    %v707 = vpop.f32.mrb[0].mxu0
    %v708 = vadd.f32 0.0, %v707
    %v709 = vpop.f32.mrb[0].mxu0
    %710 = vmatprep.mubr.f32.mxu0 0.0
    %711 = vmatmul.mubr.f32.gmra.mrb[0].mxu0 %v158
    %v712 = vpop.f32.mrb[0].mxu0
    %v713 = vadd.f32 0.0, %v712
    %v714 = vpop.f32.mrb[0].mxu0
    %715 = vmatprep.mubr.f32.mxu0 0.0
    %716 = vmatmul.mubr.f32.gmra.mrb[0].mxu0 %v159
    %v717 = vpop.f32.mrb[0].mxu0
    %v718 = vadd.f32 0.0, %v717
    %v719 = vpop.f32.mrb[0].mxu0
    %720 = vmatprep.mubr.f32.mxu0 0.0
    %721 = vmatmul.mubr.f32.gmra.mrb[0].mxu0 %v160
    %v722 = vpop.f32.mrb[0].mxu0
    %v723 = vadd.f32 0.0, %v722
    %v724 = vpop.f32.mrb[0].mxu0
    %725 = vmatprep.mubr.f32.mxu0 0.0
    %726 = vmatmul.mubr.f32.gmra.mrb[0].mxu0 %v161
    %v727 = vpop.f32.mrb[0].mxu0
    %v728 = vadd.f32 0.0, %v727
    %v729 = vpop.f32.mrb[0].mxu0
    %730 = vmatprep.mubr.f32.mxu0 0.0
    %731 = vmatmul.mubr.f32.gmra.mrb[0].mxu0 %v162
    %v732 = vpop.f32.mrb[0].mxu0
    %v733 = vadd.f32 0.0, %v732
    %v734 = vpop.f32.mrb[0].mxu0
    %735 = vmatprep.mubr.f32.mxu0 0.0
    %736 = vmatmul.mubr.f32.gmra.mrb[0].mxu0 %v163
    %v737 = vpop.f32.mrb[0].mxu0
    %v738 = vadd.f32 0.0, %v737
    %v739 = vpop.f32.mrb[0].mxu0
    %740 = vmatprep.mubr.f32.mxu0 0.0
    %741 = vmatmul.mubr.f32.gmra.mrb[0].mxu0 %v164
    %v742 = vpop.f32.mrb[0].mxu0
    %v743 = vadd.f32 0.0, %v742
    %v744 = vpop.f32.mrb[0].mxu0
    %745 = vmatprep.mubr.f32.mxu0 0.0
    %746 = vmatmul.mubr.f32.gmra.mrb[0].mxu0 %v165
    %v747 = vpop.f32.mrb[0].mxu0
    %v748 = vadd.f32 0.0, %v747
    %v749 = vpop.f32.mrb[0].mxu0
    %750 = vmatprep.mubr.f32.mxu0 0.0
    %751 = vmatmul.mubr.f32.gmra.mrb[0].mxu0 %v166
    %v752 = vpop.f32.mrb[0].mxu0
    %v753 = vadd.f32 0.0, %v752
    %v754 = vpop.f32.mrb[0].mxu0
    %755 = vmatprep.mubr.f32.mxu0 0.0
    %756 = vmatmul.mubr.f32.gmra.mrb[0].mxu0 %v167
    %v757 = vpop.f32.mrb[0].mxu0
    %v758 = vadd.f32 0.0, %v757
    %v759 = vpop.f32.mrb[0].mxu0
    %760 = vmatprep.mubr.f32.mxu0 0.0
    %761 = vmatmul.mubr.f32.gmra.mrb[0].mxu0 %v168
    %v762 = vpop.f32.mrb[0].mxu0
    %v763 = vadd.f32 0.0, %v762
    %v764 = vpop.f32.mrb[0].mxu0
    %765 = vmatprep.mubr.f32.mxu0 0.0
    %766 = vmatmul.mubr.f32.gmra.mrb[0].mxu0 %v169
    %v767 = vpop.f32.mrb[0].mxu0
    %v768 = vadd.f32 0.0, %v767
    %v769 = vpop.f32.mrb[0].mxu0
    %770 = vmatprep.mubr.f32.mxu0 0.0
    %771 = vmatmul.mubr.f32.gmra.mrb[0].mxu0 %v170
    %v772 = vpop.f32.mrb[0].mxu0
    %v773 = vadd.f32 0.0, %v772
    %v774 = vpop.f32.mrb[0].mxu0
    %775 = vmatprep.mubr.f32.mxu0 0.0
    %776 = vmatmul.mubr.f32.gmra.mrb[0].mxu0 %v171
    %v777 = vpop.f32.mrb[0].mxu0
    %v778 = vadd.f32 0.0, %v777
    %v779 = vpop.f32.mrb[0].mxu0
    %780 = vmatprep.mubr.f32.mxu0 0.0
    %781 = vmatmul.mubr.f32.gmra.mrb[0].mxu0 %v172
    %v782 = vpop.f32.mrb[0].mxu0
    %v783 = vadd.f32 0.0, %v782
    %v784 = vpop.f32.mrb[0].mxu0
    %785 = vmatprep.mubr.f32.mxu0 0.0
    %786 = vmatmul.mubr.f32.gmra.mrb[0].mxu0 %v173
    %v787 = vpop.f32.mrb[0].mxu0
    %v788 = vadd.f32 0.0, %v787
    %v789 = vpop.f32.mrb[0].mxu0
    %790 = vmatprep.mubr.f32.mxu0 0.0
    %791 = vmatmul.mubr.f32.gmra.mrb[0].mxu0 %v174
    %v792 = vpop.f32.mrb[0].mxu0
    %v793 = vadd.f32 0.0, %v792
    %v794 = vpop.f32.mrb[0].mxu0
    %795 = vdwg.mxu0
    %v796 = vld [vmem:[%s3] sm:$0x1]
    %v798 = vlaneseq
    %v799 = vshrl.u32 %v798, 7
    %v800 = vsub.s32 0, %v799
    %v801 = vrot.slane %v796, %v800
    %v803 = vmul.f32 %v258, %v801
    %v804 = vmul.f32 %v263, %v801
    %v805 = vmul.f32 %v268, %v801
    %v806 = vmul.f32 %v273, %v801
    %v807 = vmul.f32 %v278, %v801
    %v808 = vmul.f32 %v283, %v801
    %v809 = vmul.f32 %v288, %v801
    %v810 = vmul.f32 %v293, %v801
    %v811 = vmul.f32 %v298, %v801
    %v812 = vmul.f32 %v303, %v801
    %v813 = vmul.f32 %v308, %v801
    %v814 = vmul.f32 %v313, %v801
    %v815 = vmul.f32 %v318, %v801
    %v816 = vmul.f32 %v323, %v801
    %v817 = vmul.f32 %v328, %v801
    %v818 = vmul.f32 %v333, %v801
    %v819 = vmul.f32 %v338, %v801
    %v820 = vmul.f32 %v343, %v801
    %v821 = vmul.f32 %v348, %v801
    %v822 = vmul.f32 %v353, %v801
    %v823 = vmul.f32 %v358, %v801
    %v824 = vmul.f32 %v363, %v801
    %v825 = vmul.f32 %v368, %v801
    %v826 = vmul.f32 %v373, %v801
    %v827 = vmul.f32 %v378, %v801
    %v828 = vmul.f32 %v383, %v801
    %v829 = vmul.f32 %v388, %v801
    %v830 = vmul.f32 %v393, %v801
    %v831 = vmul.f32 %v398, %v801
    %v832 = vmul.f32 %v403, %v801
    %v833 = vmul.f32 %v408, %v801
    %v834 = vmul.f32 %v413, %v801
    %v835 = vmul.f32 %v418, %v801
    %v836 = vmul.f32 %v423, %v801
    %v837 = vmul.f32 %v428, %v801
    %v838 = vmul.f32 %v433, %v801
    %v839 = vmul.f32 %v438, %v801
    %v840 = vmul.f32 %v443, %v801
    %v841 = vmul.f32 %v448, %v801
    %v842 = vmul.f32 %v453, %v801
    %v843 = vmul.f32 %v458, %v801
    %v844 = vmul.f32 %v463, %v801
    %v845 = vmul.f32 %v468, %v801
    %v846 = vmul.f32 %v473, %v801
    %v847 = vmul.f32 %v478, %v801
    %v848 = vmul.f32 %v483, %v801
    %v849 = vmul.f32 %v488, %v801
    %v850 = vmul.f32 %v493, %v801
    %v851 = vmul.f32 %v498, %v801
    %v852 = vmul.f32 %v503, %v801
    %v853 = vmul.f32 %v508, %v801
    %v854 = vmul.f32 %v513, %v801
    %v855 = vmul.f32 %v518, %v801
    %v856 = vmul.f32 %v523, %v801
    %v857 = vmul.f32 %v528, %v801
    %v858 = vmul.f32 %v533, %v801
    %v859 = vmul.f32 %v538, %v801
    %v860 = vmul.f32 %v543, %v801
    %v861 = vmul.f32 %v548, %v801
    %v862 = vmul.f32 %v553, %v801
    %v863 = vmul.f32 %v558, %v801
    %v864 = vmul.f32 %v563, %v801
    %v865 = vmul.f32 %v568, %v801
    %v866 = vmul.f32 %v573, %v801
    %v867 = vmul.f32 %v578, %v801
    %v868 = vmul.f32 %v583, %v801
    %v869 = vmul.f32 %v588, %v801
    %v870 = vmul.f32 %v593, %v801
    %v871 = vmul.f32 %v598, %v801
    %v872 = vmul.f32 %v603, %v801
    %v873 = vmul.f32 %v608, %v801
    %v874 = vmul.f32 %v613, %v801
    %v875 = vmul.f32 %v618, %v801
    %v876 = vmul.f32 %v623, %v801
    %v877 = vmul.f32 %v628, %v801
    %v878 = vmul.f32 %v633, %v801
    %v879 = vmul.f32 %v638, %v801
    %v880 = vmul.f32 %v643, %v801
    %v881 = vmul.f32 %v648, %v801
    %v882 = vmul.f32 %v653, %v801
    %v883 = vmul.f32 %v658, %v801
    %v884 = vmul.f32 %v663, %v801
    %v885 = vmul.f32 %v668, %v801
    %v886 = vmul.f32 %v673, %v801
    %v887 = vmul.f32 %v678, %v801
    %v888 = vmul.f32 %v683, %v801
    %v889 = vmul.f32 %v688, %v801
    %v890 = vmul.f32 %v693, %v801
    %v891 = vmul.f32 %v698, %v801
    %v892 = vmul.f32 %v703, %v801
    %v893 = vmul.f32 %v708, %v801
    %v894 = vmul.f32 %v713, %v801
    %v895 = vmul.f32 %v718, %v801
    %v896 = vmul.f32 %v723, %v801
    %v897 = vmul.f32 %v728, %v801
    %v898 = vmul.f32 %v733, %v801
    %v899 = vmul.f32 %v738, %v801
    %v900 = vmul.f32 %v743, %v801
    %v901 = vmul.f32 %v748, %v801
    %v902 = vmul.f32 %v753, %v801
    %v903 = vmul.f32 %v758, %v801
    %v904 = vmul.f32 %v763, %v801
    %v905 = vmul.f32 %v768, %v801
    %v906 = vmul.f32 %v773, %v801
    %v907 = vmul.f32 %v778, %v801
    %v908 = vmul.f32 %v783, %v801
    %v909 = vmul.f32 %v788, %v801
    %v910 = vmul.f32 %v793, %v801
    %v911 = vld [vmem:[%s4] sm:$0x1]
    %v913 = vlaneseq
    %v914 = vshrl.u32 %v913, 7
    %v915 = vsub.s32 0, %v914
    %v916 = vrot.slane %v911, %v915
    %v918 = vadd.f32 %v803, %v916
    %v919 = vadd.f32 %v804, %v916
    %v920 = vadd.f32 %v805, %v916
    %v921 = vadd.f32 %v806, %v916
    %v922 = vadd.f32 %v807, %v916
    %v923 = vadd.f32 %v808, %v916
    %v924 = vadd.f32 %v809, %v916
    %v925 = vadd.f32 %v810, %v916
    %v926 = vadd.f32 %v811, %v916
    %v927 = vadd.f32 %v812, %v916
    %v928 = vadd.f32 %v813, %v916
    %v929 = vadd.f32 %v814, %v916
    %v930 = vadd.f32 %v815, %v916
    %v931 = vadd.f32 %v816, %v916
    %v932 = vadd.f32 %v817, %v916
    %v933 = vadd.f32 %v818, %v916
    %v934 = vadd.f32 %v819, %v916
    %v935 = vadd.f32 %v820, %v916
    %v936 = vadd.f32 %v821, %v916
    %v937 = vadd.f32 %v822, %v916
    %v938 = vadd.f32 %v823, %v916
    %v939 = vadd.f32 %v824, %v916
    %v940 = vadd.f32 %v825, %v916
    %v941 = vadd.f32 %v826, %v916
    %v942 = vadd.f32 %v827, %v916
    %v943 = vadd.f32 %v828, %v916
    %v944 = vadd.f32 %v829, %v916
    %v945 = vadd.f32 %v830, %v916
    %v946 = vadd.f32 %v831, %v916
    %v947 = vadd.f32 %v832, %v916
    %v948 = vadd.f32 %v833, %v916
    %v949 = vadd.f32 %v834, %v916
    %v950 = vadd.f32 %v835, %v916
    %v951 = vadd.f32 %v836, %v916
    %v952 = vadd.f32 %v837, %v916
    %v953 = vadd.f32 %v838, %v916
    %v954 = vadd.f32 %v839, %v916
    %v955 = vadd.f32 %v840, %v916
    %v956 = vadd.f32 %v841, %v916
    %v957 = vadd.f32 %v842, %v916
    %v958 = vadd.f32 %v843, %v916
    %v959 = vadd.f32 %v844, %v916
    %v960 = vadd.f32 %v845, %v916
    %v961 = vadd.f32 %v846, %v916
    %v962 = vadd.f32 %v847, %v916
    %v963 = vadd.f32 %v848, %v916
    %v964 = vadd.f32 %v849, %v916
    %v965 = vadd.f32 %v850, %v916
    %v966 = vadd.f32 %v851, %v916
    %v967 = vadd.f32 %v852, %v916
    %v968 = vadd.f32 %v853, %v916
    %v969 = vadd.f32 %v854, %v916
    %v970 = vadd.f32 %v855, %v916
    %v971 = vadd.f32 %v856, %v916
    %v972 = vadd.f32 %v857, %v916
    %v973 = vadd.f32 %v858, %v916
    %v974 = vadd.f32 %v859, %v916
    %v975 = vadd.f32 %v860, %v916
    %v976 = vadd.f32 %v861, %v916
    %v977 = vadd.f32 %v862, %v916
    %v978 = vadd.f32 %v863, %v916
    %v979 = vadd.f32 %v864, %v916
    %v980 = vadd.f32 %v865, %v916
    %v981 = vadd.f32 %v866, %v916
    %v982 = vadd.f32 %v867, %v916
    %v983 = vadd.f32 %v868, %v916
    %v984 = vadd.f32 %v869, %v916
    %v985 = vadd.f32 %v870, %v916
    %v986 = vadd.f32 %v871, %v916
    %v987 = vadd.f32 %v872, %v916
    %v988 = vadd.f32 %v873, %v916
    %v989 = vadd.f32 %v874, %v916
    %v990 = vadd.f32 %v875, %v916
    %v991 = vadd.f32 %v876, %v916
    %v992 = vadd.f32 %v877, %v916
    %v993 = vadd.f32 %v878, %v916
    %v994 = vadd.f32 %v879, %v916
    %v995 = vadd.f32 %v880, %v916
    %v996 = vadd.f32 %v881, %v916
    %v997 = vadd.f32 %v882, %v916
    %v998 = vadd.f32 %v883, %v916
    %v999 = vadd.f32 %v884, %v916
    %v1000 = vadd.f32 %v885, %v916
    %v1001 = vadd.f32 %v886, %v916
    %v1002 = vadd.f32 %v887, %v916
    %v1003 = vadd.f32 %v888, %v916
    %v1004 = vadd.f32 %v889, %v916
    %v1005 = vadd.f32 %v890, %v916
    %v1006 = vadd.f32 %v891, %v916
    %v1007 = vadd.f32 %v892, %v916
    %v1008 = vadd.f32 %v893, %v916
    %v1009 = vadd.f32 %v894, %v916
    %v1010 = vadd.f32 %v895, %v916
    %v1011 = vadd.f32 %v896, %v916
    %v1012 = vadd.f32 %v897, %v916
    %v1013 = vadd.f32 %v898, %v916
    %v1014 = vadd.f32 %v899, %v916
    %v1015 = vadd.f32 %v900, %v916
    %v1016 = vadd.f32 %v901, %v916
    %v1017 = vadd.f32 %v902, %v916
    %v1018 = vadd.f32 %v903, %v916
    %v1019 = vadd.f32 %v904, %v916
    %v1020 = vadd.f32 %v905, %v916
    %v1021 = vadd.f32 %v906, %v916
    %v1022 = vadd.f32 %v907, %v916
    %v1023 = vadd.f32 %v908, %v916
    %v1024 = vadd.f32 %v909, %v916
    %v1025 = vadd.f32 %v910, %v916
    %v1026 = vmax.f32 %v918, 0.0
    %v1027 = vmax.f32 %v919, 0.0
    %v1028 = vmax.f32 %v920, 0.0
    %v1029 = vmax.f32 %v921, 0.0
    %v1030 = vmax.f32 %v922, 0.0
    %v1031 = vmax.f32 %v923, 0.0
    %v1032 = vmax.f32 %v924, 0.0
    %v1033 = vmax.f32 %v925, 0.0
    %v1034 = vmax.f32 %v926, 0.0
    %v1035 = vmax.f32 %v927, 0.0
    %v1036 = vmax.f32 %v928, 0.0
    %v1037 = vmax.f32 %v929, 0.0
    %v1038 = vmax.f32 %v930, 0.0
    %v1039 = vmax.f32 %v931, 0.0
    %v1040 = vmax.f32 %v932, 0.0
    %v1041 = vmax.f32 %v933, 0.0
    %v1042 = vmax.f32 %v934, 0.0
    %v1043 = vmax.f32 %v935, 0.0
    %v1044 = vmax.f32 %v936, 0.0
    %v1045 = vmax.f32 %v937, 0.0
    %v1046 = vmax.f32 %v938, 0.0
    %v1047 = vmax.f32 %v939, 0.0
    %v1048 = vmax.f32 %v940, 0.0
    %v1049 = vmax.f32 %v941, 0.0
    %v1050 = vmax.f32 %v942, 0.0
    %v1051 = vmax.f32 %v943, 0.0
    %v1052 = vmax.f32 %v944, 0.0
    %v1053 = vmax.f32 %v945, 0.0
    %v1054 = vmax.f32 %v946, 0.0
    %v1055 = vmax.f32 %v947, 0.0
    %v1056 = vmax.f32 %v948, 0.0
    %v1057 = vmax.f32 %v949, 0.0
    %v1058 = vmax.f32 %v950, 0.0
    %v1059 = vmax.f32 %v951, 0.0
    %v1060 = vmax.f32 %v952, 0.0
    %v1061 = vmax.f32 %v953, 0.0
    %v1062 = vmax.f32 %v954, 0.0
    %v1063 = vmax.f32 %v955, 0.0
    %v1064 = vmax.f32 %v956, 0.0
    %v1065 = vmax.f32 %v957, 0.0
    %v1066 = vmax.f32 %v958, 0.0
    %v1067 = vmax.f32 %v959, 0.0
    %v1068 = vmax.f32 %v960, 0.0
    %v1069 = vmax.f32 %v961, 0.0
    %v1070 = vmax.f32 %v962, 0.0
    %v1071 = vmax.f32 %v963, 0.0
    %v1072 = vmax.f32 %v964, 0.0
    %v1073 = vmax.f32 %v965, 0.0
    %v1074 = vmax.f32 %v966, 0.0
    %v1075 = vmax.f32 %v967, 0.0
    %v1076 = vmax.f32 %v968, 0.0
    %v1077 = vmax.f32 %v969, 0.0
    %v1078 = vmax.f32 %v970, 0.0
    %v1079 = vmax.f32 %v971, 0.0
    %v1080 = vmax.f32 %v972, 0.0
    %v1081 = vmax.f32 %v973, 0.0
    %v1082 = vmax.f32 %v974, 0.0
    %v1083 = vmax.f32 %v975, 0.0
    %v1084 = vmax.f32 %v976, 0.0
    %v1085 = vmax.f32 %v977, 0.0
    %v1086 = vmax.f32 %v978, 0.0
    %v1087 = vmax.f32 %v979, 0.0
    %v1088 = vmax.f32 %v980, 0.0
    %v1089 = vmax.f32 %v981, 0.0
    %v1090 = vmax.f32 %v982, 0.0
    %v1091 = vmax.f32 %v983, 0.0
    %v1092 = vmax.f32 %v984, 0.0
    %v1093 = vmax.f32 %v985, 0.0
    %v1094 = vmax.f32 %v986, 0.0
    %v1095 = vmax.f32 %v987, 0.0
    %v1096 = vmax.f32 %v988, 0.0
    %v1097 = vmax.f32 %v989, 0.0
    %v1098 = vmax.f32 %v990, 0.0
    %v1099 = vmax.f32 %v991, 0.0
    %v1100 = vmax.f32 %v992, 0.0
    %v1101 = vmax.f32 %v993, 0.0
    %v1102 = vmax.f32 %v994, 0.0
    %v1103 = vmax.f32 %v995, 0.0
    %v1104 = vmax.f32 %v996, 0.0
    %v1105 = vmax.f32 %v997, 0.0
    %v1106 = vmax.f32 %v998, 0.0
    %v1107 = vmax.f32 %v999, 0.0
    %v1108 = vmax.f32 %v1000, 0.0
    %v1109 = vmax.f32 %v1001, 0.0
    %v1110 = vmax.f32 %v1002, 0.0
    %v1111 = vmax.f32 %v1003, 0.0
    %v1112 = vmax.f32 %v1004, 0.0
    %v1113 = vmax.f32 %v1005, 0.0
    %v1114 = vmax.f32 %v1006, 0.0
    %v1115 = vmax.f32 %v1007, 0.0
    %v1116 = vmax.f32 %v1008, 0.0
    %v1117 = vmax.f32 %v1009, 0.0
    %v1118 = vmax.f32 %v1010, 0.0
    %v1119 = vmax.f32 %v1011, 0.0
    %v1120 = vmax.f32 %v1012, 0.0
    %v1121 = vmax.f32 %v1013, 0.0
    %v1122 = vmax.f32 %v1014, 0.0
    %v1123 = vmax.f32 %v1015, 0.0
    %v1124 = vmax.f32 %v1016, 0.0
    %v1125 = vmax.f32 %v1017, 0.0
    %v1126 = vmax.f32 %v1018, 0.0
    %v1127 = vmax.f32 %v1019, 0.0
    %v1128 = vmax.f32 %v1020, 0.0
    %v1129 = vmax.f32 %v1021, 0.0
    %v1130 = vmax.f32 %v1022, 0.0
    %v1131 = vmax.f32 %v1023, 0.0
    %v1132 = vmax.f32 %v1024, 0.0
    %v1133 = vmax.f32 %v1025, 0.0
    %v1134 = vld [vmem:[%s1] sm:$0xff]
    %v1135 = vld [vmem:[%s1 + $0x8] sm:$0xff]
    %v1136 = vld [vmem:[%s1 + $0x10] sm:$0xff]
    %v1137 = vld [vmem:[%s1 + $0x18] sm:$0xff]
    %v1138 = vld [vmem:[%s1 + $0x20] sm:$0xff]
    %v1139 = vld [vmem:[%s1 + $0x28] sm:$0xff]
    %v1140 = vld [vmem:[%s1 + $0x30] sm:$0xff]
    %v1141 = vld [vmem:[%s1 + $0x38] sm:$0xff]
    %v1142 = vld [vmem:[%s1 + $0x40] sm:$0xff]
    %v1143 = vld [vmem:[%s1 + $0x48] sm:$0xff]
    %v1144 = vld [vmem:[%s1 + $0x50] sm:$0xff]
    %v1145 = vld [vmem:[%s1 + $0x58] sm:$0xff]
    %v1146 = vld [vmem:[%s1 + $0x60] sm:$0xff]
    %v1147 = vld [vmem:[%s1 + $0x68] sm:$0xff]
    %v1148 = vld [vmem:[%s1 + $0x70] sm:$0xff]
    %v1149 = vld [vmem:[%s1 + $0x78] sm:$0xff]
    %v1150 = vld [vmem:[%s1 + $0x80] sm:$0xff]
    %v1151 = vld [vmem:[%s1 + $0x88] sm:$0xff]
    %v1152 = vld [vmem:[%s1 + $0x90] sm:$0xff]
    %v1153 = vld [vmem:[%s1 + $0x98] sm:$0xff]
    %v1154 = vld [vmem:[%s1 + $0xa0] sm:$0xff]
    %v1155 = vld [vmem:[%s1 + $0xa8] sm:$0xff]
    %v1156 = vld [vmem:[%s1 + $0xb0] sm:$0xff]
    %v1157 = vld [vmem:[%s1 + $0xb8] sm:$0xff]
    %v1158 = vld [vmem:[%s1 + $0xc0] sm:$0xff]
    %v1159 = vld [vmem:[%s1 + $0xc8] sm:$0xff]
    %v1160 = vld [vmem:[%s1 + $0xd0] sm:$0xff]
    %v1161 = vld [vmem:[%s1 + $0xd8] sm:$0xff]
    %v1162 = vld [vmem:[%s1 + $0xe0] sm:$0xff]
    %v1163 = vld [vmem:[%s1 + $0xe8] sm:$0xff]
    %v1164 = vld [vmem:[%s1 + $0xf0] sm:$0xff]
    %v1165 = vld [vmem:[%s1 + $0xf8] sm:$0xff]
    %v1166 = vld [vmem:[%s1 + $0x100] sm:$0xff]
    %v1167 = vld [vmem:[%s1 + $0x108] sm:$0xff]
    %v1168 = vld [vmem:[%s1 + $0x110] sm:$0xff]
    %v1169 = vld [vmem:[%s1 + $0x118] sm:$0xff]
    %v1170 = vld [vmem:[%s1 + $0x120] sm:$0xff]
    %v1171 = vld [vmem:[%s1 + $0x128] sm:$0xff]
    %v1172 = vld [vmem:[%s1 + $0x130] sm:$0xff]
    %v1173 = vld [vmem:[%s1 + $0x138] sm:$0xff]
    %v1174 = vld [vmem:[%s1 + $0x140] sm:$0xff]
    %v1175 = vld [vmem:[%s1 + $0x148] sm:$0xff]
    %v1176 = vld [vmem:[%s1 + $0x150] sm:$0xff]
    %v1177 = vld [vmem:[%s1 + $0x158] sm:$0xff]
    %v1178 = vld [vmem:[%s1 + $0x160] sm:$0xff]
    %v1179 = vld [vmem:[%s1 + $0x168] sm:$0xff]
    %v1180 = vld [vmem:[%s1 + $0x170] sm:$0xff]
    %v1181 = vld [vmem:[%s1 + $0x178] sm:$0xff]
    %v1182 = vld [vmem:[%s1 + $0x180] sm:$0xff]
    %v1183 = vld [vmem:[%s1 + $0x188] sm:$0xff]
    %v1184 = vld [vmem:[%s1 + $0x190] sm:$0xff]
    %v1185 = vld [vmem:[%s1 + $0x198] sm:$0xff]
    %v1186 = vld [vmem:[%s1 + $0x1a0] sm:$0xff]
    %v1187 = vld [vmem:[%s1 + $0x1a8] sm:$0xff]
    %1189 = vset.pattern.permute.xlu0 0
    %1190 = vperm.xlu0 %1189, %v1134
    %v1191 = vpop.permute.xlu0 %1190
    %1194 = vset.pattern.permute.xlu0 0
    %1195 = vperm.xlu0 %1194, %v1135
    %v1196 = vpop.permute.xlu0 %1195
    %1199 = vset.pattern.permute.xlu0 0
    %1200 = vperm.xlu0 %1199, %v1136
    %v1201 = vpop.permute.xlu0 %1200
    %1204 = vset.pattern.permute.xlu0 0
    %1205 = vperm.xlu0 %1204, %v1137
    %v1206 = vpop.permute.xlu0 %1205
    %1209 = vset.pattern.permute.xlu0 0
    %1210 = vperm.xlu0 %1209, %v1138
    %v1211 = vpop.permute.xlu0 %1210
    %1214 = vset.pattern.permute.xlu0 0
    %1215 = vperm.xlu0 %1214, %v1139
    %v1216 = vpop.permute.xlu0 %1215
    %1219 = vset.pattern.permute.xlu0 0
    %1220 = vperm.xlu0 %1219, %v1140
    %v1221 = vpop.permute.xlu0 %1220
    %1224 = vset.pattern.permute.xlu0 0
    %1225 = vperm.xlu0 %1224, %v1141
    %v1226 = vpop.permute.xlu0 %1225
    %1229 = vset.pattern.permute.xlu0 0
    %1230 = vperm.xlu0 %1229, %v1142
    %v1231 = vpop.permute.xlu0 %1230
    %1234 = vset.pattern.permute.xlu0 0
    %1235 = vperm.xlu0 %1234, %v1143
    %v1236 = vpop.permute.xlu0 %1235
    %1239 = vset.pattern.permute.xlu0 0
    %1240 = vperm.xlu0 %1239, %v1144
    %v1241 = vpop.permute.xlu0 %1240
    %1244 = vset.pattern.permute.xlu0 0
    %1245 = vperm.xlu0 %1244, %v1145
    %v1246 = vpop.permute.xlu0 %1245
    %1249 = vset.pattern.permute.xlu0 0
    %1250 = vperm.xlu0 %1249, %v1146
    %v1251 = vpop.permute.xlu0 %1250
    %1254 = vset.pattern.permute.xlu0 0
    %1255 = vperm.xlu0 %1254, %v1147
    %v1256 = vpop.permute.xlu0 %1255
    %1259 = vset.pattern.permute.xlu0 0
    %1260 = vperm.xlu0 %1259, %v1148
    %v1261 = vpop.permute.xlu0 %1260
    %1264 = vset.pattern.permute.xlu0 0
    %1265 = vperm.xlu0 %1264, %v1149
    %v1266 = vpop.permute.xlu0 %1265
    %1269 = vset.pattern.permute.xlu0 0
    %1270 = vperm.xlu0 %1269, %v1150
    %v1271 = vpop.permute.xlu0 %1270
    %1274 = vset.pattern.permute.xlu0 0
    %1275 = vperm.xlu0 %1274, %v1151
    %v1276 = vpop.permute.xlu0 %1275
    %1279 = vset.pattern.permute.xlu0 0
    %1280 = vperm.xlu0 %1279, %v1152
    %v1281 = vpop.permute.xlu0 %1280
    %1284 = vset.pattern.permute.xlu0 0
    %1285 = vperm.xlu0 %1284, %v1153
    %v1286 = vpop.permute.xlu0 %1285
    %1289 = vset.pattern.permute.xlu0 0
    %1290 = vperm.xlu0 %1289, %v1154
    %v1291 = vpop.permute.xlu0 %1290
    %1294 = vset.pattern.permute.xlu0 0
    %1295 = vperm.xlu0 %1294, %v1155
    %v1296 = vpop.permute.xlu0 %1295
    %1299 = vset.pattern.permute.xlu0 0
    %1300 = vperm.xlu0 %1299, %v1156
    %v1301 = vpop.permute.xlu0 %1300
    %1304 = vset.pattern.permute.xlu0 0
    %1305 = vperm.xlu0 %1304, %v1157
    %v1306 = vpop.permute.xlu0 %1305
    %1309 = vset.pattern.permute.xlu0 0
    %1310 = vperm.xlu0 %1309, %v1158
    %v1311 = vpop.permute.xlu0 %1310
    %1314 = vset.pattern.permute.xlu0 0
    %1315 = vperm.xlu0 %1314, %v1159
    %v1316 = vpop.permute.xlu0 %1315
    %1319 = vset.pattern.permute.xlu0 0
    %1320 = vperm.xlu0 %1319, %v1160
    %v1321 = vpop.permute.xlu0 %1320
    %1324 = vset.pattern.permute.xlu0 0
    %1325 = vperm.xlu0 %1324, %v1161
    %v1326 = vpop.permute.xlu0 %1325
    %1329 = vset.pattern.permute.xlu0 0
    %1330 = vperm.xlu0 %1329, %v1162
    %v1331 = vpop.permute.xlu0 %1330
    %1334 = vset.pattern.permute.xlu0 0
    %1335 = vperm.xlu0 %1334, %v1163
    %v1336 = vpop.permute.xlu0 %1335
    %1339 = vset.pattern.permute.xlu0 0
    %1340 = vperm.xlu0 %1339, %v1164
    %v1341 = vpop.permute.xlu0 %1340
    %1344 = vset.pattern.permute.xlu0 0
    %1345 = vperm.xlu0 %1344, %v1165
    %v1346 = vpop.permute.xlu0 %1345
    %1349 = vset.pattern.permute.xlu0 0
    %1350 = vperm.xlu0 %1349, %v1166
    %v1351 = vpop.permute.xlu0 %1350
    %1354 = vset.pattern.permute.xlu0 0
    %1355 = vperm.xlu0 %1354, %v1167
    %v1356 = vpop.permute.xlu0 %1355
    %1359 = vset.pattern.permute.xlu0 0
    %1360 = vperm.xlu0 %1359, %v1168
    %v1361 = vpop.permute.xlu0 %1360
    %1364 = vset.pattern.permute.xlu0 0
    %1365 = vperm.xlu0 %1364, %v1169
    %v1366 = vpop.permute.xlu0 %1365
    %1369 = vset.pattern.permute.xlu0 0
    %1370 = vperm.xlu0 %1369, %v1170
    %v1371 = vpop.permute.xlu0 %1370
    %1374 = vset.pattern.permute.xlu0 0
    %1375 = vperm.xlu0 %1374, %v1171
    %v1376 = vpop.permute.xlu0 %1375
    %1379 = vset.pattern.permute.xlu0 0
    %1380 = vperm.xlu0 %1379, %v1172
    %v1381 = vpop.permute.xlu0 %1380
    %1384 = vset.pattern.permute.xlu0 0
    %1385 = vperm.xlu0 %1384, %v1173
    %v1386 = vpop.permute.xlu0 %1385
    %1389 = vset.pattern.permute.xlu0 0
    %1390 = vperm.xlu0 %1389, %v1174
    %v1391 = vpop.permute.xlu0 %1390
    %1394 = vset.pattern.permute.xlu0 0
    %1395 = vperm.xlu0 %1394, %v1175
    %v1396 = vpop.permute.xlu0 %1395
    %1399 = vset.pattern.permute.xlu0 0
    %1400 = vperm.xlu0 %1399, %v1176
    %v1401 = vpop.permute.xlu0 %1400
    %1404 = vset.pattern.permute.xlu0 0
    %1405 = vperm.xlu0 %1404, %v1177
    %v1406 = vpop.permute.xlu0 %1405
    %1409 = vset.pattern.permute.xlu0 0
    %1410 = vperm.xlu0 %1409, %v1178
    %v1411 = vpop.permute.xlu0 %1410
    %1414 = vset.pattern.permute.xlu0 0
    %1415 = vperm.xlu0 %1414, %v1179
    %v1416 = vpop.permute.xlu0 %1415
    %1419 = vset.pattern.permute.xlu0 0
    %1420 = vperm.xlu0 %1419, %v1180
    %v1421 = vpop.permute.xlu0 %1420
    %1424 = vset.pattern.permute.xlu0 0
    %1425 = vperm.xlu0 %1424, %v1181
    %v1426 = vpop.permute.xlu0 %1425
    %1429 = vset.pattern.permute.xlu0 0
    %1430 = vperm.xlu0 %1429, %v1182
    %v1431 = vpop.permute.xlu0 %1430
    %1434 = vset.pattern.permute.xlu0 0
    %1435 = vperm.xlu0 %1434, %v1183
    %v1436 = vpop.permute.xlu0 %1435
    %1439 = vset.pattern.permute.xlu0 0
    %1440 = vperm.xlu0 %1439, %v1184
    %v1441 = vpop.permute.xlu0 %1440
    %1444 = vset.pattern.permute.xlu0 0
    %1445 = vperm.xlu0 %1444, %v1185
    %v1446 = vpop.permute.xlu0 %1445
    %1449 = vset.pattern.permute.xlu0 0
    %1450 = vperm.xlu0 %1449, %v1186
    %v1451 = vpop.permute.xlu0 %1450
    %1454 = vset.pattern.permute.xlu0 0
    %1455 = vperm.xlu0 %1454, %v1187
    %v1456 = vpop.permute.xlu0 %1455
    %v1458 = vmul.f32 %v1026, %v1191
    %v1459 = vmul.f32 %v1027, %v1196
    %v1460 = vmul.f32 %v1028, %v1201
    %v1461 = vmul.f32 %v1029, %v1206
    %v1462 = vmul.f32 %v1030, %v1211
    %v1463 = vmul.f32 %v1031, %v1216
    %v1464 = vmul.f32 %v1032, %v1221
    %v1465 = vmul.f32 %v1033, %v1226
    %v1466 = vmul.f32 %v1034, %v1231
    %v1467 = vmul.f32 %v1035, %v1236
    %v1468 = vmul.f32 %v1036, %v1241
    %v1469 = vmul.f32 %v1037, %v1246
    %v1470 = vmul.f32 %v1038, %v1251
    %v1471 = vmul.f32 %v1039, %v1256
    %v1472 = vmul.f32 %v1040, %v1261
    %v1473 = vmul.f32 %v1041, %v1266
    %v1474 = vmul.f32 %v1042, %v1271
    %v1475 = vmul.f32 %v1043, %v1276
    %v1476 = vmul.f32 %v1044, %v1281
    %v1477 = vmul.f32 %v1045, %v1286
    %v1478 = vmul.f32 %v1046, %v1291
    %v1479 = vmul.f32 %v1047, %v1296
    %v1480 = vmul.f32 %v1048, %v1301
    %v1481 = vmul.f32 %v1049, %v1306
    %v1482 = vmul.f32 %v1050, %v1311
    %v1483 = vmul.f32 %v1051, %v1316
    %v1484 = vmul.f32 %v1052, %v1321
    %v1485 = vmul.f32 %v1053, %v1326
    %v1486 = vmul.f32 %v1054, %v1331
    %v1487 = vmul.f32 %v1055, %v1336
    %v1488 = vmul.f32 %v1056, %v1341
    %v1489 = vmul.f32 %v1057, %v1346
    %v1490 = vmul.f32 %v1058, %v1351
    %v1491 = vmul.f32 %v1059, %v1356
    %v1492 = vmul.f32 %v1060, %v1361
    %v1493 = vmul.f32 %v1061, %v1366
    %v1494 = vmul.f32 %v1062, %v1371
    %v1495 = vmul.f32 %v1063, %v1376
    %v1496 = vmul.f32 %v1064, %v1381
    %v1497 = vmul.f32 %v1065, %v1386
    %v1498 = vmul.f32 %v1066, %v1391
    %v1499 = vmul.f32 %v1067, %v1396
    %v1500 = vmul.f32 %v1068, %v1401
    %v1501 = vmul.f32 %v1069, %v1406
    %v1502 = vmul.f32 %v1070, %v1411
    %v1503 = vmul.f32 %v1071, %v1416
    %v1504 = vmul.f32 %v1072, %v1421
    %v1505 = vmul.f32 %v1073, %v1426
    %v1506 = vmul.f32 %v1074, %v1431
    %v1507 = vmul.f32 %v1075, %v1436
    %v1508 = vmul.f32 %v1076, %v1441
    %v1509 = vmul.f32 %v1077, %v1446
    %v1510 = vmul.f32 %v1078, %v1451
    %v1511 = vmul.f32 %v1079, %v1456
    %v1512 = vmul.f32 %v1080, %v1191
    %v1513 = vmul.f32 %v1081, %v1196
    %v1514 = vmul.f32 %v1082, %v1201
    %v1515 = vmul.f32 %v1083, %v1206
    %v1516 = vmul.f32 %v1084, %v1211
    %v1517 = vmul.f32 %v1085, %v1216
    %v1518 = vmul.f32 %v1086, %v1221
    %v1519 = vmul.f32 %v1087, %v1226
    %v1520 = vmul.f32 %v1088, %v1231
    %v1521 = vmul.f32 %v1089, %v1236
    %v1522 = vmul.f32 %v1090, %v1241
    %v1523 = vmul.f32 %v1091, %v1246
    %v1524 = vmul.f32 %v1092, %v1251
    %v1525 = vmul.f32 %v1093, %v1256
    %v1526 = vmul.f32 %v1094, %v1261
    %v1527 = vmul.f32 %v1095, %v1266
    %v1528 = vmul.f32 %v1096, %v1271
    %v1529 = vmul.f32 %v1097, %v1276
    %v1530 = vmul.f32 %v1098, %v1281
    %v1531 = vmul.f32 %v1099, %v1286
    %v1532 = vmul.f32 %v1100, %v1291
    %v1533 = vmul.f32 %v1101, %v1296
    %v1534 = vmul.f32 %v1102, %v1301
    %v1535 = vmul.f32 %v1103, %v1306
    %v1536 = vmul.f32 %v1104, %v1311
    %v1537 = vmul.f32 %v1105, %v1316
    %v1538 = vmul.f32 %v1106, %v1321
    %v1539 = vmul.f32 %v1107, %v1326
    %v1540 = vmul.f32 %v1108, %v1331
    %v1541 = vmul.f32 %v1109, %v1336
    %v1542 = vmul.f32 %v1110, %v1341
    %v1543 = vmul.f32 %v1111, %v1346
    %v1544 = vmul.f32 %v1112, %v1351
    %v1545 = vmul.f32 %v1113, %v1356
    %v1546 = vmul.f32 %v1114, %v1361
    %v1547 = vmul.f32 %v1115, %v1366
    %v1548 = vmul.f32 %v1116, %v1371
    %v1549 = vmul.f32 %v1117, %v1376
    %v1550 = vmul.f32 %v1118, %v1381
    %v1551 = vmul.f32 %v1119, %v1386
    %v1552 = vmul.f32 %v1120, %v1391
    %v1553 = vmul.f32 %v1121, %v1396
    %v1554 = vmul.f32 %v1122, %v1401
    %v1555 = vmul.f32 %v1123, %v1406
    %v1556 = vmul.f32 %v1124, %v1411
    %v1557 = vmul.f32 %v1125, %v1416
    %v1558 = vmul.f32 %v1126, %v1421
    %v1559 = vmul.f32 %v1127, %v1426
    %v1560 = vmul.f32 %v1128, %v1431
    %v1561 = vmul.f32 %v1129, %v1436
    %v1562 = vmul.f32 %v1130, %v1441
    %v1563 = vmul.f32 %v1131, %v1446
    %v1564 = vmul.f32 %v1132, %v1451
    %v1565 = vmul.f32 %v1133, %v1456
    %1566 = vst [vmem:[#allocation2] sm:$0xff] %v1458
    %1567 = vst [vmem:[#allocation2 + $0x8] sm:$0xff] %v1459
    %1568 = vst [vmem:[#allocation2 + $0x10] sm:$0xff] %v1460
    %1569 = vst [vmem:[#allocation2 + $0x18] sm:$0xff] %v1461
    %1570 = vst [vmem:[#allocation2 + $0x20] sm:$0xff] %v1462
    %1571 = vst [vmem:[#allocation2 + $0x28] sm:$0xff] %v1463
    %1572 = vst [vmem:[#allocation2 + $0x30] sm:$0xff] %v1464
    %1573 = vst [vmem:[#allocation2 + $0x38] sm:$0xff] %v1465
    %1574 = vst [vmem:[#allocation2 + $0x40] sm:$0xff] %v1466
    %1575 = vst [vmem:[#allocation2 + $0x48] sm:$0xff] %v1467
    %1576 = vst [vmem:[#allocation2 + $0x50] sm:$0xff] %v1468
    %1577 = vst [vmem:[#allocation2 + $0x58] sm:$0xff] %v1469
    %1578 = vst [vmem:[#allocation2 + $0x60] sm:$0xff] %v1470
    %1579 = vst [vmem:[#allocation2 + $0x68] sm:$0xff] %v1471
    %1580 = vst [vmem:[#allocation2 + $0x70] sm:$0xff] %v1472
    %1581 = vst [vmem:[#allocation2 + $0x78] sm:$0xff] %v1473
    %1582 = vst [vmem:[#allocation2 + $0x80] sm:$0xff] %v1474
    %1583 = vst [vmem:[#allocation2 + $0x88] sm:$0xff] %v1475
    %1584 = vst [vmem:[#allocation2 + $0x90] sm:$0xff] %v1476
    %1585 = vst [vmem:[#allocation2 + $0x98] sm:$0xff] %v1477
    %1586 = vst [vmem:[#allocation2 + $0xa0] sm:$0xff] %v1478
    %1587 = vst [vmem:[#allocation2 + $0xa8] sm:$0xff] %v1479
    %1588 = vst [vmem:[#allocation2 + $0xb0] sm:$0xff] %v1480
    %1589 = vst [vmem:[#allocation2 + $0xb8] sm:$0xff] %v1481
    %1590 = vst [vmem:[#allocation2 + $0xc0] sm:$0xff] %v1482
    %1591 = vst [vmem:[#allocation2 + $0xc8] sm:$0xff] %v1483
    %1592 = vst [vmem:[#allocation2 + $0xd0] sm:$0xff] %v1484
    %1593 = vst [vmem:[#allocation2 + $0xd8] sm:$0xff] %v1485
    %1594 = vst [vmem:[#allocation2 + $0xe0] sm:$0xff] %v1486
    %1595 = vst [vmem:[#allocation2 + $0xe8] sm:$0xff] %v1487
    %1596 = vst [vmem:[#allocation2 + $0xf0] sm:$0xff] %v1488
    %1597 = vst [vmem:[#allocation2 + $0xf8] sm:$0xff] %v1489
    %1598 = vst [vmem:[#allocation2 + $0x100] sm:$0xff] %v1490
    %1599 = vst [vmem:[#allocation2 + $0x108] sm:$0xff] %v1491
    %1600 = vst [vmem:[#allocation2 + $0x110] sm:$0xff] %v1492
    %1601 = vst [vmem:[#allocation2 + $0x118] sm:$0xff] %v1493
    %1602 = vst [vmem:[#allocation2 + $0x120] sm:$0xff] %v1494
    %1603 = vst [vmem:[#allocation2 + $0x128] sm:$0xff] %v1495
    %1604 = vst [vmem:[#allocation2 + $0x130] sm:$0xff] %v1496
    %1605 = vst [vmem:[#allocation2 + $0x138] sm:$0xff] %v1497
    %1606 = vst [vmem:[#allocation2 + $0x140] sm:$0xff] %v1498
    %1607 = vst [vmem:[#allocation2 + $0x148] sm:$0xff] %v1499
    %1608 = vst [vmem:[#allocation2 + $0x150] sm:$0xff] %v1500
    %1609 = vst [vmem:[#allocation2 + $0x158] sm:$0xff] %v1501
    %1610 = vst [vmem:[#allocation2 + $0x160] sm:$0xff] %v1502
    %1611 = vst [vmem:[#allocation2 + $0x168] sm:$0xff] %v1503
    %1612 = vst [vmem:[#allocation2 + $0x170] sm:$0xff] %v1504
    %1613 = vst [vmem:[#allocation2 + $0x178] sm:$0xff] %v1505
    %1614 = vst [vmem:[#allocation2 + $0x180] sm:$0xff] %v1506
    %1615 = vst [vmem:[#allocation2 + $0x188] sm:$0xff] %v1507
    %1616 = vst [vmem:[#allocation2 + $0x190] sm:$0xff] %v1508
    %1617 = vst [vmem:[#allocation2 + $0x198] sm:$0xff] %v1509
    %1618 = vst [vmem:[#allocation2 + $0x1a0] sm:$0xff] %v1510
    %1619 = vst [vmem:[#allocation2 + $0x1a8] sm:$0xff] %v1511
    %1620 = vst [vmem:[#allocation2 + $0x1b0] sm:$0xff] %v1512
    %1621 = vst [vmem:[#allocation2 + $0x1b8] sm:$0xff] %v1513
    %1622 = vst [vmem:[#allocation2 + $0x1c0] sm:$0xff] %v1514
    %1623 = vst [vmem:[#allocation2 + $0x1c8] sm:$0xff] %v1515
    %1624 = vst [vmem:[#allocation2 + $0x1d0] sm:$0xff] %v1516
    %1625 = vst [vmem:[#allocation2 + $0x1d8] sm:$0xff] %v1517
    %1626 = vst [vmem:[#allocation2 + $0x1e0] sm:$0xff] %v1518
    %1627 = vst [vmem:[#allocation2 + $0x1e8] sm:$0xff] %v1519
    %1628 = vst [vmem:[#allocation2 + $0x1f0] sm:$0xff] %v1520
    %1629 = vst [vmem:[#allocation2 + $0x1f8] sm:$0xff] %v1521
    %1630 = vst [vmem:[#allocation2 + $0x200] sm:$0xff] %v1522
    %1631 = vst [vmem:[#allocation2 + $0x208] sm:$0xff] %v1523
    %1632 = vst [vmem:[#allocation2 + $0x210] sm:$0xff] %v1524
    %1633 = vst [vmem:[#allocation2 + $0x218] sm:$0xff] %v1525
    %1634 = vst [vmem:[#allocation2 + $0x220] sm:$0xff] %v1526
    %1635 = vst [vmem:[#allocation2 + $0x228] sm:$0xff] %v1527
    %1636 = vst [vmem:[#allocation2 + $0x230] sm:$0xff] %v1528
    %1637 = vst [vmem:[#allocation2 + $0x238] sm:$0xff] %v1529
    %1638 = vst [vmem:[#allocation2 + $0x240] sm:$0xff] %v1530
    %1639 = vst [vmem:[#allocation2 + $0x248] sm:$0xff] %v1531
    %1640 = vst [vmem:[#allocation2 + $0x250] sm:$0xff] %v1532
    %1641 = vst [vmem:[#allocation2 + $0x258] sm:$0xff] %v1533
    %1642 = vst [vmem:[#allocation2 + $0x260] sm:$0xff] %v1534
    %1643 = vst [vmem:[#allocation2 + $0x268] sm:$0xff] %v1535
    %1644 = vst [vmem:[#allocation2 + $0x270] sm:$0xff] %v1536
    %1645 = vst [vmem:[#allocation2 + $0x278] sm:$0xff] %v1537
    %1646 = vst [vmem:[#allocation2 + $0x280] sm:$0xff] %v1538
    %1647 = vst [vmem:[#allocation2 + $0x288] sm:$0xff] %v1539
    %1648 = vst [vmem:[#allocation2 + $0x290] sm:$0xff] %v1540
    %1649 = vst [vmem:[#allocation2 + $0x298] sm:$0xff] %v1541
    %1650 = vst [vmem:[#allocation2 + $0x2a0] sm:$0xff] %v1542
    %1651 = vst [vmem:[#allocation2 + $0x2a8] sm:$0xff] %v1543
    %1652 = vst [vmem:[#allocation2 + $0x2b0] sm:$0xff] %v1544
    %1653 = vst [vmem:[#allocation2 + $0x2b8] sm:$0xff] %v1545
    %1654 = vst [vmem:[#allocation2 + $0x2c0] sm:$0xff] %v1546
    %1655 = vst [vmem:[#allocation2 + $0x2c8] sm:$0xff] %v1547
    %1656 = vst [vmem:[#allocation2 + $0x2d0] sm:$0xff] %v1548
    %1657 = vst [vmem:[#allocation2 + $0x2d8] sm:$0xff] %v1549
    %1658 = vst [vmem:[#allocation2 + $0x2e0] sm:$0xff] %v1550
    %1659 = vst [vmem:[#allocation2 + $0x2e8] sm:$0xff] %v1551
    %1660 = vst [vmem:[#allocation2 + $0x2f0] sm:$0xff] %v1552
    %1661 = vst [vmem:[#allocation2 + $0x2f8] sm:$0xff] %v1553
    %1662 = vst [vmem:[#allocation2 + $0x300] sm:$0xff] %v1554
    %1663 = vst [vmem:[#allocation2 + $0x308] sm:$0xff] %v1555
    %1664 = vst [vmem:[#allocation2 + $0x310] sm:$0xff] %v1556
    %1665 = vst [vmem:[#allocation2 + $0x318] sm:$0xff] %v1557
    %1666 = vst [vmem:[#allocation2 + $0x320] sm:$0xff] %v1558
    %1667 = vst [vmem:[#allocation2 + $0x328] sm:$0xff] %v1559
    %1668 = vst [vmem:[#allocation2 + $0x330] sm:$0xff] %v1560
    %1669 = vst [vmem:[#allocation2 + $0x338] sm:$0xff] %v1561
    %1670 = vst [vmem:[#allocation2 + $0x340] sm:$0xff] %v1562
    %1671 = vst [vmem:[#allocation2 + $0x348] sm:$0xff] %v1563
    %1672 = vst [vmem:[#allocation2 + $0x350] sm:$0xff] %v1564
    %1673 = vst [vmem:[#allocation2 + $0x358] sm:$0xff] %v1565
    %v1674 = vld [vmem:[#allocation2] sm:$0xff]
    %v1675 = vld [vmem:[#allocation2 + $0x8] sm:$0xff]
    %v1676 = vld [vmem:[#allocation2 + $0x18] sm:$0xff]
    %v1677 = vld [vmem:[#allocation2 + $0x20] sm:$0xff]
    %v1678 = vld [vmem:[#allocation2 + $0x30] sm:$0xff]
    %v1679 = vld [vmem:[#allocation2 + $0x38] sm:$0xff]
    %v1680 = vld [vmem:[#allocation2 + $0x48] sm:$0xff]
    %v1681 = vld [vmem:[#allocation2 + $0x50] sm:$0xff]
    %v1682 = vld [vmem:[#allocation2 + $0x60] sm:$0xff]
    %v1683 = vld [vmem:[#allocation2 + $0x68] sm:$0xff]
    %v1684 = vld [vmem:[#allocation2 + $0x78] sm:$0xff]
    %v1685 = vld [vmem:[#allocation2 + $0x80] sm:$0xff]
    %v1686 = vld [vmem:[#allocation2 + $0x90] sm:$0xff]
    %v1687 = vld [vmem:[#allocation2 + $0x98] sm:$0xff]
    %v1688 = vld [vmem:[#allocation2 + $0xa8] sm:$0xff]
    %v1689 = vld [vmem:[#allocation2 + $0xb0] sm:$0xff]
    %v1690 = vld [vmem:[#allocation2 + $0xc0] sm:$0xff]
    %v1691 = vld [vmem:[#allocation2 + $0xc8] sm:$0xff]
    %v1692 = vld [vmem:[#allocation2 + $0xd8] sm:$0xff]
    %v1693 = vld [vmem:[#allocation2 + $0xe0] sm:$0xff]
    %v1694 = vld [vmem:[#allocation2 + $0xf0] sm:$0xff]
    %v1695 = vld [vmem:[#allocation2 + $0xf8] sm:$0xff]
    %v1696 = vld [vmem:[#allocation2 + $0x108] sm:$0xff]
    %v1697 = vld [vmem:[#allocation2 + $0x110] sm:$0xff]
    %v1698 = vld [vmem:[#allocation2 + $0x120] sm:$0xff]
    %v1699 = vld [vmem:[#allocation2 + $0x128] sm:$0xff]
    %v1700 = vld [vmem:[#allocation2 + $0x138] sm:$0xff]
    %v1701 = vld [vmem:[#allocation2 + $0x140] sm:$0xff]
    %v1702 = vld [vmem:[#allocation2 + $0x150] sm:$0xff]
    %v1703 = vld [vmem:[#allocation2 + $0x158] sm:$0xff]
    %v1704 = vld [vmem:[#allocation2 + $0x168] sm:$0xff]
    %v1705 = vld [vmem:[#allocation2 + $0x170] sm:$0xff]
    %v1706 = vld [vmem:[#allocation2 + $0x1b0] sm:$0xff]
    %v1707 = vld [vmem:[#allocation2 + $0x1b8] sm:$0xff]
    %v1708 = vld [vmem:[#allocation2 + $0x1c8] sm:$0xff]
    %v1709 = vld [vmem:[#allocation2 + $0x1d0] sm:$0xff]
    %v1710 = vld [vmem:[#allocation2 + $0x1e0] sm:$0xff]
    %v1711 = vld [vmem:[#allocation2 + $0x1e8] sm:$0xff]
    %v1712 = vld [vmem:[#allocation2 + $0x1f8] sm:$0xff]
    %v1713 = vld [vmem:[#allocation2 + $0x200] sm:$0xff]
    %v1714 = vld [vmem:[#allocation2 + $0x210] sm:$0xff]
    %v1715 = vld [vmem:[#allocation2 + $0x218] sm:$0xff]
    %v1716 = vld [vmem:[#allocation2 + $0x228] sm:$0xff]
    %v1717 = vld [vmem:[#allocation2 + $0x230] sm:$0xff]
    %v1718 = vld [vmem:[#allocation2 + $0x240] sm:$0xff]
    %v1719 = vld [vmem:[#allocation2 + $0x248] sm:$0xff]
    %v1720 = vld [vmem:[#allocation2 + $0x258] sm:$0xff]
    %v1721 = vld [vmem:[#allocation2 + $0x260] sm:$0xff]
    %v1722 = vld [vmem:[#allocation2 + $0x270] sm:$0xff]
    %v1723 = vld [vmem:[#allocation2 + $0x278] sm:$0xff]
    %v1724 = vld [vmem:[#allocation2 + $0x288] sm:$0xff]
    %v1725 = vld [vmem:[#allocation2 + $0x290] sm:$0xff]
    %v1726 = vld [vmem:[#allocation2 + $0x2a0] sm:$0xff]
    %v1727 = vld [vmem:[#allocation2 + $0x2a8] sm:$0xff]
    %v1728 = vld [vmem:[#allocation2 + $0x2b8] sm:$0xff]
    %v1729 = vld [vmem:[#allocation2 + $0x2c0] sm:$0xff]
    %v1730 = vld [vmem:[#allocation2 + $0x2d0] sm:$0xff]
    %v1731 = vld [vmem:[#allocation2 + $0x2d8] sm:$0xff]
    %v1732 = vld [vmem:[#allocation2 + $0x2e8] sm:$0xff]
    %v1733 = vld [vmem:[#allocation2 + $0x2f0] sm:$0xff]
    %v1734 = vld [vmem:[#allocation2 + $0x300] sm:$0xff]
    %v1735 = vld [vmem:[#allocation2 + $0x308] sm:$0xff]
    %v1736 = vld [vmem:[#allocation2 + $0x318] sm:$0xff]
    %v1737 = vld [vmem:[#allocation2 + $0x320] sm:$0xff]
    %v1738 = vld [vmem:[#allocation6] sm:$0xff]
    %v1739 = vld [vmem:[#allocation6 + $0x8] sm:$0xff]
    %v1740 = vld [vmem:[#allocation6 + $0x10] sm:$0xff]
    %v1741 = vld [vmem:[#allocation6 + $0x18] sm:$0xff]
    %v1742 = vld [vmem:[#allocation6 + $0x20] sm:$0xff]
    %v1743 = vld [vmem:[#allocation6 + $0x28] sm:$0xff]
    %v1744 = vld [vmem:[#allocation6 + $0x30] sm:$0xff]
    %v1745 = vld [vmem:[#allocation6 + $0x38] sm:$0xff]
    %v1746 = vld [vmem:[#allocation6 + $0x40] sm:$0xff]
    %v1747 = vld [vmem:[#allocation6 + $0x48] sm:$0xff]
    %v1748 = vld [vmem:[#allocation6 + $0x50] sm:$0xff]
    %v1749 = vld [vmem:[#allocation6 + $0x58] sm:$0xff]
    %v1750 = vld [vmem:[#allocation6 + $0x60] sm:$0xff]
    %v1751 = vld [vmem:[#allocation6 + $0x68] sm:$0xff]
    %v1752 = vld [vmem:[#allocation6 + $0x70] sm:$0xff]
    %v1753 = vld [vmem:[#allocation6 + $0x78] sm:$0xff]
    %v1754 = vld [vmem:[#allocation2 + $0x1] sm:$0xff]
    %v1755 = vld [vmem:[#allocation2 + $0x9] sm:$0xff]
    %v1756 = vld [vmem:[#allocation2 + $0x19] sm:$0xff]
    %v1757 = vld [vmem:[#allocation2 + $0x21] sm:$0xff]
    %v1758 = vld [vmem:[#allocation2 + $0x31] sm:$0xff]
    %v1759 = vld [vmem:[#allocation2 + $0x39] sm:$0xff]
    %v1760 = vld [vmem:[#allocation2 + $0x49] sm:$0xff]
    %v1761 = vld [vmem:[#allocation2 + $0x51] sm:$0xff]
    %v1762 = vld [vmem:[#allocation2 + $0x61] sm:$0xff]
    %v1763 = vld [vmem:[#allocation2 + $0x69] sm:$0xff]
    %v1764 = vld [vmem:[#allocation2 + $0x79] sm:$0xff]
    %v1765 = vld [vmem:[#allocation2 + $0x81] sm:$0xff]
    %v1766 = vld [vmem:[#allocation2 + $0x91] sm:$0xff]
    %v1767 = vld [vmem:[#allocation2 + $0x99] sm:$0xff]
    %v1768 = vld [vmem:[#allocation2 + $0xa9] sm:$0xff]
    %v1769 = vld [vmem:[#allocation2 + $0xb1] sm:$0xff]
    %v1770 = vld [vmem:[#allocation2 + $0xc1] sm:$0xff]
    %v1771 = vld [vmem:[#allocation2 + $0xc9] sm:$0xff]
    %v1772 = vld [vmem:[#allocation2 + $0xd9] sm:$0xff]
    %v1773 = vld [vmem:[#allocation2 + $0xe1] sm:$0xff]
    %v1774 = vld [vmem:[#allocation2 + $0xf1] sm:$0xff]
    %v1775 = vld [vmem:[#allocation2 + $0xf9] sm:$0xff]
    %v1776 = vld [vmem:[#allocation2 + $0x109] sm:$0xff]
    %v1777 = vld [vmem:[#allocation2 + $0x111] sm:$0xff]
    %v1778 = vld [vmem:[#allocation2 + $0x121] sm:$0xff]
    %v1779 = vld [vmem:[#allocation2 + $0x129] sm:$0xff]
    %v1780 = vld [vmem:[#allocation2 + $0x139] sm:$0xff]
    %v1781 = vld [vmem:[#allocation2 + $0x141] sm:$0xff]
    %v1782 = vld [vmem:[#allocation2 + $0x151] sm:$0xff]
    %v1783 = vld [vmem:[#allocation2 + $0x159] sm:$0xff]
    %v1784 = vld [vmem:[#allocation2 + $0x169] sm:$0xff]
    %v1785 = vld [vmem:[#allocation2 + $0x171] sm:$0xff]
    %v1786 = vld [vmem:[#allocation2 + $0x1b1] sm:$0xff]
    %v1787 = vld [vmem:[#allocation2 + $0x1b9] sm:$0xff]
    %v1788 = vld [vmem:[#allocation2 + $0x1c9] sm:$0xff]
    %v1789 = vld [vmem:[#allocation2 + $0x1d1] sm:$0xff]
    %v1790 = vld [vmem:[#allocation2 + $0x1e1] sm:$0xff]
    %v1791 = vld [vmem:[#allocation2 + $0x1e9] sm:$0xff]
    %v1792 = vld [vmem:[#allocation2 + $0x1f9] sm:$0xff]
    %v1793 = vld [vmem:[#allocation2 + $0x201] sm:$0xff]
    %v1794 = vld [vmem:[#allocation2 + $0x211] sm:$0xff]
    %v1795 = vld [vmem:[#allocation2 + $0x219] sm:$0xff]
    %v1796 = vld [vmem:[#allocation2 + $0x229] sm:$0xff]
    %v1797 = vld [vmem:[#allocation2 + $0x231] sm:$0xff]
    %v1798 = vld [vmem:[#allocation2 + $0x241] sm:$0xff]
    %v1799 = vld [vmem:[#allocation2 + $0x249] sm:$0xff]
    %v1800 = vld [vmem:[#allocation2 + $0x259] sm:$0xff]
    %v1801 = vld [vmem:[#allocation2 + $0x261] sm:$0xff]
    %v1802 = vld [vmem:[#allocation2 + $0x271] sm:$0xff]
    %v1803 = vld [vmem:[#allocation2 + $0x279] sm:$0xff]
    %v1804 = vld [vmem:[#allocation2 + $0x289] sm:$0xff]
    %v1805 = vld [vmem:[#allocation2 + $0x291] sm:$0xff]
    %v1806 = vld [vmem:[#allocation2 + $0x2a1] sm:$0xff]
    %v1807 = vld [vmem:[#allocation2 + $0x2a9] sm:$0xff]
    %v1808 = vld [vmem:[#allocation2 + $0x2b9] sm:$0xff]
    %v1809 = vld [vmem:[#allocation2 + $0x2c1] sm:$0xff]
    %v1810 = vld [vmem:[#allocation2 + $0x2d1] sm:$0xff]
    %v1811 = vld [vmem:[#allocation2 + $0x2d9] sm:$0xff]
    %v1812 = vld [vmem:[#allocation2 + $0x2e9] sm:$0xff]
    %v1813 = vld [vmem:[#allocation2 + $0x2f1] sm:$0xff]
    %v1814 = vld [vmem:[#allocation2 + $0x301] sm:$0xff]
    %v1815 = vld [vmem:[#allocation2 + $0x309] sm:$0xff]
    %v1816 = vld [vmem:[#allocation2 + $0x319] sm:$0xff]
    %v1817 = vld [vmem:[#allocation2 + $0x321] sm:$0xff]
    %s1818 = scalar_lea.vmem [#allocation6], 128
    %v1819 = vld [vmem:[%s1818] sm:$0xff]
    %v1820 = vld [vmem:[%s1818 + $0x8] sm:$0xff]
    %v1821 = vld [vmem:[%s1818 + $0x10] sm:$0xff]
    %v1822 = vld [vmem:[%s1818 + $0x18] sm:$0xff]
    %v1823 = vld [vmem:[%s1818 + $0x20] sm:$0xff]
    %v1824 = vld [vmem:[%s1818 + $0x28] sm:$0xff]
    %v1825 = vld [vmem:[%s1818 + $0x30] sm:$0xff]
    %v1826 = vld [vmem:[%s1818 + $0x38] sm:$0xff]
    %v1827 = vld [vmem:[%s1818 + $0x40] sm:$0xff]
    %v1828 = vld [vmem:[%s1818 + $0x48] sm:$0xff]
    %v1829 = vld [vmem:[%s1818 + $0x50] sm:$0xff]
    %v1830 = vld [vmem:[%s1818 + $0x58] sm:$0xff]
    %v1831 = vld [vmem:[%s1818 + $0x60] sm:$0xff]
    %v1832 = vld [vmem:[%s1818 + $0x68] sm:$0xff]
    %v1833 = vld [vmem:[%s1818 + $0x70] sm:$0xff]
    %v1834 = vld [vmem:[%s1818 + $0x78] sm:$0xff]
    %1835 = vmatprep.subr.mxu0 0.0
    %1836 = vmatpush1.msra.mxu0 %v1819
    %1837 = vmatprep.subr.mxu0 0.0
    %1838 = vmatpush1.msra.mxu0 %v1820
    %1839 = vmatprep.subr.mxu0 0.0
    %1840 = vmatpush1.msra.mxu0 %v1821
    %1841 = vmatprep.subr.mxu0 0.0
    %1842 = vmatpush1.msra.mxu0 %v1822
    %1843 = vmatprep.subr.mxu0 0.0
    %1844 = vmatpush1.msra.mxu0 %v1823
    %1845 = vmatprep.subr.mxu0 0.0
    %1846 = vmatpush1.msra.mxu0 %v1824
    %1847 = vmatprep.subr.mxu0 0.0
    %1848 = vmatpush1.msra.mxu0 %v1825
    %1849 = vmatprep.subr.mxu0 0.0
    %1850 = vmatpush1.msra.mxu0 %v1826
    %1851 = vmatprep.subr.mxu0 0.0
    %1852 = vmatpush1.msra.mxu0 %v1827
    %1853 = vmatprep.subr.mxu0 0.0
    %1854 = vmatpush1.msra.mxu0 %v1828
    %1855 = vmatprep.subr.mxu0 0.0
    %1856 = vmatpush1.msra.mxu0 %v1829
    %1857 = vmatprep.subr.mxu0 0.0
    %1858 = vmatpush1.msra.mxu0 %v1830
    %1859 = vmatprep.subr.mxu0 0.0
    %1860 = vmatpush1.msra.mxu0 %v1831
    %1861 = vmatprep.subr.mxu0 0.0
    %1862 = vmatpush1.msra.mxu0 %v1832
    %1863 = vmatprep.subr.mxu0 0.0
    %1864 = vmatpush1.msra.mxu0 %v1833
    %1865 = vmatprep.subr.mxu0 0.0
    %1866 = vmatpush1.msra.mxu0 %v1834
    %1867 = vmatprep.subr.mxu0 0.0
    %1868 = vmatpush1.msra.mxu0 0.0
    %1869 = vmatprep.subr.mxu0 0.0
    %1870 = vmatpush1.msra.mxu0 0.0
    %1871 = vmatprep.subr.mxu0 0.0
    %1872 = vmatpush1.msra.mxu0 0.0
    %1873 = vmatprep.subr.mxu0 0.0
    %1874 = vmatpush1.msra.mxu0 0.0
    %1875 = vmatprep.subr.mxu0 0.0
    %1876 = vmatpush1.msra.mxu0 0.0
    %1877 = vmatprep.subr.mxu0 0.0
    %1878 = vmatpush1.msra.mxu0 0.0
    %1879 = vmatprep.subr.mxu0 0.0
    %1880 = vmatpush1.msra.mxu0 0.0
    %1881 = vmatprep.subr.mxu0 0.0
    %1882 = vmatpush1.msra.mxu0 0.0
    %1883 = vmatprep.subr.mxu0 0.0
    %1884 = vmatpush1.msra.mxu0 0.0
    %1885 = vmatprep.subr.mxu0 0.0
    %1886 = vmatpush1.msra.mxu0 0.0
    %1887 = vmatprep.subr.mxu0 0.0
    %1888 = vmatpush1.msra.mxu0 0.0
    %1889 = vmatprep.subr.mxu0 0.0
    %1890 = vmatpush1.msra.mxu0 0.0
    %1891 = vmatprep.subr.mxu0 0.0
    %1892 = vmatpush1.msra.mxu0 0.0
    %1893 = vmatprep.subr.mxu0 0.0
    %1894 = vmatpush1.msra.mxu0 0.0
    %1895 = vmatprep.subr.mxu0 0.0
    %1896 = vmatpush1.msra.mxu0 0.0
    %1897 = vmatprep.subr.mxu0 0.0
    %1898 = vmatpush1.msra.mxu0 0.0
    %1899 = vmatprep.mubr.f32.mxu0 0.0
    %1900 = vmatmul.mubr.f32.gmra.mrb[0].mxu0 %v1754
    %v1901 = vpop.f32.mrb[0].mxu0
    %v1902 = vadd.f32 0.0, %v1901
    %v1903 = vpop.f32.mrb[0].mxu0
    %1904 = vmatprep.mubr.f32.mxu0 0.0
    %1905 = vmatmul.mubr.f32.gmra.mrb[0].mxu0 %v1755
    %v1906 = vpop.f32.mrb[0].mxu0
    %v1907 = vadd.f32 0.0, %v1906
    %v1908 = vpop.f32.mrb[0].mxu0
    %1909 = vmatprep.mubr.f32.mxu0 0.0
    %1910 = vmatmul.mubr.f32.gmra.mrb[0].mxu0 %v1756
    %v1911 = vpop.f32.mrb[0].mxu0
    %v1912 = vadd.f32 0.0, %v1911
    %v1913 = vpop.f32.mrb[0].mxu0
    %1914 = vmatprep.mubr.f32.mxu0 0.0
    %1915 = vmatmul.mubr.f32.gmra.mrb[0].mxu0 %v1757
    %v1916 = vpop.f32.mrb[0].mxu0
    %v1917 = vadd.f32 0.0, %v1916
    %v1918 = vpop.f32.mrb[0].mxu0
    %1919 = vmatprep.mubr.f32.mxu0 0.0
    %1920 = vmatmul.mubr.f32.gmra.mrb[0].mxu0 %v1758
    %v1921 = vpop.f32.mrb[0].mxu0
    %v1922 = vadd.f32 0.0, %v1921
    %v1923 = vpop.f32.mrb[0].mxu0
    %1924 = vmatprep.mubr.f32.mxu0 0.0
    %1925 = vmatmul.mubr.f32.gmra.mrb[0].mxu0 %v1759
    %v1926 = vpop.f32.mrb[0].mxu0
    %v1927 = vadd.f32 0.0, %v1926
    %v1928 = vpop.f32.mrb[0].mxu0
    %1929 = vmatprep.mubr.f32.mxu0 0.0
    %1930 = vmatmul.mubr.f32.gmra.mrb[0].mxu0 %v1760
    %v1931 = vpop.f32.mrb[0].mxu0
    %v1932 = vadd.f32 0.0, %v1931
    %v1933 = vpop.f32.mrb[0].mxu0
    %1934 = vmatprep.mubr.f32.mxu0 0.0
    %1935 = vmatmul.mubr.f32.gmra.mrb[0].mxu0 %v1761
    %v1936 = vpop.f32.mrb[0].mxu0
    %v1937 = vadd.f32 0.0, %v1936
    %v1938 = vpop.f32.mrb[0].mxu0
    %1939 = vmatprep.mubr.f32.mxu0 0.0
    %1940 = vmatmul.mubr.f32.gmra.mrb[0].mxu0 %v1762
    %v1941 = vpop.f32.mrb[0].mxu0
    %v1942 = vadd.f32 0.0, %v1941
    %v1943 = vpop.f32.mrb[0].mxu0
    %1944 = vmatprep.mubr.f32.mxu0 0.0
    %1945 = vmatmul.mubr.f32.gmra.mrb[0].mxu0 %v1763
    %v1946 = vpop.f32.mrb[0].mxu0
    %v1947 = vadd.f32 0.0, %v1946
    %v1948 = vpop.f32.mrb[0].mxu0
    %1949 = vmatprep.mubr.f32.mxu0 0.0
    %1950 = vmatmul.mubr.f32.gmra.mrb[0].mxu0 %v1764
    %v1951 = vpop.f32.mrb[0].mxu0
    %v1952 = vadd.f32 0.0, %v1951
    %v1953 = vpop.f32.mrb[0].mxu0
    %1954 = vmatprep.mubr.f32.mxu0 0.0
    %1955 = vmatmul.mubr.f32.gmra.mrb[0].mxu0 %v1765
    %v1956 = vpop.f32.mrb[0].mxu0
    %v1957 = vadd.f32 0.0, %v1956
    %v1958 = vpop.f32.mrb[0].mxu0
    %1959 = vmatprep.mubr.f32.mxu0 0.0
    %1960 = vmatmul.mubr.f32.gmra.mrb[0].mxu0 %v1766
    %v1961 = vpop.f32.mrb[0].mxu0
    %v1962 = vadd.f32 0.0, %v1961
    %v1963 = vpop.f32.mrb[0].mxu0
    %1964 = vmatprep.mubr.f32.mxu0 0.0
    %1965 = vmatmul.mubr.f32.gmra.mrb[0].mxu0 %v1767
    %v1966 = vpop.f32.mrb[0].mxu0
    %v1967 = vadd.f32 0.0, %v1966
    %v1968 = vpop.f32.mrb[0].mxu0
    %1969 = vmatprep.mubr.f32.mxu0 0.0
    %1970 = vmatmul.mubr.f32.gmra.mrb[0].mxu0 %v1768
    %v1971 = vpop.f32.mrb[0].mxu0
    %v1972 = vadd.f32 0.0, %v1971
    %v1973 = vpop.f32.mrb[0].mxu0
    %1974 = vmatprep.mubr.f32.mxu0 0.0
    %1975 = vmatmul.mubr.f32.gmra.mrb[0].mxu0 %v1769
    %v1976 = vpop.f32.mrb[0].mxu0
    %v1977 = vadd.f32 0.0, %v1976
    %v1978 = vpop.f32.mrb[0].mxu0
    %1979 = vmatprep.mubr.f32.mxu0 0.0
    %1980 = vmatmul.mubr.f32.gmra.mrb[0].mxu0 %v1770
    %v1981 = vpop.f32.mrb[0].mxu0
    %v1982 = vadd.f32 0.0, %v1981
    %v1983 = vpop.f32.mrb[0].mxu0
    %1984 = vmatprep.mubr.f32.mxu0 0.0
    %1985 = vmatmul.mubr.f32.gmra.mrb[0].mxu0 %v1771
    %v1986 = vpop.f32.mrb[0].mxu0
    %v1987 = vadd.f32 0.0, %v1986
    %v1988 = vpop.f32.mrb[0].mxu0
    %1989 = vmatprep.mubr.f32.mxu0 0.0
    %1990 = vmatmul.mubr.f32.gmra.mrb[0].mxu0 %v1772
    %v1991 = vpop.f32.mrb[0].mxu0
    %v1992 = vadd.f32 0.0, %v1991
    %v1993 = vpop.f32.mrb[0].mxu0
    %1994 = vmatprep.mubr.f32.mxu0 0.0
    %1995 = vmatmul.mubr.f32.gmra.mrb[0].mxu0 %v1773
    %v1996 = vpop.f32.mrb[0].mxu0
    %v1997 = vadd.f32 0.0, %v1996
    %v1998 = vpop.f32.mrb[0].mxu0
    %1999 = vmatprep.mubr.f32.mxu0 0.0
    %2000 = vmatmul.mubr.f32.gmra.mrb[0].mxu0 %v1774
    %v2001 = vpop.f32.mrb[0].mxu0
    %v2002 = vadd.f32 0.0, %v2001
    %v2003 = vpop.f32.mrb[0].mxu0
    %2004 = vmatprep.mubr.f32.mxu0 0.0
    %2005 = vmatmul.mubr.f32.gmra.mrb[0].mxu0 %v1775
    %v2006 = vpop.f32.mrb[0].mxu0
    %v2007 = vadd.f32 0.0, %v2006
    %v2008 = vpop.f32.mrb[0].mxu0
    %2009 = vmatprep.mubr.f32.mxu0 0.0
    %2010 = vmatmul.mubr.f32.gmra.mrb[0].mxu0 %v1776
    %v2011 = vpop.f32.mrb[0].mxu0
    %v2012 = vadd.f32 0.0, %v2011
    %v2013 = vpop.f32.mrb[0].mxu0
    %2014 = vmatprep.mubr.f32.mxu0 0.0
    %2015 = vmatmul.mubr.f32.gmra.mrb[0].mxu0 %v1777
    %v2016 = vpop.f32.mrb[0].mxu0
    %v2017 = vadd.f32 0.0, %v2016
    %v2018 = vpop.f32.mrb[0].mxu0
    %2019 = vmatprep.mubr.f32.mxu0 0.0
    %2020 = vmatmul.mubr.f32.gmra.mrb[0].mxu0 %v1778
    %v2021 = vpop.f32.mrb[0].mxu0
    %v2022 = vadd.f32 0.0, %v2021
    %v2023 = vpop.f32.mrb[0].mxu0
    %2024 = vmatprep.mubr.f32.mxu0 0.0
    %2025 = vmatmul.mubr.f32.gmra.mrb[0].mxu0 %v1779
    %v2026 = vpop.f32.mrb[0].mxu0
    %v2027 = vadd.f32 0.0, %v2026
    %v2028 = vpop.f32.mrb[0].mxu0
    %2029 = vmatprep.mubr.f32.mxu0 0.0
    %2030 = vmatmul.mubr.f32.gmra.mrb[0].mxu0 %v1780
    %v2031 = vpop.f32.mrb[0].mxu0
    %v2032 = vadd.f32 0.0, %v2031
    %v2033 = vpop.f32.mrb[0].mxu0
    %2034 = vmatprep.mubr.f32.mxu0 0.0
    %2035 = vmatmul.mubr.f32.gmra.mrb[0].mxu0 %v1781
    %v2036 = vpop.f32.mrb[0].mxu0
    %v2037 = vadd.f32 0.0, %v2036
    %v2038 = vpop.f32.mrb[0].mxu0
    %2039 = vmatprep.mubr.f32.mxu0 0.0
    %2040 = vmatmul.mubr.f32.gmra.mrb[0].mxu0 %v1782
    %v2041 = vpop.f32.mrb[0].mxu0
    %v2042 = vadd.f32 0.0, %v2041
    %v2043 = vpop.f32.mrb[0].mxu0
    %2044 = vmatprep.mubr.f32.mxu0 0.0
    %2045 = vmatmul.mubr.f32.gmra.mrb[0].mxu0 %v1783
    %v2046 = vpop.f32.mrb[0].mxu0
    %v2047 = vadd.f32 0.0, %v2046
    %v2048 = vpop.f32.mrb[0].mxu0
    %2049 = vmatprep.mubr.f32.mxu0 0.0
    %2050 = vmatmul.mubr.f32.gmra.mrb[0].mxu0 %v1784
    %v2051 = vpop.f32.mrb[0].mxu0
    %v2052 = vadd.f32 0.0, %v2051
    %v2053 = vpop.f32.mrb[0].mxu0
    %2054 = vmatprep.mubr.f32.mxu0 0.0
    %2055 = vmatmul.mubr.f32.gmra.mrb[0].mxu0 %v1785
    %v2056 = vpop.f32.mrb[0].mxu0
    %v2057 = vadd.f32 0.0, %v2056
    %v2058 = vpop.f32.mrb[0].mxu0
    %2059 = vmatprep.mubr.f32.mxu0 0.0
    %2060 = vmatmul.mubr.f32.gmra.mrb[0].mxu0 %v1786
    %v2061 = vpop.f32.mrb[0].mxu0
    %v2062 = vadd.f32 0.0, %v2061
    %v2063 = vpop.f32.mrb[0].mxu0
    %2064 = vmatprep.mubr.f32.mxu0 0.0
    %2065 = vmatmul.mubr.f32.gmra.mrb[0].mxu0 %v1787
    %v2066 = vpop.f32.mrb[0].mxu0
    %v2067 = vadd.f32 0.0, %v2066
    %v2068 = vpop.f32.mrb[0].mxu0
    %2069 = vmatprep.mubr.f32.mxu0 0.0
    %2070 = vmatmul.mubr.f32.gmra.mrb[0].mxu0 %v1788
    %v2071 = vpop.f32.mrb[0].mxu0
    %v2072 = vadd.f32 0.0, %v2071
    %v2073 = vpop.f32.mrb[0].mxu0
    %2074 = vmatprep.mubr.f32.mxu0 0.0
    %2075 = vmatmul.mubr.f32.gmra.mrb[0].mxu0 %v1789
    %v2076 = vpop.f32.mrb[0].mxu0
    %v2077 = vadd.f32 0.0, %v2076
    %v2078 = vpop.f32.mrb[0].mxu0
    %2079 = vmatprep.mubr.f32.mxu0 0.0
    %2080 = vmatmul.mubr.f32.gmra.mrb[0].mxu0 %v1790
    %v2081 = vpop.f32.mrb[0].mxu0
    %v2082 = vadd.f32 0.0, %v2081
    %v2083 = vpop.f32.mrb[0].mxu0
    %2084 = vmatprep.mubr.f32.mxu0 0.0
    %2085 = vmatmul.mubr.f32.gmra.mrb[0].mxu0 %v1791
    %v2086 = vpop.f32.mrb[0].mxu0
    %v2087 = vadd.f32 0.0, %v2086
    %v2088 = vpop.f32.mrb[0].mxu0
    %2089 = vmatprep.mubr.f32.mxu0 0.0
    %2090 = vmatmul.mubr.f32.gmra.mrb[0].mxu0 %v1792
    %v2091 = vpop.f32.mrb[0].mxu0
    %v2092 = vadd.f32 0.0, %v2091
    %v2093 = vpop.f32.mrb[0].mxu0
    %2094 = vmatprep.mubr.f32.mxu0 0.0
    %2095 = vmatmul.mubr.f32.gmra.mrb[0].mxu0 %v1793
    %v2096 = vpop.f32.mrb[0].mxu0
    %v2097 = vadd.f32 0.0, %v2096
    %v2098 = vpop.f32.mrb[0].mxu0
    %2099 = vmatprep.mubr.f32.mxu0 0.0
    %2100 = vmatmul.mubr.f32.gmra.mrb[0].mxu0 %v1794
    %v2101 = vpop.f32.mrb[0].mxu0
    %v2102 = vadd.f32 0.0, %v2101
    %v2103 = vpop.f32.mrb[0].mxu0
    %2104 = vmatprep.mubr.f32.mxu0 0.0
    %2105 = vmatmul.mubr.f32.gmra.mrb[0].mxu0 %v1795
    %v2106 = vpop.f32.mrb[0].mxu0
    %v2107 = vadd.f32 0.0, %v2106
    %v2108 = vpop.f32.mrb[0].mxu0
    %2109 = vmatprep.mubr.f32.mxu0 0.0
    %2110 = vmatmul.mubr.f32.gmra.mrb[0].mxu0 %v1796
    %v2111 = vpop.f32.mrb[0].mxu0
    %v2112 = vadd.f32 0.0, %v2111
    %v2113 = vpop.f32.mrb[0].mxu0
    %2114 = vmatprep.mubr.f32.mxu0 0.0
    %2115 = vmatmul.mubr.f32.gmra.mrb[0].mxu0 %v1797
    %v2116 = vpop.f32.mrb[0].mxu0
    %v2117 = vadd.f32 0.0, %v2116
    %v2118 = vpop.f32.mrb[0].mxu0
    %2119 = vmatprep.mubr.f32.mxu0 0.0
    %2120 = vmatmul.mubr.f32.gmra.mrb[0].mxu0 %v1798
    %v2121 = vpop.f32.mrb[0].mxu0
    %v2122 = vadd.f32 0.0, %v2121
    %v2123 = vpop.f32.mrb[0].mxu0
    %2124 = vmatprep.mubr.f32.mxu0 0.0
    %2125 = vmatmul.mubr.f32.gmra.mrb[0].mxu0 %v1799
    %v2126 = vpop.f32.mrb[0].mxu0
    %v2127 = vadd.f32 0.0, %v2126
    %v2128 = vpop.f32.mrb[0].mxu0
    %2129 = vmatprep.mubr.f32.mxu0 0.0
    %2130 = vmatmul.mubr.f32.gmra.mrb[0].mxu0 %v1800
    %v2131 = vpop.f32.mrb[0].mxu0
    %v2132 = vadd.f32 0.0, %v2131
    %v2133 = vpop.f32.mrb[0].mxu0
    %2134 = vmatprep.mubr.f32.mxu0 0.0
    %2135 = vmatmul.mubr.f32.gmra.mrb[0].mxu0 %v1801
    %v2136 = vpop.f32.mrb[0].mxu0
    %v2137 = vadd.f32 0.0, %v2136
    %v2138 = vpop.f32.mrb[0].mxu0
    %2139 = vmatprep.mubr.f32.mxu0 0.0
    %2140 = vmatmul.mubr.f32.gmra.mrb[0].mxu0 %v1802
    %v2141 = vpop.f32.mrb[0].mxu0
    %v2142 = vadd.f32 0.0, %v2141
    %v2143 = vpop.f32.mrb[0].mxu0
    %2144 = vmatprep.mubr.f32.mxu0 0.0
    %2145 = vmatmul.mubr.f32.gmra.mrb[0].mxu0 %v1803
    %v2146 = vpop.f32.mrb[0].mxu0
    %v2147 = vadd.f32 0.0, %v2146
    %v2148 = vpop.f32.mrb[0].mxu0
    %2149 = vmatprep.mubr.f32.mxu0 0.0
    %2150 = vmatmul.mubr.f32.gmra.mrb[0].mxu0 %v1804
    %v2151 = vpop.f32.mrb[0].mxu0
    %v2152 = vadd.f32 0.0, %v2151
    %v2153 = vpop.f32.mrb[0].mxu0
    %2154 = vmatprep.mubr.f32.mxu0 0.0
    %2155 = vmatmul.mubr.f32.gmra.mrb[0].mxu0 %v1805
    %v2156 = vpop.f32.mrb[0].mxu0
    %v2157 = vadd.f32 0.0, %v2156
    %v2158 = vpop.f32.mrb[0].mxu0
    %2159 = vmatprep.mubr.f32.mxu0 0.0
    %2160 = vmatmul.mubr.f32.gmra.mrb[0].mxu0 %v1806
    %v2161 = vpop.f32.mrb[0].mxu0
    %v2162 = vadd.f32 0.0, %v2161
    %v2163 = vpop.f32.mrb[0].mxu0
    %2164 = vmatprep.mubr.f32.mxu0 0.0
    %2165 = vmatmul.mubr.f32.gmra.mrb[0].mxu0 %v1807
    %v2166 = vpop.f32.mrb[0].mxu0
    %v2167 = vadd.f32 0.0, %v2166
    %v2168 = vpop.f32.mrb[0].mxu0
    %2169 = vmatprep.mubr.f32.mxu0 0.0
    %2170 = vmatmul.mubr.f32.gmra.mrb[0].mxu0 %v1808
    %v2171 = vpop.f32.mrb[0].mxu0
    %v2172 = vadd.f32 0.0, %v2171
    %v2173 = vpop.f32.mrb[0].mxu0
    %2174 = vmatprep.mubr.f32.mxu0 0.0
    %2175 = vmatmul.mubr.f32.gmra.mrb[0].mxu0 %v1809
    %v2176 = vpop.f32.mrb[0].mxu0
    %v2177 = vadd.f32 0.0, %v2176
    %v2178 = vpop.f32.mrb[0].mxu0
    %2179 = vmatprep.mubr.f32.mxu0 0.0
    %2180 = vmatmul.mubr.f32.gmra.mrb[0].mxu0 %v1810
    %v2181 = vpop.f32.mrb[0].mxu0
    %v2182 = vadd.f32 0.0, %v2181
    %v2183 = vpop.f32.mrb[0].mxu0
    %2184 = vmatprep.mubr.f32.mxu0 0.0
    %2185 = vmatmul.mubr.f32.gmra.mrb[0].mxu0 %v1811
    %v2186 = vpop.f32.mrb[0].mxu0
    %v2187 = vadd.f32 0.0, %v2186
    %v2188 = vpop.f32.mrb[0].mxu0
    %2189 = vmatprep.mubr.f32.mxu0 0.0
    %2190 = vmatmul.mubr.f32.gmra.mrb[0].mxu0 %v1812
    %v2191 = vpop.f32.mrb[0].mxu0
    %v2192 = vadd.f32 0.0, %v2191
    %v2193 = vpop.f32.mrb[0].mxu0
    %2194 = vmatprep.mubr.f32.mxu0 0.0
    %2195 = vmatmul.mubr.f32.gmra.mrb[0].mxu0 %v1813
    %v2196 = vpop.f32.mrb[0].mxu0
    %v2197 = vadd.f32 0.0, %v2196
    %v2198 = vpop.f32.mrb[0].mxu0
    %2199 = vmatprep.mubr.f32.mxu0 0.0
    %2200 = vmatmul.mubr.f32.gmra.mrb[0].mxu0 %v1814
    %v2201 = vpop.f32.mrb[0].mxu0
    %v2202 = vadd.f32 0.0, %v2201
    %v2203 = vpop.f32.mrb[0].mxu0
    %2204 = vmatprep.mubr.f32.mxu0 0.0
    %2205 = vmatmul.mubr.f32.gmra.mrb[0].mxu0 %v1815
    %v2206 = vpop.f32.mrb[0].mxu0
    %v2207 = vadd.f32 0.0, %v2206
    %v2208 = vpop.f32.mrb[0].mxu0
    %2209 = vmatprep.mubr.f32.mxu0 0.0
    %2210 = vmatmul.mubr.f32.gmra.mrb[0].mxu0 %v1816
    %v2211 = vpop.f32.mrb[0].mxu0
    %v2212 = vadd.f32 0.0, %v2211
    %v2213 = vpop.f32.mrb[0].mxu0
    %2214 = vmatprep.mubr.f32.mxu0 0.0
    %2215 = vmatmul.mubr.f32.gmra.mrb[0].mxu0 %v1817
    %v2216 = vpop.f32.mrb[0].mxu0
    %v2217 = vadd.f32 0.0, %v2216
    %v2218 = vpop.f32.mrb[0].mxu0
    %2219 = vdwg.mxu0
    %2220 = vmatprep.subr.mxu0 0.0
    %2221 = vmatpush1.msra.mxu0 %v1738
    %2222 = vmatprep.subr.mxu0 0.0
    %2223 = vmatpush1.msra.mxu0 %v1739
    %2224 = vmatprep.subr.mxu0 0.0
    %2225 = vmatpush1.msra.mxu0 %v1740
    %2226 = vmatprep.subr.mxu0 0.0
    %2227 = vmatpush1.msra.mxu0 %v1741
    %2228 = vmatprep.subr.mxu0 0.0
    %2229 = vmatpush1.msra.mxu0 %v1742
    %2230 = vmatprep.subr.mxu0 0.0
    %2231 = vmatpush1.msra.mxu0 %v1743
    %2232 = vmatprep.subr.mxu0 0.0
    %2233 = vmatpush1.msra.mxu0 %v1744
    %2234 = vmatprep.subr.mxu0 0.0
    %2235 = vmatpush1.msra.mxu0 %v1745
    %2236 = vmatprep.subr.mxu0 0.0
    %2237 = vmatpush1.msra.mxu0 %v1746
    %2238 = vmatprep.subr.mxu0 0.0
    %2239 = vmatpush1.msra.mxu0 %v1747
    %2240 = vmatprep.subr.mxu0 0.0
    %2241 = vmatpush1.msra.mxu0 %v1748
    %2242 = vmatprep.subr.mxu0 0.0
    %2243 = vmatpush1.msra.mxu0 %v1749
    %2244 = vmatprep.subr.mxu0 0.0
    %2245 = vmatpush1.msra.mxu0 %v1750
    %2246 = vmatprep.subr.mxu0 0.0
    %2247 = vmatpush1.msra.mxu0 %v1751
    %2248 = vmatprep.subr.mxu0 0.0
    %2249 = vmatpush1.msra.mxu0 %v1752
    %2250 = vmatprep.subr.mxu0 0.0
    %2251 = vmatpush1.msra.mxu0 %v1753
    %2252 = vmatprep.subr.mxu0 0.0
    %2253 = vmatpush1.msra.mxu0 0.0
    %2254 = vmatprep.subr.mxu0 0.0
    %2255 = vmatpush1.msra.mxu0 0.0
    %2256 = vmatprep.subr.mxu0 0.0
    %2257 = vmatpush1.msra.mxu0 0.0
    %2258 = vmatprep.subr.mxu0 0.0
    %2259 = vmatpush1.msra.mxu0 0.0
    %2260 = vmatprep.subr.mxu0 0.0
    %2261 = vmatpush1.msra.mxu0 0.0
    %2262 = vmatprep.subr.mxu0 0.0
    %2263 = vmatpush1.msra.mxu0 0.0
    %2264 = vmatprep.subr.mxu0 0.0
    %2265 = vmatpush1.msra.mxu0 0.0
    %2266 = vmatprep.subr.mxu0 0.0
    %2267 = vmatpush1.msra.mxu0 0.0
    %2268 = vmatprep.subr.mxu0 0.0
    %2269 = vmatpush1.msra.mxu0 0.0
    %2270 = vmatprep.subr.mxu0 0.0
    %2271 = vmatpush1.msra.mxu0 0.0
    %2272 = vmatprep.subr.mxu0 0.0
    %2273 = vmatpush1.msra.mxu0 0.0
    %2274 = vmatprep.subr.mxu0 0.0
    %2275 = vmatpush1.msra.mxu0 0.0
    %2276 = vmatprep.subr.mxu0 0.0
    %2277 = vmatpush1.msra.mxu0 0.0
    %2278 = vmatprep.subr.mxu0 0.0
    %2279 = vmatpush1.msra.mxu0 0.0
    %2280 = vmatprep.subr.mxu0 0.0
    %2281 = vmatpush1.msra.mxu0 0.0
    %2282 = vmatprep.subr.mxu0 0.0
    %2283 = vmatpush1.msra.mxu0 0.0
    %2284 = vmatprep.mubr.f32.mxu0 0.0
    %2285 = vmatmul.mubr.f32.gmra.mrb[0].mxu0 %v1674
    %v2286 = vpop.f32.mrb[0].mxu0
    %v2287 = vadd.f32 %v1902, %v2286
    %v2288 = vpop.f32.mrb[0].mxu0
    %2289 = vmatprep.mubr.f32.mxu0 0.0
    %2290 = vmatmul.mubr.f32.gmra.mrb[0].mxu0 %v1675
    %v2291 = vpop.f32.mrb[0].mxu0
    %v2292 = vadd.f32 %v1907, %v2291
    %v2293 = vpop.f32.mrb[0].mxu0
    %2294 = vmatprep.mubr.f32.mxu0 0.0
    %2295 = vmatmul.mubr.f32.gmra.mrb[0].mxu0 %v1676
    %v2296 = vpop.f32.mrb[0].mxu0
    %v2297 = vadd.f32 %v1912, %v2296
    %v2298 = vpop.f32.mrb[0].mxu0
    %2299 = vmatprep.mubr.f32.mxu0 0.0
    %2300 = vmatmul.mubr.f32.gmra.mrb[0].mxu0 %v1677
    %v2301 = vpop.f32.mrb[0].mxu0
    %v2302 = vadd.f32 %v1917, %v2301
    %v2303 = vpop.f32.mrb[0].mxu0
    %2304 = vmatprep.mubr.f32.mxu0 0.0
    %2305 = vmatmul.mubr.f32.gmra.mrb[0].mxu0 %v1678
    %v2306 = vpop.f32.mrb[0].mxu0
    %v2307 = vadd.f32 %v1922, %v2306
    %v2308 = vpop.f32.mrb[0].mxu0
    %2309 = vmatprep.mubr.f32.mxu0 0.0
    %2310 = vmatmul.mubr.f32.gmra.mrb[0].mxu0 %v1679
    %v2311 = vpop.f32.mrb[0].mxu0
    %v2312 = vadd.f32 %v1927, %v2311
    %v2313 = vpop.f32.mrb[0].mxu0
    %2314 = vmatprep.mubr.f32.mxu0 0.0
    %2315 = vmatmul.mubr.f32.gmra.mrb[0].mxu0 %v1680
    %v2316 = vpop.f32.mrb[0].mxu0
    %v2317 = vadd.f32 %v1932, %v2316
    %v2318 = vpop.f32.mrb[0].mxu0
    %2319 = vmatprep.mubr.f32.mxu0 0.0
    %2320 = vmatmul.mubr.f32.gmra.mrb[0].mxu0 %v1681
    %v2321 = vpop.f32.mrb[0].mxu0
    %v2322 = vadd.f32 %v1937, %v2321
    %v2323 = vpop.f32.mrb[0].mxu0
    %2324 = vmatprep.mubr.f32.mxu0 0.0
    %2325 = vmatmul.mubr.f32.gmra.mrb[0].mxu0 %v1682
    %v2326 = vpop.f32.mrb[0].mxu0
    %v2327 = vadd.f32 %v1942, %v2326
    %v2328 = vpop.f32.mrb[0].mxu0
    %2329 = vmatprep.mubr.f32.mxu0 0.0
    %2330 = vmatmul.mubr.f32.gmra.mrb[0].mxu0 %v1683
    %v2331 = vpop.f32.mrb[0].mxu0
    %v2332 = vadd.f32 %v1947, %v2331
    %v2333 = vpop.f32.mrb[0].mxu0
    %2334 = vmatprep.mubr.f32.mxu0 0.0
    %2335 = vmatmul.mubr.f32.gmra.mrb[0].mxu0 %v1684
    %v2336 = vpop.f32.mrb[0].mxu0
    %v2337 = vadd.f32 %v1952, %v2336
    %v2338 = vpop.f32.mrb[0].mxu0
    %2339 = vmatprep.mubr.f32.mxu0 0.0
    %2340 = vmatmul.mubr.f32.gmra.mrb[0].mxu0 %v1685
    %v2341 = vpop.f32.mrb[0].mxu0
    %v2342 = vadd.f32 %v1957, %v2341
    %v2343 = vpop.f32.mrb[0].mxu0
    %2344 = vmatprep.mubr.f32.mxu0 0.0
    %2345 = vmatmul.mubr.f32.gmra.mrb[0].mxu0 %v1686
    %v2346 = vpop.f32.mrb[0].mxu0
    %v2347 = vadd.f32 %v1962, %v2346
    %v2348 = vpop.f32.mrb[0].mxu0
    %2349 = vmatprep.mubr.f32.mxu0 0.0
    %2350 = vmatmul.mubr.f32.gmra.mrb[0].mxu0 %v1687
    %v2351 = vpop.f32.mrb[0].mxu0
    %v2352 = vadd.f32 %v1967, %v2351
    %v2353 = vpop.f32.mrb[0].mxu0
    %2354 = vmatprep.mubr.f32.mxu0 0.0
    %2355 = vmatmul.mubr.f32.gmra.mrb[0].mxu0 %v1688
    %v2356 = vpop.f32.mrb[0].mxu0
    %v2357 = vadd.f32 %v1972, %v2356
    %v2358 = vpop.f32.mrb[0].mxu0
    %2359 = vmatprep.mubr.f32.mxu0 0.0
    %2360 = vmatmul.mubr.f32.gmra.mrb[0].mxu0 %v1689
    %v2361 = vpop.f32.mrb[0].mxu0
    %v2362 = vadd.f32 %v1977, %v2361
    %v2363 = vpop.f32.mrb[0].mxu0
    %2364 = vmatprep.mubr.f32.mxu0 0.0
    %2365 = vmatmul.mubr.f32.gmra.mrb[0].mxu0 %v1690
    %v2366 = vpop.f32.mrb[0].mxu0
    %v2367 = vadd.f32 %v1982, %v2366
    %v2368 = vpop.f32.mrb[0].mxu0
    %2369 = vmatprep.mubr.f32.mxu0 0.0
    %2370 = vmatmul.mubr.f32.gmra.mrb[0].mxu0 %v1691
    %v2371 = vpop.f32.mrb[0].mxu0
    %v2372 = vadd.f32 %v1987, %v2371
    %v2373 = vpop.f32.mrb[0].mxu0
    %2374 = vmatprep.mubr.f32.mxu0 0.0
    %2375 = vmatmul.mubr.f32.gmra.mrb[0].mxu0 %v1692
    %v2376 = vpop.f32.mrb[0].mxu0
    %v2377 = vadd.f32 %v1992, %v2376
    %v2378 = vpop.f32.mrb[0].mxu0
    %2379 = vmatprep.mubr.f32.mxu0 0.0
    %2380 = vmatmul.mubr.f32.gmra.mrb[0].mxu0 %v1693
    %v2381 = vpop.f32.mrb[0].mxu0
    %v2382 = vadd.f32 %v1997, %v2381
    %v2383 = vpop.f32.mrb[0].mxu0
    %2384 = vmatprep.mubr.f32.mxu0 0.0
    %2385 = vmatmul.mubr.f32.gmra.mrb[0].mxu0 %v1694
    %v2386 = vpop.f32.mrb[0].mxu0
    %v2387 = vadd.f32 %v2002, %v2386
    %v2388 = vpop.f32.mrb[0].mxu0
    %2389 = vmatprep.mubr.f32.mxu0 0.0
    %2390 = vmatmul.mubr.f32.gmra.mrb[0].mxu0 %v1695
    %v2391 = vpop.f32.mrb[0].mxu0
    %v2392 = vadd.f32 %v2007, %v2391
    %v2393 = vpop.f32.mrb[0].mxu0
    %2394 = vmatprep.mubr.f32.mxu0 0.0
    %2395 = vmatmul.mubr.f32.gmra.mrb[0].mxu0 %v1696
    %v2396 = vpop.f32.mrb[0].mxu0
    %v2397 = vadd.f32 %v2012, %v2396
    %v2398 = vpop.f32.mrb[0].mxu0
    %2399 = vmatprep.mubr.f32.mxu0 0.0
    %2400 = vmatmul.mubr.f32.gmra.mrb[0].mxu0 %v1697
    %v2401 = vpop.f32.mrb[0].mxu0
    %v2402 = vadd.f32 %v2017, %v2401
    %v2403 = vpop.f32.mrb[0].mxu0
    %2404 = vmatprep.mubr.f32.mxu0 0.0
    %2405 = vmatmul.mubr.f32.gmra.mrb[0].mxu0 %v1698
    %v2406 = vpop.f32.mrb[0].mxu0
    %v2407 = vadd.f32 %v2022, %v2406
    %v2408 = vpop.f32.mrb[0].mxu0
    %2409 = vmatprep.mubr.f32.mxu0 0.0
    %2410 = vmatmul.mubr.f32.gmra.mrb[0].mxu0 %v1699
    %v2411 = vpop.f32.mrb[0].mxu0
    %v2412 = vadd.f32 %v2027, %v2411
    %v2413 = vpop.f32.mrb[0].mxu0
    %2414 = vmatprep.mubr.f32.mxu0 0.0
    %2415 = vmatmul.mubr.f32.gmra.mrb[0].mxu0 %v1700
    %v2416 = vpop.f32.mrb[0].mxu0
    %v2417 = vadd.f32 %v2032, %v2416
    %v2418 = vpop.f32.mrb[0].mxu0
    %2419 = vmatprep.mubr.f32.mxu0 0.0
    %2420 = vmatmul.mubr.f32.gmra.mrb[0].mxu0 %v1701
    %v2421 = vpop.f32.mrb[0].mxu0
    %v2422 = vadd.f32 %v2037, %v2421
    %v2423 = vpop.f32.mrb[0].mxu0
    %2424 = vmatprep.mubr.f32.mxu0 0.0
    %2425 = vmatmul.mubr.f32.gmra.mrb[0].mxu0 %v1702
    %v2426 = vpop.f32.mrb[0].mxu0
    %v2427 = vadd.f32 %v2042, %v2426
    %v2428 = vpop.f32.mrb[0].mxu0
    %2429 = vmatprep.mubr.f32.mxu0 0.0
    %2430 = vmatmul.mubr.f32.gmra.mrb[0].mxu0 %v1703
    %v2431 = vpop.f32.mrb[0].mxu0
    %v2432 = vadd.f32 %v2047, %v2431
    %v2433 = vpop.f32.mrb[0].mxu0
    %2434 = vmatprep.mubr.f32.mxu0 0.0
    %2435 = vmatmul.mubr.f32.gmra.mrb[0].mxu0 %v1704
    %v2436 = vpop.f32.mrb[0].mxu0
    %v2437 = vadd.f32 %v2052, %v2436
    %v2438 = vpop.f32.mrb[0].mxu0
    %2439 = vmatprep.mubr.f32.mxu0 0.0
    %2440 = vmatmul.mubr.f32.gmra.mrb[0].mxu0 %v1705
    %v2441 = vpop.f32.mrb[0].mxu0
    %v2442 = vadd.f32 %v2057, %v2441
    %v2443 = vpop.f32.mrb[0].mxu0
    %2444 = vmatprep.mubr.f32.mxu0 0.0
    %2445 = vmatmul.mubr.f32.gmra.mrb[0].mxu0 %v1706
    %v2446 = vpop.f32.mrb[0].mxu0
    %v2447 = vadd.f32 %v2062, %v2446
    %v2448 = vpop.f32.mrb[0].mxu0
    %2449 = vmatprep.mubr.f32.mxu0 0.0
    %2450 = vmatmul.mubr.f32.gmra.mrb[0].mxu0 %v1707
    %v2451 = vpop.f32.mrb[0].mxu0
    %v2452 = vadd.f32 %v2067, %v2451
    %v2453 = vpop.f32.mrb[0].mxu0
    %2454 = vmatprep.mubr.f32.mxu0 0.0
    %2455 = vmatmul.mubr.f32.gmra.mrb[0].mxu0 %v1708
    %v2456 = vpop.f32.mrb[0].mxu0
    %v2457 = vadd.f32 %v2072, %v2456
    %v2458 = vpop.f32.mrb[0].mxu0
    %2459 = vmatprep.mubr.f32.mxu0 0.0
    %2460 = vmatmul.mubr.f32.gmra.mrb[0].mxu0 %v1709
    %v2461 = vpop.f32.mrb[0].mxu0
    %v2462 = vadd.f32 %v2077, %v2461
    %v2463 = vpop.f32.mrb[0].mxu0
    %2464 = vmatprep.mubr.f32.mxu0 0.0
    %2465 = vmatmul.mubr.f32.gmra.mrb[0].mxu0 %v1710
    %v2466 = vpop.f32.mrb[0].mxu0
    %v2467 = vadd.f32 %v2082, %v2466
    %v2468 = vpop.f32.mrb[0].mxu0
    %2469 = vmatprep.mubr.f32.mxu0 0.0
    %2470 = vmatmul.mubr.f32.gmra.mrb[0].mxu0 %v1711
    %v2471 = vpop.f32.mrb[0].mxu0
    %v2472 = vadd.f32 %v2087, %v2471
    %v2473 = vpop.f32.mrb[0].mxu0
    %2474 = vmatprep.mubr.f32.mxu0 0.0
    %2475 = vmatmul.mubr.f32.gmra.mrb[0].mxu0 %v1712
    %v2476 = vpop.f32.mrb[0].mxu0
    %v2477 = vadd.f32 %v2092, %v2476
    %v2478 = vpop.f32.mrb[0].mxu0
    %2479 = vmatprep.mubr.f32.mxu0 0.0
    %2480 = vmatmul.mubr.f32.gmra.mrb[0].mxu0 %v1713
    %v2481 = vpop.f32.mrb[0].mxu0
    %v2482 = vadd.f32 %v2097, %v2481
    %v2483 = vpop.f32.mrb[0].mxu0
    %2484 = vmatprep.mubr.f32.mxu0 0.0
    %2485 = vmatmul.mubr.f32.gmra.mrb[0].mxu0 %v1714
    %v2486 = vpop.f32.mrb[0].mxu0
    %v2487 = vadd.f32 %v2102, %v2486
    %v2488 = vpop.f32.mrb[0].mxu0
    %2489 = vmatprep.mubr.f32.mxu0 0.0
    %2490 = vmatmul.mubr.f32.gmra.mrb[0].mxu0 %v1715
    %v2491 = vpop.f32.mrb[0].mxu0
    %v2492 = vadd.f32 %v2107, %v2491
    %v2493 = vpop.f32.mrb[0].mxu0
    %2494 = vmatprep.mubr.f32.mxu0 0.0
    %2495 = vmatmul.mubr.f32.gmra.mrb[0].mxu0 %v1716
    %v2496 = vpop.f32.mrb[0].mxu0
    %v2497 = vadd.f32 %v2112, %v2496
    %v2498 = vpop.f32.mrb[0].mxu0
    %2499 = vmatprep.mubr.f32.mxu0 0.0
    %2500 = vmatmul.mubr.f32.gmra.mrb[0].mxu0 %v1717
    %v2501 = vpop.f32.mrb[0].mxu0
    %v2502 = vadd.f32 %v2117, %v2501
    %v2503 = vpop.f32.mrb[0].mxu0
    %2504 = vmatprep.mubr.f32.mxu0 0.0
    %2505 = vmatmul.mubr.f32.gmra.mrb[0].mxu0 %v1718
    %v2506 = vpop.f32.mrb[0].mxu0
    %v2507 = vadd.f32 %v2122, %v2506
    %v2508 = vpop.f32.mrb[0].mxu0
    %2509 = vmatprep.mubr.f32.mxu0 0.0
    %2510 = vmatmul.mubr.f32.gmra.mrb[0].mxu0 %v1719
    %v2511 = vpop.f32.mrb[0].mxu0
    %v2512 = vadd.f32 %v2127, %v2511
    %v2513 = vpop.f32.mrb[0].mxu0
    %2514 = vmatprep.mubr.f32.mxu0 0.0
    %2515 = vmatmul.mubr.f32.gmra.mrb[0].mxu0 %v1720
    %v2516 = vpop.f32.mrb[0].mxu0
    %v2517 = vadd.f32 %v2132, %v2516
    %v2518 = vpop.f32.mrb[0].mxu0
    %2519 = vmatprep.mubr.f32.mxu0 0.0
    %2520 = vmatmul.mubr.f32.gmra.mrb[0].mxu0 %v1721
    %v2521 = vpop.f32.mrb[0].mxu0
    %v2522 = vadd.f32 %v2137, %v2521
    %v2523 = vpop.f32.mrb[0].mxu0
    %2524 = vmatprep.mubr.f32.mxu0 0.0
    %2525 = vmatmul.mubr.f32.gmra.mrb[0].mxu0 %v1722
    %v2526 = vpop.f32.mrb[0].mxu0
    %v2527 = vadd.f32 %v2142, %v2526
    %v2528 = vpop.f32.mrb[0].mxu0
    %2529 = vmatprep.mubr.f32.mxu0 0.0
    %2530 = vmatmul.mubr.f32.gmra.mrb[0].mxu0 %v1723
    %v2531 = vpop.f32.mrb[0].mxu0
    %v2532 = vadd.f32 %v2147, %v2531
    %v2533 = vpop.f32.mrb[0].mxu0
    %2534 = vmatprep.mubr.f32.mxu0 0.0
    %2535 = vmatmul.mubr.f32.gmra.mrb[0].mxu0 %v1724
    %v2536 = vpop.f32.mrb[0].mxu0
    %v2537 = vadd.f32 %v2152, %v2536
    %v2538 = vpop.f32.mrb[0].mxu0
    %2539 = vmatprep.mubr.f32.mxu0 0.0
    %2540 = vmatmul.mubr.f32.gmra.mrb[0].mxu0 %v1725
    %v2541 = vpop.f32.mrb[0].mxu0
    %v2542 = vadd.f32 %v2157, %v2541
    %v2543 = vpop.f32.mrb[0].mxu0
    %2544 = vmatprep.mubr.f32.mxu0 0.0
    %2545 = vmatmul.mubr.f32.gmra.mrb[0].mxu0 %v1726
    %v2546 = vpop.f32.mrb[0].mxu0
    %v2547 = vadd.f32 %v2162, %v2546
    %v2548 = vpop.f32.mrb[0].mxu0
    %2549 = vmatprep.mubr.f32.mxu0 0.0
    %2550 = vmatmul.mubr.f32.gmra.mrb[0].mxu0 %v1727
    %v2551 = vpop.f32.mrb[0].mxu0
    %v2552 = vadd.f32 %v2167, %v2551
    %v2553 = vpop.f32.mrb[0].mxu0
    %2554 = vmatprep.mubr.f32.mxu0 0.0
    %2555 = vmatmul.mubr.f32.gmra.mrb[0].mxu0 %v1728
    %v2556 = vpop.f32.mrb[0].mxu0
    %v2557 = vadd.f32 %v2172, %v2556
    %v2558 = vpop.f32.mrb[0].mxu0
    %2559 = vmatprep.mubr.f32.mxu0 0.0
    %2560 = vmatmul.mubr.f32.gmra.mrb[0].mxu0 %v1729
    %v2561 = vpop.f32.mrb[0].mxu0
    %v2562 = vadd.f32 %v2177, %v2561
    %v2563 = vpop.f32.mrb[0].mxu0
    %2564 = vmatprep.mubr.f32.mxu0 0.0
    %2565 = vmatmul.mubr.f32.gmra.mrb[0].mxu0 %v1730
    %v2566 = vpop.f32.mrb[0].mxu0
    %v2567 = vadd.f32 %v2182, %v2566
    %v2568 = vpop.f32.mrb[0].mxu0
    %2569 = vmatprep.mubr.f32.mxu0 0.0
    %2570 = vmatmul.mubr.f32.gmra.mrb[0].mxu0 %v1731
    %v2571 = vpop.f32.mrb[0].mxu0
    %v2572 = vadd.f32 %v2187, %v2571
    %v2573 = vpop.f32.mrb[0].mxu0
    %2574 = vmatprep.mubr.f32.mxu0 0.0
    %2575 = vmatmul.mubr.f32.gmra.mrb[0].mxu0 %v1732
    %v2576 = vpop.f32.mrb[0].mxu0
    %v2577 = vadd.f32 %v2192, %v2576
    %v2578 = vpop.f32.mrb[0].mxu0
    %2579 = vmatprep.mubr.f32.mxu0 0.0
    %2580 = vmatmul.mubr.f32.gmra.mrb[0].mxu0 %v1733
    %v2581 = vpop.f32.mrb[0].mxu0
    %v2582 = vadd.f32 %v2197, %v2581
    %v2583 = vpop.f32.mrb[0].mxu0
    %2584 = vmatprep.mubr.f32.mxu0 0.0
    %2585 = vmatmul.mubr.f32.gmra.mrb[0].mxu0 %v1734
    %v2586 = vpop.f32.mrb[0].mxu0
    %v2587 = vadd.f32 %v2202, %v2586
    %v2588 = vpop.f32.mrb[0].mxu0
    %2589 = vmatprep.mubr.f32.mxu0 0.0
    %2590 = vmatmul.mubr.f32.gmra.mrb[0].mxu0 %v1735
    %v2591 = vpop.f32.mrb[0].mxu0
    %v2592 = vadd.f32 %v2207, %v2591
    %v2593 = vpop.f32.mrb[0].mxu0
    %2594 = vmatprep.mubr.f32.mxu0 0.0
    %2595 = vmatmul.mubr.f32.gmra.mrb[0].mxu0 %v1736
    %v2596 = vpop.f32.mrb[0].mxu0
    %v2597 = vadd.f32 %v2212, %v2596
    %v2598 = vpop.f32.mrb[0].mxu0
    %2599 = vmatprep.mubr.f32.mxu0 0.0
    %2600 = vmatmul.mubr.f32.gmra.mrb[0].mxu0 %v1737
    %v2601 = vpop.f32.mrb[0].mxu0
    %v2602 = vadd.f32 %v2217, %v2601
    %v2603 = vpop.f32.mrb[0].mxu0
    %2604 = vdwg.mxu0
    %v2605 = vld [vmem:[#allocation2 + $0x2] sm:$0xff]
    %v2606 = vld [vmem:[#allocation2 + $0xa] sm:$0xff]
    %v2607 = vld [vmem:[#allocation2 + $0x1a] sm:$0xff]
    %v2608 = vld [vmem:[#allocation2 + $0x22] sm:$0xff]
    %v2609 = vld [vmem:[#allocation2 + $0x32] sm:$0xff]
    %v2610 = vld [vmem:[#allocation2 + $0x3a] sm:$0xff]
    %v2611 = vld [vmem:[#allocation2 + $0x4a] sm:$0xff]
    %v2612 = vld [vmem:[#allocation2 + $0x52] sm:$0xff]
    %v2613 = vld [vmem:[#allocation2 + $0x62] sm:$0xff]
    %v2614 = vld [vmem:[#allocation2 + $0x6a] sm:$0xff]
    %v2615 = vld [vmem:[#allocation2 + $0x7a] sm:$0xff]
    %v2616 = vld [vmem:[#allocation2 + $0x82] sm:$0xff]
    %v2617 = vld [vmem:[#allocation2 + $0x92] sm:$0xff]
    %v2618 = vld [vmem:[#allocation2 + $0x9a] sm:$0xff]
    %v2619 = vld [vmem:[#allocation2 + $0xaa] sm:$0xff]
    %v2620 = vld [vmem:[#allocation2 + $0xb2] sm:$0xff]
    %v2621 = vld [vmem:[#allocation2 + $0xc2] sm:$0xff]
    %v2622 = vld [vmem:[#allocation2 + $0xca] sm:$0xff]
    %v2623 = vld [vmem:[#allocation2 + $0xda] sm:$0xff]
    %v2624 = vld [vmem:[#allocation2 + $0xe2] sm:$0xff]
    %v2625 = vld [vmem:[#allocation2 + $0xf2] sm:$0xff]
    %v2626 = vld [vmem:[#allocation2 + $0xfa] sm:$0xff]
    %v2627 = vld [vmem:[#allocation2 + $0x10a] sm:$0xff]
    %v2628 = vld [vmem:[#allocation2 + $0x112] sm:$0xff]
    %v2629 = vld [vmem:[#allocation2 + $0x122] sm:$0xff]
    %v2630 = vld [vmem:[#allocation2 + $0x12a] sm:$0xff]
    %v2631 = vld [vmem:[#allocation2 + $0x13a] sm:$0xff]
    %v2632 = vld [vmem:[#allocation2 + $0x142] sm:$0xff]
    %v2633 = vld [vmem:[#allocation2 + $0x152] sm:$0xff]
    %v2634 = vld [vmem:[#allocation2 + $0x15a] sm:$0xff]
    %v2635 = vld [vmem:[#allocation2 + $0x16a] sm:$0xff]
    %v2636 = vld [vmem:[#allocation2 + $0x172] sm:$0xff]
    %v2637 = vld [vmem:[#allocation2 + $0x1b2] sm:$0xff]
    %v2638 = vld [vmem:[#allocation2 + $0x1ba] sm:$0xff]
    %v2639 = vld [vmem:[#allocation2 + $0x1ca] sm:$0xff]
    %v2640 = vld [vmem:[#allocation2 + $0x1d2] sm:$0xff]
    %v2641 = vld [vmem:[#allocation2 + $0x1e2] sm:$0xff]
    %v2642 = vld [vmem:[#allocation2 + $0x1ea] sm:$0xff]
    %v2643 = vld [vmem:[#allocation2 + $0x1fa] sm:$0xff]
    %v2644 = vld [vmem:[#allocation2 + $0x202] sm:$0xff]
    %v2645 = vld [vmem:[#allocation2 + $0x212] sm:$0xff]
    %v2646 = vld [vmem:[#allocation2 + $0x21a] sm:$0xff]
    %v2647 = vld [vmem:[#allocation2 + $0x22a] sm:$0xff]
    %v2648 = vld [vmem:[#allocation2 + $0x232] sm:$0xff]
    %v2649 = vld [vmem:[#allocation2 + $0x242] sm:$0xff]
    %v2650 = vld [vmem:[#allocation2 + $0x24a] sm:$0xff]
    %v2651 = vld [vmem:[#allocation2 + $0x25a] sm:$0xff]
    %v2652 = vld [vmem:[#allocation2 + $0x262] sm:$0xff]
    %v2653 = vld [vmem:[#allocation2 + $0x272] sm:$0xff]
    %v2654 = vld [vmem:[#allocation2 + $0x27a] sm:$0xff]
    %v2655 = vld [vmem:[#allocation2 + $0x28a] sm:$0xff]
    %v2656 = vld [vmem:[#allocation2 + $0x292] sm:$0xff]
    %v2657 = vld [vmem:[#allocation2 + $0x2a2] sm:$0xff]
    %v2658 = vld [vmem:[#allocation2 + $0x2aa] sm:$0xff]
    %v2659 = vld [vmem:[#allocation2 + $0x2ba] sm:$0xff]
    %v2660 = vld [vmem:[#allocation2 + $0x2c2] sm:$0xff]
    %v2661 = vld [vmem:[#allocation2 + $0x2d2] sm:$0xff]
    %v2662 = vld [vmem:[#allocation2 + $0x2da] sm:$0xff]
    %v2663 = vld [vmem:[#allocation2 + $0x2ea] sm:$0xff]
    %v2664 = vld [vmem:[#allocation2 + $0x2f2] sm:$0xff]
    %v2665 = vld [vmem:[#allocation2 + $0x302] sm:$0xff]
    %v2666 = vld [vmem:[#allocation2 + $0x30a] sm:$0xff]
    %v2667 = vld [vmem:[#allocation2 + $0x31a] sm:$0xff]
    %v2668 = vld [vmem:[#allocation2 + $0x322] sm:$0xff]
    %s2669 = scalar_lea.vmem [#allocation6], 256
    %v2670 = vld [vmem:[%s2669] sm:$0xff]
    %v2671 = vld [vmem:[%s2669 + $0x8] sm:$0xff]
    %v2672 = vld [vmem:[%s2669 + $0x10] sm:$0xff]
    %v2673 = vld [vmem:[%s2669 + $0x18] sm:$0xff]
    %v2674 = vld [vmem:[%s2669 + $0x20] sm:$0xff]
    %v2675 = vld [vmem:[%s2669 + $0x28] sm:$0xff]
    %v2676 = vld [vmem:[%s2669 + $0x30] sm:$0xff]
    %v2677 = vld [vmem:[%s2669 + $0x38] sm:$0xff]
    %v2678 = vld [vmem:[%s2669 + $0x40] sm:$0xff]
    %v2679 = vld [vmem:[%s2669 + $0x48] sm:$0xff]
    %v2680 = vld [vmem:[%s2669 + $0x50] sm:$0xff]
    %v2681 = vld [vmem:[%s2669 + $0x58] sm:$0xff]
    %v2682 = vld [vmem:[%s2669 + $0x60] sm:$0xff]
    %v2683 = vld [vmem:[%s2669 + $0x68] sm:$0xff]
    %v2684 = vld [vmem:[%s2669 + $0x70] sm:$0xff]
    %v2685 = vld [vmem:[%s2669 + $0x78] sm:$0xff]
    %2686 = vmatprep.subr.mxu0 0.0
    %2687 = vmatpush1.msra.mxu0 %v2670
    %2688 = vmatprep.subr.mxu0 0.0
    %2689 = vmatpush1.msra.mxu0 %v2671
    %2690 = vmatprep.subr.mxu0 0.0
    %2691 = vmatpush1.msra.mxu0 %v2672
    %2692 = vmatprep.subr.mxu0 0.0
    %2693 = vmatpush1.msra.mxu0 %v2673
    %2694 = vmatprep.subr.mxu0 0.0
    %2695 = vmatpush1.msra.mxu0 %v2674
    %2696 = vmatprep.subr.mxu0 0.0
    %2697 = vmatpush1.msra.mxu0 %v2675
    %2698 = vmatprep.subr.mxu0 0.0
    %2699 = vmatpush1.msra.mxu0 %v2676
    %2700 = vmatprep.subr.mxu0 0.0
    %2701 = vmatpush1.msra.mxu0 %v2677
    %2702 = vmatprep.subr.mxu0 0.0
    %2703 = vmatpush1.msra.mxu0 %v2678
    %2704 = vmatprep.subr.mxu0 0.0
    %2705 = vmatpush1.msra.mxu0 %v2679
    %2706 = vmatprep.subr.mxu0 0.0
    %2707 = vmatpush1.msra.mxu0 %v2680
    %2708 = vmatprep.subr.mxu0 0.0
    %2709 = vmatpush1.msra.mxu0 %v2681
    %2710 = vmatprep.subr.mxu0 0.0
    %2711 = vmatpush1.msra.mxu0 %v2682
    %2712 = vmatprep.subr.mxu0 0.0
    %2713 = vmatpush1.msra.mxu0 %v2683
    %2714 = vmatprep.subr.mxu0 0.0
    %2715 = vmatpush1.msra.mxu0 %v2684
    %2716 = vmatprep.subr.mxu0 0.0
    %2717 = vmatpush1.msra.mxu0 %v2685
    %2718 = vmatprep.subr.mxu0 0.0
    %2719 = vmatpush1.msra.mxu0 0.0
    %2720 = vmatprep.subr.mxu0 0.0
    %2721 = vmatpush1.msra.mxu0 0.0
    %2722 = vmatprep.subr.mxu0 0.0
    %2723 = vmatpush1.msra.mxu0 0.0
    %2724 = vmatprep.subr.mxu0 0.0
    %2725 = vmatpush1.msra.mxu0 0.0
    %2726 = vmatprep.subr.mxu0 0.0
    %2727 = vmatpush1.msra.mxu0 0.0
    %2728 = vmatprep.subr.mxu0 0.0
    %2729 = vmatpush1.msra.mxu0 0.0
    %2730 = vmatprep.subr.mxu0 0.0
    %2731 = vmatpush1.msra.mxu0 0.0
    %2732 = vmatprep.subr.mxu0 0.0
    %2733 = vmatpush1.msra.mxu0 0.0
    %2734 = vmatprep.subr.mxu0 0.0
    %2735 = vmatpush1.msra.mxu0 0.0
    %2736 = vmatprep.subr.mxu0 0.0
    %2737 = vmatpush1.msra.mxu0 0.0
    %2738 = vmatprep.subr.mxu0 0.0
    %2739 = vmatpush1.msra.mxu0 0.0
    %2740 = vmatprep.subr.mxu0 0.0
    %2741 = vmatpush1.msra.mxu0 0.0
    %2742 = vmatprep.subr.mxu0 0.0
    %2743 = vmatpush1.msra.mxu0 0.0
    %2744 = vmatprep.subr.mxu0 0.0
    %2745 = vmatpush1.msra.mxu0 0.0
    %2746 = vmatprep.subr.mxu0 0.0
    %2747 = vmatpush1.msra.mxu0 0.0
    %2748 = vmatprep.subr.mxu0 0.0
    %2749 = vmatpush1.msra.mxu0 0.0
    %2750 = vmatprep.mubr.f32.mxu0 0.0
    %2751 = vmatmul.mubr.f32.gmra.mrb[0].mxu0 %v2605
    %v2752 = vpop.f32.mrb[0].mxu0
    %v2753 = vadd.f32 0.0, %v2752
    %v2754 = vpop.f32.mrb[0].mxu0
    %2755 = vmatprep.mubr.f32.mxu0 0.0
    %2756 = vmatmul.mubr.f32.gmra.mrb[0].mxu0 %v2606
    %v2757 = vpop.f32.mrb[0].mxu0
    %v2758 = vadd.f32 0.0, %v2757
    %v2759 = vpop.f32.mrb[0].mxu0
    %2760 = vmatprep.mubr.f32.mxu0 0.0
    %2761 = vmatmul.mubr.f32.gmra.mrb[0].mxu0 %v2607
    %v2762 = vpop.f32.mrb[0].mxu0
    %v2763 = vadd.f32 0.0, %v2762
    %v2764 = vpop.f32.mrb[0].mxu0
    %2765 = vmatprep.mubr.f32.mxu0 0.0
    %2766 = vmatmul.mubr.f32.gmra.mrb[0].mxu0 %v2608
    %v2767 = vpop.f32.mrb[0].mxu0
    %v2768 = vadd.f32 0.0, %v2767
    %v2769 = vpop.f32.mrb[0].mxu0
    %2770 = vmatprep.mubr.f32.mxu0 0.0
    %2771 = vmatmul.mubr.f32.gmra.mrb[0].mxu0 %v2609
    %v2772 = vpop.f32.mrb[0].mxu0
    %v2773 = vadd.f32 0.0, %v2772
    %v2774 = vpop.f32.mrb[0].mxu0
    %2775 = vmatprep.mubr.f32.mxu0 0.0
    %2776 = vmatmul.mubr.f32.gmra.mrb[0].mxu0 %v2610
    %v2777 = vpop.f32.mrb[0].mxu0
    %v2778 = vadd.f32 0.0, %v2777
    %v2779 = vpop.f32.mrb[0].mxu0
    %2780 = vmatprep.mubr.f32.mxu0 0.0
    %2781 = vmatmul.mubr.f32.gmra.mrb[0].mxu0 %v2611
    %v2782 = vpop.f32.mrb[0].mxu0
    %v2783 = vadd.f32 0.0, %v2782
    %v2784 = vpop.f32.mrb[0].mxu0
    %2785 = vmatprep.mubr.f32.mxu0 0.0
    %2786 = vmatmul.mubr.f32.gmra.mrb[0].mxu0 %v2612
    %v2787 = vpop.f32.mrb[0].mxu0
    %v2788 = vadd.f32 0.0, %v2787
    %v2789 = vpop.f32.mrb[0].mxu0
    %2790 = vmatprep.mubr.f32.mxu0 0.0
    %2791 = vmatmul.mubr.f32.gmra.mrb[0].mxu0 %v2613
    %v2792 = vpop.f32.mrb[0].mxu0
    %v2793 = vadd.f32 0.0, %v2792
    %v2794 = vpop.f32.mrb[0].mxu0
    %2795 = vmatprep.mubr.f32.mxu0 0.0
    %2796 = vmatmul.mubr.f32.gmra.mrb[0].mxu0 %v2614
    %v2797 = vpop.f32.mrb[0].mxu0
    %v2798 = vadd.f32 0.0, %v2797
    %v2799 = vpop.f32.mrb[0].mxu0
    %2800 = vmatprep.mubr.f32.mxu0 0.0
    %2801 = vmatmul.mubr.f32.gmra.mrb[0].mxu0 %v2615
    %v2802 = vpop.f32.mrb[0].mxu0
    %v2803 = vadd.f32 0.0, %v2802
    %v2804 = vpop.f32.mrb[0].mxu0
    %2805 = vmatprep.mubr.f32.mxu0 0.0
    %2806 = vmatmul.mubr.f32.gmra.mrb[0].mxu0 %v2616
    %v2807 = vpop.f32.mrb[0].mxu0
    %v2808 = vadd.f32 0.0, %v2807
    %v2809 = vpop.f32.mrb[0].mxu0
    %2810 = vmatprep.mubr.f32.mxu0 0.0
    %2811 = vmatmul.mubr.f32.gmra.mrb[0].mxu0 %v2617
    %v2812 = vpop.f32.mrb[0].mxu0
    %v2813 = vadd.f32 0.0, %v2812
    %v2814 = vpop.f32.mrb[0].mxu0
    %2815 = vmatprep.mubr.f32.mxu0 0.0
    %2816 = vmatmul.mubr.f32.gmra.mrb[0].mxu0 %v2618
    %v2817 = vpop.f32.mrb[0].mxu0
    %v2818 = vadd.f32 0.0, %v2817
    %v2819 = vpop.f32.mrb[0].mxu0
    %2820 = vmatprep.mubr.f32.mxu0 0.0
    %2821 = vmatmul.mubr.f32.gmra.mrb[0].mxu0 %v2619
    %v2822 = vpop.f32.mrb[0].mxu0
    %v2823 = vadd.f32 0.0, %v2822
    %v2824 = vpop.f32.mrb[0].mxu0
    %2825 = vmatprep.mubr.f32.mxu0 0.0
    %2826 = vmatmul.mubr.f32.gmra.mrb[0].mxu0 %v2620
    %v2827 = vpop.f32.mrb[0].mxu0
    %v2828 = vadd.f32 0.0, %v2827
    %v2829 = vpop.f32.mrb[0].mxu0
    %2830 = vmatprep.mubr.f32.mxu0 0.0
    %2831 = vmatmul.mubr.f32.gmra.mrb[0].mxu0 %v2621
    %v2832 = vpop.f32.mrb[0].mxu0
    %v2833 = vadd.f32 0.0, %v2832
    %v2834 = vpop.f32.mrb[0].mxu0
    %2835 = vmatprep.mubr.f32.mxu0 0.0
    %2836 = vmatmul.mubr.f32.gmra.mrb[0].mxu0 %v2622
    %v2837 = vpop.f32.mrb[0].mxu0
    %v2838 = vadd.f32 0.0, %v2837
    %v2839 = vpop.f32.mrb[0].mxu0
    %2840 = vmatprep.mubr.f32.mxu0 0.0
    %2841 = vmatmul.mubr.f32.gmra.mrb[0].mxu0 %v2623
    %v2842 = vpop.f32.mrb[0].mxu0
    %v2843 = vadd.f32 0.0, %v2842
    %v2844 = vpop.f32.mrb[0].mxu0
    %2845 = vmatprep.mubr.f32.mxu0 0.0
    %2846 = vmatmul.mubr.f32.gmra.mrb[0].mxu0 %v2624
    %v2847 = vpop.f32.mrb[0].mxu0
    %v2848 = vadd.f32 0.0, %v2847
    %v2849 = vpop.f32.mrb[0].mxu0
    %2850 = vmatprep.mubr.f32.mxu0 0.0
    %2851 = vmatmul.mubr.f32.gmra.mrb[0].mxu0 %v2625
    %v2852 = vpop.f32.mrb[0].mxu0
    %v2853 = vadd.f32 0.0, %v2852
    %v2854 = vpop.f32.mrb[0].mxu0
    %2855 = vmatprep.mubr.f32.mxu0 0.0
    %2856 = vmatmul.mubr.f32.gmra.mrb[0].mxu0 %v2626
    %v2857 = vpop.f32.mrb[0].mxu0
    %v2858 = vadd.f32 0.0, %v2857
    %v2859 = vpop.f32.mrb[0].mxu0
    %2860 = vmatprep.mubr.f32.mxu0 0.0
    %2861 = vmatmul.mubr.f32.gmra.mrb[0].mxu0 %v2627
    %v2862 = vpop.f32.mrb[0].mxu0
    %v2863 = vadd.f32 0.0, %v2862
    %v2864 = vpop.f32.mrb[0].mxu0
    %2865 = vmatprep.mubr.f32.mxu0 0.0
    %2866 = vmatmul.mubr.f32.gmra.mrb[0].mxu0 %v2628
    %v2867 = vpop.f32.mrb[0].mxu0
    %v2868 = vadd.f32 0.0, %v2867
    %v2869 = vpop.f32.mrb[0].mxu0
    %2870 = vmatprep.mubr.f32.mxu0 0.0
    %2871 = vmatmul.mubr.f32.gmra.mrb[0].mxu0 %v2629
    %v2872 = vpop.f32.mrb[0].mxu0
    %v2873 = vadd.f32 0.0, %v2872
    %v2874 = vpop.f32.mrb[0].mxu0
    %2875 = vmatprep.mubr.f32.mxu0 0.0
    %2876 = vmatmul.mubr.f32.gmra.mrb[0].mxu0 %v2630
    %v2877 = vpop.f32.mrb[0].mxu0
    %v2878 = vadd.f32 0.0, %v2877
    %v2879 = vpop.f32.mrb[0].mxu0
    %2880 = vmatprep.mubr.f32.mxu0 0.0
    %2881 = vmatmul.mubr.f32.gmra.mrb[0].mxu0 %v2631
    %v2882 = vpop.f32.mrb[0].mxu0
    %v2883 = vadd.f32 0.0, %v2882
    %v2884 = vpop.f32.mrb[0].mxu0
    %2885 = vmatprep.mubr.f32.mxu0 0.0
    %2886 = vmatmul.mubr.f32.gmra.mrb[0].mxu0 %v2632
    %v2887 = vpop.f32.mrb[0].mxu0
    %v2888 = vadd.f32 0.0, %v2887
    %v2889 = vpop.f32.mrb[0].mxu0
    %2890 = vmatprep.mubr.f32.mxu0 0.0
    %2891 = vmatmul.mubr.f32.gmra.mrb[0].mxu0 %v2633
    %v2892 = vpop.f32.mrb[0].mxu0
    %v2893 = vadd.f32 0.0, %v2892
    %v2894 = vpop.f32.mrb[0].mxu0
    %2895 = vmatprep.mubr.f32.mxu0 0.0
    %2896 = vmatmul.mubr.f32.gmra.mrb[0].mxu0 %v2634
    %v2897 = vpop.f32.mrb[0].mxu0
    %v2898 = vadd.f32 0.0, %v2897
    %v2899 = vpop.f32.mrb[0].mxu0
    %2900 = vmatprep.mubr.f32.mxu0 0.0
    %2901 = vmatmul.mubr.f32.gmra.mrb[0].mxu0 %v2635
    %v2902 = vpop.f32.mrb[0].mxu0
    %v2903 = vadd.f32 0.0, %v2902
    %v2904 = vpop.f32.mrb[0].mxu0
    %2905 = vmatprep.mubr.f32.mxu0 0.0
    %2906 = vmatmul.mubr.f32.gmra.mrb[0].mxu0 %v2636
    %v2907 = vpop.f32.mrb[0].mxu0
    %v2908 = vadd.f32 0.0, %v2907
    %v2909 = vpop.f32.mrb[0].mxu0
    %2910 = vmatprep.mubr.f32.mxu0 0.0
    %2911 = vmatmul.mubr.f32.gmra.mrb[0].mxu0 %v2637
    %v2912 = vpop.f32.mrb[0].mxu0
    %v2913 = vadd.f32 0.0, %v2912
    %v2914 = vpop.f32.mrb[0].mxu0
    %2915 = vmatprep.mubr.f32.mxu0 0.0
    %2916 = vmatmul.mubr.f32.gmra.mrb[0].mxu0 %v2638
    %v2917 = vpop.f32.mrb[0].mxu0
    %v2918 = vadd.f32 0.0, %v2917
    %v2919 = vpop.f32.mrb[0].mxu0
    %2920 = vmatprep.mubr.f32.mxu0 0.0
    %2921 = vmatmul.mubr.f32.gmra.mrb[0].mxu0 %v2639
    %v2922 = vpop.f32.mrb[0].mxu0
    %v2923 = vadd.f32 0.0, %v2922
    %v2924 = vpop.f32.mrb[0].mxu0
    %2925 = vmatprep.mubr.f32.mxu0 0.0
    %2926 = vmatmul.mubr.f32.gmra.mrb[0].mxu0 %v2640
    %v2927 = vpop.f32.mrb[0].mxu0
    %v2928 = vadd.f32 0.0, %v2927
    %v2929 = vpop.f32.mrb[0].mxu0
    %2930 = vmatprep.mubr.f32.mxu0 0.0
    %2931 = vmatmul.mubr.f32.gmra.mrb[0].mxu0 %v2641
    %v2932 = vpop.f32.mrb[0].mxu0
    %v2933 = vadd.f32 0.0, %v2932
    %v2934 = vpop.f32.mrb[0].mxu0
    %2935 = vmatprep.mubr.f32.mxu0 0.0
    %2936 = vmatmul.mubr.f32.gmra.mrb[0].mxu0 %v2642
    %v2937 = vpop.f32.mrb[0].mxu0
    %v2938 = vadd.f32 0.0, %v2937
    %v2939 = vpop.f32.mrb[0].mxu0
    %2940 = vmatprep.mubr.f32.mxu0 0.0
    %2941 = vmatmul.mubr.f32.gmra.mrb[0].mxu0 %v2643
    %v2942 = vpop.f32.mrb[0].mxu0
    %v2943 = vadd.f32 0.0, %v2942
    %v2944 = vpop.f32.mrb[0].mxu0
    %2945 = vmatprep.mubr.f32.mxu0 0.0
    %2946 = vmatmul.mubr.f32.gmra.mrb[0].mxu0 %v2644
    %v2947 = vpop.f32.mrb[0].mxu0
    %v2948 = vadd.f32 0.0, %v2947
    %v2949 = vpop.f32.mrb[0].mxu0
    %2950 = vmatprep.mubr.f32.mxu0 0.0
    %2951 = vmatmul.mubr.f32.gmra.mrb[0].mxu0 %v2645
    %v2952 = vpop.f32.mrb[0].mxu0
    %v2953 = vadd.f32 0.0, %v2952
    %v2954 = vpop.f32.mrb[0].mxu0
    %2955 = vmatprep.mubr.f32.mxu0 0.0
    %2956 = vmatmul.mubr.f32.gmra.mrb[0].mxu0 %v2646
    %v2957 = vpop.f32.mrb[0].mxu0
    %v2958 = vadd.f32 0.0, %v2957
    %v2959 = vpop.f32.mrb[0].mxu0
    %2960 = vmatprep.mubr.f32.mxu0 0.0
    %2961 = vmatmul.mubr.f32.gmra.mrb[0].mxu0 %v2647
    %v2962 = vpop.f32.mrb[0].mxu0
    %v2963 = vadd.f32 0.0, %v2962
    %v2964 = vpop.f32.mrb[0].mxu0
    %2965 = vmatprep.mubr.f32.mxu0 0.0
    %2966 = vmatmul.mubr.f32.gmra.mrb[0].mxu0 %v2648
    %v2967 = vpop.f32.mrb[0].mxu0
    %v2968 = vadd.f32 0.0, %v2967
    %v2969 = vpop.f32.mrb[0].mxu0
    %2970 = vmatprep.mubr.f32.mxu0 0.0
    %2971 = vmatmul.mubr.f32.gmra.mrb[0].mxu0 %v2649
    %v2972 = vpop.f32.mrb[0].mxu0
    %v2973 = vadd.f32 0.0, %v2972
    %v2974 = vpop.f32.mrb[0].mxu0
    %2975 = vmatprep.mubr.f32.mxu0 0.0
    %2976 = vmatmul.mubr.f32.gmra.mrb[0].mxu0 %v2650
    %v2977 = vpop.f32.mrb[0].mxu0
    %v2978 = vadd.f32 0.0, %v2977
    %v2979 = vpop.f32.mrb[0].mxu0
    %2980 = vmatprep.mubr.f32.mxu0 0.0
    %2981 = vmatmul.mubr.f32.gmra.mrb[0].mxu0 %v2651
    %v2982 = vpop.f32.mrb[0].mxu0
    %v2983 = vadd.f32 0.0, %v2982
    %v2984 = vpop.f32.mrb[0].mxu0
    %2985 = vmatprep.mubr.f32.mxu0 0.0
    %2986 = vmatmul.mubr.f32.gmra.mrb[0].mxu0 %v2652
    %v2987 = vpop.f32.mrb[0].mxu0
    %v2988 = vadd.f32 0.0, %v2987
    %v2989 = vpop.f32.mrb[0].mxu0
    %2990 = vmatprep.mubr.f32.mxu0 0.0
    %2991 = vmatmul.mubr.f32.gmra.mrb[0].mxu0 %v2653
    %v2992 = vpop.f32.mrb[0].mxu0
    %v2993 = vadd.f32 0.0, %v2992
    %v2994 = vpop.f32.mrb[0].mxu0
    %2995 = vmatprep.mubr.f32.mxu0 0.0
    %2996 = vmatmul.mubr.f32.gmra.mrb[0].mxu0 %v2654
    %v2997 = vpop.f32.mrb[0].mxu0
    %v2998 = vadd.f32 0.0, %v2997
    %v2999 = vpop.f32.mrb[0].mxu0
    %3000 = vmatprep.mubr.f32.mxu0 0.0
    %3001 = vmatmul.mubr.f32.gmra.mrb[0].mxu0 %v2655
    %v3002 = vpop.f32.mrb[0].mxu0
    %v3003 = vadd.f32 0.0, %v3002
    %v3004 = vpop.f32.mrb[0].mxu0
    %3005 = vmatprep.mubr.f32.mxu0 0.0
    %3006 = vmatmul.mubr.f32.gmra.mrb[0].mxu0 %v2656
    %v3007 = vpop.f32.mrb[0].mxu0
    %v3008 = vadd.f32 0.0, %v3007
    %v3009 = vpop.f32.mrb[0].mxu0
    %3010 = vmatprep.mubr.f32.mxu0 0.0
    %3011 = vmatmul.mubr.f32.gmra.mrb[0].mxu0 %v2657
    %v3012 = vpop.f32.mrb[0].mxu0
    %v3013 = vadd.f32 0.0, %v3012
    %v3014 = vpop.f32.mrb[0].mxu0
    %3015 = vmatprep.mubr.f32.mxu0 0.0
    %3016 = vmatmul.mubr.f32.gmra.mrb[0].mxu0 %v2658
    %v3017 = vpop.f32.mrb[0].mxu0
    %v3018 = vadd.f32 0.0, %v3017
    %v3019 = vpop.f32.mrb[0].mxu0
    %3020 = vmatprep.mubr.f32.mxu0 0.0
    %3021 = vmatmul.mubr.f32.gmra.mrb[0].mxu0 %v2659
    %v3022 = vpop.f32.mrb[0].mxu0
    %v3023 = vadd.f32 0.0, %v3022
    %v3024 = vpop.f32.mrb[0].mxu0
    %3025 = vmatprep.mubr.f32.mxu0 0.0
    %3026 = vmatmul.mubr.f32.gmra.mrb[0].mxu0 %v2660
    %v3027 = vpop.f32.mrb[0].mxu0
    %v3028 = vadd.f32 0.0, %v3027
    %v3029 = vpop.f32.mrb[0].mxu0
    %3030 = vmatprep.mubr.f32.mxu0 0.0
    %3031 = vmatmul.mubr.f32.gmra.mrb[0].mxu0 %v2661
    %v3032 = vpop.f32.mrb[0].mxu0
    %v3033 = vadd.f32 0.0, %v3032
    %v3034 = vpop.f32.mrb[0].mxu0
    %3035 = vmatprep.mubr.f32.mxu0 0.0
    %3036 = vmatmul.mubr.f32.gmra.mrb[0].mxu0 %v2662
    %v3037 = vpop.f32.mrb[0].mxu0
    %v3038 = vadd.f32 0.0, %v3037
    %v3039 = vpop.f32.mrb[0].mxu0
    %3040 = vmatprep.mubr.f32.mxu0 0.0
    %3041 = vmatmul.mubr.f32.gmra.mrb[0].mxu0 %v2663
    %v3042 = vpop.f32.mrb[0].mxu0
    %v3043 = vadd.f32 0.0, %v3042
    %v3044 = vpop.f32.mrb[0].mxu0
    %3045 = vmatprep.mubr.f32.mxu0 0.0
    %3046 = vmatmul.mubr.f32.gmra.mrb[0].mxu0 %v2664
    %v3047 = vpop.f32.mrb[0].mxu0
    %v3048 = vadd.f32 0.0, %v3047
    %v3049 = vpop.f32.mrb[0].mxu0
    %3050 = vmatprep.mubr.f32.mxu0 0.0
    %3051 = vmatmul.mubr.f32.gmra.mrb[0].mxu0 %v2665
    %v3052 = vpop.f32.mrb[0].mxu0
    %v3053 = vadd.f32 0.0, %v3052
    %v3054 = vpop.f32.mrb[0].mxu0
    %3055 = vmatprep.mubr.f32.mxu0 0.0
    %3056 = vmatmul.mubr.f32.gmra.mrb[0].mxu0 %v2666
    %v3057 = vpop.f32.mrb[0].mxu0
    %v3058 = vadd.f32 0.0, %v3057
    %v3059 = vpop.f32.mrb[0].mxu0
    %3060 = vmatprep.mubr.f32.mxu0 0.0
    %3061 = vmatmul.mubr.f32.gmra.mrb[0].mxu0 %v2667
    %v3062 = vpop.f32.mrb[0].mxu0
    %v3063 = vadd.f32 0.0, %v3062
    %v3064 = vpop.f32.mrb[0].mxu0
    %3065 = vmatprep.mubr.f32.mxu0 0.0
    %3066 = vmatmul.mubr.f32.gmra.mrb[0].mxu0 %v2668
    %v3067 = vpop.f32.mrb[0].mxu0
    %v3068 = vadd.f32 0.0, %v3067
    %v3069 = vpop.f32.mrb[0].mxu0
    %3070 = vdwg.mxu0
    %v3071 = vadd.f32 %v2287, %v2753
    %v3072 = vadd.f32 %v2292, %v2758
    %v3073 = vadd.f32 %v2297, %v2763
    %v3074 = vadd.f32 %v2302, %v2768
    %v3075 = vadd.f32 %v2307, %v2773
    %v3076 = vadd.f32 %v2312, %v2778
    %v3077 = vadd.f32 %v2317, %v2783
    %v3078 = vadd.f32 %v2322, %v2788
    %v3079 = vadd.f32 %v2327, %v2793
    %v3080 = vadd.f32 %v2332, %v2798
    %v3081 = vadd.f32 %v2337, %v2803
    %v3082 = vadd.f32 %v2342, %v2808
    %v3083 = vadd.f32 %v2347, %v2813
    %v3084 = vadd.f32 %v2352, %v2818
    %v3085 = vadd.f32 %v2357, %v2823
    %v3086 = vadd.f32 %v2362, %v2828
    %v3087 = vadd.f32 %v2367, %v2833
    %v3088 = vadd.f32 %v2372, %v2838
    %v3089 = vadd.f32 %v2377, %v2843
    %v3090 = vadd.f32 %v2382, %v2848
    %v3091 = vadd.f32 %v2387, %v2853
    %v3092 = vadd.f32 %v2392, %v2858
    %v3093 = vadd.f32 %v2397, %v2863
    %v3094 = vadd.f32 %v2402, %v2868
    %v3095 = vadd.f32 %v2407, %v2873
    %v3096 = vadd.f32 %v2412, %v2878
    %v3097 = vadd.f32 %v2417, %v2883
    %v3098 = vadd.f32 %v2422, %v2888
    %v3099 = vadd.f32 %v2427, %v2893
    %v3100 = vadd.f32 %v2432, %v2898
    %v3101 = vadd.f32 %v2437, %v2903
    %v3102 = vadd.f32 %v2442, %v2908
    %v3103 = vadd.f32 %v2447, %v2913
    %v3104 = vadd.f32 %v2452, %v2918
    %v3105 = vadd.f32 %v2457, %v2923
    %v3106 = vadd.f32 %v2462, %v2928
    %v3107 = vadd.f32 %v2467, %v2933
    %v3108 = vadd.f32 %v2472, %v2938
    %v3109 = vadd.f32 %v2477, %v2943
    %v3110 = vadd.f32 %v2482, %v2948
    %v3111 = vadd.f32 %v2487, %v2953
    %v3112 = vadd.f32 %v2492, %v2958
    %v3113 = vadd.f32 %v2497, %v2963
    %v3114 = vadd.f32 %v2502, %v2968
    %v3115 = vadd.f32 %v2507, %v2973
    %v3116 = vadd.f32 %v2512, %v2978
    %v3117 = vadd.f32 %v2517, %v2983
    %v3118 = vadd.f32 %v2522, %v2988
    %v3119 = vadd.f32 %v2527, %v2993
    %v3120 = vadd.f32 %v2532, %v2998
    %v3121 = vadd.f32 %v2537, %v3003
    %v3122 = vadd.f32 %v2542, %v3008
    %v3123 = vadd.f32 %v2547, %v3013
    %v3124 = vadd.f32 %v2552, %v3018
    %v3125 = vadd.f32 %v2557, %v3023
    %v3126 = vadd.f32 %v2562, %v3028
    %v3127 = vadd.f32 %v2567, %v3033
    %v3128 = vadd.f32 %v2572, %v3038
    %v3129 = vadd.f32 %v2577, %v3043
    %v3130 = vadd.f32 %v2582, %v3048
    %v3131 = vadd.f32 %v2587, %v3053
    %v3132 = vadd.f32 %v2592, %v3058
    %v3133 = vadd.f32 %v2597, %v3063
    %v3134 = vadd.f32 %v2602, %v3068
    %s3135 = scalar_lea.vmem [#allocation2], 24
    %v3136 = vld [vmem:[%s3135] sm:$0xff]
    %v3137 = vld [vmem:[%s3135 + $0x8] sm:$0xff]
    %v3138 = vld [vmem:[%s3135 + $0x18] sm:$0xff]
    %v3139 = vld [vmem:[%s3135 + $0x20] sm:$0xff]
    %v3140 = vld [vmem:[%s3135 + $0x30] sm:$0xff]
    %v3141 = vld [vmem:[%s3135 + $0x38] sm:$0xff]
    %v3142 = vld [vmem:[%s3135 + $0x48] sm:$0xff]
    %v3143 = vld [vmem:[%s3135 + $0x50] sm:$0xff]
    %v3144 = vld [vmem:[%s3135 + $0x60] sm:$0xff]
    %v3145 = vld [vmem:[%s3135 + $0x68] sm:$0xff]
    %v3146 = vld [vmem:[%s3135 + $0x78] sm:$0xff]
    %v3147 = vld [vmem:[%s3135 + $0x80] sm:$0xff]
    %v3148 = vld [vmem:[%s3135 + $0x90] sm:$0xff]
    %v3149 = vld [vmem:[%s3135 + $0x98] sm:$0xff]
    %v3150 = vld [vmem:[%s3135 + $0xa8] sm:$0xff]
    %v3151 = vld [vmem:[%s3135 + $0xb0] sm:$0xff]
    %v3152 = vld [vmem:[%s3135 + $0xc0] sm:$0xff]
    %v3153 = vld [vmem:[%s3135 + $0xc8] sm:$0xff]
    %v3154 = vld [vmem:[%s3135 + $0xd8] sm:$0xff]
    %v3155 = vld [vmem:[%s3135 + $0xe0] sm:$0xff]
    %v3156 = vld [vmem:[%s3135 + $0xf0] sm:$0xff]
    %v3157 = vld [vmem:[%s3135 + $0xf8] sm:$0xff]
    %v3158 = vld [vmem:[%s3135 + $0x108] sm:$0xff]
    %v3159 = vld [vmem:[%s3135 + $0x110] sm:$0xff]
    %v3160 = vld [vmem:[%s3135 + $0x120] sm:$0xff]
    %v3161 = vld [vmem:[%s3135 + $0x128] sm:$0xff]
    %v3162 = vld [vmem:[%s3135 + $0x138] sm:$0xff]
    %v3163 = vld [vmem:[%s3135 + $0x140] sm:$0xff]
    %v3164 = vld [vmem:[%s3135 + $0x150] sm:$0xff]
    %v3165 = vld [vmem:[%s3135 + $0x158] sm:$0xff]
    %v3166 = vld [vmem:[%s3135 + $0x168] sm:$0xff]
    %v3167 = vld [vmem:[%s3135 + $0x170] sm:$0xff]
    %v3168 = vld [vmem:[%s3135 + $0x1b0] sm:$0xff]
    %v3169 = vld [vmem:[%s3135 + $0x1b8] sm:$0xff]
    %v3170 = vld [vmem:[%s3135 + $0x1c8] sm:$0xff]
    %v3171 = vld [vmem:[%s3135 + $0x1d0] sm:$0xff]
    %v3172 = vld [vmem:[%s3135 + $0x1e0] sm:$0xff]
    %v3173 = vld [vmem:[%s3135 + $0x1e8] sm:$0xff]
    %v3174 = vld [vmem:[%s3135 + $0x1f8] sm:$0xff]
    %v3175 = vld [vmem:[%s3135 + $0x200] sm:$0xff]
    %v3176 = vld [vmem:[%s3135 + $0x210] sm:$0xff]
    %v3177 = vld [vmem:[%s3135 + $0x218] sm:$0xff]
    %v3178 = vld [vmem:[%s3135 + $0x228] sm:$0xff]
    %v3179 = vld [vmem:[%s3135 + $0x230] sm:$0xff]
    %v3180 = vld [vmem:[%s3135 + $0x240] sm:$0xff]
    %v3181 = vld [vmem:[%s3135 + $0x248] sm:$0xff]
    %v3182 = vld [vmem:[%s3135 + $0x258] sm:$0xff]
    %v3183 = vld [vmem:[%s3135 + $0x260] sm:$0xff]
    %v3184 = vld [vmem:[%s3135 + $0x270] sm:$0xff]
    %v3185 = vld [vmem:[%s3135 + $0x278] sm:$0xff]
    %v3186 = vld [vmem:[%s3135 + $0x288] sm:$0xff]
    %v3187 = vld [vmem:[%s3135 + $0x290] sm:$0xff]
    %v3188 = vld [vmem:[%s3135 + $0x2a0] sm:$0xff]
    %v3189 = vld [vmem:[%s3135 + $0x2a8] sm:$0xff]
    %v3190 = vld [vmem:[%s3135 + $0x2b8] sm:$0xff]
    %v3191 = vld [vmem:[%s3135 + $0x2c0] sm:$0xff]
    %v3192 = vld [vmem:[%s3135 + $0x2d0] sm:$0xff]
    %v3193 = vld [vmem:[%s3135 + $0x2d8] sm:$0xff]
    %v3194 = vld [vmem:[%s3135 + $0x2e8] sm:$0xff]
    %v3195 = vld [vmem:[%s3135 + $0x2f0] sm:$0xff]
    %v3196 = vld [vmem:[%s3135 + $0x300] sm:$0xff]
    %v3197 = vld [vmem:[%s3135 + $0x308] sm:$0xff]
    %v3198 = vld [vmem:[%s3135 + $0x318] sm:$0xff]
    %v3199 = vld [vmem:[%s3135 + $0x320] sm:$0xff]
    %s3200 = scalar_lea.vmem [#allocation6], 384
    %v3201 = vld [vmem:[%s3200] sm:$0xff]
    %v3202 = vld [vmem:[%s3200 + $0x8] sm:$0xff]
    %v3203 = vld [vmem:[%s3200 + $0x10] sm:$0xff]
    %v3204 = vld [vmem:[%s3200 + $0x18] sm:$0xff]
    %v3205 = vld [vmem:[%s3200 + $0x20] sm:$0xff]
    %v3206 = vld [vmem:[%s3200 + $0x28] sm:$0xff]
    %v3207 = vld [vmem:[%s3200 + $0x30] sm:$0xff]
    %v3208 = vld [vmem:[%s3200 + $0x38] sm:$0xff]
    %v3209 = vld [vmem:[%s3200 + $0x40] sm:$0xff]
    %v3210 = vld [vmem:[%s3200 + $0x48] sm:$0xff]
    %v3211 = vld [vmem:[%s3200 + $0x50] sm:$0xff]
    %v3212 = vld [vmem:[%s3200 + $0x58] sm:$0xff]
    %v3213 = vld [vmem:[%s3200 + $0x60] sm:$0xff]
    %v3214 = vld [vmem:[%s3200 + $0x68] sm:$0xff]
    %v3215 = vld [vmem:[%s3200 + $0x70] sm:$0xff]
    %v3216 = vld [vmem:[%s3200 + $0x78] sm:$0xff]
    %3217 = vmatprep.subr.mxu0 0.0
    %3218 = vmatpush1.msra.mxu0 %v3201
    %3219 = vmatprep.subr.mxu0 0.0
    %3220 = vmatpush1.msra.mxu0 %v3202
    %3221 = vmatprep.subr.mxu0 0.0
    %3222 = vmatpush1.msra.mxu0 %v3203
    %3223 = vmatprep.subr.mxu0 0.0
    %3224 = vmatpush1.msra.mxu0 %v3204
    %3225 = vmatprep.subr.mxu0 0.0
    %3226 = vmatpush1.msra.mxu0 %v3205
    %3227 = vmatprep.subr.mxu0 0.0
    %3228 = vmatpush1.msra.mxu0 %v3206
    %3229 = vmatprep.subr.mxu0 0.0
    %3230 = vmatpush1.msra.mxu0 %v3207
    %3231 = vmatprep.subr.mxu0 0.0
    %3232 = vmatpush1.msra.mxu0 %v3208
    %3233 = vmatprep.subr.mxu0 0.0
    %3234 = vmatpush1.msra.mxu0 %v3209
    %3235 = vmatprep.subr.mxu0 0.0
    %3236 = vmatpush1.msra.mxu0 %v3210
    %3237 = vmatprep.subr.mxu0 0.0
    %3238 = vmatpush1.msra.mxu0 %v3211
    %3239 = vmatprep.subr.mxu0 0.0
    %3240 = vmatpush1.msra.mxu0 %v3212
    %3241 = vmatprep.subr.mxu0 0.0
    %3242 = vmatpush1.msra.mxu0 %v3213
    %3243 = vmatprep.subr.mxu0 0.0
    %3244 = vmatpush1.msra.mxu0 %v3214
    %3245 = vmatprep.subr.mxu0 0.0
    %3246 = vmatpush1.msra.mxu0 %v3215
    %3247 = vmatprep.subr.mxu0 0.0
    %3248 = vmatpush1.msra.mxu0 %v3216
    %3249 = vmatprep.subr.mxu0 0.0
    %3250 = vmatpush1.msra.mxu0 0.0
    %3251 = vmatprep.subr.mxu0 0.0
    %3252 = vmatpush1.msra.mxu0 0.0
    %3253 = vmatprep.subr.mxu0 0.0
    %3254 = vmatpush1.msra.mxu0 0.0
    %3255 = vmatprep.subr.mxu0 0.0
    %3256 = vmatpush1.msra.mxu0 0.0
    %3257 = vmatprep.subr.mxu0 0.0
    %3258 = vmatpush1.msra.mxu0 0.0
    %3259 = vmatprep.subr.mxu0 0.0
    %3260 = vmatpush1.msra.mxu0 0.0
    %3261 = vmatprep.subr.mxu0 0.0
    %3262 = vmatpush1.msra.mxu0 0.0
    %3263 = vmatprep.subr.mxu0 0.0
    %3264 = vmatpush1.msra.mxu0 0.0
    %3265 = vmatprep.subr.mxu0 0.0
    %3266 = vmatpush1.msra.mxu0 0.0
    %3267 = vmatprep.subr.mxu0 0.0
    %3268 = vmatpush1.msra.mxu0 0.0
    %3269 = vmatprep.subr.mxu0 0.0
    %3270 = vmatpush1.msra.mxu0 0.0
    %3271 = vmatprep.subr.mxu0 0.0
    %3272 = vmatpush1.msra.mxu0 0.0
    %3273 = vmatprep.subr.mxu0 0.0
    %3274 = vmatpush1.msra.mxu0 0.0
    %3275 = vmatprep.subr.mxu0 0.0
    %3276 = vmatpush1.msra.mxu0 0.0
    %3277 = vmatprep.subr.mxu0 0.0
    %3278 = vmatpush1.msra.mxu0 0.0
    %3279 = vmatprep.subr.mxu0 0.0
    %3280 = vmatpush1.msra.mxu0 0.0
    %3281 = vmatprep.mubr.f32.mxu0 0.0
    %3282 = vmatmul.mubr.f32.gmra.mrb[0].mxu0 %v3136
    %v3283 = vpop.f32.mrb[0].mxu0
    %v3284 = vadd.f32 0.0, %v3283
    %v3285 = vpop.f32.mrb[0].mxu0
    %3286 = vmatprep.mubr.f32.mxu0 0.0
    %3287 = vmatmul.mubr.f32.gmra.mrb[0].mxu0 %v3137
    %v3288 = vpop.f32.mrb[0].mxu0
    %v3289 = vadd.f32 0.0, %v3288
    %v3290 = vpop.f32.mrb[0].mxu0
    %3291 = vmatprep.mubr.f32.mxu0 0.0
    %3292 = vmatmul.mubr.f32.gmra.mrb[0].mxu0 %v3138
    %v3293 = vpop.f32.mrb[0].mxu0
    %v3294 = vadd.f32 0.0, %v3293
    %v3295 = vpop.f32.mrb[0].mxu0
    %3296 = vmatprep.mubr.f32.mxu0 0.0
    %3297 = vmatmul.mubr.f32.gmra.mrb[0].mxu0 %v3139
    %v3298 = vpop.f32.mrb[0].mxu0
    %v3299 = vadd.f32 0.0, %v3298
    %v3300 = vpop.f32.mrb[0].mxu0
    %3301 = vmatprep.mubr.f32.mxu0 0.0
    %3302 = vmatmul.mubr.f32.gmra.mrb[0].mxu0 %v3140
    %v3303 = vpop.f32.mrb[0].mxu0
    %v3304 = vadd.f32 0.0, %v3303
    %v3305 = vpop.f32.mrb[0].mxu0
    %3306 = vmatprep.mubr.f32.mxu0 0.0
    %3307 = vmatmul.mubr.f32.gmra.mrb[0].mxu0 %v3141
    %v3308 = vpop.f32.mrb[0].mxu0
    %v3309 = vadd.f32 0.0, %v3308
    %v3310 = vpop.f32.mrb[0].mxu0
    %3311 = vmatprep.mubr.f32.mxu0 0.0
    %3312 = vmatmul.mubr.f32.gmra.mrb[0].mxu0 %v3142
    %v3313 = vpop.f32.mrb[0].mxu0
    %v3314 = vadd.f32 0.0, %v3313
    %v3315 = vpop.f32.mrb[0].mxu0
    %3316 = vmatprep.mubr.f32.mxu0 0.0
    %3317 = vmatmul.mubr.f32.gmra.mrb[0].mxu0 %v3143
    %v3318 = vpop.f32.mrb[0].mxu0
    %v3319 = vadd.f32 0.0, %v3318
    %v3320 = vpop.f32.mrb[0].mxu0
    %3321 = vmatprep.mubr.f32.mxu0 0.0
    %3322 = vmatmul.mubr.f32.gmra.mrb[0].mxu0 %v3144
    %v3323 = vpop.f32.mrb[0].mxu0
    %v3324 = vadd.f32 0.0, %v3323
    %v3325 = vpop.f32.mrb[0].mxu0
    %3326 = vmatprep.mubr.f32.mxu0 0.0
    %3327 = vmatmul.mubr.f32.gmra.mrb[0].mxu0 %v3145
    %v3328 = vpop.f32.mrb[0].mxu0
    %v3329 = vadd.f32 0.0, %v3328
    %v3330 = vpop.f32.mrb[0].mxu0
    %3331 = vmatprep.mubr.f32.mxu0 0.0
    %3332 = vmatmul.mubr.f32.gmra.mrb[0].mxu0 %v3146
    %v3333 = vpop.f32.mrb[0].mxu0
    %v3334 = vadd.f32 0.0, %v3333
    %v3335 = vpop.f32.mrb[0].mxu0
    %3336 = vmatprep.mubr.f32.mxu0 0.0
    %3337 = vmatmul.mubr.f32.gmra.mrb[0].mxu0 %v3147
    %v3338 = vpop.f32.mrb[0].mxu0
    %v3339 = vadd.f32 0.0, %v3338
    %v3340 = vpop.f32.mrb[0].mxu0
    %3341 = vmatprep.mubr.f32.mxu0 0.0
    %3342 = vmatmul.mubr.f32.gmra.mrb[0].mxu0 %v3148
    %v3343 = vpop.f32.mrb[0].mxu0
    %v3344 = vadd.f32 0.0, %v3343
    %v3345 = vpop.f32.mrb[0].mxu0
    %3346 = vmatprep.mubr.f32.mxu0 0.0
    %3347 = vmatmul.mubr.f32.gmra.mrb[0].mxu0 %v3149
    %v3348 = vpop.f32.mrb[0].mxu0
    %v3349 = vadd.f32 0.0, %v3348
    %v3350 = vpop.f32.mrb[0].mxu0
    %3351 = vmatprep.mubr.f32.mxu0 0.0
    %3352 = vmatmul.mubr.f32.gmra.mrb[0].mxu0 %v3150
    %v3353 = vpop.f32.mrb[0].mxu0
    %v3354 = vadd.f32 0.0, %v3353
    %v3355 = vpop.f32.mrb[0].mxu0
    %3356 = vmatprep.mubr.f32.mxu0 0.0
    %3357 = vmatmul.mubr.f32.gmra.mrb[0].mxu0 %v3151
    %v3358 = vpop.f32.mrb[0].mxu0
    %v3359 = vadd.f32 0.0, %v3358
    %v3360 = vpop.f32.mrb[0].mxu0
    %3361 = vmatprep.mubr.f32.mxu0 0.0
    %3362 = vmatmul.mubr.f32.gmra.mrb[0].mxu0 %v3152
    %v3363 = vpop.f32.mrb[0].mxu0
    %v3364 = vadd.f32 0.0, %v3363
    %v3365 = vpop.f32.mrb[0].mxu0
    %3366 = vmatprep.mubr.f32.mxu0 0.0
    %3367 = vmatmul.mubr.f32.gmra.mrb[0].mxu0 %v3153
    %v3368 = vpop.f32.mrb[0].mxu0
    %v3369 = vadd.f32 0.0, %v3368
    %v3370 = vpop.f32.mrb[0].mxu0
    %3371 = vmatprep.mubr.f32.mxu0 0.0
    %3372 = vmatmul.mubr.f32.gmra.mrb[0].mxu0 %v3154
    %v3373 = vpop.f32.mrb[0].mxu0
    %v3374 = vadd.f32 0.0, %v3373
    %v3375 = vpop.f32.mrb[0].mxu0
    %3376 = vmatprep.mubr.f32.mxu0 0.0
    %3377 = vmatmul.mubr.f32.gmra.mrb[0].mxu0 %v3155
    %v3378 = vpop.f32.mrb[0].mxu0
    %v3379 = vadd.f32 0.0, %v3378
    %v3380 = vpop.f32.mrb[0].mxu0
    %3381 = vmatprep.mubr.f32.mxu0 0.0
    %3382 = vmatmul.mubr.f32.gmra.mrb[0].mxu0 %v3156
    %v3383 = vpop.f32.mrb[0].mxu0
    %v3384 = vadd.f32 0.0, %v3383
    %v3385 = vpop.f32.mrb[0].mxu0
    %3386 = vmatprep.mubr.f32.mxu0 0.0
    %3387 = vmatmul.mubr.f32.gmra.mrb[0].mxu0 %v3157
    %v3388 = vpop.f32.mrb[0].mxu0
    %v3389 = vadd.f32 0.0, %v3388
    %v3390 = vpop.f32.mrb[0].mxu0
    %3391 = vmatprep.mubr.f32.mxu0 0.0
    %3392 = vmatmul.mubr.f32.gmra.mrb[0].mxu0 %v3158
    %v3393 = vpop.f32.mrb[0].mxu0
    %v3394 = vadd.f32 0.0, %v3393
    %v3395 = vpop.f32.mrb[0].mxu0
    %3396 = vmatprep.mubr.f32.mxu0 0.0
    %3397 = vmatmul.mubr.f32.gmra.mrb[0].mxu0 %v3159
    %v3398 = vpop.f32.mrb[0].mxu0
    %v3399 = vadd.f32 0.0, %v3398
    %v3400 = vpop.f32.mrb[0].mxu0
    %3401 = vmatprep.mubr.f32.mxu0 0.0
    %3402 = vmatmul.mubr.f32.gmra.mrb[0].mxu0 %v3160
    %v3403 = vpop.f32.mrb[0].mxu0
    %v3404 = vadd.f32 0.0, %v3403
    %v3405 = vpop.f32.mrb[0].mxu0
    %3406 = vmatprep.mubr.f32.mxu0 0.0
    %3407 = vmatmul.mubr.f32.gmra.mrb[0].mxu0 %v3161
    %v3408 = vpop.f32.mrb[0].mxu0
    %v3409 = vadd.f32 0.0, %v3408
    %v3410 = vpop.f32.mrb[0].mxu0
    %3411 = vmatprep.mubr.f32.mxu0 0.0
    %3412 = vmatmul.mubr.f32.gmra.mrb[0].mxu0 %v3162
    %v3413 = vpop.f32.mrb[0].mxu0
    %v3414 = vadd.f32 0.0, %v3413
    %v3415 = vpop.f32.mrb[0].mxu0
    %3416 = vmatprep.mubr.f32.mxu0 0.0
    %3417 = vmatmul.mubr.f32.gmra.mrb[0].mxu0 %v3163
    %v3418 = vpop.f32.mrb[0].mxu0
    %v3419 = vadd.f32 0.0, %v3418
    %v3420 = vpop.f32.mrb[0].mxu0
    %3421 = vmatprep.mubr.f32.mxu0 0.0
    %3422 = vmatmul.mubr.f32.gmra.mrb[0].mxu0 %v3164
    %v3423 = vpop.f32.mrb[0].mxu0
    %v3424 = vadd.f32 0.0, %v3423
    %v3425 = vpop.f32.mrb[0].mxu0
    %3426 = vmatprep.mubr.f32.mxu0 0.0
    %3427 = vmatmul.mubr.f32.gmra.mrb[0].mxu0 %v3165
    %v3428 = vpop.f32.mrb[0].mxu0
    %v3429 = vadd.f32 0.0, %v3428
    %v3430 = vpop.f32.mrb[0].mxu0
    %3431 = vmatprep.mubr.f32.mxu0 0.0
    %3432 = vmatmul.mubr.f32.gmra.mrb[0].mxu0 %v3166
    %v3433 = vpop.f32.mrb[0].mxu0
    %v3434 = vadd.f32 0.0, %v3433
    %v3435 = vpop.f32.mrb[0].mxu0
    %3436 = vmatprep.mubr.f32.mxu0 0.0
    %3437 = vmatmul.mubr.f32.gmra.mrb[0].mxu0 %v3167
    %v3438 = vpop.f32.mrb[0].mxu0
    %v3439 = vadd.f32 0.0, %v3438
    %v3440 = vpop.f32.mrb[0].mxu0
    %3441 = vmatprep.mubr.f32.mxu0 0.0
    %3442 = vmatmul.mubr.f32.gmra.mrb[0].mxu0 %v3168
    %v3443 = vpop.f32.mrb[0].mxu0
    %v3444 = vadd.f32 0.0, %v3443
    %v3445 = vpop.f32.mrb[0].mxu0
    %3446 = vmatprep.mubr.f32.mxu0 0.0
    %3447 = vmatmul.mubr.f32.gmra.mrb[0].mxu0 %v3169
    %v3448 = vpop.f32.mrb[0].mxu0
    %v3449 = vadd.f32 0.0, %v3448
    %v3450 = vpop.f32.mrb[0].mxu0
    %3451 = vmatprep.mubr.f32.mxu0 0.0
    %3452 = vmatmul.mubr.f32.gmra.mrb[0].mxu0 %v3170
    %v3453 = vpop.f32.mrb[0].mxu0
    %v3454 = vadd.f32 0.0, %v3453
    %v3455 = vpop.f32.mrb[0].mxu0
    %3456 = vmatprep.mubr.f32.mxu0 0.0
    %3457 = vmatmul.mubr.f32.gmra.mrb[0].mxu0 %v3171
    %v3458 = vpop.f32.mrb[0].mxu0
    %v3459 = vadd.f32 0.0, %v3458
    %v3460 = vpop.f32.mrb[0].mxu0
    %3461 = vmatprep.mubr.f32.mxu0 0.0
    %3462 = vmatmul.mubr.f32.gmra.mrb[0].mxu0 %v3172
    %v3463 = vpop.f32.mrb[0].mxu0
    %v3464 = vadd.f32 0.0, %v3463
    %v3465 = vpop.f32.mrb[0].mxu0
    %3466 = vmatprep.mubr.f32.mxu0 0.0
    %3467 = vmatmul.mubr.f32.gmra.mrb[0].mxu0 %v3173
    %v3468 = vpop.f32.mrb[0].mxu0
    %v3469 = vadd.f32 0.0, %v3468
    %v3470 = vpop.f32.mrb[0].mxu0
    %3471 = vmatprep.mubr.f32.mxu0 0.0
    %3472 = vmatmul.mubr.f32.gmra.mrb[0].mxu0 %v3174
    %v3473 = vpop.f32.mrb[0].mxu0
    %v3474 = vadd.f32 0.0, %v3473
    %v3475 = vpop.f32.mrb[0].mxu0
    %3476 = vmatprep.mubr.f32.mxu0 0.0
    %3477 = vmatmul.mubr.f32.gmra.mrb[0].mxu0 %v3175
    %v3478 = vpop.f32.mrb[0].mxu0
    %v3479 = vadd.f32 0.0, %v3478
    %v3480 = vpop.f32.mrb[0].mxu0
    %3481 = vmatprep.mubr.f32.mxu0 0.0
    %3482 = vmatmul.mubr.f32.gmra.mrb[0].mxu0 %v3176
    %v3483 = vpop.f32.mrb[0].mxu0
    %v3484 = vadd.f32 0.0, %v3483
    %v3485 = vpop.f32.mrb[0].mxu0
    %3486 = vmatprep.mubr.f32.mxu0 0.0
    %3487 = vmatmul.mubr.f32.gmra.mrb[0].mxu0 %v3177
    %v3488 = vpop.f32.mrb[0].mxu0
    %v3489 = vadd.f32 0.0, %v3488
    %v3490 = vpop.f32.mrb[0].mxu0
    %3491 = vmatprep.mubr.f32.mxu0 0.0
    %3492 = vmatmul.mubr.f32.gmra.mrb[0].mxu0 %v3178
    %v3493 = vpop.f32.mrb[0].mxu0
    %v3494 = vadd.f32 0.0, %v3493
    %v3495 = vpop.f32.mrb[0].mxu0
    %3496 = vmatprep.mubr.f32.mxu0 0.0
    %3497 = vmatmul.mubr.f32.gmra.mrb[0].mxu0 %v3179
    %v3498 = vpop.f32.mrb[0].mxu0
    %v3499 = vadd.f32 0.0, %v3498
    %v3500 = vpop.f32.mrb[0].mxu0
    %3501 = vmatprep.mubr.f32.mxu0 0.0
    %3502 = vmatmul.mubr.f32.gmra.mrb[0].mxu0 %v3180
    %v3503 = vpop.f32.mrb[0].mxu0
    %v3504 = vadd.f32 0.0, %v3503
    %v3505 = vpop.f32.mrb[0].mxu0
    %3506 = vmatprep.mubr.f32.mxu0 0.0
    %3507 = vmatmul.mubr.f32.gmra.mrb[0].mxu0 %v3181
    %v3508 = vpop.f32.mrb[0].mxu0
    %v3509 = vadd.f32 0.0, %v3508
    %v3510 = vpop.f32.mrb[0].mxu0
    %3511 = vmatprep.mubr.f32.mxu0 0.0
    %3512 = vmatmul.mubr.f32.gmra.mrb[0].mxu0 %v3182
    %v3513 = vpop.f32.mrb[0].mxu0
    %v3514 = vadd.f32 0.0, %v3513
    %v3515 = vpop.f32.mrb[0].mxu0
    %3516 = vmatprep.mubr.f32.mxu0 0.0
    %3517 = vmatmul.mubr.f32.gmra.mrb[0].mxu0 %v3183
    %v3518 = vpop.f32.mrb[0].mxu0
    %v3519 = vadd.f32 0.0, %v3518
    %v3520 = vpop.f32.mrb[0].mxu0
    %3521 = vmatprep.mubr.f32.mxu0 0.0
    %3522 = vmatmul.mubr.f32.gmra.mrb[0].mxu0 %v3184
    %v3523 = vpop.f32.mrb[0].mxu0
    %v3524 = vadd.f32 0.0, %v3523
    %v3525 = vpop.f32.mrb[0].mxu0
    %3526 = vmatprep.mubr.f32.mxu0 0.0
    %3527 = vmatmul.mubr.f32.gmra.mrb[0].mxu0 %v3185
    %v3528 = vpop.f32.mrb[0].mxu0
    %v3529 = vadd.f32 0.0, %v3528
    %v3530 = vpop.f32.mrb[0].mxu0
    %3531 = vmatprep.mubr.f32.mxu0 0.0
    %3532 = vmatmul.mubr.f32.gmra.mrb[0].mxu0 %v3186
    %v3533 = vpop.f32.mrb[0].mxu0
    %v3534 = vadd.f32 0.0, %v3533
    %v3535 = vpop.f32.mrb[0].mxu0
    %3536 = vmatprep.mubr.f32.mxu0 0.0
    %3537 = vmatmul.mubr.f32.gmra.mrb[0].mxu0 %v3187
    %v3538 = vpop.f32.mrb[0].mxu0
    %v3539 = vadd.f32 0.0, %v3538
    %v3540 = vpop.f32.mrb[0].mxu0
    %3541 = vmatprep.mubr.f32.mxu0 0.0
    %3542 = vmatmul.mubr.f32.gmra.mrb[0].mxu0 %v3188
    %v3543 = vpop.f32.mrb[0].mxu0
    %v3544 = vadd.f32 0.0, %v3543
    %v3545 = vpop.f32.mrb[0].mxu0
    %3546 = vmatprep.mubr.f32.mxu0 0.0
    %3547 = vmatmul.mubr.f32.gmra.mrb[0].mxu0 %v3189
    %v3548 = vpop.f32.mrb[0].mxu0
    %v3549 = vadd.f32 0.0, %v3548
    %v3550 = vpop.f32.mrb[0].mxu0
    %3551 = vmatprep.mubr.f32.mxu0 0.0
    %3552 = vmatmul.mubr.f32.gmra.mrb[0].mxu0 %v3190
    %v3553 = vpop.f32.mrb[0].mxu0
    %v3554 = vadd.f32 0.0, %v3553
    %v3555 = vpop.f32.mrb[0].mxu0
    %3556 = vmatprep.mubr.f32.mxu0 0.0
    %3557 = vmatmul.mubr.f32.gmra.mrb[0].mxu0 %v3191
    %v3558 = vpop.f32.mrb[0].mxu0
    %v3559 = vadd.f32 0.0, %v3558
    %v3560 = vpop.f32.mrb[0].mxu0
    %3561 = vmatprep.mubr.f32.mxu0 0.0
    %3562 = vmatmul.mubr.f32.gmra.mrb[0].mxu0 %v3192
    %v3563 = vpop.f32.mrb[0].mxu0
    %v3564 = vadd.f32 0.0, %v3563
    %v3565 = vpop.f32.mrb[0].mxu0
    %3566 = vmatprep.mubr.f32.mxu0 0.0
    %3567 = vmatmul.mubr.f32.gmra.mrb[0].mxu0 %v3193
    %v3568 = vpop.f32.mrb[0].mxu0
    %v3569 = vadd.f32 0.0, %v3568
    %v3570 = vpop.f32.mrb[0].mxu0
    %3571 = vmatprep.mubr.f32.mxu0 0.0
    %3572 = vmatmul.mubr.f32.gmra.mrb[0].mxu0 %v3194
    %v3573 = vpop.f32.mrb[0].mxu0
    %v3574 = vadd.f32 0.0, %v3573
    %v3575 = vpop.f32.mrb[0].mxu0
    %3576 = vmatprep.mubr.f32.mxu0 0.0
    %3577 = vmatmul.mubr.f32.gmra.mrb[0].mxu0 %v3195
    %v3578 = vpop.f32.mrb[0].mxu0
    %v3579 = vadd.f32 0.0, %v3578
    %v3580 = vpop.f32.mrb[0].mxu0
    %3581 = vmatprep.mubr.f32.mxu0 0.0
    %3582 = vmatmul.mubr.f32.gmra.mrb[0].mxu0 %v3196
    %v3583 = vpop.f32.mrb[0].mxu0
    %v3584 = vadd.f32 0.0, %v3583
    %v3585 = vpop.f32.mrb[0].mxu0
    %3586 = vmatprep.mubr.f32.mxu0 0.0
    %3587 = vmatmul.mubr.f32.gmra.mrb[0].mxu0 %v3197
    %v3588 = vpop.f32.mrb[0].mxu0
    %v3589 = vadd.f32 0.0, %v3588
    %v3590 = vpop.f32.mrb[0].mxu0
    %3591 = vmatprep.mubr.f32.mxu0 0.0
    %3592 = vmatmul.mubr.f32.gmra.mrb[0].mxu0 %v3198
    %v3593 = vpop.f32.mrb[0].mxu0
    %v3594 = vadd.f32 0.0, %v3593
    %v3595 = vpop.f32.mrb[0].mxu0
    %3596 = vmatprep.mubr.f32.mxu0 0.0
    %3597 = vmatmul.mubr.f32.gmra.mrb[0].mxu0 %v3199
    %v3598 = vpop.f32.mrb[0].mxu0
    %v3599 = vadd.f32 0.0, %v3598
    %v3600 = vpop.f32.mrb[0].mxu0
    %3601 = vdwg.mxu0
    %v3602 = vadd.f32 %v3071, %v3284
    %v3603 = vadd.f32 %v3072, %v3289
    %v3604 = vadd.f32 %v3073, %v3294
    %v3605 = vadd.f32 %v3074, %v3299
    %v3606 = vadd.f32 %v3075, %v3304
    %v3607 = vadd.f32 %v3076, %v3309
    %v3608 = vadd.f32 %v3077, %v3314
    %v3609 = vadd.f32 %v3078, %v3319
    %v3610 = vadd.f32 %v3079, %v3324
    %v3611 = vadd.f32 %v3080, %v3329
    %v3612 = vadd.f32 %v3081, %v3334
    %v3613 = vadd.f32 %v3082, %v3339
    %v3614 = vadd.f32 %v3083, %v3344
    %v3615 = vadd.f32 %v3084, %v3349
    %v3616 = vadd.f32 %v3085, %v3354
    %v3617 = vadd.f32 %v3086, %v3359
    %v3618 = vadd.f32 %v3087, %v3364
    %v3619 = vadd.f32 %v3088, %v3369
    %v3620 = vadd.f32 %v3089, %v3374
    %v3621 = vadd.f32 %v3090, %v3379
    %v3622 = vadd.f32 %v3091, %v3384
    %v3623 = vadd.f32 %v3092, %v3389
    %v3624 = vadd.f32 %v3093, %v3394
    %v3625 = vadd.f32 %v3094, %v3399
    %v3626 = vadd.f32 %v3095, %v3404
    %v3627 = vadd.f32 %v3096, %v3409
    %v3628 = vadd.f32 %v3097, %v3414
    %v3629 = vadd.f32 %v3098, %v3419
    %v3630 = vadd.f32 %v3099, %v3424
    %v3631 = vadd.f32 %v3100, %v3429
    %v3632 = vadd.f32 %v3101, %v3434
    %v3633 = vadd.f32 %v3102, %v3439
    %v3634 = vadd.f32 %v3103, %v3444
    %v3635 = vadd.f32 %v3104, %v3449
    %v3636 = vadd.f32 %v3105, %v3454
    %v3637 = vadd.f32 %v3106, %v3459
    %v3638 = vadd.f32 %v3107, %v3464
    %v3639 = vadd.f32 %v3108, %v3469
    %v3640 = vadd.f32 %v3109, %v3474
    %v3641 = vadd.f32 %v3110, %v3479
    %v3642 = vadd.f32 %v3111, %v3484
    %v3643 = vadd.f32 %v3112, %v3489
    %v3644 = vadd.f32 %v3113, %v3494
    %v3645 = vadd.f32 %v3114, %v3499
    %v3646 = vadd.f32 %v3115, %v3504
    %v3647 = vadd.f32 %v3116, %v3509
    %v3648 = vadd.f32 %v3117, %v3514
    %v3649 = vadd.f32 %v3118, %v3519
    %v3650 = vadd.f32 %v3119, %v3524
    %v3651 = vadd.f32 %v3120, %v3529
    %v3652 = vadd.f32 %v3121, %v3534
    %v3653 = vadd.f32 %v3122, %v3539
    %v3654 = vadd.f32 %v3123, %v3544
    %v3655 = vadd.f32 %v3124, %v3549
    %v3656 = vadd.f32 %v3125, %v3554
    %v3657 = vadd.f32 %v3126, %v3559
    %v3658 = vadd.f32 %v3127, %v3564
    %v3659 = vadd.f32 %v3128, %v3569
    %v3660 = vadd.f32 %v3129, %v3574
    %v3661 = vadd.f32 %v3130, %v3579
    %v3662 = vadd.f32 %v3131, %v3584
    %v3663 = vadd.f32 %v3132, %v3589
    %v3664 = vadd.f32 %v3133, %v3594
    %v3665 = vadd.f32 %v3134, %v3599
    %v3666 = vld [vmem:[%s3135 + $0x1] sm:$0xff]
    %v3667 = vld [vmem:[%s3135 + $0x9] sm:$0xff]
    %v3668 = vld [vmem:[%s3135 + $0x19] sm:$0xff]
    %v3669 = vld [vmem:[%s3135 + $0x21] sm:$0xff]
    %v3670 = vld [vmem:[%s3135 + $0x31] sm:$0xff]
    %v3671 = vld [vmem:[%s3135 + $0x39] sm:$0xff]
    %v3672 = vld [vmem:[%s3135 + $0x49] sm:$0xff]
    %v3673 = vld [vmem:[%s3135 + $0x51] sm:$0xff]
    %v3674 = vld [vmem:[%s3135 + $0x61] sm:$0xff]
    %v3675 = vld [vmem:[%s3135 + $0x69] sm:$0xff]
    %v3676 = vld [vmem:[%s3135 + $0x79] sm:$0xff]
    %v3677 = vld [vmem:[%s3135 + $0x81] sm:$0xff]
    %v3678 = vld [vmem:[%s3135 + $0x91] sm:$0xff]
    %v3679 = vld [vmem:[%s3135 + $0x99] sm:$0xff]
    %v3680 = vld [vmem:[%s3135 + $0xa9] sm:$0xff]
    %v3681 = vld [vmem:[%s3135 + $0xb1] sm:$0xff]
    %v3682 = vld [vmem:[%s3135 + $0xc1] sm:$0xff]
    %v3683 = vld [vmem:[%s3135 + $0xc9] sm:$0xff]
    %v3684 = vld [vmem:[%s3135 + $0xd9] sm:$0xff]
    %v3685 = vld [vmem:[%s3135 + $0xe1] sm:$0xff]
    %v3686 = vld [vmem:[%s3135 + $0xf1] sm:$0xff]
    %v3687 = vld [vmem:[%s3135 + $0xf9] sm:$0xff]
    %v3688 = vld [vmem:[%s3135 + $0x109] sm:$0xff]
    %v3689 = vld [vmem:[%s3135 + $0x111] sm:$0xff]
    %v3690 = vld [vmem:[%s3135 + $0x121] sm:$0xff]
    %v3691 = vld [vmem:[%s3135 + $0x129] sm:$0xff]
    %v3692 = vld [vmem:[%s3135 + $0x139] sm:$0xff]
    %v3693 = vld [vmem:[%s3135 + $0x141] sm:$0xff]
    %v3694 = vld [vmem:[%s3135 + $0x151] sm:$0xff]
    %v3695 = vld [vmem:[%s3135 + $0x159] sm:$0xff]
    %v3696 = vld [vmem:[%s3135 + $0x169] sm:$0xff]
    %v3697 = vld [vmem:[%s3135 + $0x171] sm:$0xff]
    %v3698 = vld [vmem:[%s3135 + $0x1b1] sm:$0xff]
    %v3699 = vld [vmem:[%s3135 + $0x1b9] sm:$0xff]
    %v3700 = vld [vmem:[%s3135 + $0x1c9] sm:$0xff]
    %v3701 = vld [vmem:[%s3135 + $0x1d1] sm:$0xff]
    %v3702 = vld [vmem:[%s3135 + $0x1e1] sm:$0xff]
    %v3703 = vld [vmem:[%s3135 + $0x1e9] sm:$0xff]
    %v3704 = vld [vmem:[%s3135 + $0x1f9] sm:$0xff]
    %v3705 = vld [vmem:[%s3135 + $0x201] sm:$0xff]
    %v3706 = vld [vmem:[%s3135 + $0x211] sm:$0xff]
    %v3707 = vld [vmem:[%s3135 + $0x219] sm:$0xff]
    %v3708 = vld [vmem:[%s3135 + $0x229] sm:$0xff]
    %v3709 = vld [vmem:[%s3135 + $0x231] sm:$0xff]
    %v3710 = vld [vmem:[%s3135 + $0x241] sm:$0xff]
    %v3711 = vld [vmem:[%s3135 + $0x249] sm:$0xff]
    %v3712 = vld [vmem:[%s3135 + $0x259] sm:$0xff]
    %v3713 = vld [vmem:[%s3135 + $0x261] sm:$0xff]
    %v3714 = vld [vmem:[%s3135 + $0x271] sm:$0xff]
    %v3715 = vld [vmem:[%s3135 + $0x279] sm:$0xff]
    %v3716 = vld [vmem:[%s3135 + $0x289] sm:$0xff]
    %v3717 = vld [vmem:[%s3135 + $0x291] sm:$0xff]
    %v3718 = vld [vmem:[%s3135 + $0x2a1] sm:$0xff]
    %v3719 = vld [vmem:[%s3135 + $0x2a9] sm:$0xff]
    %v3720 = vld [vmem:[%s3135 + $0x2b9] sm:$0xff]
    %v3721 = vld [vmem:[%s3135 + $0x2c1] sm:$0xff]
    %v3722 = vld [vmem:[%s3135 + $0x2d1] sm:$0xff]
    %v3723 = vld [vmem:[%s3135 + $0x2d9] sm:$0xff]
    %v3724 = vld [vmem:[%s3135 + $0x2e9] sm:$0xff]
    %v3725 = vld [vmem:[%s3135 + $0x2f1] sm:$0xff]
    %v3726 = vld [vmem:[%s3135 + $0x301] sm:$0xff]
    %v3727 = vld [vmem:[%s3135 + $0x309] sm:$0xff]
    %v3728 = vld [vmem:[%s3135 + $0x319] sm:$0xff]
    %v3729 = vld [vmem:[%s3135 + $0x321] sm:$0xff]
    %s3730 = scalar_lea.vmem [#allocation6], 512
    %v3731 = vld [vmem:[%s3730] sm:$0xff]
    %v3732 = vld [vmem:[%s3730 + $0x8] sm:$0xff]
    %v3733 = vld [vmem:[%s3730 + $0x10] sm:$0xff]
    %v3734 = vld [vmem:[%s3730 + $0x18] sm:$0xff]
    %v3735 = vld [vmem:[%s3730 + $0x20] sm:$0xff]
    %v3736 = vld [vmem:[%s3730 + $0x28] sm:$0xff]
    %v3737 = vld [vmem:[%s3730 + $0x30] sm:$0xff]
    %v3738 = vld [vmem:[%s3730 + $0x38] sm:$0xff]
    %v3739 = vld [vmem:[%s3730 + $0x40] sm:$0xff]
    %v3740 = vld [vmem:[%s3730 + $0x48] sm:$0xff]
    %v3741 = vld [vmem:[%s3730 + $0x50] sm:$0xff]
    %v3742 = vld [vmem:[%s3730 + $0x58] sm:$0xff]
    %v3743 = vld [vmem:[%s3730 + $0x60] sm:$0xff]
    %v3744 = vld [vmem:[%s3730 + $0x68] sm:$0xff]
    %v3745 = vld [vmem:[%s3730 + $0x70] sm:$0xff]
    %v3746 = vld [vmem:[%s3730 + $0x78] sm:$0xff]
    %3747 = vmatprep.subr.mxu0 0.0
    %3748 = vmatpush1.msra.mxu0 %v3731
    %3749 = vmatprep.subr.mxu0 0.0
    %3750 = vmatpush1.msra.mxu0 %v3732
    %3751 = vmatprep.subr.mxu0 0.0
    %3752 = vmatpush1.msra.mxu0 %v3733
    %3753 = vmatprep.subr.mxu0 0.0
    %3754 = vmatpush1.msra.mxu0 %v3734
    %3755 = vmatprep.subr.mxu0 0.0
    %3756 = vmatpush1.msra.mxu0 %v3735
    %3757 = vmatprep.subr.mxu0 0.0
    %3758 = vmatpush1.msra.mxu0 %v3736
    %3759 = vmatprep.subr.mxu0 0.0
    %3760 = vmatpush1.msra.mxu0 %v3737
    %3761 = vmatprep.subr.mxu0 0.0
    %3762 = vmatpush1.msra.mxu0 %v3738
    %3763 = vmatprep.subr.mxu0 0.0
    %3764 = vmatpush1.msra.mxu0 %v3739
    %3765 = vmatprep.subr.mxu0 0.0
    %3766 = vmatpush1.msra.mxu0 %v3740
    %3767 = vmatprep.subr.mxu0 0.0
    %3768 = vmatpush1.msra.mxu0 %v3741
    %3769 = vmatprep.subr.mxu0 0.0
    %3770 = vmatpush1.msra.mxu0 %v3742
    %3771 = vmatprep.subr.mxu0 0.0
    %3772 = vmatpush1.msra.mxu0 %v3743
    %3773 = vmatprep.subr.mxu0 0.0
    %3774 = vmatpush1.msra.mxu0 %v3744
    %3775 = vmatprep.subr.mxu0 0.0
    %3776 = vmatpush1.msra.mxu0 %v3745
    %3777 = vmatprep.subr.mxu0 0.0
    %3778 = vmatpush1.msra.mxu0 %v3746
    %3779 = vmatprep.subr.mxu0 0.0
    %3780 = vmatpush1.msra.mxu0 0.0
    %3781 = vmatprep.subr.mxu0 0.0
    %3782 = vmatpush1.msra.mxu0 0.0
    %3783 = vmatprep.subr.mxu0 0.0
    %3784 = vmatpush1.msra.mxu0 0.0
    %3785 = vmatprep.subr.mxu0 0.0
    %3786 = vmatpush1.msra.mxu0 0.0
    %3787 = vmatprep.subr.mxu0 0.0
    %3788 = vmatpush1.msra.mxu0 0.0
    %3789 = vmatprep.subr.mxu0 0.0
    %3790 = vmatpush1.msra.mxu0 0.0
    %3791 = vmatprep.subr.mxu0 0.0
    %3792 = vmatpush1.msra.mxu0 0.0
    %3793 = vmatprep.subr.mxu0 0.0
    %3794 = vmatpush1.msra.mxu0 0.0
    %3795 = vmatprep.subr.mxu0 0.0
    %3796 = vmatpush1.msra.mxu0 0.0
    %3797 = vmatprep.subr.mxu0 0.0
    %3798 = vmatpush1.msra.mxu0 0.0
    %3799 = vmatprep.subr.mxu0 0.0
    %3800 = vmatpush1.msra.mxu0 0.0
    %3801 = vmatprep.subr.mxu0 0.0
    %3802 = vmatpush1.msra.mxu0 0.0
    %3803 = vmatprep.subr.mxu0 0.0
    %3804 = vmatpush1.msra.mxu0 0.0
    %3805 = vmatprep.subr.mxu0 0.0
    %3806 = vmatpush1.msra.mxu0 0.0
    %3807 = vmatprep.subr.mxu0 0.0
    %3808 = vmatpush1.msra.mxu0 0.0
    %3809 = vmatprep.subr.mxu0 0.0
    %3810 = vmatpush1.msra.mxu0 0.0
    %3811 = vmatprep.mubr.f32.mxu0 0.0
    %3812 = vmatmul.mubr.f32.gmra.mrb[0].mxu0 %v3666
    %v3813 = vpop.f32.mrb[0].mxu0
    %v3814 = vadd.f32 0.0, %v3813
    %v3815 = vpop.f32.mrb[0].mxu0
    %3816 = vmatprep.mubr.f32.mxu0 0.0
    %3817 = vmatmul.mubr.f32.gmra.mrb[0].mxu0 %v3667
    %v3818 = vpop.f32.mrb[0].mxu0
    %v3819 = vadd.f32 0.0, %v3818
    %v3820 = vpop.f32.mrb[0].mxu0
    %3821 = vmatprep.mubr.f32.mxu0 0.0
    %3822 = vmatmul.mubr.f32.gmra.mrb[0].mxu0 %v3668
    %v3823 = vpop.f32.mrb[0].mxu0
    %v3824 = vadd.f32 0.0, %v3823
    %v3825 = vpop.f32.mrb[0].mxu0
    %3826 = vmatprep.mubr.f32.mxu0 0.0
    %3827 = vmatmul.mubr.f32.gmra.mrb[0].mxu0 %v3669
    %v3828 = vpop.f32.mrb[0].mxu0
    %v3829 = vadd.f32 0.0, %v3828
    %v3830 = vpop.f32.mrb[0].mxu0
    %3831 = vmatprep.mubr.f32.mxu0 0.0
    %3832 = vmatmul.mubr.f32.gmra.mrb[0].mxu0 %v3670
    %v3833 = vpop.f32.mrb[0].mxu0
    %v3834 = vadd.f32 0.0, %v3833
    %v3835 = vpop.f32.mrb[0].mxu0
    %3836 = vmatprep.mubr.f32.mxu0 0.0
    %3837 = vmatmul.mubr.f32.gmra.mrb[0].mxu0 %v3671
    %v3838 = vpop.f32.mrb[0].mxu0
    %v3839 = vadd.f32 0.0, %v3838
    %v3840 = vpop.f32.mrb[0].mxu0
    %3841 = vmatprep.mubr.f32.mxu0 0.0
    %3842 = vmatmul.mubr.f32.gmra.mrb[0].mxu0 %v3672
    %v3843 = vpop.f32.mrb[0].mxu0
    %v3844 = vadd.f32 0.0, %v3843
    %v3845 = vpop.f32.mrb[0].mxu0
    %3846 = vmatprep.mubr.f32.mxu0 0.0
    %3847 = vmatmul.mubr.f32.gmra.mrb[0].mxu0 %v3673
    %v3848 = vpop.f32.mrb[0].mxu0
    %v3849 = vadd.f32 0.0, %v3848
    %v3850 = vpop.f32.mrb[0].mxu0
    %3851 = vmatprep.mubr.f32.mxu0 0.0
    %3852 = vmatmul.mubr.f32.gmra.mrb[0].mxu0 %v3674
    %v3853 = vpop.f32.mrb[0].mxu0
    %v3854 = vadd.f32 0.0, %v3853
    %v3855 = vpop.f32.mrb[0].mxu0
    %3856 = vmatprep.mubr.f32.mxu0 0.0
    %3857 = vmatmul.mubr.f32.gmra.mrb[0].mxu0 %v3675
    %v3858 = vpop.f32.mrb[0].mxu0
    %v3859 = vadd.f32 0.0, %v3858
    %v3860 = vpop.f32.mrb[0].mxu0
    %3861 = vmatprep.mubr.f32.mxu0 0.0
    %3862 = vmatmul.mubr.f32.gmra.mrb[0].mxu0 %v3676
    %v3863 = vpop.f32.mrb[0].mxu0
    %v3864 = vadd.f32 0.0, %v3863
    %v3865 = vpop.f32.mrb[0].mxu0
    %3866 = vmatprep.mubr.f32.mxu0 0.0
    %3867 = vmatmul.mubr.f32.gmra.mrb[0].mxu0 %v3677
    %v3868 = vpop.f32.mrb[0].mxu0
    %v3869 = vadd.f32 0.0, %v3868
    %v3870 = vpop.f32.mrb[0].mxu0
    %3871 = vmatprep.mubr.f32.mxu0 0.0
    %3872 = vmatmul.mubr.f32.gmra.mrb[0].mxu0 %v3678
    %v3873 = vpop.f32.mrb[0].mxu0
    %v3874 = vadd.f32 0.0, %v3873
    %v3875 = vpop.f32.mrb[0].mxu0
    %3876 = vmatprep.mubr.f32.mxu0 0.0
    %3877 = vmatmul.mubr.f32.gmra.mrb[0].mxu0 %v3679
    %v3878 = vpop.f32.mrb[0].mxu0
    %v3879 = vadd.f32 0.0, %v3878
    %v3880 = vpop.f32.mrb[0].mxu0
    %3881 = vmatprep.mubr.f32.mxu0 0.0
    %3882 = vmatmul.mubr.f32.gmra.mrb[0].mxu0 %v3680
    %v3883 = vpop.f32.mrb[0].mxu0
    %v3884 = vadd.f32 0.0, %v3883
    %v3885 = vpop.f32.mrb[0].mxu0
    %3886 = vmatprep.mubr.f32.mxu0 0.0
    %3887 = vmatmul.mubr.f32.gmra.mrb[0].mxu0 %v3681
    %v3888 = vpop.f32.mrb[0].mxu0
    %v3889 = vadd.f32 0.0, %v3888
    %v3890 = vpop.f32.mrb[0].mxu0
    %3891 = vmatprep.mubr.f32.mxu0 0.0
    %3892 = vmatmul.mubr.f32.gmra.mrb[0].mxu0 %v3682
    %v3893 = vpop.f32.mrb[0].mxu0
    %v3894 = vadd.f32 0.0, %v3893
    %v3895 = vpop.f32.mrb[0].mxu0
    %3896 = vmatprep.mubr.f32.mxu0 0.0
    %3897 = vmatmul.mubr.f32.gmra.mrb[0].mxu0 %v3683
    %v3898 = vpop.f32.mrb[0].mxu0
    %v3899 = vadd.f32 0.0, %v3898
    %v3900 = vpop.f32.mrb[0].mxu0
    %3901 = vmatprep.mubr.f32.mxu0 0.0
    %3902 = vmatmul.mubr.f32.gmra.mrb[0].mxu0 %v3684
    %v3903 = vpop.f32.mrb[0].mxu0
    %v3904 = vadd.f32 0.0, %v3903
    %v3905 = vpop.f32.mrb[0].mxu0
    %3906 = vmatprep.mubr.f32.mxu0 0.0
    %3907 = vmatmul.mubr.f32.gmra.mrb[0].mxu0 %v3685
    %v3908 = vpop.f32.mrb[0].mxu0
    %v3909 = vadd.f32 0.0, %v3908
    %v3910 = vpop.f32.mrb[0].mxu0
    %3911 = vmatprep.mubr.f32.mxu0 0.0
    %3912 = vmatmul.mubr.f32.gmra.mrb[0].mxu0 %v3686
    %v3913 = vpop.f32.mrb[0].mxu0
    %v3914 = vadd.f32 0.0, %v3913
    %v3915 = vpop.f32.mrb[0].mxu0
    %3916 = vmatprep.mubr.f32.mxu0 0.0
    %3917 = vmatmul.mubr.f32.gmra.mrb[0].mxu0 %v3687
    %v3918 = vpop.f32.mrb[0].mxu0
    %v3919 = vadd.f32 0.0, %v3918
    %v3920 = vpop.f32.mrb[0].mxu0
    %3921 = vmatprep.mubr.f32.mxu0 0.0
    %3922 = vmatmul.mubr.f32.gmra.mrb[0].mxu0 %v3688
    %v3923 = vpop.f32.mrb[0].mxu0
    %v3924 = vadd.f32 0.0, %v3923
    %v3925 = vpop.f32.mrb[0].mxu0
    %3926 = vmatprep.mubr.f32.mxu0 0.0
    %3927 = vmatmul.mubr.f32.gmra.mrb[0].mxu0 %v3689
    %v3928 = vpop.f32.mrb[0].mxu0
    %v3929 = vadd.f32 0.0, %v3928
    %v3930 = vpop.f32.mrb[0].mxu0
    %3931 = vmatprep.mubr.f32.mxu0 0.0
    %3932 = vmatmul.mubr.f32.gmra.mrb[0].mxu0 %v3690
    %v3933 = vpop.f32.mrb[0].mxu0
    %v3934 = vadd.f32 0.0, %v3933
    %v3935 = vpop.f32.mrb[0].mxu0
    %3936 = vmatprep.mubr.f32.mxu0 0.0
    %3937 = vmatmul.mubr.f32.gmra.mrb[0].mxu0 %v3691
    %v3938 = vpop.f32.mrb[0].mxu0
    %v3939 = vadd.f32 0.0, %v3938
    %v3940 = vpop.f32.mrb[0].mxu0
    %3941 = vmatprep.mubr.f32.mxu0 0.0
    %3942 = vmatmul.mubr.f32.gmra.mrb[0].mxu0 %v3692
    %v3943 = vpop.f32.mrb[0].mxu0
    %v3944 = vadd.f32 0.0, %v3943
    %v3945 = vpop.f32.mrb[0].mxu0
    %3946 = vmatprep.mubr.f32.mxu0 0.0
    %3947 = vmatmul.mubr.f32.gmra.mrb[0].mxu0 %v3693
    %v3948 = vpop.f32.mrb[0].mxu0
    %v3949 = vadd.f32 0.0, %v3948
    %v3950 = vpop.f32.mrb[0].mxu0
    %3951 = vmatprep.mubr.f32.mxu0 0.0
    %3952 = vmatmul.mubr.f32.gmra.mrb[0].mxu0 %v3694
    %v3953 = vpop.f32.mrb[0].mxu0
    %v3954 = vadd.f32 0.0, %v3953
    %v3955 = vpop.f32.mrb[0].mxu0
    %3956 = vmatprep.mubr.f32.mxu0 0.0
    %3957 = vmatmul.mubr.f32.gmra.mrb[0].mxu0 %v3695
    %v3958 = vpop.f32.mrb[0].mxu0
    %v3959 = vadd.f32 0.0, %v3958
    %v3960 = vpop.f32.mrb[0].mxu0
    %3961 = vmatprep.mubr.f32.mxu0 0.0
    %3962 = vmatmul.mubr.f32.gmra.mrb[0].mxu0 %v3696
    %v3963 = vpop.f32.mrb[0].mxu0
    %v3964 = vadd.f32 0.0, %v3963
    %v3965 = vpop.f32.mrb[0].mxu0
    %3966 = vmatprep.mubr.f32.mxu0 0.0
    %3967 = vmatmul.mubr.f32.gmra.mrb[0].mxu0 %v3697
    %v3968 = vpop.f32.mrb[0].mxu0
    %v3969 = vadd.f32 0.0, %v3968
    %v3970 = vpop.f32.mrb[0].mxu0
    %3971 = vmatprep.mubr.f32.mxu0 0.0
    %3972 = vmatmul.mubr.f32.gmra.mrb[0].mxu0 %v3698
    %v3973 = vpop.f32.mrb[0].mxu0
    %v3974 = vadd.f32 0.0, %v3973
    %v3975 = vpop.f32.mrb[0].mxu0
    %3976 = vmatprep.mubr.f32.mxu0 0.0
    %3977 = vmatmul.mubr.f32.gmra.mrb[0].mxu0 %v3699
    %v3978 = vpop.f32.mrb[0].mxu0
    %v3979 = vadd.f32 0.0, %v3978
    %v3980 = vpop.f32.mrb[0].mxu0
    %3981 = vmatprep.mubr.f32.mxu0 0.0
    %3982 = vmatmul.mubr.f32.gmra.mrb[0].mxu0 %v3700
    %v3983 = vpop.f32.mrb[0].mxu0
    %v3984 = vadd.f32 0.0, %v3983
    %v3985 = vpop.f32.mrb[0].mxu0
    %3986 = vmatprep.mubr.f32.mxu0 0.0
    %3987 = vmatmul.mubr.f32.gmra.mrb[0].mxu0 %v3701
    %v3988 = vpop.f32.mrb[0].mxu0
    %v3989 = vadd.f32 0.0, %v3988
    %v3990 = vpop.f32.mrb[0].mxu0
    %3991 = vmatprep.mubr.f32.mxu0 0.0
    %3992 = vmatmul.mubr.f32.gmra.mrb[0].mxu0 %v3702
    %v3993 = vpop.f32.mrb[0].mxu0
    %v3994 = vadd.f32 0.0, %v3993
    %v3995 = vpop.f32.mrb[0].mxu0
    %3996 = vmatprep.mubr.f32.mxu0 0.0
    %3997 = vmatmul.mubr.f32.gmra.mrb[0].mxu0 %v3703
    %v3998 = vpop.f32.mrb[0].mxu0
    %v3999 = vadd.f32 0.0, %v3998
    %v4000 = vpop.f32.mrb[0].mxu0
    %4001 = vmatprep.mubr.f32.mxu0 0.0
    %4002 = vmatmul.mubr.f32.gmra.mrb[0].mxu0 %v3704
    %v4003 = vpop.f32.mrb[0].mxu0
    %v4004 = vadd.f32 0.0, %v4003
    %v4005 = vpop.f32.mrb[0].mxu0
    %4006 = vmatprep.mubr.f32.mxu0 0.0
    %4007 = vmatmul.mubr.f32.gmra.mrb[0].mxu0 %v3705
    %v4008 = vpop.f32.mrb[0].mxu0
    %v4009 = vadd.f32 0.0, %v4008
    %v4010 = vpop.f32.mrb[0].mxu0
    %4011 = vmatprep.mubr.f32.mxu0 0.0
    %4012 = vmatmul.mubr.f32.gmra.mrb[0].mxu0 %v3706
    %v4013 = vpop.f32.mrb[0].mxu0
    %v4014 = vadd.f32 0.0, %v4013
    %v4015 = vpop.f32.mrb[0].mxu0
    %4016 = vmatprep.mubr.f32.mxu0 0.0
    %4017 = vmatmul.mubr.f32.gmra.mrb[0].mxu0 %v3707
    %v4018 = vpop.f32.mrb[0].mxu0
    %v4019 = vadd.f32 0.0, %v4018
    %v4020 = vpop.f32.mrb[0].mxu0
    %4021 = vmatprep.mubr.f32.mxu0 0.0
    %4022 = vmatmul.mubr.f32.gmra.mrb[0].mxu0 %v3708
    %v4023 = vpop.f32.mrb[0].mxu0
    %v4024 = vadd.f32 0.0, %v4023
    %v4025 = vpop.f32.mrb[0].mxu0
    %4026 = vmatprep.mubr.f32.mxu0 0.0
    %4027 = vmatmul.mubr.f32.gmra.mrb[0].mxu0 %v3709
    %v4028 = vpop.f32.mrb[0].mxu0
    %v4029 = vadd.f32 0.0, %v4028
    %v4030 = vpop.f32.mrb[0].mxu0
    %4031 = vmatprep.mubr.f32.mxu0 0.0
    %4032 = vmatmul.mubr.f32.gmra.mrb[0].mxu0 %v3710
    %v4033 = vpop.f32.mrb[0].mxu0
    %v4034 = vadd.f32 0.0, %v4033
    %v4035 = vpop.f32.mrb[0].mxu0
    %4036 = vmatprep.mubr.f32.mxu0 0.0
    %4037 = vmatmul.mubr.f32.gmra.mrb[0].mxu0 %v3711
    %v4038 = vpop.f32.mrb[0].mxu0
    %v4039 = vadd.f32 0.0, %v4038
    %v4040 = vpop.f32.mrb[0].mxu0
    %4041 = vmatprep.mubr.f32.mxu0 0.0
    %4042 = vmatmul.mubr.f32.gmra.mrb[0].mxu0 %v3712
    %v4043 = vpop.f32.mrb[0].mxu0
    %v4044 = vadd.f32 0.0, %v4043
    %v4045 = vpop.f32.mrb[0].mxu0
    %4046 = vmatprep.mubr.f32.mxu0 0.0
    %4047 = vmatmul.mubr.f32.gmra.mrb[0].mxu0 %v3713
    %v4048 = vpop.f32.mrb[0].mxu0
    %v4049 = vadd.f32 0.0, %v4048
    %v4050 = vpop.f32.mrb[0].mxu0
    %4051 = vmatprep.mubr.f32.mxu0 0.0
    %4052 = vmatmul.mubr.f32.gmra.mrb[0].mxu0 %v3714
    %v4053 = vpop.f32.mrb[0].mxu0
    %v4054 = vadd.f32 0.0, %v4053
    %v4055 = vpop.f32.mrb[0].mxu0
    %4056 = vmatprep.mubr.f32.mxu0 0.0
    %4057 = vmatmul.mubr.f32.gmra.mrb[0].mxu0 %v3715
    %v4058 = vpop.f32.mrb[0].mxu0
    %v4059 = vadd.f32 0.0, %v4058
    %v4060 = vpop.f32.mrb[0].mxu0
    %4061 = vmatprep.mubr.f32.mxu0 0.0
    %4062 = vmatmul.mubr.f32.gmra.mrb[0].mxu0 %v3716
    %v4063 = vpop.f32.mrb[0].mxu0
    %v4064 = vadd.f32 0.0, %v4063
    %v4065 = vpop.f32.mrb[0].mxu0
    %4066 = vmatprep.mubr.f32.mxu0 0.0
    %4067 = vmatmul.mubr.f32.gmra.mrb[0].mxu0 %v3717
    %v4068 = vpop.f32.mrb[0].mxu0
    %v4069 = vadd.f32 0.0, %v4068
    %v4070 = vpop.f32.mrb[0].mxu0
    %4071 = vmatprep.mubr.f32.mxu0 0.0
    %4072 = vmatmul.mubr.f32.gmra.mrb[0].mxu0 %v3718
    %v4073 = vpop.f32.mrb[0].mxu0
    %v4074 = vadd.f32 0.0, %v4073
    %v4075 = vpop.f32.mrb[0].mxu0
    %4076 = vmatprep.mubr.f32.mxu0 0.0
    %4077 = vmatmul.mubr.f32.gmra.mrb[0].mxu0 %v3719
    %v4078 = vpop.f32.mrb[0].mxu0
    %v4079 = vadd.f32 0.0, %v4078
    %v4080 = vpop.f32.mrb[0].mxu0
    %4081 = vmatprep.mubr.f32.mxu0 0.0
    %4082 = vmatmul.mubr.f32.gmra.mrb[0].mxu0 %v3720
    %v4083 = vpop.f32.mrb[0].mxu0
    %v4084 = vadd.f32 0.0, %v4083
    %v4085 = vpop.f32.mrb[0].mxu0
    %4086 = vmatprep.mubr.f32.mxu0 0.0
    %4087 = vmatmul.mubr.f32.gmra.mrb[0].mxu0 %v3721
    %v4088 = vpop.f32.mrb[0].mxu0
    %v4089 = vadd.f32 0.0, %v4088
    %v4090 = vpop.f32.mrb[0].mxu0
    %4091 = vmatprep.mubr.f32.mxu0 0.0
    %4092 = vmatmul.mubr.f32.gmra.mrb[0].mxu0 %v3722
    %v4093 = vpop.f32.mrb[0].mxu0
    %v4094 = vadd.f32 0.0, %v4093
    %v4095 = vpop.f32.mrb[0].mxu0
    %4096 = vmatprep.mubr.f32.mxu0 0.0
    %4097 = vmatmul.mubr.f32.gmra.mrb[0].mxu0 %v3723
    %v4098 = vpop.f32.mrb[0].mxu0
    %v4099 = vadd.f32 0.0, %v4098
    %v4100 = vpop.f32.mrb[0].mxu0
    %4101 = vmatprep.mubr.f32.mxu0 0.0
    %4102 = vmatmul.mubr.f32.gmra.mrb[0].mxu0 %v3724
    %v4103 = vpop.f32.mrb[0].mxu0
    %v4104 = vadd.f32 0.0, %v4103
    %v4105 = vpop.f32.mrb[0].mxu0
    %4106 = vmatprep.mubr.f32.mxu0 0.0
    %4107 = vmatmul.mubr.f32.gmra.mrb[0].mxu0 %v3725
    %v4108 = vpop.f32.mrb[0].mxu0
    %v4109 = vadd.f32 0.0, %v4108
    %v4110 = vpop.f32.mrb[0].mxu0
    %4111 = vmatprep.mubr.f32.mxu0 0.0
    %4112 = vmatmul.mubr.f32.gmra.mrb[0].mxu0 %v3726
    %v4113 = vpop.f32.mrb[0].mxu0
    %v4114 = vadd.f32 0.0, %v4113
    %v4115 = vpop.f32.mrb[0].mxu0
    %4116 = vmatprep.mubr.f32.mxu0 0.0
    %4117 = vmatmul.mubr.f32.gmra.mrb[0].mxu0 %v3727
    %v4118 = vpop.f32.mrb[0].mxu0
    %v4119 = vadd.f32 0.0, %v4118
    %v4120 = vpop.f32.mrb[0].mxu0
    %4121 = vmatprep.mubr.f32.mxu0 0.0
    %4122 = vmatmul.mubr.f32.gmra.mrb[0].mxu0 %v3728
    %v4123 = vpop.f32.mrb[0].mxu0
    %v4124 = vadd.f32 0.0, %v4123
    %v4125 = vpop.f32.mrb[0].mxu0
    %4126 = vmatprep.mubr.f32.mxu0 0.0
    %4127 = vmatmul.mubr.f32.gmra.mrb[0].mxu0 %v3729
    %v4128 = vpop.f32.mrb[0].mxu0
    %v4129 = vadd.f32 0.0, %v4128
    %v4130 = vpop.f32.mrb[0].mxu0
    %4131 = vdwg.mxu0
    %v4132 = vadd.f32 %v3602, %v3814
    %v4133 = vadd.f32 %v3603, %v3819
    %v4134 = vadd.f32 %v3604, %v3824
    %v4135 = vadd.f32 %v3605, %v3829
    %v4136 = vadd.f32 %v3606, %v3834
    %v4137 = vadd.f32 %v3607, %v3839
    %v4138 = vadd.f32 %v3608, %v3844
    %v4139 = vadd.f32 %v3609, %v3849
    %v4140 = vadd.f32 %v3610, %v3854
    %v4141 = vadd.f32 %v3611, %v3859
    %v4142 = vadd.f32 %v3612, %v3864
    %v4143 = vadd.f32 %v3613, %v3869
    %v4144 = vadd.f32 %v3614, %v3874
    %v4145 = vadd.f32 %v3615, %v3879
    %v4146 = vadd.f32 %v3616, %v3884
    %v4147 = vadd.f32 %v3617, %v3889
    %v4148 = vadd.f32 %v3618, %v3894
    %v4149 = vadd.f32 %v3619, %v3899
    %v4150 = vadd.f32 %v3620, %v3904
    %v4151 = vadd.f32 %v3621, %v3909
    %v4152 = vadd.f32 %v3622, %v3914
    %v4153 = vadd.f32 %v3623, %v3919
    %v4154 = vadd.f32 %v3624, %v3924
    %v4155 = vadd.f32 %v3625, %v3929
    %v4156 = vadd.f32 %v3626, %v3934
    %v4157 = vadd.f32 %v3627, %v3939
    %v4158 = vadd.f32 %v3628, %v3944
    %v4159 = vadd.f32 %v3629, %v3949
    %v4160 = vadd.f32 %v3630, %v3954
    %v4161 = vadd.f32 %v3631, %v3959
    %v4162 = vadd.f32 %v3632, %v3964
    %v4163 = vadd.f32 %v3633, %v3969
    %v4164 = vadd.f32 %v3634, %v3974
    %v4165 = vadd.f32 %v3635, %v3979
    %v4166 = vadd.f32 %v3636, %v3984
    %v4167 = vadd.f32 %v3637, %v3989
    %v4168 = vadd.f32 %v3638, %v3994
    %v4169 = vadd.f32 %v3639, %v3999
    %v4170 = vadd.f32 %v3640, %v4004
    %v4171 = vadd.f32 %v3641, %v4009
    %v4172 = vadd.f32 %v3642, %v4014
    %v4173 = vadd.f32 %v3643, %v4019
    %v4174 = vadd.f32 %v3644, %v4024
    %v4175 = vadd.f32 %v3645, %v4029
    %v4176 = vadd.f32 %v3646, %v4034
    %v4177 = vadd.f32 %v3647, %v4039
    %v4178 = vadd.f32 %v3648, %v4044
    %v4179 = vadd.f32 %v3649, %v4049
    %v4180 = vadd.f32 %v3650, %v4054
    %v4181 = vadd.f32 %v3651, %v4059
    %v4182 = vadd.f32 %v3652, %v4064
    %v4183 = vadd.f32 %v3653, %v4069
    %v4184 = vadd.f32 %v3654, %v4074
    %v4185 = vadd.f32 %v3655, %v4079
    %v4186 = vadd.f32 %v3656, %v4084
    %v4187 = vadd.f32 %v3657, %v4089
    %v4188 = vadd.f32 %v3658, %v4094
    %v4189 = vadd.f32 %v3659, %v4099
    %v4190 = vadd.f32 %v3660, %v4104
    %v4191 = vadd.f32 %v3661, %v4109
    %v4192 = vadd.f32 %v3662, %v4114
    %v4193 = vadd.f32 %v3663, %v4119
    %v4194 = vadd.f32 %v3664, %v4124
    %v4195 = vadd.f32 %v3665, %v4129
    %v4196 = vld [vmem:[%s3135 + $0x2] sm:$0xff]
    %v4197 = vld [vmem:[%s3135 + $0xa] sm:$0xff]
    %v4198 = vld [vmem:[%s3135 + $0x1a] sm:$0xff]
    %v4199 = vld [vmem:[%s3135 + $0x22] sm:$0xff]
    %v4200 = vld [vmem:[%s3135 + $0x32] sm:$0xff]
    %v4201 = vld [vmem:[%s3135 + $0x3a] sm:$0xff]
    %v4202 = vld [vmem:[%s3135 + $0x4a] sm:$0xff]
    %v4203 = vld [vmem:[%s3135 + $0x52] sm:$0xff]
    %v4204 = vld [vmem:[%s3135 + $0x62] sm:$0xff]
    %v4205 = vld [vmem:[%s3135 + $0x6a] sm:$0xff]
    %v4206 = vld [vmem:[%s3135 + $0x7a] sm:$0xff]
    %v4207 = vld [vmem:[%s3135 + $0x82] sm:$0xff]
    %v4208 = vld [vmem:[%s3135 + $0x92] sm:$0xff]
    %v4209 = vld [vmem:[%s3135 + $0x9a] sm:$0xff]
    %v4210 = vld [vmem:[%s3135 + $0xaa] sm:$0xff]
    %v4211 = vld [vmem:[%s3135 + $0xb2] sm:$0xff]
    %v4212 = vld [vmem:[%s3135 + $0xc2] sm:$0xff]
    %v4213 = vld [vmem:[%s3135 + $0xca] sm:$0xff]
    %v4214 = vld [vmem:[%s3135 + $0xda] sm:$0xff]
    %v4215 = vld [vmem:[%s3135 + $0xe2] sm:$0xff]
    %v4216 = vld [vmem:[%s3135 + $0xf2] sm:$0xff]
    %v4217 = vld [vmem:[%s3135 + $0xfa] sm:$0xff]
    %v4218 = vld [vmem:[%s3135 + $0x10a] sm:$0xff]
    %v4219 = vld [vmem:[%s3135 + $0x112] sm:$0xff]
    %v4220 = vld [vmem:[%s3135 + $0x122] sm:$0xff]
    %v4221 = vld [vmem:[%s3135 + $0x12a] sm:$0xff]
    %v4222 = vld [vmem:[%s3135 + $0x13a] sm:$0xff]
    %v4223 = vld [vmem:[%s3135 + $0x142] sm:$0xff]
    %v4224 = vld [vmem:[%s3135 + $0x152] sm:$0xff]
    %v4225 = vld [vmem:[%s3135 + $0x15a] sm:$0xff]
    %v4226 = vld [vmem:[%s3135 + $0x16a] sm:$0xff]
    %v4227 = vld [vmem:[%s3135 + $0x172] sm:$0xff]
    %v4228 = vld [vmem:[%s3135 + $0x1b2] sm:$0xff]
    %v4229 = vld [vmem:[%s3135 + $0x1ba] sm:$0xff]
    %v4230 = vld [vmem:[%s3135 + $0x1ca] sm:$0xff]
    %v4231 = vld [vmem:[%s3135 + $0x1d2] sm:$0xff]
    %v4232 = vld [vmem:[%s3135 + $0x1e2] sm:$0xff]
    %v4233 = vld [vmem:[%s3135 + $0x1ea] sm:$0xff]
    %v4234 = vld [vmem:[%s3135 + $0x1fa] sm:$0xff]
    %v4235 = vld [vmem:[%s3135 + $0x202] sm:$0xff]
    %v4236 = vld [vmem:[%s3135 + $0x212] sm:$0xff]
    %v4237 = vld [vmem:[%s3135 + $0x21a] sm:$0xff]
    %v4238 = vld [vmem:[%s3135 + $0x22a] sm:$0xff]
    %v4239 = vld [vmem:[%s3135 + $0x232] sm:$0xff]
    %v4240 = vld [vmem:[%s3135 + $0x242] sm:$0xff]
    %v4241 = vld [vmem:[%s3135 + $0x24a] sm:$0xff]
    %v4242 = vld [vmem:[%s3135 + $0x25a] sm:$0xff]
    %v4243 = vld [vmem:[%s3135 + $0x262] sm:$0xff]
    %v4244 = vld [vmem:[%s3135 + $0x272] sm:$0xff]
    %v4245 = vld [vmem:[%s3135 + $0x27a] sm:$0xff]
    %v4246 = vld [vmem:[%s3135 + $0x28a] sm:$0xff]
    %v4247 = vld [vmem:[%s3135 + $0x292] sm:$0xff]
    %v4248 = vld [vmem:[%s3135 + $0x2a2] sm:$0xff]
    %v4249 = vld [vmem:[%s3135 + $0x2aa] sm:$0xff]
    %v4250 = vld [vmem:[%s3135 + $0x2ba] sm:$0xff]
    %v4251 = vld [vmem:[%s3135 + $0x2c2] sm:$0xff]
    %v4252 = vld [vmem:[%s3135 + $0x2d2] sm:$0xff]
    %v4253 = vld [vmem:[%s3135 + $0x2da] sm:$0xff]
    %v4254 = vld [vmem:[%s3135 + $0x2ea] sm:$0xff]
    %v4255 = vld [vmem:[%s3135 + $0x2f2] sm:$0xff]
    %v4256 = vld [vmem:[%s3135 + $0x302] sm:$0xff]
    %v4257 = vld [vmem:[%s3135 + $0x30a] sm:$0xff]
    %v4258 = vld [vmem:[%s3135 + $0x31a] sm:$0xff]
    %v4259 = vld [vmem:[%s3135 + $0x322] sm:$0xff]
    %s4260 = scalar_lea.vmem [#allocation6], 640
    %v4261 = vld [vmem:[%s4260] sm:$0xff]
    %v4262 = vld [vmem:[%s4260 + $0x8] sm:$0xff]
    %v4263 = vld [vmem:[%s4260 + $0x10] sm:$0xff]
    %v4264 = vld [vmem:[%s4260 + $0x18] sm:$0xff]
    %v4265 = vld [vmem:[%s4260 + $0x20] sm:$0xff]
    %v4266 = vld [vmem:[%s4260 + $0x28] sm:$0xff]
    %v4267 = vld [vmem:[%s4260 + $0x30] sm:$0xff]
    %v4268 = vld [vmem:[%s4260 + $0x38] sm:$0xff]
    %v4269 = vld [vmem:[%s4260 + $0x40] sm:$0xff]
    %v4270 = vld [vmem:[%s4260 + $0x48] sm:$0xff]
    %v4271 = vld [vmem:[%s4260 + $0x50] sm:$0xff]
    %v4272 = vld [vmem:[%s4260 + $0x58] sm:$0xff]
    %v4273 = vld [vmem:[%s4260 + $0x60] sm:$0xff]
    %v4274 = vld [vmem:[%s4260 + $0x68] sm:$0xff]
    %v4275 = vld [vmem:[%s4260 + $0x70] sm:$0xff]
    %v4276 = vld [vmem:[%s4260 + $0x78] sm:$0xff]
    %4277 = vmatprep.subr.mxu0 0.0
    %4278 = vmatpush1.msra.mxu0 %v4261
    %4279 = vmatprep.subr.mxu0 0.0
    %4280 = vmatpush1.msra.mxu0 %v4262
    %4281 = vmatprep.subr.mxu0 0.0
    %4282 = vmatpush1.msra.mxu0 %v4263
    %4283 = vmatprep.subr.mxu0 0.0
    %4284 = vmatpush1.msra.mxu0 %v4264
    %4285 = vmatprep.subr.mxu0 0.0
    %4286 = vmatpush1.msra.mxu0 %v4265
    %4287 = vmatprep.subr.mxu0 0.0
    %4288 = vmatpush1.msra.mxu0 %v4266
    %4289 = vmatprep.subr.mxu0 0.0
    %4290 = vmatpush1.msra.mxu0 %v4267
    %4291 = vmatprep.subr.mxu0 0.0
    %4292 = vmatpush1.msra.mxu0 %v4268
    %4293 = vmatprep.subr.mxu0 0.0
    %4294 = vmatpush1.msra.mxu0 %v4269
    %4295 = vmatprep.subr.mxu0 0.0
    %4296 = vmatpush1.msra.mxu0 %v4270
    %4297 = vmatprep.subr.mxu0 0.0
    %4298 = vmatpush1.msra.mxu0 %v4271
    %4299 = vmatprep.subr.mxu0 0.0
    %4300 = vmatpush1.msra.mxu0 %v4272
    %4301 = vmatprep.subr.mxu0 0.0
    %4302 = vmatpush1.msra.mxu0 %v4273
    %4303 = vmatprep.subr.mxu0 0.0
    %4304 = vmatpush1.msra.mxu0 %v4274
    %4305 = vmatprep.subr.mxu0 0.0
    %4306 = vmatpush1.msra.mxu0 %v4275
    %4307 = vmatprep.subr.mxu0 0.0
    %4308 = vmatpush1.msra.mxu0 %v4276
    %4309 = vmatprep.subr.mxu0 0.0
    %4310 = vmatpush1.msra.mxu0 0.0
    %4311 = vmatprep.subr.mxu0 0.0
    %4312 = vmatpush1.msra.mxu0 0.0
    %4313 = vmatprep.subr.mxu0 0.0
    %4314 = vmatpush1.msra.mxu0 0.0
    %4315 = vmatprep.subr.mxu0 0.0
    %4316 = vmatpush1.msra.mxu0 0.0
    %4317 = vmatprep.subr.mxu0 0.0
    %4318 = vmatpush1.msra.mxu0 0.0
    %4319 = vmatprep.subr.mxu0 0.0
    %4320 = vmatpush1.msra.mxu0 0.0
    %4321 = vmatprep.subr.mxu0 0.0
    %4322 = vmatpush1.msra.mxu0 0.0
    %4323 = vmatprep.subr.mxu0 0.0
    %4324 = vmatpush1.msra.mxu0 0.0
    %4325 = vmatprep.subr.mxu0 0.0
    %4326 = vmatpush1.msra.mxu0 0.0
    %4327 = vmatprep.subr.mxu0 0.0
    %4328 = vmatpush1.msra.mxu0 0.0
    %4329 = vmatprep.subr.mxu0 0.0
    %4330 = vmatpush1.msra.mxu0 0.0
    %4331 = vmatprep.subr.mxu0 0.0
    %4332 = vmatpush1.msra.mxu0 0.0
    %4333 = vmatprep.subr.mxu0 0.0
    %4334 = vmatpush1.msra.mxu0 0.0
    %4335 = vmatprep.subr.mxu0 0.0
    %4336 = vmatpush1.msra.mxu0 0.0
    %4337 = vmatprep.subr.mxu0 0.0
    %4338 = vmatpush1.msra.mxu0 0.0
    %4339 = vmatprep.subr.mxu0 0.0
    %4340 = vmatpush1.msra.mxu0 0.0
    %4341 = vmatprep.mubr.f32.mxu0 0.0
    %4342 = vmatmul.mubr.f32.gmra.mrb[0].mxu0 %v4196
    %v4343 = vpop.f32.mrb[0].mxu0
    %v4344 = vadd.f32 0.0, %v4343
    %v4345 = vpop.f32.mrb[0].mxu0
    %4346 = vmatprep.mubr.f32.mxu0 0.0
    %4347 = vmatmul.mubr.f32.gmra.mrb[0].mxu0 %v4197
    %v4348 = vpop.f32.mrb[0].mxu0
    %v4349 = vadd.f32 0.0, %v4348
    %v4350 = vpop.f32.mrb[0].mxu0
    %4351 = vmatprep.mubr.f32.mxu0 0.0
    %4352 = vmatmul.mubr.f32.gmra.mrb[0].mxu0 %v4198
    %v4353 = vpop.f32.mrb[0].mxu0
    %v4354 = vadd.f32 0.0, %v4353
    %v4355 = vpop.f32.mrb[0].mxu0
    %4356 = vmatprep.mubr.f32.mxu0 0.0
    %4357 = vmatmul.mubr.f32.gmra.mrb[0].mxu0 %v4199
    %v4358 = vpop.f32.mrb[0].mxu0
    %v4359 = vadd.f32 0.0, %v4358
    %v4360 = vpop.f32.mrb[0].mxu0
    %4361 = vmatprep.mubr.f32.mxu0 0.0
    %4362 = vmatmul.mubr.f32.gmra.mrb[0].mxu0 %v4200
    %v4363 = vpop.f32.mrb[0].mxu0
    %v4364 = vadd.f32 0.0, %v4363
    %v4365 = vpop.f32.mrb[0].mxu0
    %4366 = vmatprep.mubr.f32.mxu0 0.0
    %4367 = vmatmul.mubr.f32.gmra.mrb[0].mxu0 %v4201
    %v4368 = vpop.f32.mrb[0].mxu0
    %v4369 = vadd.f32 0.0, %v4368
    %v4370 = vpop.f32.mrb[0].mxu0
    %4371 = vmatprep.mubr.f32.mxu0 0.0
    %4372 = vmatmul.mubr.f32.gmra.mrb[0].mxu0 %v4202
    %v4373 = vpop.f32.mrb[0].mxu0
    %v4374 = vadd.f32 0.0, %v4373
    %v4375 = vpop.f32.mrb[0].mxu0
    %4376 = vmatprep.mubr.f32.mxu0 0.0
    %4377 = vmatmul.mubr.f32.gmra.mrb[0].mxu0 %v4203
    %v4378 = vpop.f32.mrb[0].mxu0
    %v4379 = vadd.f32 0.0, %v4378
    %v4380 = vpop.f32.mrb[0].mxu0
    %4381 = vmatprep.mubr.f32.mxu0 0.0
    %4382 = vmatmul.mubr.f32.gmra.mrb[0].mxu0 %v4204
    %v4383 = vpop.f32.mrb[0].mxu0
    %v4384 = vadd.f32 0.0, %v4383
    %v4385 = vpop.f32.mrb[0].mxu0
    %4386 = vmatprep.mubr.f32.mxu0 0.0
    %4387 = vmatmul.mubr.f32.gmra.mrb[0].mxu0 %v4205
    %v4388 = vpop.f32.mrb[0].mxu0
    %v4389 = vadd.f32 0.0, %v4388
    %v4390 = vpop.f32.mrb[0].mxu0
    %4391 = vmatprep.mubr.f32.mxu0 0.0
    %4392 = vmatmul.mubr.f32.gmra.mrb[0].mxu0 %v4206
    %v4393 = vpop.f32.mrb[0].mxu0
    %v4394 = vadd.f32 0.0, %v4393
    %v4395 = vpop.f32.mrb[0].mxu0
    %4396 = vmatprep.mubr.f32.mxu0 0.0
    %4397 = vmatmul.mubr.f32.gmra.mrb[0].mxu0 %v4207
    %v4398 = vpop.f32.mrb[0].mxu0
    %v4399 = vadd.f32 0.0, %v4398
    %v4400 = vpop.f32.mrb[0].mxu0
    %4401 = vmatprep.mubr.f32.mxu0 0.0
    %4402 = vmatmul.mubr.f32.gmra.mrb[0].mxu0 %v4208
    %v4403 = vpop.f32.mrb[0].mxu0
    %v4404 = vadd.f32 0.0, %v4403
    %v4405 = vpop.f32.mrb[0].mxu0
    %4406 = vmatprep.mubr.f32.mxu0 0.0
    %4407 = vmatmul.mubr.f32.gmra.mrb[0].mxu0 %v4209
    %v4408 = vpop.f32.mrb[0].mxu0
    %v4409 = vadd.f32 0.0, %v4408
    %v4410 = vpop.f32.mrb[0].mxu0
    %4411 = vmatprep.mubr.f32.mxu0 0.0
    %4412 = vmatmul.mubr.f32.gmra.mrb[0].mxu0 %v4210
    %v4413 = vpop.f32.mrb[0].mxu0
    %v4414 = vadd.f32 0.0, %v4413
    %v4415 = vpop.f32.mrb[0].mxu0
    %4416 = vmatprep.mubr.f32.mxu0 0.0
    %4417 = vmatmul.mubr.f32.gmra.mrb[0].mxu0 %v4211
    %v4418 = vpop.f32.mrb[0].mxu0
    %v4419 = vadd.f32 0.0, %v4418
    %v4420 = vpop.f32.mrb[0].mxu0
    %4421 = vmatprep.mubr.f32.mxu0 0.0
    %4422 = vmatmul.mubr.f32.gmra.mrb[0].mxu0 %v4212
    %v4423 = vpop.f32.mrb[0].mxu0
    %v4424 = vadd.f32 0.0, %v4423
    %v4425 = vpop.f32.mrb[0].mxu0
    %4426 = vmatprep.mubr.f32.mxu0 0.0
    %4427 = vmatmul.mubr.f32.gmra.mrb[0].mxu0 %v4213
    %v4428 = vpop.f32.mrb[0].mxu0
    %v4429 = vadd.f32 0.0, %v4428
    %v4430 = vpop.f32.mrb[0].mxu0
    %4431 = vmatprep.mubr.f32.mxu0 0.0
    %4432 = vmatmul.mubr.f32.gmra.mrb[0].mxu0 %v4214
    %v4433 = vpop.f32.mrb[0].mxu0
    %v4434 = vadd.f32 0.0, %v4433
    %v4435 = vpop.f32.mrb[0].mxu0
    %4436 = vmatprep.mubr.f32.mxu0 0.0
    %4437 = vmatmul.mubr.f32.gmra.mrb[0].mxu0 %v4215
    %v4438 = vpop.f32.mrb[0].mxu0
    %v4439 = vadd.f32 0.0, %v4438
    %v4440 = vpop.f32.mrb[0].mxu0
    %4441 = vmatprep.mubr.f32.mxu0 0.0
    %4442 = vmatmul.mubr.f32.gmra.mrb[0].mxu0 %v4216
    %v4443 = vpop.f32.mrb[0].mxu0
    %v4444 = vadd.f32 0.0, %v4443
    %v4445 = vpop.f32.mrb[0].mxu0
    %4446 = vmatprep.mubr.f32.mxu0 0.0
    %4447 = vmatmul.mubr.f32.gmra.mrb[0].mxu0 %v4217
    %v4448 = vpop.f32.mrb[0].mxu0
    %v4449 = vadd.f32 0.0, %v4448
    %v4450 = vpop.f32.mrb[0].mxu0
    %4451 = vmatprep.mubr.f32.mxu0 0.0
    %4452 = vmatmul.mubr.f32.gmra.mrb[0].mxu0 %v4218
    %v4453 = vpop.f32.mrb[0].mxu0
    %v4454 = vadd.f32 0.0, %v4453
    %v4455 = vpop.f32.mrb[0].mxu0
    %4456 = vmatprep.mubr.f32.mxu0 0.0
    %4457 = vmatmul.mubr.f32.gmra.mrb[0].mxu0 %v4219
    %v4458 = vpop.f32.mrb[0].mxu0
    %v4459 = vadd.f32 0.0, %v4458
    %v4460 = vpop.f32.mrb[0].mxu0
    %4461 = vmatprep.mubr.f32.mxu0 0.0
    %4462 = vmatmul.mubr.f32.gmra.mrb[0].mxu0 %v4220
    %v4463 = vpop.f32.mrb[0].mxu0
    %v4464 = vadd.f32 0.0, %v4463
    %v4465 = vpop.f32.mrb[0].mxu0
    %4466 = vmatprep.mubr.f32.mxu0 0.0
    %4467 = vmatmul.mubr.f32.gmra.mrb[0].mxu0 %v4221
    %v4468 = vpop.f32.mrb[0].mxu0
    %v4469 = vadd.f32 0.0, %v4468
    %v4470 = vpop.f32.mrb[0].mxu0
    %4471 = vmatprep.mubr.f32.mxu0 0.0
    %4472 = vmatmul.mubr.f32.gmra.mrb[0].mxu0 %v4222
    %v4473 = vpop.f32.mrb[0].mxu0
    %v4474 = vadd.f32 0.0, %v4473
    %v4475 = vpop.f32.mrb[0].mxu0
    %4476 = vmatprep.mubr.f32.mxu0 0.0
    %4477 = vmatmul.mubr.f32.gmra.mrb[0].mxu0 %v4223
    %v4478 = vpop.f32.mrb[0].mxu0
    %v4479 = vadd.f32 0.0, %v4478
    %v4480 = vpop.f32.mrb[0].mxu0
    %4481 = vmatprep.mubr.f32.mxu0 0.0
    %4482 = vmatmul.mubr.f32.gmra.mrb[0].mxu0 %v4224
    %v4483 = vpop.f32.mrb[0].mxu0
    %v4484 = vadd.f32 0.0, %v4483
    %v4485 = vpop.f32.mrb[0].mxu0
    %4486 = vmatprep.mubr.f32.mxu0 0.0
    %4487 = vmatmul.mubr.f32.gmra.mrb[0].mxu0 %v4225
    %v4488 = vpop.f32.mrb[0].mxu0
    %v4489 = vadd.f32 0.0, %v4488
    %v4490 = vpop.f32.mrb[0].mxu0
    %4491 = vmatprep.mubr.f32.mxu0 0.0
    %4492 = vmatmul.mubr.f32.gmra.mrb[0].mxu0 %v4226
    %v4493 = vpop.f32.mrb[0].mxu0
    %v4494 = vadd.f32 0.0, %v4493
    %v4495 = vpop.f32.mrb[0].mxu0
    %4496 = vmatprep.mubr.f32.mxu0 0.0
    %4497 = vmatmul.mubr.f32.gmra.mrb[0].mxu0 %v4227
    %v4498 = vpop.f32.mrb[0].mxu0
    %v4499 = vadd.f32 0.0, %v4498
    %v4500 = vpop.f32.mrb[0].mxu0
    %4501 = vmatprep.mubr.f32.mxu0 0.0
    %4502 = vmatmul.mubr.f32.gmra.mrb[0].mxu0 %v4228
    %v4503 = vpop.f32.mrb[0].mxu0
    %v4504 = vadd.f32 0.0, %v4503
    %v4505 = vpop.f32.mrb[0].mxu0
    %4506 = vmatprep.mubr.f32.mxu0 0.0
    %4507 = vmatmul.mubr.f32.gmra.mrb[0].mxu0 %v4229
    %v4508 = vpop.f32.mrb[0].mxu0
    %v4509 = vadd.f32 0.0, %v4508
    %v4510 = vpop.f32.mrb[0].mxu0
    %4511 = vmatprep.mubr.f32.mxu0 0.0
    %4512 = vmatmul.mubr.f32.gmra.mrb[0].mxu0 %v4230
    %v4513 = vpop.f32.mrb[0].mxu0
    %v4514 = vadd.f32 0.0, %v4513
    %v4515 = vpop.f32.mrb[0].mxu0
    %4516 = vmatprep.mubr.f32.mxu0 0.0
    %4517 = vmatmul.mubr.f32.gmra.mrb[0].mxu0 %v4231
    %v4518 = vpop.f32.mrb[0].mxu0
    %v4519 = vadd.f32 0.0, %v4518
    %v4520 = vpop.f32.mrb[0].mxu0
    %4521 = vmatprep.mubr.f32.mxu0 0.0
    %4522 = vmatmul.mubr.f32.gmra.mrb[0].mxu0 %v4232
    %v4523 = vpop.f32.mrb[0].mxu0
    %v4524 = vadd.f32 0.0, %v4523
    %v4525 = vpop.f32.mrb[0].mxu0
    %4526 = vmatprep.mubr.f32.mxu0 0.0
    %4527 = vmatmul.mubr.f32.gmra.mrb[0].mxu0 %v4233
    %v4528 = vpop.f32.mrb[0].mxu0
    %v4529 = vadd.f32 0.0, %v4528
    %v4530 = vpop.f32.mrb[0].mxu0
    %4531 = vmatprep.mubr.f32.mxu0 0.0
    %4532 = vmatmul.mubr.f32.gmra.mrb[0].mxu0 %v4234
    %v4533 = vpop.f32.mrb[0].mxu0
    %v4534 = vadd.f32 0.0, %v4533
    %v4535 = vpop.f32.mrb[0].mxu0
    %4536 = vmatprep.mubr.f32.mxu0 0.0
    %4537 = vmatmul.mubr.f32.gmra.mrb[0].mxu0 %v4235
    %v4538 = vpop.f32.mrb[0].mxu0
    %v4539 = vadd.f32 0.0, %v4538
    %v4540 = vpop.f32.mrb[0].mxu0
    %4541 = vmatprep.mubr.f32.mxu0 0.0
    %4542 = vmatmul.mubr.f32.gmra.mrb[0].mxu0 %v4236
    %v4543 = vpop.f32.mrb[0].mxu0
    %v4544 = vadd.f32 0.0, %v4543
    %v4545 = vpop.f32.mrb[0].mxu0
    %4546 = vmatprep.mubr.f32.mxu0 0.0
    %4547 = vmatmul.mubr.f32.gmra.mrb[0].mxu0 %v4237
    %v4548 = vpop.f32.mrb[0].mxu0
    %v4549 = vadd.f32 0.0, %v4548
    %v4550 = vpop.f32.mrb[0].mxu0
    %4551 = vmatprep.mubr.f32.mxu0 0.0
    %4552 = vmatmul.mubr.f32.gmra.mrb[0].mxu0 %v4238
    %v4553 = vpop.f32.mrb[0].mxu0
    %v4554 = vadd.f32 0.0, %v4553
    %v4555 = vpop.f32.mrb[0].mxu0
    %4556 = vmatprep.mubr.f32.mxu0 0.0
    %4557 = vmatmul.mubr.f32.gmra.mrb[0].mxu0 %v4239
    %v4558 = vpop.f32.mrb[0].mxu0
    %v4559 = vadd.f32 0.0, %v4558
    %v4560 = vpop.f32.mrb[0].mxu0
    %4561 = vmatprep.mubr.f32.mxu0 0.0
    %4562 = vmatmul.mubr.f32.gmra.mrb[0].mxu0 %v4240
    %v4563 = vpop.f32.mrb[0].mxu0
    %v4564 = vadd.f32 0.0, %v4563
    %v4565 = vpop.f32.mrb[0].mxu0
    %4566 = vmatprep.mubr.f32.mxu0 0.0
    %4567 = vmatmul.mubr.f32.gmra.mrb[0].mxu0 %v4241
    %v4568 = vpop.f32.mrb[0].mxu0
    %v4569 = vadd.f32 0.0, %v4568
    %v4570 = vpop.f32.mrb[0].mxu0
    %4571 = vmatprep.mubr.f32.mxu0 0.0
    %4572 = vmatmul.mubr.f32.gmra.mrb[0].mxu0 %v4242
    %v4573 = vpop.f32.mrb[0].mxu0
    %v4574 = vadd.f32 0.0, %v4573
    %v4575 = vpop.f32.mrb[0].mxu0
    %4576 = vmatprep.mubr.f32.mxu0 0.0
    %4577 = vmatmul.mubr.f32.gmra.mrb[0].mxu0 %v4243
    %v4578 = vpop.f32.mrb[0].mxu0
    %v4579 = vadd.f32 0.0, %v4578
    %v4580 = vpop.f32.mrb[0].mxu0
    %4581 = vmatprep.mubr.f32.mxu0 0.0
    %4582 = vmatmul.mubr.f32.gmra.mrb[0].mxu0 %v4244
    %v4583 = vpop.f32.mrb[0].mxu0
    %v4584 = vadd.f32 0.0, %v4583
    %v4585 = vpop.f32.mrb[0].mxu0
    %4586 = vmatprep.mubr.f32.mxu0 0.0
    %4587 = vmatmul.mubr.f32.gmra.mrb[0].mxu0 %v4245
    %v4588 = vpop.f32.mrb[0].mxu0
    %v4589 = vadd.f32 0.0, %v4588
    %v4590 = vpop.f32.mrb[0].mxu0
    %4591 = vmatprep.mubr.f32.mxu0 0.0
    %4592 = vmatmul.mubr.f32.gmra.mrb[0].mxu0 %v4246
    %v4593 = vpop.f32.mrb[0].mxu0
    %v4594 = vadd.f32 0.0, %v4593
    %v4595 = vpop.f32.mrb[0].mxu0
    %4596 = vmatprep.mubr.f32.mxu0 0.0
    %4597 = vmatmul.mubr.f32.gmra.mrb[0].mxu0 %v4247
    %v4598 = vpop.f32.mrb[0].mxu0
    %v4599 = vadd.f32 0.0, %v4598
    %v4600 = vpop.f32.mrb[0].mxu0
    %4601 = vmatprep.mubr.f32.mxu0 0.0
    %4602 = vmatmul.mubr.f32.gmra.mrb[0].mxu0 %v4248
    %v4603 = vpop.f32.mrb[0].mxu0
    %v4604 = vadd.f32 0.0, %v4603
    %v4605 = vpop.f32.mrb[0].mxu0
    %4606 = vmatprep.mubr.f32.mxu0 0.0
    %4607 = vmatmul.mubr.f32.gmra.mrb[0].mxu0 %v4249
    %v4608 = vpop.f32.mrb[0].mxu0
    %v4609 = vadd.f32 0.0, %v4608
    %v4610 = vpop.f32.mrb[0].mxu0
    %4611 = vmatprep.mubr.f32.mxu0 0.0
    %4612 = vmatmul.mubr.f32.gmra.mrb[0].mxu0 %v4250
    %v4613 = vpop.f32.mrb[0].mxu0
    %v4614 = vadd.f32 0.0, %v4613
    %v4615 = vpop.f32.mrb[0].mxu0
    %4616 = vmatprep.mubr.f32.mxu0 0.0
    %4617 = vmatmul.mubr.f32.gmra.mrb[0].mxu0 %v4251
    %v4618 = vpop.f32.mrb[0].mxu0
    %v4619 = vadd.f32 0.0, %v4618
    %v4620 = vpop.f32.mrb[0].mxu0
    %4621 = vmatprep.mubr.f32.mxu0 0.0
    %4622 = vmatmul.mubr.f32.gmra.mrb[0].mxu0 %v4252
    %v4623 = vpop.f32.mrb[0].mxu0
    %v4624 = vadd.f32 0.0, %v4623
    %v4625 = vpop.f32.mrb[0].mxu0
    %4626 = vmatprep.mubr.f32.mxu0 0.0
    %4627 = vmatmul.mubr.f32.gmra.mrb[0].mxu0 %v4253
    %v4628 = vpop.f32.mrb[0].mxu0
    %v4629 = vadd.f32 0.0, %v4628
    %v4630 = vpop.f32.mrb[0].mxu0
    %4631 = vmatprep.mubr.f32.mxu0 0.0
    %4632 = vmatmul.mubr.f32.gmra.mrb[0].mxu0 %v4254
    %v4633 = vpop.f32.mrb[0].mxu0
    %v4634 = vadd.f32 0.0, %v4633
    %v4635 = vpop.f32.mrb[0].mxu0
    %4636 = vmatprep.mubr.f32.mxu0 0.0
    %4637 = vmatmul.mubr.f32.gmra.mrb[0].mxu0 %v4255
    %v4638 = vpop.f32.mrb[0].mxu0
    %v4639 = vadd.f32 0.0, %v4638
    %v4640 = vpop.f32.mrb[0].mxu0
    %4641 = vmatprep.mubr.f32.mxu0 0.0
    %4642 = vmatmul.mubr.f32.gmra.mrb[0].mxu0 %v4256
    %v4643 = vpop.f32.mrb[0].mxu0
    %v4644 = vadd.f32 0.0, %v4643
    %v4645 = vpop.f32.mrb[0].mxu0
    %4646 = vmatprep.mubr.f32.mxu0 0.0
    %4647 = vmatmul.mubr.f32.gmra.mrb[0].mxu0 %v4257
    %v4648 = vpop.f32.mrb[0].mxu0
    %v4649 = vadd.f32 0.0, %v4648
    %v4650 = vpop.f32.mrb[0].mxu0
    %4651 = vmatprep.mubr.f32.mxu0 0.0
    %4652 = vmatmul.mubr.f32.gmra.mrb[0].mxu0 %v4258
    %v4653 = vpop.f32.mrb[0].mxu0
    %v4654 = vadd.f32 0.0, %v4653
    %v4655 = vpop.f32.mrb[0].mxu0
    %4656 = vmatprep.mubr.f32.mxu0 0.0
    %4657 = vmatmul.mubr.f32.gmra.mrb[0].mxu0 %v4259
    %v4658 = vpop.f32.mrb[0].mxu0
    %v4659 = vadd.f32 0.0, %v4658
    %v4660 = vpop.f32.mrb[0].mxu0
    %4661 = vdwg.mxu0
    %v4662 = vadd.f32 %v4132, %v4344
    %v4663 = vadd.f32 %v4133, %v4349
    %v4664 = vadd.f32 %v4134, %v4354
    %v4665 = vadd.f32 %v4135, %v4359
    %v4666 = vadd.f32 %v4136, %v4364
    %v4667 = vadd.f32 %v4137, %v4369
    %v4668 = vadd.f32 %v4138, %v4374
    %v4669 = vadd.f32 %v4139, %v4379
    %v4670 = vadd.f32 %v4140, %v4384
    %v4671 = vadd.f32 %v4141, %v4389
    %v4672 = vadd.f32 %v4142, %v4394
    %v4673 = vadd.f32 %v4143, %v4399
    %v4674 = vadd.f32 %v4144, %v4404
    %v4675 = vadd.f32 %v4145, %v4409
    %v4676 = vadd.f32 %v4146, %v4414
    %v4677 = vadd.f32 %v4147, %v4419
    %v4678 = vadd.f32 %v4148, %v4424
    %v4679 = vadd.f32 %v4149, %v4429
    %v4680 = vadd.f32 %v4150, %v4434
    %v4681 = vadd.f32 %v4151, %v4439
    %v4682 = vadd.f32 %v4152, %v4444
    %v4683 = vadd.f32 %v4153, %v4449
    %v4684 = vadd.f32 %v4154, %v4454
    %v4685 = vadd.f32 %v4155, %v4459
    %v4686 = vadd.f32 %v4156, %v4464
    %v4687 = vadd.f32 %v4157, %v4469
    %v4688 = vadd.f32 %v4158, %v4474
    %v4689 = vadd.f32 %v4159, %v4479
    %v4690 = vadd.f32 %v4160, %v4484
    %v4691 = vadd.f32 %v4161, %v4489
    %v4692 = vadd.f32 %v4162, %v4494
    %v4693 = vadd.f32 %v4163, %v4499
    %v4694 = vadd.f32 %v4164, %v4504
    %v4695 = vadd.f32 %v4165, %v4509
    %v4696 = vadd.f32 %v4166, %v4514
    %v4697 = vadd.f32 %v4167, %v4519
    %v4698 = vadd.f32 %v4168, %v4524
    %v4699 = vadd.f32 %v4169, %v4529
    %v4700 = vadd.f32 %v4170, %v4534
    %v4701 = vadd.f32 %v4171, %v4539
    %v4702 = vadd.f32 %v4172, %v4544
    %v4703 = vadd.f32 %v4173, %v4549
    %v4704 = vadd.f32 %v4174, %v4554
    %v4705 = vadd.f32 %v4175, %v4559
    %v4706 = vadd.f32 %v4176, %v4564
    %v4707 = vadd.f32 %v4177, %v4569
    %v4708 = vadd.f32 %v4178, %v4574
    %v4709 = vadd.f32 %v4179, %v4579
    %v4710 = vadd.f32 %v4180, %v4584
    %v4711 = vadd.f32 %v4181, %v4589
    %v4712 = vadd.f32 %v4182, %v4594
    %v4713 = vadd.f32 %v4183, %v4599
    %v4714 = vadd.f32 %v4184, %v4604
    %v4715 = vadd.f32 %v4185, %v4609
    %v4716 = vadd.f32 %v4186, %v4614
    %v4717 = vadd.f32 %v4187, %v4619
    %v4718 = vadd.f32 %v4188, %v4624
    %v4719 = vadd.f32 %v4189, %v4629
    %v4720 = vadd.f32 %v4190, %v4634
    %v4721 = vadd.f32 %v4191, %v4639
    %v4722 = vadd.f32 %v4192, %v4644
    %v4723 = vadd.f32 %v4193, %v4649
    %v4724 = vadd.f32 %v4194, %v4654
    %v4725 = vadd.f32 %v4195, %v4659
    %s4726 = scalar_lea.vmem [#allocation2], 48
    %v4727 = vld [vmem:[%s4726] sm:$0xff]
    %v4728 = vld [vmem:[%s4726 + $0x8] sm:$0xff]
    %v4729 = vld [vmem:[%s4726 + $0x18] sm:$0xff]
    %v4730 = vld [vmem:[%s4726 + $0x20] sm:$0xff]
    %v4731 = vld [vmem:[%s4726 + $0x30] sm:$0xff]
    %v4732 = vld [vmem:[%s4726 + $0x38] sm:$0xff]
    %v4733 = vld [vmem:[%s4726 + $0x48] sm:$0xff]
    %v4734 = vld [vmem:[%s4726 + $0x50] sm:$0xff]
    %v4735 = vld [vmem:[%s4726 + $0x60] sm:$0xff]
    %v4736 = vld [vmem:[%s4726 + $0x68] sm:$0xff]
    %v4737 = vld [vmem:[%s4726 + $0x78] sm:$0xff]
    %v4738 = vld [vmem:[%s4726 + $0x80] sm:$0xff]
    %v4739 = vld [vmem:[%s4726 + $0x90] sm:$0xff]
    %v4740 = vld [vmem:[%s4726 + $0x98] sm:$0xff]
    %v4741 = vld [vmem:[%s4726 + $0xa8] sm:$0xff]
    %v4742 = vld [vmem:[%s4726 + $0xb0] sm:$0xff]
    %v4743 = vld [vmem:[%s4726 + $0xc0] sm:$0xff]
    %v4744 = vld [vmem:[%s4726 + $0xc8] sm:$0xff]
    %v4745 = vld [vmem:[%s4726 + $0xd8] sm:$0xff]
    %v4746 = vld [vmem:[%s4726 + $0xe0] sm:$0xff]
    %v4747 = vld [vmem:[%s4726 + $0xf0] sm:$0xff]
    %v4748 = vld [vmem:[%s4726 + $0xf8] sm:$0xff]
    %v4749 = vld [vmem:[%s4726 + $0x108] sm:$0xff]
    %v4750 = vld [vmem:[%s4726 + $0x110] sm:$0xff]
    %v4751 = vld [vmem:[%s4726 + $0x120] sm:$0xff]
    %v4752 = vld [vmem:[%s4726 + $0x128] sm:$0xff]
    %v4753 = vld [vmem:[%s4726 + $0x138] sm:$0xff]
    %v4754 = vld [vmem:[%s4726 + $0x140] sm:$0xff]
    %v4755 = vld [vmem:[%s4726 + $0x150] sm:$0xff]
    %v4756 = vld [vmem:[%s4726 + $0x158] sm:$0xff]
    %v4757 = vld [vmem:[%s4726 + $0x168] sm:$0xff]
    %v4758 = vld [vmem:[%s4726 + $0x170] sm:$0xff]
    %v4759 = vld [vmem:[%s4726 + $0x1b0] sm:$0xff]
    %v4760 = vld [vmem:[%s4726 + $0x1b8] sm:$0xff]
    %v4761 = vld [vmem:[%s4726 + $0x1c8] sm:$0xff]
    %v4762 = vld [vmem:[%s4726 + $0x1d0] sm:$0xff]
    %v4763 = vld [vmem:[%s4726 + $0x1e0] sm:$0xff]
    %v4764 = vld [vmem:[%s4726 + $0x1e8] sm:$0xff]
    %v4765 = vld [vmem:[%s4726 + $0x1f8] sm:$0xff]
    %v4766 = vld [vmem:[%s4726 + $0x200] sm:$0xff]
    %v4767 = vld [vmem:[%s4726 + $0x210] sm:$0xff]
    %v4768 = vld [vmem:[%s4726 + $0x218] sm:$0xff]
    %v4769 = vld [vmem:[%s4726 + $0x228] sm:$0xff]
    %v4770 = vld [vmem:[%s4726 + $0x230] sm:$0xff]
    %v4771 = vld [vmem:[%s4726 + $0x240] sm:$0xff]
    %v4772 = vld [vmem:[%s4726 + $0x248] sm:$0xff]
    %v4773 = vld [vmem:[%s4726 + $0x258] sm:$0xff]
    %v4774 = vld [vmem:[%s4726 + $0x260] sm:$0xff]
    %v4775 = vld [vmem:[%s4726 + $0x270] sm:$0xff]
    %v4776 = vld [vmem:[%s4726 + $0x278] sm:$0xff]
    %v4777 = vld [vmem:[%s4726 + $0x288] sm:$0xff]
    %v4778 = vld [vmem:[%s4726 + $0x290] sm:$0xff]
    %v4779 = vld [vmem:[%s4726 + $0x2a0] sm:$0xff]
    %v4780 = vld [vmem:[%s4726 + $0x2a8] sm:$0xff]
    %v4781 = vld [vmem:[%s4726 + $0x2b8] sm:$0xff]
    %v4782 = vld [vmem:[%s4726 + $0x2c0] sm:$0xff]
    %v4783 = vld [vmem:[%s4726 + $0x2d0] sm:$0xff]
    %v4784 = vld [vmem:[%s4726 + $0x2d8] sm:$0xff]
    %v4785 = vld [vmem:[%s4726 + $0x2e8] sm:$0xff]
    %v4786 = vld [vmem:[%s4726 + $0x2f0] sm:$0xff]
    %v4787 = vld [vmem:[%s4726 + $0x300] sm:$0xff]
    %v4788 = vld [vmem:[%s4726 + $0x308] sm:$0xff]
    %v4789 = vld [vmem:[%s4726 + $0x318] sm:$0xff]
    %v4790 = vld [vmem:[%s4726 + $0x320] sm:$0xff]
    %s4791 = scalar_lea.vmem [#allocation6], 768
    %v4792 = vld [vmem:[%s4791] sm:$0xff]
    %v4793 = vld [vmem:[%s4791 + $0x8] sm:$0xff]
    %v4794 = vld [vmem:[%s4791 + $0x10] sm:$0xff]
    %v4795 = vld [vmem:[%s4791 + $0x18] sm:$0xff]
    %v4796 = vld [vmem:[%s4791 + $0x20] sm:$0xff]
    %v4797 = vld [vmem:[%s4791 + $0x28] sm:$0xff]
    %v4798 = vld [vmem:[%s4791 + $0x30] sm:$0xff]
    %v4799 = vld [vmem:[%s4791 + $0x38] sm:$0xff]
    %v4800 = vld [vmem:[%s4791 + $0x40] sm:$0xff]
    %v4801 = vld [vmem:[%s4791 + $0x48] sm:$0xff]
    %v4802 = vld [vmem:[%s4791 + $0x50] sm:$0xff]
    %v4803 = vld [vmem:[%s4791 + $0x58] sm:$0xff]
    %v4804 = vld [vmem:[%s4791 + $0x60] sm:$0xff]
    %v4805 = vld [vmem:[%s4791 + $0x68] sm:$0xff]
    %v4806 = vld [vmem:[%s4791 + $0x70] sm:$0xff]
    %v4807 = vld [vmem:[%s4791 + $0x78] sm:$0xff]
    %4808 = vmatprep.subr.mxu0 0.0
    %4809 = vmatpush1.msra.mxu0 %v4792
    %4810 = vmatprep.subr.mxu0 0.0
    %4811 = vmatpush1.msra.mxu0 %v4793
    %4812 = vmatprep.subr.mxu0 0.0
    %4813 = vmatpush1.msra.mxu0 %v4794
    %4814 = vmatprep.subr.mxu0 0.0
    %4815 = vmatpush1.msra.mxu0 %v4795
    %4816 = vmatprep.subr.mxu0 0.0
    %4817 = vmatpush1.msra.mxu0 %v4796
    %4818 = vmatprep.subr.mxu0 0.0
    %4819 = vmatpush1.msra.mxu0 %v4797
    %4820 = vmatprep.subr.mxu0 0.0
    %4821 = vmatpush1.msra.mxu0 %v4798
    %4822 = vmatprep.subr.mxu0 0.0
    %4823 = vmatpush1.msra.mxu0 %v4799
    %4824 = vmatprep.subr.mxu0 0.0
    %4825 = vmatpush1.msra.mxu0 %v4800
    %4826 = vmatprep.subr.mxu0 0.0
    %4827 = vmatpush1.msra.mxu0 %v4801
    %4828 = vmatprep.subr.mxu0 0.0
    %4829 = vmatpush1.msra.mxu0 %v4802
    %4830 = vmatprep.subr.mxu0 0.0
    %4831 = vmatpush1.msra.mxu0 %v4803
    %4832 = vmatprep.subr.mxu0 0.0
    %4833 = vmatpush1.msra.mxu0 %v4804
    %4834 = vmatprep.subr.mxu0 0.0
    %4835 = vmatpush1.msra.mxu0 %v4805
    %4836 = vmatprep.subr.mxu0 0.0
    %4837 = vmatpush1.msra.mxu0 %v4806
    %4838 = vmatprep.subr.mxu0 0.0
    %4839 = vmatpush1.msra.mxu0 %v4807
    %4840 = vmatprep.subr.mxu0 0.0
    %4841 = vmatpush1.msra.mxu0 0.0
    %4842 = vmatprep.subr.mxu0 0.0
    %4843 = vmatpush1.msra.mxu0 0.0
    %4844 = vmatprep.subr.mxu0 0.0
    %4845 = vmatpush1.msra.mxu0 0.0
    %4846 = vmatprep.subr.mxu0 0.0
    %4847 = vmatpush1.msra.mxu0 0.0
    %4848 = vmatprep.subr.mxu0 0.0
    %4849 = vmatpush1.msra.mxu0 0.0
    %4850 = vmatprep.subr.mxu0 0.0
    %4851 = vmatpush1.msra.mxu0 0.0
    %4852 = vmatprep.subr.mxu0 0.0
    %4853 = vmatpush1.msra.mxu0 0.0
    %4854 = vmatprep.subr.mxu0 0.0
    %4855 = vmatpush1.msra.mxu0 0.0
    %4856 = vmatprep.subr.mxu0 0.0
    %4857 = vmatpush1.msra.mxu0 0.0
    %4858 = vmatprep.subr.mxu0 0.0
    %4859 = vmatpush1.msra.mxu0 0.0
    %4860 = vmatprep.subr.mxu0 0.0
    %4861 = vmatpush1.msra.mxu0 0.0
    %4862 = vmatprep.subr.mxu0 0.0
    %4863 = vmatpush1.msra.mxu0 0.0
    %4864 = vmatprep.subr.mxu0 0.0
    %4865 = vmatpush1.msra.mxu0 0.0
    %4866 = vmatprep.subr.mxu0 0.0
    %4867 = vmatpush1.msra.mxu0 0.0
    %4868 = vmatprep.subr.mxu0 0.0
    %4869 = vmatpush1.msra.mxu0 0.0
    %4870 = vmatprep.subr.mxu0 0.0
    %4871 = vmatpush1.msra.mxu0 0.0
    %4872 = vmatprep.mubr.f32.mxu0 0.0
    %4873 = vmatmul.mubr.f32.gmra.mrb[0].mxu0 %v4727
    %v4874 = vpop.f32.mrb[0].mxu0
    %v4875 = vadd.f32 0.0, %v4874
    %v4876 = vpop.f32.mrb[0].mxu0
    %4877 = vmatprep.mubr.f32.mxu0 0.0
    %4878 = vmatmul.mubr.f32.gmra.mrb[0].mxu0 %v4728
    %v4879 = vpop.f32.mrb[0].mxu0
    %v4880 = vadd.f32 0.0, %v4879
    %v4881 = vpop.f32.mrb[0].mxu0
    %4882 = vmatprep.mubr.f32.mxu0 0.0
    %4883 = vmatmul.mubr.f32.gmra.mrb[0].mxu0 %v4729
    %v4884 = vpop.f32.mrb[0].mxu0
    %v4885 = vadd.f32 0.0, %v4884
    %v4886 = vpop.f32.mrb[0].mxu0
    %4887 = vmatprep.mubr.f32.mxu0 0.0
    %4888 = vmatmul.mubr.f32.gmra.mrb[0].mxu0 %v4730
    %v4889 = vpop.f32.mrb[0].mxu0
    %v4890 = vadd.f32 0.0, %v4889
    %v4891 = vpop.f32.mrb[0].mxu0
    %4892 = vmatprep.mubr.f32.mxu0 0.0
    %4893 = vmatmul.mubr.f32.gmra.mrb[0].mxu0 %v4731
    %v4894 = vpop.f32.mrb[0].mxu0
    %v4895 = vadd.f32 0.0, %v4894
    %v4896 = vpop.f32.mrb[0].mxu0
    %4897 = vmatprep.mubr.f32.mxu0 0.0
    %4898 = vmatmul.mubr.f32.gmra.mrb[0].mxu0 %v4732
    %v4899 = vpop.f32.mrb[0].mxu0
    %v4900 = vadd.f32 0.0, %v4899
    %v4901 = vpop.f32.mrb[0].mxu0
    %4902 = vmatprep.mubr.f32.mxu0 0.0
    %4903 = vmatmul.mubr.f32.gmra.mrb[0].mxu0 %v4733
    %v4904 = vpop.f32.mrb[0].mxu0
    %v4905 = vadd.f32 0.0, %v4904
    %v4906 = vpop.f32.mrb[0].mxu0
    %4907 = vmatprep.mubr.f32.mxu0 0.0
    %4908 = vmatmul.mubr.f32.gmra.mrb[0].mxu0 %v4734
    %v4909 = vpop.f32.mrb[0].mxu0
    %v4910 = vadd.f32 0.0, %v4909
    %v4911 = vpop.f32.mrb[0].mxu0
    %4912 = vmatprep.mubr.f32.mxu0 0.0
    %4913 = vmatmul.mubr.f32.gmra.mrb[0].mxu0 %v4735
    %v4914 = vpop.f32.mrb[0].mxu0
    %v4915 = vadd.f32 0.0, %v4914
    %v4916 = vpop.f32.mrb[0].mxu0
    %4917 = vmatprep.mubr.f32.mxu0 0.0
    %4918 = vmatmul.mubr.f32.gmra.mrb[0].mxu0 %v4736
    %v4919 = vpop.f32.mrb[0].mxu0
    %v4920 = vadd.f32 0.0, %v4919
    %v4921 = vpop.f32.mrb[0].mxu0
    %4922 = vmatprep.mubr.f32.mxu0 0.0
    %4923 = vmatmul.mubr.f32.gmra.mrb[0].mxu0 %v4737
    %v4924 = vpop.f32.mrb[0].mxu0
    %v4925 = vadd.f32 0.0, %v4924
    %v4926 = vpop.f32.mrb[0].mxu0
    %4927 = vmatprep.mubr.f32.mxu0 0.0
    %4928 = vmatmul.mubr.f32.gmra.mrb[0].mxu0 %v4738
    %v4929 = vpop.f32.mrb[0].mxu0
    %v4930 = vadd.f32 0.0, %v4929
    %v4931 = vpop.f32.mrb[0].mxu0
    %4932 = vmatprep.mubr.f32.mxu0 0.0
    %4933 = vmatmul.mubr.f32.gmra.mrb[0].mxu0 %v4739
    %v4934 = vpop.f32.mrb[0].mxu0
    %v4935 = vadd.f32 0.0, %v4934
    %v4936 = vpop.f32.mrb[0].mxu0
    %4937 = vmatprep.mubr.f32.mxu0 0.0
    %4938 = vmatmul.mubr.f32.gmra.mrb[0].mxu0 %v4740
    %v4939 = vpop.f32.mrb[0].mxu0
    %v4940 = vadd.f32 0.0, %v4939
    %v4941 = vpop.f32.mrb[0].mxu0
    %4942 = vmatprep.mubr.f32.mxu0 0.0
    %4943 = vmatmul.mubr.f32.gmra.mrb[0].mxu0 %v4741
    %v4944 = vpop.f32.mrb[0].mxu0
    %v4945 = vadd.f32 0.0, %v4944
    %v4946 = vpop.f32.mrb[0].mxu0
    %4947 = vmatprep.mubr.f32.mxu0 0.0
    %4948 = vmatmul.mubr.f32.gmra.mrb[0].mxu0 %v4742
    %v4949 = vpop.f32.mrb[0].mxu0
    %v4950 = vadd.f32 0.0, %v4949
    %v4951 = vpop.f32.mrb[0].mxu0
    %4952 = vmatprep.mubr.f32.mxu0 0.0
    %4953 = vmatmul.mubr.f32.gmra.mrb[0].mxu0 %v4743
    %v4954 = vpop.f32.mrb[0].mxu0
    %v4955 = vadd.f32 0.0, %v4954
    %v4956 = vpop.f32.mrb[0].mxu0
    %4957 = vmatprep.mubr.f32.mxu0 0.0
    %4958 = vmatmul.mubr.f32.gmra.mrb[0].mxu0 %v4744
    %v4959 = vpop.f32.mrb[0].mxu0
    %v4960 = vadd.f32 0.0, %v4959
    %v4961 = vpop.f32.mrb[0].mxu0
    %4962 = vmatprep.mubr.f32.mxu0 0.0
    %4963 = vmatmul.mubr.f32.gmra.mrb[0].mxu0 %v4745
    %v4964 = vpop.f32.mrb[0].mxu0
    %v4965 = vadd.f32 0.0, %v4964
    %v4966 = vpop.f32.mrb[0].mxu0
    %4967 = vmatprep.mubr.f32.mxu0 0.0
    %4968 = vmatmul.mubr.f32.gmra.mrb[0].mxu0 %v4746
    %v4969 = vpop.f32.mrb[0].mxu0
    %v4970 = vadd.f32 0.0, %v4969
    %v4971 = vpop.f32.mrb[0].mxu0
    %4972 = vmatprep.mubr.f32.mxu0 0.0
    %4973 = vmatmul.mubr.f32.gmra.mrb[0].mxu0 %v4747
    %v4974 = vpop.f32.mrb[0].mxu0
    %v4975 = vadd.f32 0.0, %v4974
    %v4976 = vpop.f32.mrb[0].mxu0
    %4977 = vmatprep.mubr.f32.mxu0 0.0
    %4978 = vmatmul.mubr.f32.gmra.mrb[0].mxu0 %v4748
    %v4979 = vpop.f32.mrb[0].mxu0
    %v4980 = vadd.f32 0.0, %v4979
    %v4981 = vpop.f32.mrb[0].mxu0
    %4982 = vmatprep.mubr.f32.mxu0 0.0
    %4983 = vmatmul.mubr.f32.gmra.mrb[0].mxu0 %v4749
    %v4984 = vpop.f32.mrb[0].mxu0
    %v4985 = vadd.f32 0.0, %v4984
    %v4986 = vpop.f32.mrb[0].mxu0
    %4987 = vmatprep.mubr.f32.mxu0 0.0
    %4988 = vmatmul.mubr.f32.gmra.mrb[0].mxu0 %v4750
    %v4989 = vpop.f32.mrb[0].mxu0
    %v4990 = vadd.f32 0.0, %v4989
    %v4991 = vpop.f32.mrb[0].mxu0
    %4992 = vmatprep.mubr.f32.mxu0 0.0
    %4993 = vmatmul.mubr.f32.gmra.mrb[0].mxu0 %v4751
    %v4994 = vpop.f32.mrb[0].mxu0
    %v4995 = vadd.f32 0.0, %v4994
    %v4996 = vpop.f32.mrb[0].mxu0
    %4997 = vmatprep.mubr.f32.mxu0 0.0
    %4998 = vmatmul.mubr.f32.gmra.mrb[0].mxu0 %v4752
    %v4999 = vpop.f32.mrb[0].mxu0
    %v5000 = vadd.f32 0.0, %v4999
    %v5001 = vpop.f32.mrb[0].mxu0
    %5002 = vmatprep.mubr.f32.mxu0 0.0
    %5003 = vmatmul.mubr.f32.gmra.mrb[0].mxu0 %v4753
    %v5004 = vpop.f32.mrb[0].mxu0
    %v5005 = vadd.f32 0.0, %v5004
    %v5006 = vpop.f32.mrb[0].mxu0
    %5007 = vmatprep.mubr.f32.mxu0 0.0
    %5008 = vmatmul.mubr.f32.gmra.mrb[0].mxu0 %v4754
    %v5009 = vpop.f32.mrb[0].mxu0
    %v5010 = vadd.f32 0.0, %v5009
    %v5011 = vpop.f32.mrb[0].mxu0
    %5012 = vmatprep.mubr.f32.mxu0 0.0
    %5013 = vmatmul.mubr.f32.gmra.mrb[0].mxu0 %v4755
    %v5014 = vpop.f32.mrb[0].mxu0
    %v5015 = vadd.f32 0.0, %v5014
    %v5016 = vpop.f32.mrb[0].mxu0
    %5017 = vmatprep.mubr.f32.mxu0 0.0
    %5018 = vmatmul.mubr.f32.gmra.mrb[0].mxu0 %v4756
    %v5019 = vpop.f32.mrb[0].mxu0
    %v5020 = vadd.f32 0.0, %v5019
    %v5021 = vpop.f32.mrb[0].mxu0
    %5022 = vmatprep.mubr.f32.mxu0 0.0
    %5023 = vmatmul.mubr.f32.gmra.mrb[0].mxu0 %v4757
    %v5024 = vpop.f32.mrb[0].mxu0
    %v5025 = vadd.f32 0.0, %v5024
    %v5026 = vpop.f32.mrb[0].mxu0
    %5027 = vmatprep.mubr.f32.mxu0 0.0
    %5028 = vmatmul.mubr.f32.gmra.mrb[0].mxu0 %v4758
    %v5029 = vpop.f32.mrb[0].mxu0
    %v5030 = vadd.f32 0.0, %v5029
    %v5031 = vpop.f32.mrb[0].mxu0
    %5032 = vmatprep.mubr.f32.mxu0 0.0
    %5033 = vmatmul.mubr.f32.gmra.mrb[0].mxu0 %v4759
    %v5034 = vpop.f32.mrb[0].mxu0
    %v5035 = vadd.f32 0.0, %v5034
    %v5036 = vpop.f32.mrb[0].mxu0
    %5037 = vmatprep.mubr.f32.mxu0 0.0
    %5038 = vmatmul.mubr.f32.gmra.mrb[0].mxu0 %v4760
    %v5039 = vpop.f32.mrb[0].mxu0
    %v5040 = vadd.f32 0.0, %v5039
    %v5041 = vpop.f32.mrb[0].mxu0
    %5042 = vmatprep.mubr.f32.mxu0 0.0
    %5043 = vmatmul.mubr.f32.gmra.mrb[0].mxu0 %v4761
    %v5044 = vpop.f32.mrb[0].mxu0
    %v5045 = vadd.f32 0.0, %v5044
    %v5046 = vpop.f32.mrb[0].mxu0
    %5047 = vmatprep.mubr.f32.mxu0 0.0
    %5048 = vmatmul.mubr.f32.gmra.mrb[0].mxu0 %v4762
    %v5049 = vpop.f32.mrb[0].mxu0
    %v5050 = vadd.f32 0.0, %v5049
    %v5051 = vpop.f32.mrb[0].mxu0
    %5052 = vmatprep.mubr.f32.mxu0 0.0
    %5053 = vmatmul.mubr.f32.gmra.mrb[0].mxu0 %v4763
    %v5054 = vpop.f32.mrb[0].mxu0
    %v5055 = vadd.f32 0.0, %v5054
    %v5056 = vpop.f32.mrb[0].mxu0
    %5057 = vmatprep.mubr.f32.mxu0 0.0
    %5058 = vmatmul.mubr.f32.gmra.mrb[0].mxu0 %v4764
    %v5059 = vpop.f32.mrb[0].mxu0
    %v5060 = vadd.f32 0.0, %v5059
    %v5061 = vpop.f32.mrb[0].mxu0
    %5062 = vmatprep.mubr.f32.mxu0 0.0
    %5063 = vmatmul.mubr.f32.gmra.mrb[0].mxu0 %v4765
    %v5064 = vpop.f32.mrb[0].mxu0
    %v5065 = vadd.f32 0.0, %v5064
    %v5066 = vpop.f32.mrb[0].mxu0
    %5067 = vmatprep.mubr.f32.mxu0 0.0
    %5068 = vmatmul.mubr.f32.gmra.mrb[0].mxu0 %v4766
    %v5069 = vpop.f32.mrb[0].mxu0
    %v5070 = vadd.f32 0.0, %v5069
    %v5071 = vpop.f32.mrb[0].mxu0
    %5072 = vmatprep.mubr.f32.mxu0 0.0
    %5073 = vmatmul.mubr.f32.gmra.mrb[0].mxu0 %v4767
    %v5074 = vpop.f32.mrb[0].mxu0
    %v5075 = vadd.f32 0.0, %v5074
    %v5076 = vpop.f32.mrb[0].mxu0
    %5077 = vmatprep.mubr.f32.mxu0 0.0
    %5078 = vmatmul.mubr.f32.gmra.mrb[0].mxu0 %v4768
    %v5079 = vpop.f32.mrb[0].mxu0
    %v5080 = vadd.f32 0.0, %v5079
    %v5081 = vpop.f32.mrb[0].mxu0
    %5082 = vmatprep.mubr.f32.mxu0 0.0
    %5083 = vmatmul.mubr.f32.gmra.mrb[0].mxu0 %v4769
    %v5084 = vpop.f32.mrb[0].mxu0
    %v5085 = vadd.f32 0.0, %v5084
    %v5086 = vpop.f32.mrb[0].mxu0
    %5087 = vmatprep.mubr.f32.mxu0 0.0
    %5088 = vmatmul.mubr.f32.gmra.mrb[0].mxu0 %v4770
    %v5089 = vpop.f32.mrb[0].mxu0
    %v5090 = vadd.f32 0.0, %v5089
    %v5091 = vpop.f32.mrb[0].mxu0
    %5092 = vmatprep.mubr.f32.mxu0 0.0
    %5093 = vmatmul.mubr.f32.gmra.mrb[0].mxu0 %v4771
    %v5094 = vpop.f32.mrb[0].mxu0
    %v5095 = vadd.f32 0.0, %v5094
    %v5096 = vpop.f32.mrb[0].mxu0
    %5097 = vmatprep.mubr.f32.mxu0 0.0
    %5098 = vmatmul.mubr.f32.gmra.mrb[0].mxu0 %v4772
    %v5099 = vpop.f32.mrb[0].mxu0
    %v5100 = vadd.f32 0.0, %v5099
    %v5101 = vpop.f32.mrb[0].mxu0
    %5102 = vmatprep.mubr.f32.mxu0 0.0
    %5103 = vmatmul.mubr.f32.gmra.mrb[0].mxu0 %v4773
    %v5104 = vpop.f32.mrb[0].mxu0
    %v5105 = vadd.f32 0.0, %v5104
    %v5106 = vpop.f32.mrb[0].mxu0
    %5107 = vmatprep.mubr.f32.mxu0 0.0
    %5108 = vmatmul.mubr.f32.gmra.mrb[0].mxu0 %v4774
    %v5109 = vpop.f32.mrb[0].mxu0
    %v5110 = vadd.f32 0.0, %v5109
    %v5111 = vpop.f32.mrb[0].mxu0
    %5112 = vmatprep.mubr.f32.mxu0 0.0
    %5113 = vmatmul.mubr.f32.gmra.mrb[0].mxu0 %v4775
    %v5114 = vpop.f32.mrb[0].mxu0
    %v5115 = vadd.f32 0.0, %v5114
    %v5116 = vpop.f32.mrb[0].mxu0
    %5117 = vmatprep.mubr.f32.mxu0 0.0
    %5118 = vmatmul.mubr.f32.gmra.mrb[0].mxu0 %v4776
    %v5119 = vpop.f32.mrb[0].mxu0
    %v5120 = vadd.f32 0.0, %v5119
    %v5121 = vpop.f32.mrb[0].mxu0
    %5122 = vmatprep.mubr.f32.mxu0 0.0
    %5123 = vmatmul.mubr.f32.gmra.mrb[0].mxu0 %v4777
    %v5124 = vpop.f32.mrb[0].mxu0
    %v5125 = vadd.f32 0.0, %v5124
    %v5126 = vpop.f32.mrb[0].mxu0
    %5127 = vmatprep.mubr.f32.mxu0 0.0
    %5128 = vmatmul.mubr.f32.gmra.mrb[0].mxu0 %v4778
    %v5129 = vpop.f32.mrb[0].mxu0
    %v5130 = vadd.f32 0.0, %v5129
    %v5131 = vpop.f32.mrb[0].mxu0
    %5132 = vmatprep.mubr.f32.mxu0 0.0
    %5133 = vmatmul.mubr.f32.gmra.mrb[0].mxu0 %v4779
    %v5134 = vpop.f32.mrb[0].mxu0
    %v5135 = vadd.f32 0.0, %v5134
    %v5136 = vpop.f32.mrb[0].mxu0
    %5137 = vmatprep.mubr.f32.mxu0 0.0
    %5138 = vmatmul.mubr.f32.gmra.mrb[0].mxu0 %v4780
    %v5139 = vpop.f32.mrb[0].mxu0
    %v5140 = vadd.f32 0.0, %v5139
    %v5141 = vpop.f32.mrb[0].mxu0
    %5142 = vmatprep.mubr.f32.mxu0 0.0
    %5143 = vmatmul.mubr.f32.gmra.mrb[0].mxu0 %v4781
    %v5144 = vpop.f32.mrb[0].mxu0
    %v5145 = vadd.f32 0.0, %v5144
    %v5146 = vpop.f32.mrb[0].mxu0
    %5147 = vmatprep.mubr.f32.mxu0 0.0
    %5148 = vmatmul.mubr.f32.gmra.mrb[0].mxu0 %v4782
    %v5149 = vpop.f32.mrb[0].mxu0
    %v5150 = vadd.f32 0.0, %v5149
    %v5151 = vpop.f32.mrb[0].mxu0
    %5152 = vmatprep.mubr.f32.mxu0 0.0
    %5153 = vmatmul.mubr.f32.gmra.mrb[0].mxu0 %v4783
    %v5154 = vpop.f32.mrb[0].mxu0
    %v5155 = vadd.f32 0.0, %v5154
    %v5156 = vpop.f32.mrb[0].mxu0
    %5157 = vmatprep.mubr.f32.mxu0 0.0
    %5158 = vmatmul.mubr.f32.gmra.mrb[0].mxu0 %v4784
    %v5159 = vpop.f32.mrb[0].mxu0
    %v5160 = vadd.f32 0.0, %v5159
    %v5161 = vpop.f32.mrb[0].mxu0
    %5162 = vmatprep.mubr.f32.mxu0 0.0
    %5163 = vmatmul.mubr.f32.gmra.mrb[0].mxu0 %v4785
    %v5164 = vpop.f32.mrb[0].mxu0
    %v5165 = vadd.f32 0.0, %v5164
    %v5166 = vpop.f32.mrb[0].mxu0
    %5167 = vmatprep.mubr.f32.mxu0 0.0
    %5168 = vmatmul.mubr.f32.gmra.mrb[0].mxu0 %v4786
    %v5169 = vpop.f32.mrb[0].mxu0
    %v5170 = vadd.f32 0.0, %v5169
    %v5171 = vpop.f32.mrb[0].mxu0
    %5172 = vmatprep.mubr.f32.mxu0 0.0
    %5173 = vmatmul.mubr.f32.gmra.mrb[0].mxu0 %v4787
    %v5174 = vpop.f32.mrb[0].mxu0
    %v5175 = vadd.f32 0.0, %v5174
    %v5176 = vpop.f32.mrb[0].mxu0
    %5177 = vmatprep.mubr.f32.mxu0 0.0
    %5178 = vmatmul.mubr.f32.gmra.mrb[0].mxu0 %v4788
    %v5179 = vpop.f32.mrb[0].mxu0
    %v5180 = vadd.f32 0.0, %v5179
    %v5181 = vpop.f32.mrb[0].mxu0
    %5182 = vmatprep.mubr.f32.mxu0 0.0
    %5183 = vmatmul.mubr.f32.gmra.mrb[0].mxu0 %v4789
    %v5184 = vpop.f32.mrb[0].mxu0
    %v5185 = vadd.f32 0.0, %v5184
    %v5186 = vpop.f32.mrb[0].mxu0
    %5187 = vmatprep.mubr.f32.mxu0 0.0
    %5188 = vmatmul.mubr.f32.gmra.mrb[0].mxu0 %v4790
    %v5189 = vpop.f32.mrb[0].mxu0
    %v5190 = vadd.f32 0.0, %v5189
    %v5191 = vpop.f32.mrb[0].mxu0
    %5192 = vdwg.mxu0
    %v5193 = vadd.f32 %v4662, %v4875
    %v5194 = vadd.f32 %v4663, %v4880
    %v5195 = vadd.f32 %v4664, %v4885
    %v5196 = vadd.f32 %v4665, %v4890
    %v5197 = vadd.f32 %v4666, %v4895
    %v5198 = vadd.f32 %v4667, %v4900
    %v5199 = vadd.f32 %v4668, %v4905
    %v5200 = vadd.f32 %v4669, %v4910
    %v5201 = vadd.f32 %v4670, %v4915
    %v5202 = vadd.f32 %v4671, %v4920
    %v5203 = vadd.f32 %v4672, %v4925
    %v5204 = vadd.f32 %v4673, %v4930
    %v5205 = vadd.f32 %v4674, %v4935
    %v5206 = vadd.f32 %v4675, %v4940
    %v5207 = vadd.f32 %v4676, %v4945
    %v5208 = vadd.f32 %v4677, %v4950
    %v5209 = vadd.f32 %v4678, %v4955
    %v5210 = vadd.f32 %v4679, %v4960
    %v5211 = vadd.f32 %v4680, %v4965
    %v5212 = vadd.f32 %v4681, %v4970
    %v5213 = vadd.f32 %v4682, %v4975
    %v5214 = vadd.f32 %v4683, %v4980
    %v5215 = vadd.f32 %v4684, %v4985
    %v5216 = vadd.f32 %v4685, %v4990
    %v5217 = vadd.f32 %v4686, %v4995
    %v5218 = vadd.f32 %v4687, %v5000
    %v5219 = vadd.f32 %v4688, %v5005
    %v5220 = vadd.f32 %v4689, %v5010
    %v5221 = vadd.f32 %v4690, %v5015
    %v5222 = vadd.f32 %v4691, %v5020
    %v5223 = vadd.f32 %v4692, %v5025
    %v5224 = vadd.f32 %v4693, %v5030
    %v5225 = vadd.f32 %v4694, %v5035
    %v5226 = vadd.f32 %v4695, %v5040
    %v5227 = vadd.f32 %v4696, %v5045
    %v5228 = vadd.f32 %v4697, %v5050
    %v5229 = vadd.f32 %v4698, %v5055
    %v5230 = vadd.f32 %v4699, %v5060
    %v5231 = vadd.f32 %v4700, %v5065
    %v5232 = vadd.f32 %v4701, %v5070
    %v5233 = vadd.f32 %v4702, %v5075
    %v5234 = vadd.f32 %v4703, %v5080
    %v5235 = vadd.f32 %v4704, %v5085
    %v5236 = vadd.f32 %v4705, %v5090
    %v5237 = vadd.f32 %v4706, %v5095
    %v5238 = vadd.f32 %v4707, %v5100
    %v5239 = vadd.f32 %v4708, %v5105
    %v5240 = vadd.f32 %v4709, %v5110
    %v5241 = vadd.f32 %v4710, %v5115
    %v5242 = vadd.f32 %v4711, %v5120
    %v5243 = vadd.f32 %v4712, %v5125
    %v5244 = vadd.f32 %v4713, %v5130
    %v5245 = vadd.f32 %v4714, %v5135
    %v5246 = vadd.f32 %v4715, %v5140
    %v5247 = vadd.f32 %v4716, %v5145
    %v5248 = vadd.f32 %v4717, %v5150
    %v5249 = vadd.f32 %v4718, %v5155
    %v5250 = vadd.f32 %v4719, %v5160
    %v5251 = vadd.f32 %v4720, %v5165
    %v5252 = vadd.f32 %v4721, %v5170
    %v5253 = vadd.f32 %v4722, %v5175
    %v5254 = vadd.f32 %v4723, %v5180
    %v5255 = vadd.f32 %v4724, %v5185
    %v5256 = vadd.f32 %v4725, %v5190
    %v5257 = vld [vmem:[%s4726 + $0x1] sm:$0xff]
    %v5258 = vld [vmem:[%s4726 + $0x9] sm:$0xff]
    %v5259 = vld [vmem:[%s4726 + $0x19] sm:$0xff]
    %v5260 = vld [vmem:[%s4726 + $0x21] sm:$0xff]
    %v5261 = vld [vmem:[%s4726 + $0x31] sm:$0xff]
    %v5262 = vld [vmem:[%s4726 + $0x39] sm:$0xff]
    %v5263 = vld [vmem:[%s4726 + $0x49] sm:$0xff]
    %v5264 = vld [vmem:[%s4726 + $0x51] sm:$0xff]
    %v5265 = vld [vmem:[%s4726 + $0x61] sm:$0xff]
    %v5266 = vld [vmem:[%s4726 + $0x69] sm:$0xff]
    %v5267 = vld [vmem:[%s4726 + $0x79] sm:$0xff]
    %v5268 = vld [vmem:[%s4726 + $0x81] sm:$0xff]
    %v5269 = vld [vmem:[%s4726 + $0x91] sm:$0xff]
    %v5270 = vld [vmem:[%s4726 + $0x99] sm:$0xff]
    %v5271 = vld [vmem:[%s4726 + $0xa9] sm:$0xff]
    %v5272 = vld [vmem:[%s4726 + $0xb1] sm:$0xff]
    %v5273 = vld [vmem:[%s4726 + $0xc1] sm:$0xff]
    %v5274 = vld [vmem:[%s4726 + $0xc9] sm:$0xff]
    %v5275 = vld [vmem:[%s4726 + $0xd9] sm:$0xff]
    %v5276 = vld [vmem:[%s4726 + $0xe1] sm:$0xff]
    %v5277 = vld [vmem:[%s4726 + $0xf1] sm:$0xff]
    %v5278 = vld [vmem:[%s4726 + $0xf9] sm:$0xff]
    %v5279 = vld [vmem:[%s4726 + $0x109] sm:$0xff]
    %v5280 = vld [vmem:[%s4726 + $0x111] sm:$0xff]
    %v5281 = vld [vmem:[%s4726 + $0x121] sm:$0xff]
    %v5282 = vld [vmem:[%s4726 + $0x129] sm:$0xff]
    %v5283 = vld [vmem:[%s4726 + $0x139] sm:$0xff]
    %v5284 = vld [vmem:[%s4726 + $0x141] sm:$0xff]
    %v5285 = vld [vmem:[%s4726 + $0x151] sm:$0xff]
    %v5286 = vld [vmem:[%s4726 + $0x159] sm:$0xff]
    %v5287 = vld [vmem:[%s4726 + $0x169] sm:$0xff]
    %v5288 = vld [vmem:[%s4726 + $0x171] sm:$0xff]
    %v5289 = vld [vmem:[%s4726 + $0x1b1] sm:$0xff]
    %v5290 = vld [vmem:[%s4726 + $0x1b9] sm:$0xff]
    %v5291 = vld [vmem:[%s4726 + $0x1c9] sm:$0xff]
    %v5292 = vld [vmem:[%s4726 + $0x1d1] sm:$0xff]
    %v5293 = vld [vmem:[%s4726 + $0x1e1] sm:$0xff]
    %v5294 = vld [vmem:[%s4726 + $0x1e9] sm:$0xff]
    %v5295 = vld [vmem:[%s4726 + $0x1f9] sm:$0xff]
    %v5296 = vld [vmem:[%s4726 + $0x201] sm:$0xff]
    %v5297 = vld [vmem:[%s4726 + $0x211] sm:$0xff]
    %v5298 = vld [vmem:[%s4726 + $0x219] sm:$0xff]
    %v5299 = vld [vmem:[%s4726 + $0x229] sm:$0xff]
    %v5300 = vld [vmem:[%s4726 + $0x231] sm:$0xff]
    %v5301 = vld [vmem:[%s4726 + $0x241] sm:$0xff]
    %v5302 = vld [vmem:[%s4726 + $0x249] sm:$0xff]
    %v5303 = vld [vmem:[%s4726 + $0x259] sm:$0xff]
    %v5304 = vld [vmem:[%s4726 + $0x261] sm:$0xff]
    %v5305 = vld [vmem:[%s4726 + $0x271] sm:$0xff]
    %v5306 = vld [vmem:[%s4726 + $0x279] sm:$0xff]
    %v5307 = vld [vmem:[%s4726 + $0x289] sm:$0xff]
    %v5308 = vld [vmem:[%s4726 + $0x291] sm:$0xff]
    %v5309 = vld [vmem:[%s4726 + $0x2a1] sm:$0xff]
    %v5310 = vld [vmem:[%s4726 + $0x2a9] sm:$0xff]
    %v5311 = vld [vmem:[%s4726 + $0x2b9] sm:$0xff]
    %v5312 = vld [vmem:[%s4726 + $0x2c1] sm:$0xff]
    %v5313 = vld [vmem:[%s4726 + $0x2d1] sm:$0xff]
    %v5314 = vld [vmem:[%s4726 + $0x2d9] sm:$0xff]
    %v5315 = vld [vmem:[%s4726 + $0x2e9] sm:$0xff]
    %v5316 = vld [vmem:[%s4726 + $0x2f1] sm:$0xff]
    %v5317 = vld [vmem:[%s4726 + $0x301] sm:$0xff]
    %v5318 = vld [vmem:[%s4726 + $0x309] sm:$0xff]
    %v5319 = vld [vmem:[%s4726 + $0x319] sm:$0xff]
    %v5320 = vld [vmem:[%s4726 + $0x321] sm:$0xff]
    %s5321 = scalar_lea.vmem [#allocation6], 896
    %v5322 = vld [vmem:[%s5321] sm:$0xff]
    %v5323 = vld [vmem:[%s5321 + $0x8] sm:$0xff]
    %v5324 = vld [vmem:[%s5321 + $0x10] sm:$0xff]
    %v5325 = vld [vmem:[%s5321 + $0x18] sm:$0xff]
    %v5326 = vld [vmem:[%s5321 + $0x20] sm:$0xff]
    %v5327 = vld [vmem:[%s5321 + $0x28] sm:$0xff]
    %v5328 = vld [vmem:[%s5321 + $0x30] sm:$0xff]
    %v5329 = vld [vmem:[%s5321 + $0x38] sm:$0xff]
    %v5330 = vld [vmem:[%s5321 + $0x40] sm:$0xff]
    %v5331 = vld [vmem:[%s5321 + $0x48] sm:$0xff]
    %v5332 = vld [vmem:[%s5321 + $0x50] sm:$0xff]
    %v5333 = vld [vmem:[%s5321 + $0x58] sm:$0xff]
    %v5334 = vld [vmem:[%s5321 + $0x60] sm:$0xff]
    %v5335 = vld [vmem:[%s5321 + $0x68] sm:$0xff]
    %v5336 = vld [vmem:[%s5321 + $0x70] sm:$0xff]
    %v5337 = vld [vmem:[%s5321 + $0x78] sm:$0xff]
    %5338 = vmatprep.subr.mxu0 0.0
    %5339 = vmatpush1.msra.mxu0 %v5322
    %5340 = vmatprep.subr.mxu0 0.0
    %5341 = vmatpush1.msra.mxu0 %v5323
    %5342 = vmatprep.subr.mxu0 0.0
    %5343 = vmatpush1.msra.mxu0 %v5324
    %5344 = vmatprep.subr.mxu0 0.0
    %5345 = vmatpush1.msra.mxu0 %v5325
    %5346 = vmatprep.subr.mxu0 0.0
    %5347 = vmatpush1.msra.mxu0 %v5326
    %5348 = vmatprep.subr.mxu0 0.0
    %5349 = vmatpush1.msra.mxu0 %v5327
    %5350 = vmatprep.subr.mxu0 0.0
    %5351 = vmatpush1.msra.mxu0 %v5328
    %5352 = vmatprep.subr.mxu0 0.0
    %5353 = vmatpush1.msra.mxu0 %v5329
    %5354 = vmatprep.subr.mxu0 0.0
    %5355 = vmatpush1.msra.mxu0 %v5330
    %5356 = vmatprep.subr.mxu0 0.0
    %5357 = vmatpush1.msra.mxu0 %v5331
    %5358 = vmatprep.subr.mxu0 0.0
    %5359 = vmatpush1.msra.mxu0 %v5332
    %5360 = vmatprep.subr.mxu0 0.0
    %5361 = vmatpush1.msra.mxu0 %v5333
    %5362 = vmatprep.subr.mxu0 0.0
    %5363 = vmatpush1.msra.mxu0 %v5334
    %5364 = vmatprep.subr.mxu0 0.0
    %5365 = vmatpush1.msra.mxu0 %v5335
    %5366 = vmatprep.subr.mxu0 0.0
    %5367 = vmatpush1.msra.mxu0 %v5336
    %5368 = vmatprep.subr.mxu0 0.0
    %5369 = vmatpush1.msra.mxu0 %v5337
    %5370 = vmatprep.subr.mxu0 0.0
    %5371 = vmatpush1.msra.mxu0 0.0
    %5372 = vmatprep.subr.mxu0 0.0
    %5373 = vmatpush1.msra.mxu0 0.0
    %5374 = vmatprep.subr.mxu0 0.0
    %5375 = vmatpush1.msra.mxu0 0.0
    %5376 = vmatprep.subr.mxu0 0.0
    %5377 = vmatpush1.msra.mxu0 0.0
    %5378 = vmatprep.subr.mxu0 0.0
    %5379 = vmatpush1.msra.mxu0 0.0
    %5380 = vmatprep.subr.mxu0 0.0
    %5381 = vmatpush1.msra.mxu0 0.0
    %5382 = vmatprep.subr.mxu0 0.0
    %5383 = vmatpush1.msra.mxu0 0.0
    %5384 = vmatprep.subr.mxu0 0.0
    %5385 = vmatpush1.msra.mxu0 0.0
    %5386 = vmatprep.subr.mxu0 0.0
    %5387 = vmatpush1.msra.mxu0 0.0
    %5388 = vmatprep.subr.mxu0 0.0
    %5389 = vmatpush1.msra.mxu0 0.0
    %5390 = vmatprep.subr.mxu0 0.0
    %5391 = vmatpush1.msra.mxu0 0.0
    %5392 = vmatprep.subr.mxu0 0.0
    %5393 = vmatpush1.msra.mxu0 0.0
    %5394 = vmatprep.subr.mxu0 0.0
    %5395 = vmatpush1.msra.mxu0 0.0
    %5396 = vmatprep.subr.mxu0 0.0
    %5397 = vmatpush1.msra.mxu0 0.0
    %5398 = vmatprep.subr.mxu0 0.0
    %5399 = vmatpush1.msra.mxu0 0.0
    %5400 = vmatprep.subr.mxu0 0.0
    %5401 = vmatpush1.msra.mxu0 0.0
    %5402 = vmatprep.mubr.f32.mxu0 0.0
    %5403 = vmatmul.mubr.f32.gmra.mrb[0].mxu0 %v5257
    %v5404 = vpop.f32.mrb[0].mxu0
    %v5405 = vadd.f32 0.0, %v5404
    %v5406 = vpop.f32.mrb[0].mxu0
    %5407 = vmatprep.mubr.f32.mxu0 0.0
    %5408 = vmatmul.mubr.f32.gmra.mrb[0].mxu0 %v5258
    %v5409 = vpop.f32.mrb[0].mxu0
    %v5410 = vadd.f32 0.0, %v5409
    %v5411 = vpop.f32.mrb[0].mxu0
    %5412 = vmatprep.mubr.f32.mxu0 0.0
    %5413 = vmatmul.mubr.f32.gmra.mrb[0].mxu0 %v5259
    %v5414 = vpop.f32.mrb[0].mxu0
    %v5415 = vadd.f32 0.0, %v5414
    %v5416 = vpop.f32.mrb[0].mxu0
    %5417 = vmatprep.mubr.f32.mxu0 0.0
    %5418 = vmatmul.mubr.f32.gmra.mrb[0].mxu0 %v5260
    %v5419 = vpop.f32.mrb[0].mxu0
    %v5420 = vadd.f32 0.0, %v5419
    %v5421 = vpop.f32.mrb[0].mxu0
    %5422 = vmatprep.mubr.f32.mxu0 0.0
    %5423 = vmatmul.mubr.f32.gmra.mrb[0].mxu0 %v5261
    %v5424 = vpop.f32.mrb[0].mxu0
    %v5425 = vadd.f32 0.0, %v5424
    %v5426 = vpop.f32.mrb[0].mxu0
    %5427 = vmatprep.mubr.f32.mxu0 0.0
    %5428 = vmatmul.mubr.f32.gmra.mrb[0].mxu0 %v5262
    %v5429 = vpop.f32.mrb[0].mxu0
    %v5430 = vadd.f32 0.0, %v5429
    %v5431 = vpop.f32.mrb[0].mxu0
    %5432 = vmatprep.mubr.f32.mxu0 0.0
    %5433 = vmatmul.mubr.f32.gmra.mrb[0].mxu0 %v5263
    %v5434 = vpop.f32.mrb[0].mxu0
    %v5435 = vadd.f32 0.0, %v5434
    %v5436 = vpop.f32.mrb[0].mxu0
    %5437 = vmatprep.mubr.f32.mxu0 0.0
    %5438 = vmatmul.mubr.f32.gmra.mrb[0].mxu0 %v5264
    %v5439 = vpop.f32.mrb[0].mxu0
    %v5440 = vadd.f32 0.0, %v5439
    %v5441 = vpop.f32.mrb[0].mxu0
    %5442 = vmatprep.mubr.f32.mxu0 0.0
    %5443 = vmatmul.mubr.f32.gmra.mrb[0].mxu0 %v5265
    %v5444 = vpop.f32.mrb[0].mxu0
    %v5445 = vadd.f32 0.0, %v5444
    %v5446 = vpop.f32.mrb[0].mxu0
    %5447 = vmatprep.mubr.f32.mxu0 0.0
    %5448 = vmatmul.mubr.f32.gmra.mrb[0].mxu0 %v5266
    %v5449 = vpop.f32.mrb[0].mxu0
    %v5450 = vadd.f32 0.0, %v5449
    %v5451 = vpop.f32.mrb[0].mxu0
    %5452 = vmatprep.mubr.f32.mxu0 0.0
    %5453 = vmatmul.mubr.f32.gmra.mrb[0].mxu0 %v5267
    %v5454 = vpop.f32.mrb[0].mxu0
    %v5455 = vadd.f32 0.0, %v5454
    %v5456 = vpop.f32.mrb[0].mxu0
    %5457 = vmatprep.mubr.f32.mxu0 0.0
    %5458 = vmatmul.mubr.f32.gmra.mrb[0].mxu0 %v5268
    %v5459 = vpop.f32.mrb[0].mxu0
    %v5460 = vadd.f32 0.0, %v5459
    %v5461 = vpop.f32.mrb[0].mxu0
    %5462 = vmatprep.mubr.f32.mxu0 0.0
    %5463 = vmatmul.mubr.f32.gmra.mrb[0].mxu0 %v5269
    %v5464 = vpop.f32.mrb[0].mxu0
    %v5465 = vadd.f32 0.0, %v5464
    %v5466 = vpop.f32.mrb[0].mxu0
    %5467 = vmatprep.mubr.f32.mxu0 0.0
    %5468 = vmatmul.mubr.f32.gmra.mrb[0].mxu0 %v5270
    %v5469 = vpop.f32.mrb[0].mxu0
    %v5470 = vadd.f32 0.0, %v5469
    %v5471 = vpop.f32.mrb[0].mxu0
    %5472 = vmatprep.mubr.f32.mxu0 0.0
    %5473 = vmatmul.mubr.f32.gmra.mrb[0].mxu0 %v5271
    %v5474 = vpop.f32.mrb[0].mxu0
    %v5475 = vadd.f32 0.0, %v5474
    %v5476 = vpop.f32.mrb[0].mxu0
    %5477 = vmatprep.mubr.f32.mxu0 0.0
    %5478 = vmatmul.mubr.f32.gmra.mrb[0].mxu0 %v5272
    %v5479 = vpop.f32.mrb[0].mxu0
    %v5480 = vadd.f32 0.0, %v5479
    %v5481 = vpop.f32.mrb[0].mxu0
    %5482 = vmatprep.mubr.f32.mxu0 0.0
    %5483 = vmatmul.mubr.f32.gmra.mrb[0].mxu0 %v5273
    %v5484 = vpop.f32.mrb[0].mxu0
    %v5485 = vadd.f32 0.0, %v5484
    %v5486 = vpop.f32.mrb[0].mxu0
    %5487 = vmatprep.mubr.f32.mxu0 0.0
    %5488 = vmatmul.mubr.f32.gmra.mrb[0].mxu0 %v5274
    %v5489 = vpop.f32.mrb[0].mxu0
    %v5490 = vadd.f32 0.0, %v5489
    %v5491 = vpop.f32.mrb[0].mxu0
    %5492 = vmatprep.mubr.f32.mxu0 0.0
    %5493 = vmatmul.mubr.f32.gmra.mrb[0].mxu0 %v5275
    %v5494 = vpop.f32.mrb[0].mxu0
    %v5495 = vadd.f32 0.0, %v5494
    %v5496 = vpop.f32.mrb[0].mxu0
    %5497 = vmatprep.mubr.f32.mxu0 0.0
    %5498 = vmatmul.mubr.f32.gmra.mrb[0].mxu0 %v5276
    %v5499 = vpop.f32.mrb[0].mxu0
    %v5500 = vadd.f32 0.0, %v5499
    %v5501 = vpop.f32.mrb[0].mxu0
    %5502 = vmatprep.mubr.f32.mxu0 0.0
    %5503 = vmatmul.mubr.f32.gmra.mrb[0].mxu0 %v5277
    %v5504 = vpop.f32.mrb[0].mxu0
    %v5505 = vadd.f32 0.0, %v5504
    %v5506 = vpop.f32.mrb[0].mxu0
    %5507 = vmatprep.mubr.f32.mxu0 0.0
    %5508 = vmatmul.mubr.f32.gmra.mrb[0].mxu0 %v5278
    %v5509 = vpop.f32.mrb[0].mxu0
    %v5510 = vadd.f32 0.0, %v5509
    %v5511 = vpop.f32.mrb[0].mxu0
    %5512 = vmatprep.mubr.f32.mxu0 0.0
    %5513 = vmatmul.mubr.f32.gmra.mrb[0].mxu0 %v5279
    %v5514 = vpop.f32.mrb[0].mxu0
    %v5515 = vadd.f32 0.0, %v5514
    %v5516 = vpop.f32.mrb[0].mxu0
    %5517 = vmatprep.mubr.f32.mxu0 0.0
    %5518 = vmatmul.mubr.f32.gmra.mrb[0].mxu0 %v5280
    %v5519 = vpop.f32.mrb[0].mxu0
    %v5520 = vadd.f32 0.0, %v5519
    %v5521 = vpop.f32.mrb[0].mxu0
    %5522 = vmatprep.mubr.f32.mxu0 0.0
    %5523 = vmatmul.mubr.f32.gmra.mrb[0].mxu0 %v5281
    %v5524 = vpop.f32.mrb[0].mxu0
    %v5525 = vadd.f32 0.0, %v5524
    %v5526 = vpop.f32.mrb[0].mxu0
    %5527 = vmatprep.mubr.f32.mxu0 0.0
    %5528 = vmatmul.mubr.f32.gmra.mrb[0].mxu0 %v5282
    %v5529 = vpop.f32.mrb[0].mxu0
    %v5530 = vadd.f32 0.0, %v5529
    %v5531 = vpop.f32.mrb[0].mxu0
    %5532 = vmatprep.mubr.f32.mxu0 0.0
    %5533 = vmatmul.mubr.f32.gmra.mrb[0].mxu0 %v5283
    %v5534 = vpop.f32.mrb[0].mxu0
    %v5535 = vadd.f32 0.0, %v5534
    %v5536 = vpop.f32.mrb[0].mxu0
    %5537 = vmatprep.mubr.f32.mxu0 0.0
    %5538 = vmatmul.mubr.f32.gmra.mrb[0].mxu0 %v5284
    %v5539 = vpop.f32.mrb[0].mxu0
    %v5540 = vadd.f32 0.0, %v5539
    %v5541 = vpop.f32.mrb[0].mxu0
    %5542 = vmatprep.mubr.f32.mxu0 0.0
    %5543 = vmatmul.mubr.f32.gmra.mrb[0].mxu0 %v5285
    %v5544 = vpop.f32.mrb[0].mxu0
    %v5545 = vadd.f32 0.0, %v5544
    %v5546 = vpop.f32.mrb[0].mxu0
    %5547 = vmatprep.mubr.f32.mxu0 0.0
    %5548 = vmatmul.mubr.f32.gmra.mrb[0].mxu0 %v5286
    %v5549 = vpop.f32.mrb[0].mxu0
    %v5550 = vadd.f32 0.0, %v5549
    %v5551 = vpop.f32.mrb[0].mxu0
    %5552 = vmatprep.mubr.f32.mxu0 0.0
    %5553 = vmatmul.mubr.f32.gmra.mrb[0].mxu0 %v5287
    %v5554 = vpop.f32.mrb[0].mxu0
    %v5555 = vadd.f32 0.0, %v5554
    %v5556 = vpop.f32.mrb[0].mxu0
    %5557 = vmatprep.mubr.f32.mxu0 0.0
    %5558 = vmatmul.mubr.f32.gmra.mrb[0].mxu0 %v5288
    %v5559 = vpop.f32.mrb[0].mxu0
    %v5560 = vadd.f32 0.0, %v5559
    %v5561 = vpop.f32.mrb[0].mxu0
    %5562 = vmatprep.mubr.f32.mxu0 0.0
    %5563 = vmatmul.mubr.f32.gmra.mrb[0].mxu0 %v5289
    %v5564 = vpop.f32.mrb[0].mxu0
    %v5565 = vadd.f32 0.0, %v5564
    %v5566 = vpop.f32.mrb[0].mxu0
    %5567 = vmatprep.mubr.f32.mxu0 0.0
    %5568 = vmatmul.mubr.f32.gmra.mrb[0].mxu0 %v5290
    %v5569 = vpop.f32.mrb[0].mxu0
    %v5570 = vadd.f32 0.0, %v5569
    %v5571 = vpop.f32.mrb[0].mxu0
    %5572 = vmatprep.mubr.f32.mxu0 0.0
    %5573 = vmatmul.mubr.f32.gmra.mrb[0].mxu0 %v5291
    %v5574 = vpop.f32.mrb[0].mxu0
    %v5575 = vadd.f32 0.0, %v5574
    %v5576 = vpop.f32.mrb[0].mxu0
    %5577 = vmatprep.mubr.f32.mxu0 0.0
    %5578 = vmatmul.mubr.f32.gmra.mrb[0].mxu0 %v5292
    %v5579 = vpop.f32.mrb[0].mxu0
    %v5580 = vadd.f32 0.0, %v5579
    %v5581 = vpop.f32.mrb[0].mxu0
    %5582 = vmatprep.mubr.f32.mxu0 0.0
    %5583 = vmatmul.mubr.f32.gmra.mrb[0].mxu0 %v5293
    %v5584 = vpop.f32.mrb[0].mxu0
    %v5585 = vadd.f32 0.0, %v5584
    %v5586 = vpop.f32.mrb[0].mxu0
    %5587 = vmatprep.mubr.f32.mxu0 0.0
    %5588 = vmatmul.mubr.f32.gmra.mrb[0].mxu0 %v5294
    %v5589 = vpop.f32.mrb[0].mxu0
    %v5590 = vadd.f32 0.0, %v5589
    %v5591 = vpop.f32.mrb[0].mxu0
    %5592 = vmatprep.mubr.f32.mxu0 0.0
    %5593 = vmatmul.mubr.f32.gmra.mrb[0].mxu0 %v5295
    %v5594 = vpop.f32.mrb[0].mxu0
    %v5595 = vadd.f32 0.0, %v5594
    %v5596 = vpop.f32.mrb[0].mxu0
    %5597 = vmatprep.mubr.f32.mxu0 0.0
    %5598 = vmatmul.mubr.f32.gmra.mrb[0].mxu0 %v5296
    %v5599 = vpop.f32.mrb[0].mxu0
    %v5600 = vadd.f32 0.0, %v5599
    %v5601 = vpop.f32.mrb[0].mxu0
    %5602 = vmatprep.mubr.f32.mxu0 0.0
    %5603 = vmatmul.mubr.f32.gmra.mrb[0].mxu0 %v5297
    %v5604 = vpop.f32.mrb[0].mxu0
    %v5605 = vadd.f32 0.0, %v5604
    %v5606 = vpop.f32.mrb[0].mxu0
    %5607 = vmatprep.mubr.f32.mxu0 0.0
    %5608 = vmatmul.mubr.f32.gmra.mrb[0].mxu0 %v5298
    %v5609 = vpop.f32.mrb[0].mxu0
    %v5610 = vadd.f32 0.0, %v5609
    %v5611 = vpop.f32.mrb[0].mxu0
    %5612 = vmatprep.mubr.f32.mxu0 0.0
    %5613 = vmatmul.mubr.f32.gmra.mrb[0].mxu0 %v5299
    %v5614 = vpop.f32.mrb[0].mxu0
    %v5615 = vadd.f32 0.0, %v5614
    %v5616 = vpop.f32.mrb[0].mxu0
    %5617 = vmatprep.mubr.f32.mxu0 0.0
    %5618 = vmatmul.mubr.f32.gmra.mrb[0].mxu0 %v5300
    %v5619 = vpop.f32.mrb[0].mxu0
    %v5620 = vadd.f32 0.0, %v5619
    %v5621 = vpop.f32.mrb[0].mxu0
    %5622 = vmatprep.mubr.f32.mxu0 0.0
    %5623 = vmatmul.mubr.f32.gmra.mrb[0].mxu0 %v5301
    %v5624 = vpop.f32.mrb[0].mxu0
    %v5625 = vadd.f32 0.0, %v5624
    %v5626 = vpop.f32.mrb[0].mxu0
    %5627 = vmatprep.mubr.f32.mxu0 0.0
    %5628 = vmatmul.mubr.f32.gmra.mrb[0].mxu0 %v5302
    %v5629 = vpop.f32.mrb[0].mxu0
    %v5630 = vadd.f32 0.0, %v5629
    %v5631 = vpop.f32.mrb[0].mxu0
    %5632 = vmatprep.mubr.f32.mxu0 0.0
    %5633 = vmatmul.mubr.f32.gmra.mrb[0].mxu0 %v5303
    %v5634 = vpop.f32.mrb[0].mxu0
    %v5635 = vadd.f32 0.0, %v5634
    %v5636 = vpop.f32.mrb[0].mxu0
    %5637 = vmatprep.mubr.f32.mxu0 0.0
    %5638 = vmatmul.mubr.f32.gmra.mrb[0].mxu0 %v5304
    %v5639 = vpop.f32.mrb[0].mxu0
    %v5640 = vadd.f32 0.0, %v5639
    %v5641 = vpop.f32.mrb[0].mxu0
    %5642 = vmatprep.mubr.f32.mxu0 0.0
    %5643 = vmatmul.mubr.f32.gmra.mrb[0].mxu0 %v5305
    %v5644 = vpop.f32.mrb[0].mxu0
    %v5645 = vadd.f32 0.0, %v5644
    %v5646 = vpop.f32.mrb[0].mxu0
    %5647 = vmatprep.mubr.f32.mxu0 0.0
    %5648 = vmatmul.mubr.f32.gmra.mrb[0].mxu0 %v5306
    %v5649 = vpop.f32.mrb[0].mxu0
    %v5650 = vadd.f32 0.0, %v5649
    %v5651 = vpop.f32.mrb[0].mxu0
    %5652 = vmatprep.mubr.f32.mxu0 0.0
    %5653 = vmatmul.mubr.f32.gmra.mrb[0].mxu0 %v5307
    %v5654 = vpop.f32.mrb[0].mxu0
    %v5655 = vadd.f32 0.0, %v5654
    %v5656 = vpop.f32.mrb[0].mxu0
    %5657 = vmatprep.mubr.f32.mxu0 0.0
    %5658 = vmatmul.mubr.f32.gmra.mrb[0].mxu0 %v5308
    %v5659 = vpop.f32.mrb[0].mxu0
    %v5660 = vadd.f32 0.0, %v5659
    %v5661 = vpop.f32.mrb[0].mxu0
    %5662 = vmatprep.mubr.f32.mxu0 0.0
    %5663 = vmatmul.mubr.f32.gmra.mrb[0].mxu0 %v5309
    %v5664 = vpop.f32.mrb[0].mxu0
    %v5665 = vadd.f32 0.0, %v5664
    %v5666 = vpop.f32.mrb[0].mxu0
    %5667 = vmatprep.mubr.f32.mxu0 0.0
    %5668 = vmatmul.mubr.f32.gmra.mrb[0].mxu0 %v5310
    %v5669 = vpop.f32.mrb[0].mxu0
    %v5670 = vadd.f32 0.0, %v5669
    %v5671 = vpop.f32.mrb[0].mxu0
    %5672 = vmatprep.mubr.f32.mxu0 0.0
    %5673 = vmatmul.mubr.f32.gmra.mrb[0].mxu0 %v5311
    %v5674 = vpop.f32.mrb[0].mxu0
    %v5675 = vadd.f32 0.0, %v5674
    %v5676 = vpop.f32.mrb[0].mxu0
    %5677 = vmatprep.mubr.f32.mxu0 0.0
    %5678 = vmatmul.mubr.f32.gmra.mrb[0].mxu0 %v5312
    %v5679 = vpop.f32.mrb[0].mxu0
    %v5680 = vadd.f32 0.0, %v5679
    %v5681 = vpop.f32.mrb[0].mxu0
    %5682 = vmatprep.mubr.f32.mxu0 0.0
    %5683 = vmatmul.mubr.f32.gmra.mrb[0].mxu0 %v5313
    %v5684 = vpop.f32.mrb[0].mxu0
    %v5685 = vadd.f32 0.0, %v5684
    %v5686 = vpop.f32.mrb[0].mxu0
    %5687 = vmatprep.mubr.f32.mxu0 0.0
    %5688 = vmatmul.mubr.f32.gmra.mrb[0].mxu0 %v5314
    %v5689 = vpop.f32.mrb[0].mxu0
    %v5690 = vadd.f32 0.0, %v5689
    %v5691 = vpop.f32.mrb[0].mxu0
    %5692 = vmatprep.mubr.f32.mxu0 0.0
    %5693 = vmatmul.mubr.f32.gmra.mrb[0].mxu0 %v5315
    %v5694 = vpop.f32.mrb[0].mxu0
    %v5695 = vadd.f32 0.0, %v5694
    %v5696 = vpop.f32.mrb[0].mxu0
    %5697 = vmatprep.mubr.f32.mxu0 0.0
    %5698 = vmatmul.mubr.f32.gmra.mrb[0].mxu0 %v5316
    %v5699 = vpop.f32.mrb[0].mxu0
    %v5700 = vadd.f32 0.0, %v5699
    %v5701 = vpop.f32.mrb[0].mxu0
    %5702 = vmatprep.mubr.f32.mxu0 0.0
    %5703 = vmatmul.mubr.f32.gmra.mrb[0].mxu0 %v5317
    %v5704 = vpop.f32.mrb[0].mxu0
    %v5705 = vadd.f32 0.0, %v5704
    %v5706 = vpop.f32.mrb[0].mxu0
    %5707 = vmatprep.mubr.f32.mxu0 0.0
    %5708 = vmatmul.mubr.f32.gmra.mrb[0].mxu0 %v5318
    %v5709 = vpop.f32.mrb[0].mxu0
    %v5710 = vadd.f32 0.0, %v5709
    %v5711 = vpop.f32.mrb[0].mxu0
    %5712 = vmatprep.mubr.f32.mxu0 0.0
    %5713 = vmatmul.mubr.f32.gmra.mrb[0].mxu0 %v5319
    %v5714 = vpop.f32.mrb[0].mxu0
    %v5715 = vadd.f32 0.0, %v5714
    %v5716 = vpop.f32.mrb[0].mxu0
    %5717 = vmatprep.mubr.f32.mxu0 0.0
    %5718 = vmatmul.mubr.f32.gmra.mrb[0].mxu0 %v5320
    %v5719 = vpop.f32.mrb[0].mxu0
    %v5720 = vadd.f32 0.0, %v5719
    %v5721 = vpop.f32.mrb[0].mxu0
    %5722 = vdwg.mxu0
    %v5723 = vadd.f32 %v5193, %v5405
    %v5724 = vadd.f32 %v5194, %v5410
    %v5725 = vadd.f32 %v5195, %v5415
    %v5726 = vadd.f32 %v5196, %v5420
    %v5727 = vadd.f32 %v5197, %v5425
    %v5728 = vadd.f32 %v5198, %v5430
    %v5729 = vadd.f32 %v5199, %v5435
    %v5730 = vadd.f32 %v5200, %v5440
    %v5731 = vadd.f32 %v5201, %v5445
    %v5732 = vadd.f32 %v5202, %v5450
    %v5733 = vadd.f32 %v5203, %v5455
    %v5734 = vadd.f32 %v5204, %v5460
    %v5735 = vadd.f32 %v5205, %v5465
    %v5736 = vadd.f32 %v5206, %v5470
    %v5737 = vadd.f32 %v5207, %v5475
    %v5738 = vadd.f32 %v5208, %v5480
    %v5739 = vadd.f32 %v5209, %v5485
    %v5740 = vadd.f32 %v5210, %v5490
    %v5741 = vadd.f32 %v5211, %v5495
    %v5742 = vadd.f32 %v5212, %v5500
    %v5743 = vadd.f32 %v5213, %v5505
    %v5744 = vadd.f32 %v5214, %v5510
    %v5745 = vadd.f32 %v5215, %v5515
    %v5746 = vadd.f32 %v5216, %v5520
    %v5747 = vadd.f32 %v5217, %v5525
    %v5748 = vadd.f32 %v5218, %v5530
    %v5749 = vadd.f32 %v5219, %v5535
    %v5750 = vadd.f32 %v5220, %v5540
    %v5751 = vadd.f32 %v5221, %v5545
    %v5752 = vadd.f32 %v5222, %v5550
    %v5753 = vadd.f32 %v5223, %v5555
    %v5754 = vadd.f32 %v5224, %v5560
    %v5755 = vadd.f32 %v5225, %v5565
    %v5756 = vadd.f32 %v5226, %v5570
    %v5757 = vadd.f32 %v5227, %v5575
    %v5758 = vadd.f32 %v5228, %v5580
    %v5759 = vadd.f32 %v5229, %v5585
    %v5760 = vadd.f32 %v5230, %v5590
    %v5761 = vadd.f32 %v5231, %v5595
    %v5762 = vadd.f32 %v5232, %v5600
    %v5763 = vadd.f32 %v5233, %v5605
    %v5764 = vadd.f32 %v5234, %v5610
    %v5765 = vadd.f32 %v5235, %v5615
    %v5766 = vadd.f32 %v5236, %v5620
    %v5767 = vadd.f32 %v5237, %v5625
    %v5768 = vadd.f32 %v5238, %v5630
    %v5769 = vadd.f32 %v5239, %v5635
    %v5770 = vadd.f32 %v5240, %v5640
    %v5771 = vadd.f32 %v5241, %v5645
    %v5772 = vadd.f32 %v5242, %v5650
    %v5773 = vadd.f32 %v5243, %v5655
    %v5774 = vadd.f32 %v5244, %v5660
    %v5775 = vadd.f32 %v5245, %v5665
    %v5776 = vadd.f32 %v5246, %v5670
    %v5777 = vadd.f32 %v5247, %v5675
    %v5778 = vadd.f32 %v5248, %v5680
    %v5779 = vadd.f32 %v5249, %v5685
    %v5780 = vadd.f32 %v5250, %v5690
    %v5781 = vadd.f32 %v5251, %v5695
    %v5782 = vadd.f32 %v5252, %v5700
    %v5783 = vadd.f32 %v5253, %v5705
    %v5784 = vadd.f32 %v5254, %v5710
    %v5785 = vadd.f32 %v5255, %v5715
    %v5786 = vadd.f32 %v5256, %v5720
    %v5787 = vld [vmem:[%s4726 + $0x2] sm:$0xff]
    %v5788 = vld [vmem:[%s4726 + $0xa] sm:$0xff]
    %v5789 = vld [vmem:[%s4726 + $0x1a] sm:$0xff]
    %v5790 = vld [vmem:[%s4726 + $0x22] sm:$0xff]
    %v5791 = vld [vmem:[%s4726 + $0x32] sm:$0xff]
    %v5792 = vld [vmem:[%s4726 + $0x3a] sm:$0xff]
    %v5793 = vld [vmem:[%s4726 + $0x4a] sm:$0xff]
    %v5794 = vld [vmem:[%s4726 + $0x52] sm:$0xff]
    %v5795 = vld [vmem:[%s4726 + $0x62] sm:$0xff]
    %v5796 = vld [vmem:[%s4726 + $0x6a] sm:$0xff]
    %v5797 = vld [vmem:[%s4726 + $0x7a] sm:$0xff]
    %v5798 = vld [vmem:[%s4726 + $0x82] sm:$0xff]
    %v5799 = vld [vmem:[%s4726 + $0x92] sm:$0xff]
    %v5800 = vld [vmem:[%s4726 + $0x9a] sm:$0xff]
    %v5801 = vld [vmem:[%s4726 + $0xaa] sm:$0xff]
    %v5802 = vld [vmem:[%s4726 + $0xb2] sm:$0xff]
    %v5803 = vld [vmem:[%s4726 + $0xc2] sm:$0xff]
    %v5804 = vld [vmem:[%s4726 + $0xca] sm:$0xff]
    %v5805 = vld [vmem:[%s4726 + $0xda] sm:$0xff]
    %v5806 = vld [vmem:[%s4726 + $0xe2] sm:$0xff]
    %v5807 = vld [vmem:[%s4726 + $0xf2] sm:$0xff]
    %v5808 = vld [vmem:[%s4726 + $0xfa] sm:$0xff]
    %v5809 = vld [vmem:[%s4726 + $0x10a] sm:$0xff]
    %v5810 = vld [vmem:[%s4726 + $0x112] sm:$0xff]
    %v5811 = vld [vmem:[%s4726 + $0x122] sm:$0xff]
    %v5812 = vld [vmem:[%s4726 + $0x12a] sm:$0xff]
    %v5813 = vld [vmem:[%s4726 + $0x13a] sm:$0xff]
    %v5814 = vld [vmem:[%s4726 + $0x142] sm:$0xff]
    %v5815 = vld [vmem:[%s4726 + $0x152] sm:$0xff]
    %v5816 = vld [vmem:[%s4726 + $0x15a] sm:$0xff]
    %v5817 = vld [vmem:[%s4726 + $0x16a] sm:$0xff]
    %v5818 = vld [vmem:[%s4726 + $0x172] sm:$0xff]
    %v5819 = vld [vmem:[%s4726 + $0x1b2] sm:$0xff]
    %v5820 = vld [vmem:[%s4726 + $0x1ba] sm:$0xff]
    %v5821 = vld [vmem:[%s4726 + $0x1ca] sm:$0xff]
    %v5822 = vld [vmem:[%s4726 + $0x1d2] sm:$0xff]
    %v5823 = vld [vmem:[%s4726 + $0x1e2] sm:$0xff]
    %v5824 = vld [vmem:[%s4726 + $0x1ea] sm:$0xff]
    %v5825 = vld [vmem:[%s4726 + $0x1fa] sm:$0xff]
    %v5826 = vld [vmem:[%s4726 + $0x202] sm:$0xff]
    %v5827 = vld [vmem:[%s4726 + $0x212] sm:$0xff]
    %v5828 = vld [vmem:[%s4726 + $0x21a] sm:$0xff]
    %v5829 = vld [vmem:[%s4726 + $0x22a] sm:$0xff]
    %v5830 = vld [vmem:[%s4726 + $0x232] sm:$0xff]
    %v5831 = vld [vmem:[%s4726 + $0x242] sm:$0xff]
    %v5832 = vld [vmem:[%s4726 + $0x24a] sm:$0xff]
    %v5833 = vld [vmem:[%s4726 + $0x25a] sm:$0xff]
    %v5834 = vld [vmem:[%s4726 + $0x262] sm:$0xff]
    %v5835 = vld [vmem:[%s4726 + $0x272] sm:$0xff]
    %v5836 = vld [vmem:[%s4726 + $0x27a] sm:$0xff]
    %v5837 = vld [vmem:[%s4726 + $0x28a] sm:$0xff]
    %v5838 = vld [vmem:[%s4726 + $0x292] sm:$0xff]
    %v5839 = vld [vmem:[%s4726 + $0x2a2] sm:$0xff]
    %v5840 = vld [vmem:[%s4726 + $0x2aa] sm:$0xff]
    %v5841 = vld [vmem:[%s4726 + $0x2ba] sm:$0xff]
    %v5842 = vld [vmem:[%s4726 + $0x2c2] sm:$0xff]
    %v5843 = vld [vmem:[%s4726 + $0x2d2] sm:$0xff]
    %v5844 = vld [vmem:[%s4726 + $0x2da] sm:$0xff]
    %v5845 = vld [vmem:[%s4726 + $0x2ea] sm:$0xff]
    %v5846 = vld [vmem:[%s4726 + $0x2f2] sm:$0xff]
    %v5847 = vld [vmem:[%s4726 + $0x302] sm:$0xff]
    %v5848 = vld [vmem:[%s4726 + $0x30a] sm:$0xff]
    %v5849 = vld [vmem:[%s4726 + $0x31a] sm:$0xff]
    %v5850 = vld [vmem:[%s4726 + $0x322] sm:$0xff]
    %s5851 = scalar_lea.vmem [#allocation6], 1024
    %v5852 = vld [vmem:[%s5851] sm:$0xff]
    %v5853 = vld [vmem:[%s5851 + $0x8] sm:$0xff]
    %v5854 = vld [vmem:[%s5851 + $0x10] sm:$0xff]
    %v5855 = vld [vmem:[%s5851 + $0x18] sm:$0xff]
    %v5856 = vld [vmem:[%s5851 + $0x20] sm:$0xff]
    %v5857 = vld [vmem:[%s5851 + $0x28] sm:$0xff]
    %v5858 = vld [vmem:[%s5851 + $0x30] sm:$0xff]
    %v5859 = vld [vmem:[%s5851 + $0x38] sm:$0xff]
    %v5860 = vld [vmem:[%s5851 + $0x40] sm:$0xff]
    %v5861 = vld [vmem:[%s5851 + $0x48] sm:$0xff]
    %v5862 = vld [vmem:[%s5851 + $0x50] sm:$0xff]
    %v5863 = vld [vmem:[%s5851 + $0x58] sm:$0xff]
    %v5864 = vld [vmem:[%s5851 + $0x60] sm:$0xff]
    %v5865 = vld [vmem:[%s5851 + $0x68] sm:$0xff]
    %v5866 = vld [vmem:[%s5851 + $0x70] sm:$0xff]
    %v5867 = vld [vmem:[%s5851 + $0x78] sm:$0xff]
    %5868 = vmatprep.subr.mxu0 0.0
    %5869 = vmatpush1.msra.mxu0 %v5852
    %5870 = vmatprep.subr.mxu0 0.0
    %5871 = vmatpush1.msra.mxu0 %v5853
    %5872 = vmatprep.subr.mxu0 0.0
    %5873 = vmatpush1.msra.mxu0 %v5854
    %5874 = vmatprep.subr.mxu0 0.0
    %5875 = vmatpush1.msra.mxu0 %v5855
    %5876 = vmatprep.subr.mxu0 0.0
    %5877 = vmatpush1.msra.mxu0 %v5856
    %5878 = vmatprep.subr.mxu0 0.0
    %5879 = vmatpush1.msra.mxu0 %v5857
    %5880 = vmatprep.subr.mxu0 0.0
    %5881 = vmatpush1.msra.mxu0 %v5858
    %5882 = vmatprep.subr.mxu0 0.0
    %5883 = vmatpush1.msra.mxu0 %v5859
    %5884 = vmatprep.subr.mxu0 0.0
    %5885 = vmatpush1.msra.mxu0 %v5860
    %5886 = vmatprep.subr.mxu0 0.0
    %5887 = vmatpush1.msra.mxu0 %v5861
    %5888 = vmatprep.subr.mxu0 0.0
    %5889 = vmatpush1.msra.mxu0 %v5862
    %5890 = vmatprep.subr.mxu0 0.0
    %5891 = vmatpush1.msra.mxu0 %v5863
    %5892 = vmatprep.subr.mxu0 0.0
    %5893 = vmatpush1.msra.mxu0 %v5864
    %5894 = vmatprep.subr.mxu0 0.0
    %5895 = vmatpush1.msra.mxu0 %v5865
    %5896 = vmatprep.subr.mxu0 0.0
    %5897 = vmatpush1.msra.mxu0 %v5866
    %5898 = vmatprep.subr.mxu0 0.0
    %5899 = vmatpush1.msra.mxu0 %v5867
    %5900 = vmatprep.subr.mxu0 0.0
    %5901 = vmatpush1.msra.mxu0 0.0
    %5902 = vmatprep.subr.mxu0 0.0
    %5903 = vmatpush1.msra.mxu0 0.0
    %5904 = vmatprep.subr.mxu0 0.0
    %5905 = vmatpush1.msra.mxu0 0.0
    %5906 = vmatprep.subr.mxu0 0.0
    %5907 = vmatpush1.msra.mxu0 0.0
    %5908 = vmatprep.subr.mxu0 0.0
    %5909 = vmatpush1.msra.mxu0 0.0
    %5910 = vmatprep.subr.mxu0 0.0
    %5911 = vmatpush1.msra.mxu0 0.0
    %5912 = vmatprep.subr.mxu0 0.0
    %5913 = vmatpush1.msra.mxu0 0.0
    %5914 = vmatprep.subr.mxu0 0.0
    %5915 = vmatpush1.msra.mxu0 0.0
    %5916 = vmatprep.subr.mxu0 0.0
    %5917 = vmatpush1.msra.mxu0 0.0
    %5918 = vmatprep.subr.mxu0 0.0
    %5919 = vmatpush1.msra.mxu0 0.0
    %5920 = vmatprep.subr.mxu0 0.0
    %5921 = vmatpush1.msra.mxu0 0.0
    %5922 = vmatprep.subr.mxu0 0.0
    %5923 = vmatpush1.msra.mxu0 0.0
    %5924 = vmatprep.subr.mxu0 0.0
    %5925 = vmatpush1.msra.mxu0 0.0
    %5926 = vmatprep.subr.mxu0 0.0
    %5927 = vmatpush1.msra.mxu0 0.0
    %5928 = vmatprep.subr.mxu0 0.0
    %5929 = vmatpush1.msra.mxu0 0.0
    %5930 = vmatprep.subr.mxu0 0.0
    %5931 = vmatpush1.msra.mxu0 0.0
    %5932 = vmatprep.mubr.f32.mxu0 0.0
    %5933 = vmatmul.mubr.f32.gmra.mrb[0].mxu0 %v5787
    %v5934 = vpop.f32.mrb[0].mxu0
    %v5935 = vadd.f32 0.0, %v5934
    %v5936 = vpop.f32.mrb[0].mxu0
    %5937 = vmatprep.mubr.f32.mxu0 0.0
    %5938 = vmatmul.mubr.f32.gmra.mrb[0].mxu0 %v5788
    %v5939 = vpop.f32.mrb[0].mxu0
    %v5940 = vadd.f32 0.0, %v5939
    %v5941 = vpop.f32.mrb[0].mxu0
    %5942 = vmatprep.mubr.f32.mxu0 0.0
    %5943 = vmatmul.mubr.f32.gmra.mrb[0].mxu0 %v5789
    %v5944 = vpop.f32.mrb[0].mxu0
    %v5945 = vadd.f32 0.0, %v5944
    %v5946 = vpop.f32.mrb[0].mxu0
    %5947 = vmatprep.mubr.f32.mxu0 0.0
    %5948 = vmatmul.mubr.f32.gmra.mrb[0].mxu0 %v5790
    %v5949 = vpop.f32.mrb[0].mxu0
    %v5950 = vadd.f32 0.0, %v5949
    %v5951 = vpop.f32.mrb[0].mxu0
    %5952 = vmatprep.mubr.f32.mxu0 0.0
    %5953 = vmatmul.mubr.f32.gmra.mrb[0].mxu0 %v5791
    %v5954 = vpop.f32.mrb[0].mxu0
    %v5955 = vadd.f32 0.0, %v5954
    %v5956 = vpop.f32.mrb[0].mxu0
    %5957 = vmatprep.mubr.f32.mxu0 0.0
    %5958 = vmatmul.mubr.f32.gmra.mrb[0].mxu0 %v5792
    %v5959 = vpop.f32.mrb[0].mxu0
    %v5960 = vadd.f32 0.0, %v5959
    %v5961 = vpop.f32.mrb[0].mxu0
    %5962 = vmatprep.mubr.f32.mxu0 0.0
    %5963 = vmatmul.mubr.f32.gmra.mrb[0].mxu0 %v5793
    %v5964 = vpop.f32.mrb[0].mxu0
    %v5965 = vadd.f32 0.0, %v5964
    %v5966 = vpop.f32.mrb[0].mxu0
    %5967 = vmatprep.mubr.f32.mxu0 0.0
    %5968 = vmatmul.mubr.f32.gmra.mrb[0].mxu0 %v5794
    %v5969 = vpop.f32.mrb[0].mxu0
    %v5970 = vadd.f32 0.0, %v5969
    %v5971 = vpop.f32.mrb[0].mxu0
    %5972 = vmatprep.mubr.f32.mxu0 0.0
    %5973 = vmatmul.mubr.f32.gmra.mrb[0].mxu0 %v5795
    %v5974 = vpop.f32.mrb[0].mxu0
    %v5975 = vadd.f32 0.0, %v5974
    %v5976 = vpop.f32.mrb[0].mxu0
    %5977 = vmatprep.mubr.f32.mxu0 0.0
    %5978 = vmatmul.mubr.f32.gmra.mrb[0].mxu0 %v5796
    %v5979 = vpop.f32.mrb[0].mxu0
    %v5980 = vadd.f32 0.0, %v5979
    %v5981 = vpop.f32.mrb[0].mxu0
    %5982 = vmatprep.mubr.f32.mxu0 0.0
    %5983 = vmatmul.mubr.f32.gmra.mrb[0].mxu0 %v5797
    %v5984 = vpop.f32.mrb[0].mxu0
    %v5985 = vadd.f32 0.0, %v5984
    %v5986 = vpop.f32.mrb[0].mxu0
    %5987 = vmatprep.mubr.f32.mxu0 0.0
    %5988 = vmatmul.mubr.f32.gmra.mrb[0].mxu0 %v5798
    %v5989 = vpop.f32.mrb[0].mxu0
    %v5990 = vadd.f32 0.0, %v5989
    %v5991 = vpop.f32.mrb[0].mxu0
    %5992 = vmatprep.mubr.f32.mxu0 0.0
    %5993 = vmatmul.mubr.f32.gmra.mrb[0].mxu0 %v5799
    %v5994 = vpop.f32.mrb[0].mxu0
    %v5995 = vadd.f32 0.0, %v5994
    %v5996 = vpop.f32.mrb[0].mxu0
    %5997 = vmatprep.mubr.f32.mxu0 0.0
    %5998 = vmatmul.mubr.f32.gmra.mrb[0].mxu0 %v5800
    %v5999 = vpop.f32.mrb[0].mxu0
    %v6000 = vadd.f32 0.0, %v5999
    %v6001 = vpop.f32.mrb[0].mxu0
    %6002 = vmatprep.mubr.f32.mxu0 0.0
    %6003 = vmatmul.mubr.f32.gmra.mrb[0].mxu0 %v5801
    %v6004 = vpop.f32.mrb[0].mxu0
    %v6005 = vadd.f32 0.0, %v6004
    %v6006 = vpop.f32.mrb[0].mxu0
    %6007 = vmatprep.mubr.f32.mxu0 0.0
    %6008 = vmatmul.mubr.f32.gmra.mrb[0].mxu0 %v5802
    %v6009 = vpop.f32.mrb[0].mxu0
    %v6010 = vadd.f32 0.0, %v6009
    %v6011 = vpop.f32.mrb[0].mxu0
    %6012 = vmatprep.mubr.f32.mxu0 0.0
    %6013 = vmatmul.mubr.f32.gmra.mrb[0].mxu0 %v5803
    %v6014 = vpop.f32.mrb[0].mxu0
    %v6015 = vadd.f32 0.0, %v6014
    %v6016 = vpop.f32.mrb[0].mxu0
    %6017 = vmatprep.mubr.f32.mxu0 0.0
    %6018 = vmatmul.mubr.f32.gmra.mrb[0].mxu0 %v5804
    %v6019 = vpop.f32.mrb[0].mxu0
    %v6020 = vadd.f32 0.0, %v6019
    %v6021 = vpop.f32.mrb[0].mxu0
    %6022 = vmatprep.mubr.f32.mxu0 0.0
    %6023 = vmatmul.mubr.f32.gmra.mrb[0].mxu0 %v5805
    %v6024 = vpop.f32.mrb[0].mxu0
    %v6025 = vadd.f32 0.0, %v6024
    %v6026 = vpop.f32.mrb[0].mxu0
    %6027 = vmatprep.mubr.f32.mxu0 0.0
    %6028 = vmatmul.mubr.f32.gmra.mrb[0].mxu0 %v5806
    %v6029 = vpop.f32.mrb[0].mxu0
    %v6030 = vadd.f32 0.0, %v6029
    %v6031 = vpop.f32.mrb[0].mxu0
    %6032 = vmatprep.mubr.f32.mxu0 0.0
    %6033 = vmatmul.mubr.f32.gmra.mrb[0].mxu0 %v5807
    %v6034 = vpop.f32.mrb[0].mxu0
    %v6035 = vadd.f32 0.0, %v6034
    %v6036 = vpop.f32.mrb[0].mxu0
    %6037 = vmatprep.mubr.f32.mxu0 0.0
    %6038 = vmatmul.mubr.f32.gmra.mrb[0].mxu0 %v5808
    %v6039 = vpop.f32.mrb[0].mxu0
    %v6040 = vadd.f32 0.0, %v6039
    %v6041 = vpop.f32.mrb[0].mxu0
    %6042 = vmatprep.mubr.f32.mxu0 0.0
    %6043 = vmatmul.mubr.f32.gmra.mrb[0].mxu0 %v5809
    %v6044 = vpop.f32.mrb[0].mxu0
    %v6045 = vadd.f32 0.0, %v6044
    %v6046 = vpop.f32.mrb[0].mxu0
    %6047 = vmatprep.mubr.f32.mxu0 0.0
    %6048 = vmatmul.mubr.f32.gmra.mrb[0].mxu0 %v5810
    %v6049 = vpop.f32.mrb[0].mxu0
    %v6050 = vadd.f32 0.0, %v6049
    %v6051 = vpop.f32.mrb[0].mxu0
    %6052 = vmatprep.mubr.f32.mxu0 0.0
    %6053 = vmatmul.mubr.f32.gmra.mrb[0].mxu0 %v5811
    %v6054 = vpop.f32.mrb[0].mxu0
    %v6055 = vadd.f32 0.0, %v6054
    %v6056 = vpop.f32.mrb[0].mxu0
    %6057 = vmatprep.mubr.f32.mxu0 0.0
    %6058 = vmatmul.mubr.f32.gmra.mrb[0].mxu0 %v5812
    %v6059 = vpop.f32.mrb[0].mxu0
    %v6060 = vadd.f32 0.0, %v6059
    %v6061 = vpop.f32.mrb[0].mxu0
    %6062 = vmatprep.mubr.f32.mxu0 0.0
    %6063 = vmatmul.mubr.f32.gmra.mrb[0].mxu0 %v5813
    %v6064 = vpop.f32.mrb[0].mxu0
    %v6065 = vadd.f32 0.0, %v6064
    %v6066 = vpop.f32.mrb[0].mxu0
    %6067 = vmatprep.mubr.f32.mxu0 0.0
    %6068 = vmatmul.mubr.f32.gmra.mrb[0].mxu0 %v5814
    %v6069 = vpop.f32.mrb[0].mxu0
    %v6070 = vadd.f32 0.0, %v6069
    %v6071 = vpop.f32.mrb[0].mxu0
    %6072 = vmatprep.mubr.f32.mxu0 0.0
    %6073 = vmatmul.mubr.f32.gmra.mrb[0].mxu0 %v5815
    %v6074 = vpop.f32.mrb[0].mxu0
    %v6075 = vadd.f32 0.0, %v6074
    %v6076 = vpop.f32.mrb[0].mxu0
    %6077 = vmatprep.mubr.f32.mxu0 0.0
    %6078 = vmatmul.mubr.f32.gmra.mrb[0].mxu0 %v5816
    %v6079 = vpop.f32.mrb[0].mxu0
    %v6080 = vadd.f32 0.0, %v6079
    %v6081 = vpop.f32.mrb[0].mxu0
    %6082 = vmatprep.mubr.f32.mxu0 0.0
    %6083 = vmatmul.mubr.f32.gmra.mrb[0].mxu0 %v5817
    %v6084 = vpop.f32.mrb[0].mxu0
    %v6085 = vadd.f32 0.0, %v6084
    %v6086 = vpop.f32.mrb[0].mxu0
    %6087 = vmatprep.mubr.f32.mxu0 0.0
    %6088 = vmatmul.mubr.f32.gmra.mrb[0].mxu0 %v5818
    %v6089 = vpop.f32.mrb[0].mxu0
    %v6090 = vadd.f32 0.0, %v6089
    %v6091 = vpop.f32.mrb[0].mxu0
    %6092 = vmatprep.mubr.f32.mxu0 0.0
    %6093 = vmatmul.mubr.f32.gmra.mrb[0].mxu0 %v5819
    %v6094 = vpop.f32.mrb[0].mxu0
    %v6095 = vadd.f32 0.0, %v6094
    %v6096 = vpop.f32.mrb[0].mxu0
    %6097 = vmatprep.mubr.f32.mxu0 0.0
    %6098 = vmatmul.mubr.f32.gmra.mrb[0].mxu0 %v5820
    %v6099 = vpop.f32.mrb[0].mxu0
    %v6100 = vadd.f32 0.0, %v6099
    %v6101 = vpop.f32.mrb[0].mxu0
    %6102 = vmatprep.mubr.f32.mxu0 0.0
    %6103 = vmatmul.mubr.f32.gmra.mrb[0].mxu0 %v5821
    %v6104 = vpop.f32.mrb[0].mxu0
    %v6105 = vadd.f32 0.0, %v6104
    %v6106 = vpop.f32.mrb[0].mxu0
    %6107 = vmatprep.mubr.f32.mxu0 0.0
    %6108 = vmatmul.mubr.f32.gmra.mrb[0].mxu0 %v5822
    %v6109 = vpop.f32.mrb[0].mxu0
    %v6110 = vadd.f32 0.0, %v6109
    %v6111 = vpop.f32.mrb[0].mxu0
    %6112 = vmatprep.mubr.f32.mxu0 0.0
    %6113 = vmatmul.mubr.f32.gmra.mrb[0].mxu0 %v5823
    %v6114 = vpop.f32.mrb[0].mxu0
    %v6115 = vadd.f32 0.0, %v6114
    %v6116 = vpop.f32.mrb[0].mxu0
    %6117 = vmatprep.mubr.f32.mxu0 0.0
    %6118 = vmatmul.mubr.f32.gmra.mrb[0].mxu0 %v5824
    %v6119 = vpop.f32.mrb[0].mxu0
    %v6120 = vadd.f32 0.0, %v6119
    %v6121 = vpop.f32.mrb[0].mxu0
    %6122 = vmatprep.mubr.f32.mxu0 0.0
    %6123 = vmatmul.mubr.f32.gmra.mrb[0].mxu0 %v5825
    %v6124 = vpop.f32.mrb[0].mxu0
    %v6125 = vadd.f32 0.0, %v6124
    %v6126 = vpop.f32.mrb[0].mxu0
    %6127 = vmatprep.mubr.f32.mxu0 0.0
    %6128 = vmatmul.mubr.f32.gmra.mrb[0].mxu0 %v5826
    %v6129 = vpop.f32.mrb[0].mxu0
    %v6130 = vadd.f32 0.0, %v6129
    %v6131 = vpop.f32.mrb[0].mxu0
    %6132 = vmatprep.mubr.f32.mxu0 0.0
    %6133 = vmatmul.mubr.f32.gmra.mrb[0].mxu0 %v5827
    %v6134 = vpop.f32.mrb[0].mxu0
    %v6135 = vadd.f32 0.0, %v6134
    %v6136 = vpop.f32.mrb[0].mxu0
    %6137 = vmatprep.mubr.f32.mxu0 0.0
    %6138 = vmatmul.mubr.f32.gmra.mrb[0].mxu0 %v5828
    %v6139 = vpop.f32.mrb[0].mxu0
    %v6140 = vadd.f32 0.0, %v6139
    %v6141 = vpop.f32.mrb[0].mxu0
    %6142 = vmatprep.mubr.f32.mxu0 0.0
    %6143 = vmatmul.mubr.f32.gmra.mrb[0].mxu0 %v5829
    %v6144 = vpop.f32.mrb[0].mxu0
    %v6145 = vadd.f32 0.0, %v6144
    %v6146 = vpop.f32.mrb[0].mxu0
    %6147 = vmatprep.mubr.f32.mxu0 0.0
    %6148 = vmatmul.mubr.f32.gmra.mrb[0].mxu0 %v5830
    %v6149 = vpop.f32.mrb[0].mxu0
    %v6150 = vadd.f32 0.0, %v6149
    %v6151 = vpop.f32.mrb[0].mxu0
    %6152 = vmatprep.mubr.f32.mxu0 0.0
    %6153 = vmatmul.mubr.f32.gmra.mrb[0].mxu0 %v5831
    %v6154 = vpop.f32.mrb[0].mxu0
    %v6155 = vadd.f32 0.0, %v6154
    %v6156 = vpop.f32.mrb[0].mxu0
    %6157 = vmatprep.mubr.f32.mxu0 0.0
    %6158 = vmatmul.mubr.f32.gmra.mrb[0].mxu0 %v5832
    %v6159 = vpop.f32.mrb[0].mxu0
    %v6160 = vadd.f32 0.0, %v6159
    %v6161 = vpop.f32.mrb[0].mxu0
    %6162 = vmatprep.mubr.f32.mxu0 0.0
    %6163 = vmatmul.mubr.f32.gmra.mrb[0].mxu0 %v5833
    %v6164 = vpop.f32.mrb[0].mxu0
    %v6165 = vadd.f32 0.0, %v6164
    %v6166 = vpop.f32.mrb[0].mxu0
    %6167 = vmatprep.mubr.f32.mxu0 0.0
    %6168 = vmatmul.mubr.f32.gmra.mrb[0].mxu0 %v5834
    %v6169 = vpop.f32.mrb[0].mxu0
    %v6170 = vadd.f32 0.0, %v6169
    %v6171 = vpop.f32.mrb[0].mxu0
    %6172 = vmatprep.mubr.f32.mxu0 0.0
    %6173 = vmatmul.mubr.f32.gmra.mrb[0].mxu0 %v5835
    %v6174 = vpop.f32.mrb[0].mxu0
    %v6175 = vadd.f32 0.0, %v6174
    %v6176 = vpop.f32.mrb[0].mxu0
    %6177 = vmatprep.mubr.f32.mxu0 0.0
    %6178 = vmatmul.mubr.f32.gmra.mrb[0].mxu0 %v5836
    %v6179 = vpop.f32.mrb[0].mxu0
    %v6180 = vadd.f32 0.0, %v6179
    %v6181 = vpop.f32.mrb[0].mxu0
    %6182 = vmatprep.mubr.f32.mxu0 0.0
    %6183 = vmatmul.mubr.f32.gmra.mrb[0].mxu0 %v5837
    %v6184 = vpop.f32.mrb[0].mxu0
    %v6185 = vadd.f32 0.0, %v6184
    %v6186 = vpop.f32.mrb[0].mxu0
    %6187 = vmatprep.mubr.f32.mxu0 0.0
    %6188 = vmatmul.mubr.f32.gmra.mrb[0].mxu0 %v5838
    %v6189 = vpop.f32.mrb[0].mxu0
    %v6190 = vadd.f32 0.0, %v6189
    %v6191 = vpop.f32.mrb[0].mxu0
    %6192 = vmatprep.mubr.f32.mxu0 0.0
    %6193 = vmatmul.mubr.f32.gmra.mrb[0].mxu0 %v5839
    %v6194 = vpop.f32.mrb[0].mxu0
    %v6195 = vadd.f32 0.0, %v6194
    %v6196 = vpop.f32.mrb[0].mxu0
    %6197 = vmatprep.mubr.f32.mxu0 0.0
    %6198 = vmatmul.mubr.f32.gmra.mrb[0].mxu0 %v5840
    %v6199 = vpop.f32.mrb[0].mxu0
    %v6200 = vadd.f32 0.0, %v6199
    %v6201 = vpop.f32.mrb[0].mxu0
    %6202 = vmatprep.mubr.f32.mxu0 0.0
    %6203 = vmatmul.mubr.f32.gmra.mrb[0].mxu0 %v5841
    %v6204 = vpop.f32.mrb[0].mxu0
    %v6205 = vadd.f32 0.0, %v6204
    %v6206 = vpop.f32.mrb[0].mxu0
    %6207 = vmatprep.mubr.f32.mxu0 0.0
    %6208 = vmatmul.mubr.f32.gmra.mrb[0].mxu0 %v5842
    %v6209 = vpop.f32.mrb[0].mxu0
    %v6210 = vadd.f32 0.0, %v6209
    %v6211 = vpop.f32.mrb[0].mxu0
    %6212 = vmatprep.mubr.f32.mxu0 0.0
    %6213 = vmatmul.mubr.f32.gmra.mrb[0].mxu0 %v5843
    %v6214 = vpop.f32.mrb[0].mxu0
    %v6215 = vadd.f32 0.0, %v6214
    %v6216 = vpop.f32.mrb[0].mxu0
    %6217 = vmatprep.mubr.f32.mxu0 0.0
    %6218 = vmatmul.mubr.f32.gmra.mrb[0].mxu0 %v5844
    %v6219 = vpop.f32.mrb[0].mxu0
    %v6220 = vadd.f32 0.0, %v6219
    %v6221 = vpop.f32.mrb[0].mxu0
    %6222 = vmatprep.mubr.f32.mxu0 0.0
    %6223 = vmatmul.mubr.f32.gmra.mrb[0].mxu0 %v5845
    %v6224 = vpop.f32.mrb[0].mxu0
    %v6225 = vadd.f32 0.0, %v6224
    %v6226 = vpop.f32.mrb[0].mxu0
    %6227 = vmatprep.mubr.f32.mxu0 0.0
    %6228 = vmatmul.mubr.f32.gmra.mrb[0].mxu0 %v5846
    %v6229 = vpop.f32.mrb[0].mxu0
    %v6230 = vadd.f32 0.0, %v6229
    %v6231 = vpop.f32.mrb[0].mxu0
    %6232 = vmatprep.mubr.f32.mxu0 0.0
    %6233 = vmatmul.mubr.f32.gmra.mrb[0].mxu0 %v5847
    %v6234 = vpop.f32.mrb[0].mxu0
    %v6235 = vadd.f32 0.0, %v6234
    %v6236 = vpop.f32.mrb[0].mxu0
    %6237 = vmatprep.mubr.f32.mxu0 0.0
    %6238 = vmatmul.mubr.f32.gmra.mrb[0].mxu0 %v5848
    %v6239 = vpop.f32.mrb[0].mxu0
    %v6240 = vadd.f32 0.0, %v6239
    %v6241 = vpop.f32.mrb[0].mxu0
    %6242 = vmatprep.mubr.f32.mxu0 0.0
    %6243 = vmatmul.mubr.f32.gmra.mrb[0].mxu0 %v5849
    %v6244 = vpop.f32.mrb[0].mxu0
    %v6245 = vadd.f32 0.0, %v6244
    %v6246 = vpop.f32.mrb[0].mxu0
    %6247 = vmatprep.mubr.f32.mxu0 0.0
    %6248 = vmatmul.mubr.f32.gmra.mrb[0].mxu0 %v5850
    %v6249 = vpop.f32.mrb[0].mxu0
    %v6250 = vadd.f32 0.0, %v6249
    %v6251 = vpop.f32.mrb[0].mxu0
    %6252 = vdwg.mxu0
    %v6253 = vadd.f32 %v5723, %v5935
    %v6254 = vadd.f32 %v5724, %v5940
    %v6255 = vadd.f32 %v5725, %v5945
    %v6256 = vadd.f32 %v5726, %v5950
    %v6257 = vadd.f32 %v5727, %v5955
    %v6258 = vadd.f32 %v5728, %v5960
    %v6259 = vadd.f32 %v5729, %v5965
    %v6260 = vadd.f32 %v5730, %v5970
    %v6261 = vadd.f32 %v5731, %v5975
    %v6262 = vadd.f32 %v5732, %v5980
    %v6263 = vadd.f32 %v5733, %v5985
    %v6264 = vadd.f32 %v5734, %v5990
    %v6265 = vadd.f32 %v5735, %v5995
    %v6266 = vadd.f32 %v5736, %v6000
    %v6267 = vadd.f32 %v5737, %v6005
    %v6268 = vadd.f32 %v5738, %v6010
    %v6269 = vadd.f32 %v5739, %v6015
    %v6270 = vadd.f32 %v5740, %v6020
    %v6271 = vadd.f32 %v5741, %v6025
    %v6272 = vadd.f32 %v5742, %v6030
    %v6273 = vadd.f32 %v5743, %v6035
    %v6274 = vadd.f32 %v5744, %v6040
    %v6275 = vadd.f32 %v5745, %v6045
    %v6276 = vadd.f32 %v5746, %v6050
    %v6277 = vadd.f32 %v5747, %v6055
    %v6278 = vadd.f32 %v5748, %v6060
    %v6279 = vadd.f32 %v5749, %v6065
    %v6280 = vadd.f32 %v5750, %v6070
    %v6281 = vadd.f32 %v5751, %v6075
    %v6282 = vadd.f32 %v5752, %v6080
    %v6283 = vadd.f32 %v5753, %v6085
    %v6284 = vadd.f32 %v5754, %v6090
    %v6285 = vadd.f32 %v5755, %v6095
    %v6286 = vadd.f32 %v5756, %v6100
    %v6287 = vadd.f32 %v5757, %v6105
    %v6288 = vadd.f32 %v5758, %v6110
    %v6289 = vadd.f32 %v5759, %v6115
    %v6290 = vadd.f32 %v5760, %v6120
    %v6291 = vadd.f32 %v5761, %v6125
    %v6292 = vadd.f32 %v5762, %v6130
    %v6293 = vadd.f32 %v5763, %v6135
    %v6294 = vadd.f32 %v5764, %v6140
    %v6295 = vadd.f32 %v5765, %v6145
    %v6296 = vadd.f32 %v5766, %v6150
    %v6297 = vadd.f32 %v5767, %v6155
    %v6298 = vadd.f32 %v5768, %v6160
    %v6299 = vadd.f32 %v5769, %v6165
    %v6300 = vadd.f32 %v5770, %v6170
    %v6301 = vadd.f32 %v5771, %v6175
    %v6302 = vadd.f32 %v5772, %v6180
    %v6303 = vadd.f32 %v5773, %v6185
    %v6304 = vadd.f32 %v5774, %v6190
    %v6305 = vadd.f32 %v5775, %v6195
    %v6306 = vadd.f32 %v5776, %v6200
    %v6307 = vadd.f32 %v5777, %v6205
    %v6308 = vadd.f32 %v5778, %v6210
    %v6309 = vadd.f32 %v5779, %v6215
    %v6310 = vadd.f32 %v5780, %v6220
    %v6311 = vadd.f32 %v5781, %v6225
    %v6312 = vadd.f32 %v5782, %v6230
    %v6313 = vadd.f32 %v5783, %v6235
    %v6314 = vadd.f32 %v5784, %v6240
    %v6315 = vadd.f32 %v5785, %v6245
    %v6316 = vadd.f32 %v5786, %v6250
    %v6317 = vld [vmem:[%s6] sm:$0x1]
    %v6319 = vlaneseq
    %v6320 = vshrl.u32 %v6319, 7
    %v6321 = vsub.s32 0, %v6320
    %v6322 = vrot.slane %v6317, %v6321
    %v6324 = vmul.f32 %v6253, %v6322
    %v6325 = vmul.f32 %v6254, %v6322
    %v6326 = vmul.f32 %v6255, %v6322
    %v6327 = vmul.f32 %v6256, %v6322
    %v6328 = vmul.f32 %v6257, %v6322
    %v6329 = vmul.f32 %v6258, %v6322
    %v6330 = vmul.f32 %v6259, %v6322
    %v6331 = vmul.f32 %v6260, %v6322
    %v6332 = vmul.f32 %v6261, %v6322
    %v6333 = vmul.f32 %v6262, %v6322
    %v6334 = vmul.f32 %v6263, %v6322
    %v6335 = vmul.f32 %v6264, %v6322
    %v6336 = vmul.f32 %v6265, %v6322
    %v6337 = vmul.f32 %v6266, %v6322
    %v6338 = vmul.f32 %v6267, %v6322
    %v6339 = vmul.f32 %v6268, %v6322
    %v6340 = vmul.f32 %v6269, %v6322
    %v6341 = vmul.f32 %v6270, %v6322
    %v6342 = vmul.f32 %v6271, %v6322
    %v6343 = vmul.f32 %v6272, %v6322
    %v6344 = vmul.f32 %v6273, %v6322
    %v6345 = vmul.f32 %v6274, %v6322
    %v6346 = vmul.f32 %v6275, %v6322
    %v6347 = vmul.f32 %v6276, %v6322
    %v6348 = vmul.f32 %v6277, %v6322
    %v6349 = vmul.f32 %v6278, %v6322
    %v6350 = vmul.f32 %v6279, %v6322
    %v6351 = vmul.f32 %v6280, %v6322
    %v6352 = vmul.f32 %v6281, %v6322
    %v6353 = vmul.f32 %v6282, %v6322
    %v6354 = vmul.f32 %v6283, %v6322
    %v6355 = vmul.f32 %v6284, %v6322
    %v6356 = vmul.f32 %v6285, %v6322
    %v6357 = vmul.f32 %v6286, %v6322
    %v6358 = vmul.f32 %v6287, %v6322
    %v6359 = vmul.f32 %v6288, %v6322
    %v6360 = vmul.f32 %v6289, %v6322
    %v6361 = vmul.f32 %v6290, %v6322
    %v6362 = vmul.f32 %v6291, %v6322
    %v6363 = vmul.f32 %v6292, %v6322
    %v6364 = vmul.f32 %v6293, %v6322
    %v6365 = vmul.f32 %v6294, %v6322
    %v6366 = vmul.f32 %v6295, %v6322
    %v6367 = vmul.f32 %v6296, %v6322
    %v6368 = vmul.f32 %v6297, %v6322
    %v6369 = vmul.f32 %v6298, %v6322
    %v6370 = vmul.f32 %v6299, %v6322
    %v6371 = vmul.f32 %v6300, %v6322
    %v6372 = vmul.f32 %v6301, %v6322
    %v6373 = vmul.f32 %v6302, %v6322
    %v6374 = vmul.f32 %v6303, %v6322
    %v6375 = vmul.f32 %v6304, %v6322
    %v6376 = vmul.f32 %v6305, %v6322
    %v6377 = vmul.f32 %v6306, %v6322
    %v6378 = vmul.f32 %v6307, %v6322
    %v6379 = vmul.f32 %v6308, %v6322
    %v6380 = vmul.f32 %v6309, %v6322
    %v6381 = vmul.f32 %v6310, %v6322
    %v6382 = vmul.f32 %v6311, %v6322
    %v6383 = vmul.f32 %v6312, %v6322
    %v6384 = vmul.f32 %v6313, %v6322
    %v6385 = vmul.f32 %v6314, %v6322
    %v6386 = vmul.f32 %v6315, %v6322
    %v6387 = vmul.f32 %v6316, %v6322
    %v6388 = vld [vmem:[%s7] sm:$0x1]
    %v6390 = vlaneseq
    %v6391 = vshrl.u32 %v6390, 7
    %v6392 = vsub.s32 0, %v6391
    %v6393 = vrot.slane %v6388, %v6392
    %v6395 = vadd.f32 %v6324, %v6393
    %v6396 = vadd.f32 %v6325, %v6393
    %v6397 = vadd.f32 %v6326, %v6393
    %v6398 = vadd.f32 %v6327, %v6393
    %v6399 = vadd.f32 %v6328, %v6393
    %v6400 = vadd.f32 %v6329, %v6393
    %v6401 = vadd.f32 %v6330, %v6393
    %v6402 = vadd.f32 %v6331, %v6393
    %v6403 = vadd.f32 %v6332, %v6393
    %v6404 = vadd.f32 %v6333, %v6393
    %v6405 = vadd.f32 %v6334, %v6393
    %v6406 = vadd.f32 %v6335, %v6393
    %v6407 = vadd.f32 %v6336, %v6393
    %v6408 = vadd.f32 %v6337, %v6393
    %v6409 = vadd.f32 %v6338, %v6393
    %v6410 = vadd.f32 %v6339, %v6393
    %v6411 = vadd.f32 %v6340, %v6393
    %v6412 = vadd.f32 %v6341, %v6393
    %v6413 = vadd.f32 %v6342, %v6393
    %v6414 = vadd.f32 %v6343, %v6393
    %v6415 = vadd.f32 %v6344, %v6393
    %v6416 = vadd.f32 %v6345, %v6393
    %v6417 = vadd.f32 %v6346, %v6393
    %v6418 = vadd.f32 %v6347, %v6393
    %v6419 = vadd.f32 %v6348, %v6393
    %v6420 = vadd.f32 %v6349, %v6393
    %v6421 = vadd.f32 %v6350, %v6393
    %v6422 = vadd.f32 %v6351, %v6393
    %v6423 = vadd.f32 %v6352, %v6393
    %v6424 = vadd.f32 %v6353, %v6393
    %v6425 = vadd.f32 %v6354, %v6393
    %v6426 = vadd.f32 %v6355, %v6393
    %v6427 = vadd.f32 %v6356, %v6393
    %v6428 = vadd.f32 %v6357, %v6393
    %v6429 = vadd.f32 %v6358, %v6393
    %v6430 = vadd.f32 %v6359, %v6393
    %v6431 = vadd.f32 %v6360, %v6393
    %v6432 = vadd.f32 %v6361, %v6393
    %v6433 = vadd.f32 %v6362, %v6393
    %v6434 = vadd.f32 %v6363, %v6393
    %v6435 = vadd.f32 %v6364, %v6393
    %v6436 = vadd.f32 %v6365, %v6393
    %v6437 = vadd.f32 %v6366, %v6393
    %v6438 = vadd.f32 %v6367, %v6393
    %v6439 = vadd.f32 %v6368, %v6393
    %v6440 = vadd.f32 %v6369, %v6393
    %v6441 = vadd.f32 %v6370, %v6393
    %v6442 = vadd.f32 %v6371, %v6393
    %v6443 = vadd.f32 %v6372, %v6393
    %v6444 = vadd.f32 %v6373, %v6393
    %v6445 = vadd.f32 %v6374, %v6393
    %v6446 = vadd.f32 %v6375, %v6393
    %v6447 = vadd.f32 %v6376, %v6393
    %v6448 = vadd.f32 %v6377, %v6393
    %v6449 = vadd.f32 %v6378, %v6393
    %v6450 = vadd.f32 %v6379, %v6393
    %v6451 = vadd.f32 %v6380, %v6393
    %v6452 = vadd.f32 %v6381, %v6393
    %v6453 = vadd.f32 %v6382, %v6393
    %v6454 = vadd.f32 %v6383, %v6393
    %v6455 = vadd.f32 %v6384, %v6393
    %v6456 = vadd.f32 %v6385, %v6393
    %v6457 = vadd.f32 %v6386, %v6393
    %v6458 = vadd.f32 %v6387, %v6393
    %v6459 = vmax.f32 %v6395, 0.0
    %v6460 = vmax.f32 %v6396, 0.0
    %v6461 = vmax.f32 %v6397, 0.0
    %v6462 = vmax.f32 %v6398, 0.0
    %v6463 = vmax.f32 %v6399, 0.0
    %v6464 = vmax.f32 %v6400, 0.0
    %v6465 = vmax.f32 %v6401, 0.0
    %v6466 = vmax.f32 %v6402, 0.0
    %v6467 = vmax.f32 %v6403, 0.0
    %v6468 = vmax.f32 %v6404, 0.0
    %v6469 = vmax.f32 %v6405, 0.0
    %v6470 = vmax.f32 %v6406, 0.0
    %v6471 = vmax.f32 %v6407, 0.0
    %v6472 = vmax.f32 %v6408, 0.0
    %v6473 = vmax.f32 %v6409, 0.0
    %v6474 = vmax.f32 %v6410, 0.0
    %v6475 = vmax.f32 %v6411, 0.0
    %v6476 = vmax.f32 %v6412, 0.0
    %v6477 = vmax.f32 %v6413, 0.0
    %v6478 = vmax.f32 %v6414, 0.0
    %v6479 = vmax.f32 %v6415, 0.0
    %v6480 = vmax.f32 %v6416, 0.0
    %v6481 = vmax.f32 %v6417, 0.0
    %v6482 = vmax.f32 %v6418, 0.0
    %v6483 = vmax.f32 %v6419, 0.0
    %v6484 = vmax.f32 %v6420, 0.0
    %v6485 = vmax.f32 %v6421, 0.0
    %v6486 = vmax.f32 %v6422, 0.0
    %v6487 = vmax.f32 %v6423, 0.0
    %v6488 = vmax.f32 %v6424, 0.0
    %v6489 = vmax.f32 %v6425, 0.0
    %v6490 = vmax.f32 %v6426, 0.0
    %v6491 = vmax.f32 %v6427, 0.0
    %v6492 = vmax.f32 %v6428, 0.0
    %v6493 = vmax.f32 %v6429, 0.0
    %v6494 = vmax.f32 %v6430, 0.0
    %v6495 = vmax.f32 %v6431, 0.0
    %v6496 = vmax.f32 %v6432, 0.0
    %v6497 = vmax.f32 %v6433, 0.0
    %v6498 = vmax.f32 %v6434, 0.0
    %v6499 = vmax.f32 %v6435, 0.0
    %v6500 = vmax.f32 %v6436, 0.0
    %v6501 = vmax.f32 %v6437, 0.0
    %v6502 = vmax.f32 %v6438, 0.0
    %v6503 = vmax.f32 %v6439, 0.0
    %v6504 = vmax.f32 %v6440, 0.0
    %v6505 = vmax.f32 %v6441, 0.0
    %v6506 = vmax.f32 %v6442, 0.0
    %v6507 = vmax.f32 %v6443, 0.0
    %v6508 = vmax.f32 %v6444, 0.0
    %v6509 = vmax.f32 %v6445, 0.0
    %v6510 = vmax.f32 %v6446, 0.0
    %v6511 = vmax.f32 %v6447, 0.0
    %v6512 = vmax.f32 %v6448, 0.0
    %v6513 = vmax.f32 %v6449, 0.0
    %v6514 = vmax.f32 %v6450, 0.0
    %v6515 = vmax.f32 %v6451, 0.0
    %v6516 = vmax.f32 %v6452, 0.0
    %v6517 = vmax.f32 %v6453, 0.0
    %v6518 = vmax.f32 %v6454, 0.0
    %v6519 = vmax.f32 %v6455, 0.0
    %v6520 = vmax.f32 %v6456, 0.0
    %v6521 = vmax.f32 %v6457, 0.0
    %v6522 = vmax.f32 %v6458, 0.0
    %v6523 = vld [vmem:[%s8] sm:$0xff]
    %v6524 = vld [vmem:[%s8 + $0x8] sm:$0xff]
    %v6525 = vld [vmem:[%s8 + $0x10] sm:$0xff]
    %v6526 = vld [vmem:[%s8 + $0x18] sm:$0xff]
    %v6527 = vld [vmem:[%s8 + $0x20] sm:$0xff]
    %v6528 = vld [vmem:[%s8 + $0x28] sm:$0xff]
    %v6529 = vld [vmem:[%s8 + $0x30] sm:$0xff]
    %v6530 = vld [vmem:[%s8 + $0x38] sm:$0xff]
    %v6531 = vld [vmem:[%s8 + $0x40] sm:$0xff]
    %v6532 = vld [vmem:[%s8 + $0x48] sm:$0xff]
    %v6533 = vld [vmem:[%s8 + $0x50] sm:$0xff]
    %v6534 = vld [vmem:[%s8 + $0x58] sm:$0xff]
    %v6535 = vld [vmem:[%s8 + $0x60] sm:$0xff]
    %v6536 = vld [vmem:[%s8 + $0x68] sm:$0xff]
    %v6537 = vld [vmem:[%s8 + $0x70] sm:$0xff]
    %v6538 = vld [vmem:[%s8 + $0x78] sm:$0xff]
    %6539 = vmatprep.subr.mxu0 0.0
    %6540 = vmatpush1.msra.mxu0 %v6523
    %6541 = vmatprep.subr.mxu0 0.0
    %6542 = vmatpush1.msra.mxu0 %v6524
    %6543 = vmatprep.subr.mxu0 0.0
    %6544 = vmatpush1.msra.mxu0 %v6525
    %6545 = vmatprep.subr.mxu0 0.0
    %6546 = vmatpush1.msra.mxu0 %v6526
    %6547 = vmatprep.subr.mxu0 0.0
    %6548 = vmatpush1.msra.mxu0 %v6527
    %6549 = vmatprep.subr.mxu0 0.0
    %6550 = vmatpush1.msra.mxu0 %v6528
    %6551 = vmatprep.subr.mxu0 0.0
    %6552 = vmatpush1.msra.mxu0 %v6529
    %6553 = vmatprep.subr.mxu0 0.0
    %6554 = vmatpush1.msra.mxu0 %v6530
    %6555 = vmatprep.subr.mxu0 0.0
    %6556 = vmatpush1.msra.mxu0 %v6531
    %6557 = vmatprep.subr.mxu0 0.0
    %6558 = vmatpush1.msra.mxu0 %v6532
    %6559 = vmatprep.subr.mxu0 0.0
    %6560 = vmatpush1.msra.mxu0 %v6533
    %6561 = vmatprep.subr.mxu0 0.0
    %6562 = vmatpush1.msra.mxu0 %v6534
    %6563 = vmatprep.subr.mxu0 0.0
    %6564 = vmatpush1.msra.mxu0 %v6535
    %6565 = vmatprep.subr.mxu0 0.0
    %6566 = vmatpush1.msra.mxu0 %v6536
    %6567 = vmatprep.subr.mxu0 0.0
    %6568 = vmatpush1.msra.mxu0 %v6537
    %6569 = vmatprep.subr.mxu0 0.0
    %6570 = vmatpush1.msra.mxu0 %v6538
    %6571 = vmatprep.subr.mxu0 0.0
    %6572 = vmatpush1.msra.mxu0 0.0
    %6573 = vmatprep.subr.mxu0 0.0
    %6574 = vmatpush1.msra.mxu0 0.0
    %6575 = vmatprep.subr.mxu0 0.0
    %6576 = vmatpush1.msra.mxu0 0.0
    %6577 = vmatprep.subr.mxu0 0.0
    %6578 = vmatpush1.msra.mxu0 0.0
    %6579 = vmatprep.subr.mxu0 0.0
    %6580 = vmatpush1.msra.mxu0 0.0
    %6581 = vmatprep.subr.mxu0 0.0
    %6582 = vmatpush1.msra.mxu0 0.0
    %6583 = vmatprep.subr.mxu0 0.0
    %6584 = vmatpush1.msra.mxu0 0.0
    %6585 = vmatprep.subr.mxu0 0.0
    %6586 = vmatpush1.msra.mxu0 0.0
    %6587 = vmatprep.subr.mxu0 0.0
    %6588 = vmatpush1.msra.mxu0 0.0
    %6589 = vmatprep.subr.mxu0 0.0
    %6590 = vmatpush1.msra.mxu0 0.0
    %6591 = vmatprep.subr.mxu0 0.0
    %6592 = vmatpush1.msra.mxu0 0.0
    %6593 = vmatprep.subr.mxu0 0.0
    %6594 = vmatpush1.msra.mxu0 0.0
    %6595 = vmatprep.subr.mxu0 0.0
    %6596 = vmatpush1.msra.mxu0 0.0
    %6597 = vmatprep.subr.mxu0 0.0
    %6598 = vmatpush1.msra.mxu0 0.0
    %6599 = vmatprep.subr.mxu0 0.0
    %6600 = vmatpush1.msra.mxu0 0.0
    %6601 = vmatprep.subr.mxu0 0.0
    %6602 = vmatpush1.msra.mxu0 0.0
    %6603 = vmatprep.mubr.f32.mxu0 0.0
    %6604 = vmatmul.mubr.f32.gmra.mrb[0].mxu0 %v6459
    %v6605 = vpop.f32.mrb[0].mxu0
    %v6606 = vadd.f32 0.0, %v6605
    %v6607 = vpop.f32.mrb[0].mxu0
    %6608 = vmatprep.mubr.f32.mxu0 0.0
    %6609 = vmatmul.mubr.f32.gmra.mrb[0].mxu0 %v6460
    %v6610 = vpop.f32.mrb[0].mxu0
    %v6611 = vadd.f32 0.0, %v6610
    %v6612 = vpop.f32.mrb[0].mxu0
    %6613 = vmatprep.mubr.f32.mxu0 0.0
    %6614 = vmatmul.mubr.f32.gmra.mrb[0].mxu0 %v6461
    %v6615 = vpop.f32.mrb[0].mxu0
    %v6616 = vadd.f32 0.0, %v6615
    %v6617 = vpop.f32.mrb[0].mxu0
    %6618 = vmatprep.mubr.f32.mxu0 0.0
    %6619 = vmatmul.mubr.f32.gmra.mrb[0].mxu0 %v6462
    %v6620 = vpop.f32.mrb[0].mxu0
    %v6621 = vadd.f32 0.0, %v6620
    %v6622 = vpop.f32.mrb[0].mxu0
    %6623 = vmatprep.mubr.f32.mxu0 0.0
    %6624 = vmatmul.mubr.f32.gmra.mrb[0].mxu0 %v6463
    %v6625 = vpop.f32.mrb[0].mxu0
    %v6626 = vadd.f32 0.0, %v6625
    %v6627 = vpop.f32.mrb[0].mxu0
    %6628 = vmatprep.mubr.f32.mxu0 0.0
    %6629 = vmatmul.mubr.f32.gmra.mrb[0].mxu0 %v6464
    %v6630 = vpop.f32.mrb[0].mxu0
    %v6631 = vadd.f32 0.0, %v6630
    %v6632 = vpop.f32.mrb[0].mxu0
    %6633 = vmatprep.mubr.f32.mxu0 0.0
    %6634 = vmatmul.mubr.f32.gmra.mrb[0].mxu0 %v6465
    %v6635 = vpop.f32.mrb[0].mxu0
    %v6636 = vadd.f32 0.0, %v6635
    %v6637 = vpop.f32.mrb[0].mxu0
    %6638 = vmatprep.mubr.f32.mxu0 0.0
    %6639 = vmatmul.mubr.f32.gmra.mrb[0].mxu0 %v6466
    %v6640 = vpop.f32.mrb[0].mxu0
    %v6641 = vadd.f32 0.0, %v6640
    %v6642 = vpop.f32.mrb[0].mxu0
    %6643 = vmatprep.mubr.f32.mxu0 0.0
    %6644 = vmatmul.mubr.f32.gmra.mrb[0].mxu0 %v6467
    %v6645 = vpop.f32.mrb[0].mxu0
    %v6646 = vadd.f32 0.0, %v6645
    %v6647 = vpop.f32.mrb[0].mxu0
    %6648 = vmatprep.mubr.f32.mxu0 0.0
    %6649 = vmatmul.mubr.f32.gmra.mrb[0].mxu0 %v6468
    %v6650 = vpop.f32.mrb[0].mxu0
    %v6651 = vadd.f32 0.0, %v6650
    %v6652 = vpop.f32.mrb[0].mxu0
    %6653 = vmatprep.mubr.f32.mxu0 0.0
    %6654 = vmatmul.mubr.f32.gmra.mrb[0].mxu0 %v6469
    %v6655 = vpop.f32.mrb[0].mxu0
    %v6656 = vadd.f32 0.0, %v6655
    %v6657 = vpop.f32.mrb[0].mxu0
    %6658 = vmatprep.mubr.f32.mxu0 0.0
    %6659 = vmatmul.mubr.f32.gmra.mrb[0].mxu0 %v6470
    %v6660 = vpop.f32.mrb[0].mxu0
    %v6661 = vadd.f32 0.0, %v6660
    %v6662 = vpop.f32.mrb[0].mxu0
    %6663 = vmatprep.mubr.f32.mxu0 0.0
    %6664 = vmatmul.mubr.f32.gmra.mrb[0].mxu0 %v6471
    %v6665 = vpop.f32.mrb[0].mxu0
    %v6666 = vadd.f32 0.0, %v6665
    %v6667 = vpop.f32.mrb[0].mxu0
    %6668 = vmatprep.mubr.f32.mxu0 0.0
    %6669 = vmatmul.mubr.f32.gmra.mrb[0].mxu0 %v6472
    %v6670 = vpop.f32.mrb[0].mxu0
    %v6671 = vadd.f32 0.0, %v6670
    %v6672 = vpop.f32.mrb[0].mxu0
    %6673 = vmatprep.mubr.f32.mxu0 0.0
    %6674 = vmatmul.mubr.f32.gmra.mrb[0].mxu0 %v6473
    %v6675 = vpop.f32.mrb[0].mxu0
    %v6676 = vadd.f32 0.0, %v6675
    %v6677 = vpop.f32.mrb[0].mxu0
    %6678 = vmatprep.mubr.f32.mxu0 0.0
    %6679 = vmatmul.mubr.f32.gmra.mrb[0].mxu0 %v6474
    %v6680 = vpop.f32.mrb[0].mxu0
    %v6681 = vadd.f32 0.0, %v6680
    %v6682 = vpop.f32.mrb[0].mxu0
    %6683 = vmatprep.mubr.f32.mxu0 0.0
    %6684 = vmatmul.mubr.f32.gmra.mrb[0].mxu0 %v6475
    %v6685 = vpop.f32.mrb[0].mxu0
    %v6686 = vadd.f32 0.0, %v6685
    %v6687 = vpop.f32.mrb[0].mxu0
    %6688 = vmatprep.mubr.f32.mxu0 0.0
    %6689 = vmatmul.mubr.f32.gmra.mrb[0].mxu0 %v6476
    %v6690 = vpop.f32.mrb[0].mxu0
    %v6691 = vadd.f32 0.0, %v6690
    %v6692 = vpop.f32.mrb[0].mxu0
    %6693 = vmatprep.mubr.f32.mxu0 0.0
    %6694 = vmatmul.mubr.f32.gmra.mrb[0].mxu0 %v6477
    %v6695 = vpop.f32.mrb[0].mxu0
    %v6696 = vadd.f32 0.0, %v6695
    %v6697 = vpop.f32.mrb[0].mxu0
    %6698 = vmatprep.mubr.f32.mxu0 0.0
    %6699 = vmatmul.mubr.f32.gmra.mrb[0].mxu0 %v6478
    %v6700 = vpop.f32.mrb[0].mxu0
    %v6701 = vadd.f32 0.0, %v6700
    %v6702 = vpop.f32.mrb[0].mxu0
    %6703 = vmatprep.mubr.f32.mxu0 0.0
    %6704 = vmatmul.mubr.f32.gmra.mrb[0].mxu0 %v6479
    %v6705 = vpop.f32.mrb[0].mxu0
    %v6706 = vadd.f32 0.0, %v6705
    %v6707 = vpop.f32.mrb[0].mxu0
    %6708 = vmatprep.mubr.f32.mxu0 0.0
    %6709 = vmatmul.mubr.f32.gmra.mrb[0].mxu0 %v6480
    %v6710 = vpop.f32.mrb[0].mxu0
    %v6711 = vadd.f32 0.0, %v6710
    %v6712 = vpop.f32.mrb[0].mxu0
    %6713 = vmatprep.mubr.f32.mxu0 0.0
    %6714 = vmatmul.mubr.f32.gmra.mrb[0].mxu0 %v6481
    %v6715 = vpop.f32.mrb[0].mxu0
    %v6716 = vadd.f32 0.0, %v6715
    %v6717 = vpop.f32.mrb[0].mxu0
    %6718 = vmatprep.mubr.f32.mxu0 0.0
    %6719 = vmatmul.mubr.f32.gmra.mrb[0].mxu0 %v6482
    %v6720 = vpop.f32.mrb[0].mxu0
    %v6721 = vadd.f32 0.0, %v6720
    %v6722 = vpop.f32.mrb[0].mxu0
    %6723 = vmatprep.mubr.f32.mxu0 0.0
    %6724 = vmatmul.mubr.f32.gmra.mrb[0].mxu0 %v6483
    %v6725 = vpop.f32.mrb[0].mxu0
    %v6726 = vadd.f32 0.0, %v6725
    %v6727 = vpop.f32.mrb[0].mxu0
    %6728 = vmatprep.mubr.f32.mxu0 0.0
    %6729 = vmatmul.mubr.f32.gmra.mrb[0].mxu0 %v6484
    %v6730 = vpop.f32.mrb[0].mxu0
    %v6731 = vadd.f32 0.0, %v6730
    %v6732 = vpop.f32.mrb[0].mxu0
    %6733 = vmatprep.mubr.f32.mxu0 0.0
    %6734 = vmatmul.mubr.f32.gmra.mrb[0].mxu0 %v6485
    %v6735 = vpop.f32.mrb[0].mxu0
    %v6736 = vadd.f32 0.0, %v6735
    %v6737 = vpop.f32.mrb[0].mxu0
    %6738 = vmatprep.mubr.f32.mxu0 0.0
    %6739 = vmatmul.mubr.f32.gmra.mrb[0].mxu0 %v6486
    %v6740 = vpop.f32.mrb[0].mxu0
    %v6741 = vadd.f32 0.0, %v6740
    %v6742 = vpop.f32.mrb[0].mxu0
    %6743 = vmatprep.mubr.f32.mxu0 0.0
    %6744 = vmatmul.mubr.f32.gmra.mrb[0].mxu0 %v6487
    %v6745 = vpop.f32.mrb[0].mxu0
    %v6746 = vadd.f32 0.0, %v6745
    %v6747 = vpop.f32.mrb[0].mxu0
    %6748 = vmatprep.mubr.f32.mxu0 0.0
    %6749 = vmatmul.mubr.f32.gmra.mrb[0].mxu0 %v6488
    %v6750 = vpop.f32.mrb[0].mxu0
    %v6751 = vadd.f32 0.0, %v6750
    %v6752 = vpop.f32.mrb[0].mxu0
    %6753 = vmatprep.mubr.f32.mxu0 0.0
    %6754 = vmatmul.mubr.f32.gmra.mrb[0].mxu0 %v6489
    %v6755 = vpop.f32.mrb[0].mxu0
    %v6756 = vadd.f32 0.0, %v6755
    %v6757 = vpop.f32.mrb[0].mxu0
    %6758 = vmatprep.mubr.f32.mxu0 0.0
    %6759 = vmatmul.mubr.f32.gmra.mrb[0].mxu0 %v6490
    %v6760 = vpop.f32.mrb[0].mxu0
    %v6761 = vadd.f32 0.0, %v6760
    %v6762 = vpop.f32.mrb[0].mxu0
    %6763 = vmatprep.mubr.f32.mxu0 0.0
    %6764 = vmatmul.mubr.f32.gmra.mrb[0].mxu0 %v6491
    %v6765 = vpop.f32.mrb[0].mxu0
    %v6766 = vadd.f32 0.0, %v6765
    %v6767 = vpop.f32.mrb[0].mxu0
    %6768 = vmatprep.mubr.f32.mxu0 0.0
    %6769 = vmatmul.mubr.f32.gmra.mrb[0].mxu0 %v6492
    %v6770 = vpop.f32.mrb[0].mxu0
    %v6771 = vadd.f32 0.0, %v6770
    %v6772 = vpop.f32.mrb[0].mxu0
    %6773 = vmatprep.mubr.f32.mxu0 0.0
    %6774 = vmatmul.mubr.f32.gmra.mrb[0].mxu0 %v6493
    %v6775 = vpop.f32.mrb[0].mxu0
    %v6776 = vadd.f32 0.0, %v6775
    %v6777 = vpop.f32.mrb[0].mxu0
    %6778 = vmatprep.mubr.f32.mxu0 0.0
    %6779 = vmatmul.mubr.f32.gmra.mrb[0].mxu0 %v6494
    %v6780 = vpop.f32.mrb[0].mxu0
    %v6781 = vadd.f32 0.0, %v6780
    %v6782 = vpop.f32.mrb[0].mxu0
    %6783 = vmatprep.mubr.f32.mxu0 0.0
    %6784 = vmatmul.mubr.f32.gmra.mrb[0].mxu0 %v6495
    %v6785 = vpop.f32.mrb[0].mxu0
    %v6786 = vadd.f32 0.0, %v6785
    %v6787 = vpop.f32.mrb[0].mxu0
    %6788 = vmatprep.mubr.f32.mxu0 0.0
    %6789 = vmatmul.mubr.f32.gmra.mrb[0].mxu0 %v6496
    %v6790 = vpop.f32.mrb[0].mxu0
    %v6791 = vadd.f32 0.0, %v6790
    %v6792 = vpop.f32.mrb[0].mxu0
    %6793 = vmatprep.mubr.f32.mxu0 0.0
    %6794 = vmatmul.mubr.f32.gmra.mrb[0].mxu0 %v6497
    %v6795 = vpop.f32.mrb[0].mxu0
    %v6796 = vadd.f32 0.0, %v6795
    %v6797 = vpop.f32.mrb[0].mxu0
    %6798 = vmatprep.mubr.f32.mxu0 0.0
    %6799 = vmatmul.mubr.f32.gmra.mrb[0].mxu0 %v6498
    %v6800 = vpop.f32.mrb[0].mxu0
    %v6801 = vadd.f32 0.0, %v6800
    %v6802 = vpop.f32.mrb[0].mxu0
    %6803 = vmatprep.mubr.f32.mxu0 0.0
    %6804 = vmatmul.mubr.f32.gmra.mrb[0].mxu0 %v6499
    %v6805 = vpop.f32.mrb[0].mxu0
    %v6806 = vadd.f32 0.0, %v6805
    %v6807 = vpop.f32.mrb[0].mxu0
    %6808 = vmatprep.mubr.f32.mxu0 0.0
    %6809 = vmatmul.mubr.f32.gmra.mrb[0].mxu0 %v6500
    %v6810 = vpop.f32.mrb[0].mxu0
    %v6811 = vadd.f32 0.0, %v6810
    %v6812 = vpop.f32.mrb[0].mxu0
    %6813 = vmatprep.mubr.f32.mxu0 0.0
    %6814 = vmatmul.mubr.f32.gmra.mrb[0].mxu0 %v6501
    %v6815 = vpop.f32.mrb[0].mxu0
    %v6816 = vadd.f32 0.0, %v6815
    %v6817 = vpop.f32.mrb[0].mxu0
    %6818 = vmatprep.mubr.f32.mxu0 0.0
    %6819 = vmatmul.mubr.f32.gmra.mrb[0].mxu0 %v6502
    %v6820 = vpop.f32.mrb[0].mxu0
    %v6821 = vadd.f32 0.0, %v6820
    %v6822 = vpop.f32.mrb[0].mxu0
    %6823 = vmatprep.mubr.f32.mxu0 0.0
    %6824 = vmatmul.mubr.f32.gmra.mrb[0].mxu0 %v6503
    %v6825 = vpop.f32.mrb[0].mxu0
    %v6826 = vadd.f32 0.0, %v6825
    %v6827 = vpop.f32.mrb[0].mxu0
    %6828 = vmatprep.mubr.f32.mxu0 0.0
    %6829 = vmatmul.mubr.f32.gmra.mrb[0].mxu0 %v6504
    %v6830 = vpop.f32.mrb[0].mxu0
    %v6831 = vadd.f32 0.0, %v6830
    %v6832 = vpop.f32.mrb[0].mxu0
    %6833 = vmatprep.mubr.f32.mxu0 0.0
    %6834 = vmatmul.mubr.f32.gmra.mrb[0].mxu0 %v6505
    %v6835 = vpop.f32.mrb[0].mxu0
    %v6836 = vadd.f32 0.0, %v6835
    %v6837 = vpop.f32.mrb[0].mxu0
    %6838 = vmatprep.mubr.f32.mxu0 0.0
    %6839 = vmatmul.mubr.f32.gmra.mrb[0].mxu0 %v6506
    %v6840 = vpop.f32.mrb[0].mxu0
    %v6841 = vadd.f32 0.0, %v6840
    %v6842 = vpop.f32.mrb[0].mxu0
    %6843 = vmatprep.mubr.f32.mxu0 0.0
    %6844 = vmatmul.mubr.f32.gmra.mrb[0].mxu0 %v6507
    %v6845 = vpop.f32.mrb[0].mxu0
    %v6846 = vadd.f32 0.0, %v6845
    %v6847 = vpop.f32.mrb[0].mxu0
    %6848 = vmatprep.mubr.f32.mxu0 0.0
    %6849 = vmatmul.mubr.f32.gmra.mrb[0].mxu0 %v6508
    %v6850 = vpop.f32.mrb[0].mxu0
    %v6851 = vadd.f32 0.0, %v6850
    %v6852 = vpop.f32.mrb[0].mxu0
    %6853 = vmatprep.mubr.f32.mxu0 0.0
    %6854 = vmatmul.mubr.f32.gmra.mrb[0].mxu0 %v6509
    %v6855 = vpop.f32.mrb[0].mxu0
    %v6856 = vadd.f32 0.0, %v6855
    %v6857 = vpop.f32.mrb[0].mxu0
    %6858 = vmatprep.mubr.f32.mxu0 0.0
    %6859 = vmatmul.mubr.f32.gmra.mrb[0].mxu0 %v6510
    %v6860 = vpop.f32.mrb[0].mxu0
    %v6861 = vadd.f32 0.0, %v6860
    %v6862 = vpop.f32.mrb[0].mxu0
    %6863 = vmatprep.mubr.f32.mxu0 0.0
    %6864 = vmatmul.mubr.f32.gmra.mrb[0].mxu0 %v6511
    %v6865 = vpop.f32.mrb[0].mxu0
    %v6866 = vadd.f32 0.0, %v6865
    %v6867 = vpop.f32.mrb[0].mxu0
    %6868 = vmatprep.mubr.f32.mxu0 0.0
    %6869 = vmatmul.mubr.f32.gmra.mrb[0].mxu0 %v6512
    %v6870 = vpop.f32.mrb[0].mxu0
    %v6871 = vadd.f32 0.0, %v6870
    %v6872 = vpop.f32.mrb[0].mxu0
    %6873 = vmatprep.mubr.f32.mxu0 0.0
    %6874 = vmatmul.mubr.f32.gmra.mrb[0].mxu0 %v6513
    %v6875 = vpop.f32.mrb[0].mxu0
    %v6876 = vadd.f32 0.0, %v6875
    %v6877 = vpop.f32.mrb[0].mxu0
    %6878 = vmatprep.mubr.f32.mxu0 0.0
    %6879 = vmatmul.mubr.f32.gmra.mrb[0].mxu0 %v6514
    %v6880 = vpop.f32.mrb[0].mxu0
    %v6881 = vadd.f32 0.0, %v6880
    %v6882 = vpop.f32.mrb[0].mxu0
    %6883 = vmatprep.mubr.f32.mxu0 0.0
    %6884 = vmatmul.mubr.f32.gmra.mrb[0].mxu0 %v6515
    %v6885 = vpop.f32.mrb[0].mxu0
    %v6886 = vadd.f32 0.0, %v6885
    %v6887 = vpop.f32.mrb[0].mxu0
    %6888 = vmatprep.mubr.f32.mxu0 0.0
    %6889 = vmatmul.mubr.f32.gmra.mrb[0].mxu0 %v6516
    %v6890 = vpop.f32.mrb[0].mxu0
    %v6891 = vadd.f32 0.0, %v6890
    %v6892 = vpop.f32.mrb[0].mxu0
    %6893 = vmatprep.mubr.f32.mxu0 0.0
    %6894 = vmatmul.mubr.f32.gmra.mrb[0].mxu0 %v6517
    %v6895 = vpop.f32.mrb[0].mxu0
    %v6896 = vadd.f32 0.0, %v6895
    %v6897 = vpop.f32.mrb[0].mxu0
    %6898 = vmatprep.mubr.f32.mxu0 0.0
    %6899 = vmatmul.mubr.f32.gmra.mrb[0].mxu0 %v6518
    %v6900 = vpop.f32.mrb[0].mxu0
    %v6901 = vadd.f32 0.0, %v6900
    %v6902 = vpop.f32.mrb[0].mxu0
    %6903 = vmatprep.mubr.f32.mxu0 0.0
    %6904 = vmatmul.mubr.f32.gmra.mrb[0].mxu0 %v6519
    %v6905 = vpop.f32.mrb[0].mxu0
    %v6906 = vadd.f32 0.0, %v6905
    %v6907 = vpop.f32.mrb[0].mxu0
    %6908 = vmatprep.mubr.f32.mxu0 0.0
    %6909 = vmatmul.mubr.f32.gmra.mrb[0].mxu0 %v6520
    %v6910 = vpop.f32.mrb[0].mxu0
    %v6911 = vadd.f32 0.0, %v6910
    %v6912 = vpop.f32.mrb[0].mxu0
    %6913 = vmatprep.mubr.f32.mxu0 0.0
    %6914 = vmatmul.mubr.f32.gmra.mrb[0].mxu0 %v6521
    %v6915 = vpop.f32.mrb[0].mxu0
    %v6916 = vadd.f32 0.0, %v6915
    %v6917 = vpop.f32.mrb[0].mxu0
    %6918 = vmatprep.mubr.f32.mxu0 0.0
    %6919 = vmatmul.mubr.f32.gmra.mrb[0].mxu0 %v6522
    %v6920 = vpop.f32.mrb[0].mxu0
    %v6921 = vadd.f32 0.0, %v6920
    %v6922 = vpop.f32.mrb[0].mxu0
    %6923 = vdwg.mxu0
    %v6924 = vld [vmem:[%s9] sm:$0x1]
    %v6926 = vlaneseq
    %v6927 = vshrl.u32 %v6926, 7
    %v6928 = vsub.s32 0, %v6927
    %v6929 = vrot.slane %v6924, %v6928
    %v6931 = vmul.f32 %v6606, %v6929
    %v6932 = vmul.f32 %v6611, %v6929
    %v6933 = vmul.f32 %v6616, %v6929
    %v6934 = vmul.f32 %v6621, %v6929
    %v6935 = vmul.f32 %v6626, %v6929
    %v6936 = vmul.f32 %v6631, %v6929
    %v6937 = vmul.f32 %v6636, %v6929
    %v6938 = vmul.f32 %v6641, %v6929
    %v6939 = vmul.f32 %v6646, %v6929
    %v6940 = vmul.f32 %v6651, %v6929
    %v6941 = vmul.f32 %v6656, %v6929
    %v6942 = vmul.f32 %v6661, %v6929
    %v6943 = vmul.f32 %v6666, %v6929
    %v6944 = vmul.f32 %v6671, %v6929
    %v6945 = vmul.f32 %v6676, %v6929
    %v6946 = vmul.f32 %v6681, %v6929
    %v6947 = vmul.f32 %v6686, %v6929
    %v6948 = vmul.f32 %v6691, %v6929
    %v6949 = vmul.f32 %v6696, %v6929
    %v6950 = vmul.f32 %v6701, %v6929
    %v6951 = vmul.f32 %v6706, %v6929
    %v6952 = vmul.f32 %v6711, %v6929
    %v6953 = vmul.f32 %v6716, %v6929
    %v6954 = vmul.f32 %v6721, %v6929
    %v6955 = vmul.f32 %v6726, %v6929
    %v6956 = vmul.f32 %v6731, %v6929
    %v6957 = vmul.f32 %v6736, %v6929
    %v6958 = vmul.f32 %v6741, %v6929
    %v6959 = vmul.f32 %v6746, %v6929
    %v6960 = vmul.f32 %v6751, %v6929
    %v6961 = vmul.f32 %v6756, %v6929
    %v6962 = vmul.f32 %v6761, %v6929
    %v6963 = vmul.f32 %v6766, %v6929
    %v6964 = vmul.f32 %v6771, %v6929
    %v6965 = vmul.f32 %v6776, %v6929
    %v6966 = vmul.f32 %v6781, %v6929
    %v6967 = vmul.f32 %v6786, %v6929
    %v6968 = vmul.f32 %v6791, %v6929
    %v6969 = vmul.f32 %v6796, %v6929
    %v6970 = vmul.f32 %v6801, %v6929
    %v6971 = vmul.f32 %v6806, %v6929
    %v6972 = vmul.f32 %v6811, %v6929
    %v6973 = vmul.f32 %v6816, %v6929
    %v6974 = vmul.f32 %v6821, %v6929
    %v6975 = vmul.f32 %v6826, %v6929
    %v6976 = vmul.f32 %v6831, %v6929
    %v6977 = vmul.f32 %v6836, %v6929
    %v6978 = vmul.f32 %v6841, %v6929
    %v6979 = vmul.f32 %v6846, %v6929
    %v6980 = vmul.f32 %v6851, %v6929
    %v6981 = vmul.f32 %v6856, %v6929
    %v6982 = vmul.f32 %v6861, %v6929
    %v6983 = vmul.f32 %v6866, %v6929
    %v6984 = vmul.f32 %v6871, %v6929
    %v6985 = vmul.f32 %v6876, %v6929
    %v6986 = vmul.f32 %v6881, %v6929
    %v6987 = vmul.f32 %v6886, %v6929
    %v6988 = vmul.f32 %v6891, %v6929
    %v6989 = vmul.f32 %v6896, %v6929
    %v6990 = vmul.f32 %v6901, %v6929
    %v6991 = vmul.f32 %v6906, %v6929
    %v6992 = vmul.f32 %v6911, %v6929
    %v6993 = vmul.f32 %v6916, %v6929
    %v6994 = vmul.f32 %v6921, %v6929
    %v6995 = vld [vmem:[%s10] sm:$0x1]
    %v6997 = vlaneseq
    %v6998 = vshrl.u32 %v6997, 7
    %v6999 = vsub.s32 0, %v6998
    %v7000 = vrot.slane %v6995, %v6999
    %v7002 = vadd.f32 %v6931, %v7000
    %v7003 = vadd.f32 %v6932, %v7000
    %v7004 = vadd.f32 %v6933, %v7000
    %v7005 = vadd.f32 %v6934, %v7000
    %v7006 = vadd.f32 %v6935, %v7000
    %v7007 = vadd.f32 %v6936, %v7000
    %v7008 = vadd.f32 %v6937, %v7000
    %v7009 = vadd.f32 %v6938, %v7000
    %v7010 = vadd.f32 %v6939, %v7000
    %v7011 = vadd.f32 %v6940, %v7000
    %v7012 = vadd.f32 %v6941, %v7000
    %v7013 = vadd.f32 %v6942, %v7000
    %v7014 = vadd.f32 %v6943, %v7000
    %v7015 = vadd.f32 %v6944, %v7000
    %v7016 = vadd.f32 %v6945, %v7000
    %v7017 = vadd.f32 %v6946, %v7000
    %v7018 = vadd.f32 %v6947, %v7000
    %v7019 = vadd.f32 %v6948, %v7000
    %v7020 = vadd.f32 %v6949, %v7000
    %v7021 = vadd.f32 %v6950, %v7000
    %v7022 = vadd.f32 %v6951, %v7000
    %v7023 = vadd.f32 %v6952, %v7000
    %v7024 = vadd.f32 %v6953, %v7000
    %v7025 = vadd.f32 %v6954, %v7000
    %v7026 = vadd.f32 %v6955, %v7000
    %v7027 = vadd.f32 %v6956, %v7000
    %v7028 = vadd.f32 %v6957, %v7000
    %v7029 = vadd.f32 %v6958, %v7000
    %v7030 = vadd.f32 %v6959, %v7000
    %v7031 = vadd.f32 %v6960, %v7000
    %v7032 = vadd.f32 %v6961, %v7000
    %v7033 = vadd.f32 %v6962, %v7000
    %v7034 = vadd.f32 %v6963, %v7000
    %v7035 = vadd.f32 %v6964, %v7000
    %v7036 = vadd.f32 %v6965, %v7000
    %v7037 = vadd.f32 %v6966, %v7000
    %v7038 = vadd.f32 %v6967, %v7000
    %v7039 = vadd.f32 %v6968, %v7000
    %v7040 = vadd.f32 %v6969, %v7000
    %v7041 = vadd.f32 %v6970, %v7000
    %v7042 = vadd.f32 %v6971, %v7000
    %v7043 = vadd.f32 %v6972, %v7000
    %v7044 = vadd.f32 %v6973, %v7000
    %v7045 = vadd.f32 %v6974, %v7000
    %v7046 = vadd.f32 %v6975, %v7000
    %v7047 = vadd.f32 %v6976, %v7000
    %v7048 = vadd.f32 %v6977, %v7000
    %v7049 = vadd.f32 %v6978, %v7000
    %v7050 = vadd.f32 %v6979, %v7000
    %v7051 = vadd.f32 %v6980, %v7000
    %v7052 = vadd.f32 %v6981, %v7000
    %v7053 = vadd.f32 %v6982, %v7000
    %v7054 = vadd.f32 %v6983, %v7000
    %v7055 = vadd.f32 %v6984, %v7000
    %v7056 = vadd.f32 %v6985, %v7000
    %v7057 = vadd.f32 %v6986, %v7000
    %v7058 = vadd.f32 %v6987, %v7000
    %v7059 = vadd.f32 %v6988, %v7000
    %v7060 = vadd.f32 %v6989, %v7000
    %v7061 = vadd.f32 %v6990, %v7000
    %v7062 = vadd.f32 %v6991, %v7000
    %v7063 = vadd.f32 %v6992, %v7000
    %v7064 = vadd.f32 %v6993, %v7000
    %v7065 = vadd.f32 %v6994, %v7000
    %s7066 = scalar_lea.vmem [#allocation3], 24
    %v7067 = vld [vmem:[%s7066 + $0x1] sm:$0xff]
    %v7068 = vld [vmem:[%s7066 + $0x9] sm:$0xff]
    %v7069 = vld [vmem:[%s7066 + $0x19] sm:$0xff]
    %v7070 = vld [vmem:[%s7066 + $0x21] sm:$0xff]
    %v7071 = vld [vmem:[%s7066 + $0x31] sm:$0xff]
    %v7072 = vld [vmem:[%s7066 + $0x39] sm:$0xff]
    %v7073 = vld [vmem:[%s7066 + $0x49] sm:$0xff]
    %v7074 = vld [vmem:[%s7066 + $0x51] sm:$0xff]
    %v7075 = vld [vmem:[%s7066 + $0x61] sm:$0xff]
    %v7076 = vld [vmem:[%s7066 + $0x69] sm:$0xff]
    %v7077 = vld [vmem:[%s7066 + $0x79] sm:$0xff]
    %v7078 = vld [vmem:[%s7066 + $0x81] sm:$0xff]
    %v7079 = vld [vmem:[%s7066 + $0x91] sm:$0xff]
    %v7080 = vld [vmem:[%s7066 + $0x99] sm:$0xff]
    %v7081 = vld [vmem:[%s7066 + $0xa9] sm:$0xff]
    %v7082 = vld [vmem:[%s7066 + $0xb1] sm:$0xff]
    %v7083 = vld [vmem:[%s7066 + $0xc1] sm:$0xff]
    %v7084 = vld [vmem:[%s7066 + $0xc9] sm:$0xff]
    %v7085 = vld [vmem:[%s7066 + $0xd9] sm:$0xff]
    %v7086 = vld [vmem:[%s7066 + $0xe1] sm:$0xff]
    %v7087 = vld [vmem:[%s7066 + $0xf1] sm:$0xff]
    %v7088 = vld [vmem:[%s7066 + $0xf9] sm:$0xff]
    %v7089 = vld [vmem:[%s7066 + $0x109] sm:$0xff]
    %v7090 = vld [vmem:[%s7066 + $0x111] sm:$0xff]
    %v7091 = vld [vmem:[%s7066 + $0x121] sm:$0xff]
    %v7092 = vld [vmem:[%s7066 + $0x129] sm:$0xff]
    %v7093 = vld [vmem:[%s7066 + $0x139] sm:$0xff]
    %v7094 = vld [vmem:[%s7066 + $0x141] sm:$0xff]
    %v7095 = vld [vmem:[%s7066 + $0x151] sm:$0xff]
    %v7096 = vld [vmem:[%s7066 + $0x159] sm:$0xff]
    %v7097 = vld [vmem:[%s7066 + $0x169] sm:$0xff]
    %v7098 = vld [vmem:[%s7066 + $0x171] sm:$0xff]
    %v7099 = vld [vmem:[%s7066 + $0x1b1] sm:$0xff]
    %v7100 = vld [vmem:[%s7066 + $0x1b9] sm:$0xff]
    %v7101 = vld [vmem:[%s7066 + $0x1c9] sm:$0xff]
    %v7102 = vld [vmem:[%s7066 + $0x1d1] sm:$0xff]
    %v7103 = vld [vmem:[%s7066 + $0x1e1] sm:$0xff]
    %v7104 = vld [vmem:[%s7066 + $0x1e9] sm:$0xff]
    %v7105 = vld [vmem:[%s7066 + $0x1f9] sm:$0xff]
    %v7106 = vld [vmem:[%s7066 + $0x201] sm:$0xff]
    %v7107 = vld [vmem:[%s7066 + $0x211] sm:$0xff]
    %v7108 = vld [vmem:[%s7066 + $0x219] sm:$0xff]
    %v7109 = vld [vmem:[%s7066 + $0x229] sm:$0xff]
    %v7110 = vld [vmem:[%s7066 + $0x231] sm:$0xff]
    %v7111 = vld [vmem:[%s7066 + $0x241] sm:$0xff]
    %v7112 = vld [vmem:[%s7066 + $0x249] sm:$0xff]
    %v7113 = vld [vmem:[%s7066 + $0x259] sm:$0xff]
    %v7114 = vld [vmem:[%s7066 + $0x261] sm:$0xff]
    %v7115 = vld [vmem:[%s7066 + $0x271] sm:$0xff]
    %v7116 = vld [vmem:[%s7066 + $0x279] sm:$0xff]
    %v7117 = vld [vmem:[%s7066 + $0x289] sm:$0xff]
    %v7118 = vld [vmem:[%s7066 + $0x291] sm:$0xff]
    %v7119 = vld [vmem:[%s7066 + $0x2a1] sm:$0xff]
    %v7120 = vld [vmem:[%s7066 + $0x2a9] sm:$0xff]
    %v7121 = vld [vmem:[%s7066 + $0x2b9] sm:$0xff]
    %v7122 = vld [vmem:[%s7066 + $0x2c1] sm:$0xff]
    %v7123 = vld [vmem:[%s7066 + $0x2d1] sm:$0xff]
    %v7124 = vld [vmem:[%s7066 + $0x2d9] sm:$0xff]
    %v7125 = vld [vmem:[%s7066 + $0x2e9] sm:$0xff]
    %v7126 = vld [vmem:[%s7066 + $0x2f1] sm:$0xff]
    %v7127 = vld [vmem:[%s7066 + $0x301] sm:$0xff]
    %v7128 = vld [vmem:[%s7066 + $0x309] sm:$0xff]
    %v7129 = vld [vmem:[%s7066 + $0x319] sm:$0xff]
    %v7130 = vld [vmem:[%s7066 + $0x321] sm:$0xff]
    %v7131 = vadd.f32 %v7002, %v7067
    %v7132 = vadd.f32 %v7003, %v7068
    %v7133 = vadd.f32 %v7004, %v7069
    %v7134 = vadd.f32 %v7005, %v7070
    %v7135 = vadd.f32 %v7006, %v7071
    %v7136 = vadd.f32 %v7007, %v7072
    %v7137 = vadd.f32 %v7008, %v7073
    %v7138 = vadd.f32 %v7009, %v7074
    %v7139 = vadd.f32 %v7010, %v7075
    %v7140 = vadd.f32 %v7011, %v7076
    %v7141 = vadd.f32 %v7012, %v7077
    %v7142 = vadd.f32 %v7013, %v7078
    %v7143 = vadd.f32 %v7014, %v7079
    %v7144 = vadd.f32 %v7015, %v7080
    %v7145 = vadd.f32 %v7016, %v7081
    %v7146 = vadd.f32 %v7017, %v7082
    %v7147 = vadd.f32 %v7018, %v7083
    %v7148 = vadd.f32 %v7019, %v7084
    %v7149 = vadd.f32 %v7020, %v7085
    %v7150 = vadd.f32 %v7021, %v7086
    %v7151 = vadd.f32 %v7022, %v7087
    %v7152 = vadd.f32 %v7023, %v7088
    %v7153 = vadd.f32 %v7024, %v7089
    %v7154 = vadd.f32 %v7025, %v7090
    %v7155 = vadd.f32 %v7026, %v7091
    %v7156 = vadd.f32 %v7027, %v7092
    %v7157 = vadd.f32 %v7028, %v7093
    %v7158 = vadd.f32 %v7029, %v7094
    %v7159 = vadd.f32 %v7030, %v7095
    %v7160 = vadd.f32 %v7031, %v7096
    %v7161 = vadd.f32 %v7032, %v7097
    %v7162 = vadd.f32 %v7033, %v7098
    %v7163 = vadd.f32 %v7034, %v7099
    %v7164 = vadd.f32 %v7035, %v7100
    %v7165 = vadd.f32 %v7036, %v7101
    %v7166 = vadd.f32 %v7037, %v7102
    %v7167 = vadd.f32 %v7038, %v7103
    %v7168 = vadd.f32 %v7039, %v7104
    %v7169 = vadd.f32 %v7040, %v7105
    %v7170 = vadd.f32 %v7041, %v7106
    %v7171 = vadd.f32 %v7042, %v7107
    %v7172 = vadd.f32 %v7043, %v7108
    %v7173 = vadd.f32 %v7044, %v7109
    %v7174 = vadd.f32 %v7045, %v7110
    %v7175 = vadd.f32 %v7046, %v7111
    %v7176 = vadd.f32 %v7047, %v7112
    %v7177 = vadd.f32 %v7048, %v7113
    %v7178 = vadd.f32 %v7049, %v7114
    %v7179 = vadd.f32 %v7050, %v7115
    %v7180 = vadd.f32 %v7051, %v7116
    %v7181 = vadd.f32 %v7052, %v7117
    %v7182 = vadd.f32 %v7053, %v7118
    %v7183 = vadd.f32 %v7054, %v7119
    %v7184 = vadd.f32 %v7055, %v7120
    %v7185 = vadd.f32 %v7056, %v7121
    %v7186 = vadd.f32 %v7057, %v7122
    %v7187 = vadd.f32 %v7058, %v7123
    %v7188 = vadd.f32 %v7059, %v7124
    %v7189 = vadd.f32 %v7060, %v7125
    %v7190 = vadd.f32 %v7061, %v7126
    %v7191 = vadd.f32 %v7062, %v7127
    %v7192 = vadd.f32 %v7063, %v7128
    %v7193 = vadd.f32 %v7064, %v7129
    %v7194 = vadd.f32 %v7065, %v7130
    %v7195 = vmax.f32 %v7131, 0.0
    %v7196 = vmax.f32 %v7132, 0.0
    %v7197 = vmax.f32 %v7133, 0.0
    %v7198 = vmax.f32 %v7134, 0.0
    %v7199 = vmax.f32 %v7135, 0.0
    %v7200 = vmax.f32 %v7136, 0.0
    %v7201 = vmax.f32 %v7137, 0.0
    %v7202 = vmax.f32 %v7138, 0.0
    %v7203 = vmax.f32 %v7139, 0.0
    %v7204 = vmax.f32 %v7140, 0.0
    %v7205 = vmax.f32 %v7141, 0.0
    %v7206 = vmax.f32 %v7142, 0.0
    %v7207 = vmax.f32 %v7143, 0.0
    %v7208 = vmax.f32 %v7144, 0.0
    %v7209 = vmax.f32 %v7145, 0.0
    %v7210 = vmax.f32 %v7146, 0.0
    %v7211 = vmax.f32 %v7147, 0.0
    %v7212 = vmax.f32 %v7148, 0.0
    %v7213 = vmax.f32 %v7149, 0.0
    %v7214 = vmax.f32 %v7150, 0.0
    %v7215 = vmax.f32 %v7151, 0.0
    %v7216 = vmax.f32 %v7152, 0.0
    %v7217 = vmax.f32 %v7153, 0.0
    %v7218 = vmax.f32 %v7154, 0.0
    %v7219 = vmax.f32 %v7155, 0.0
    %v7220 = vmax.f32 %v7156, 0.0
    %v7221 = vmax.f32 %v7157, 0.0
    %v7222 = vmax.f32 %v7158, 0.0
    %v7223 = vmax.f32 %v7159, 0.0
    %v7224 = vmax.f32 %v7160, 0.0
    %v7225 = vmax.f32 %v7161, 0.0
    %v7226 = vmax.f32 %v7162, 0.0
    %v7227 = vmax.f32 %v7163, 0.0
    %v7228 = vmax.f32 %v7164, 0.0
    %v7229 = vmax.f32 %v7165, 0.0
    %v7230 = vmax.f32 %v7166, 0.0
    %v7231 = vmax.f32 %v7167, 0.0
    %v7232 = vmax.f32 %v7168, 0.0
    %v7233 = vmax.f32 %v7169, 0.0
    %v7234 = vmax.f32 %v7170, 0.0
    %v7235 = vmax.f32 %v7171, 0.0
    %v7236 = vmax.f32 %v7172, 0.0
    %v7237 = vmax.f32 %v7173, 0.0
    %v7238 = vmax.f32 %v7174, 0.0
    %v7239 = vmax.f32 %v7175, 0.0
    %v7240 = vmax.f32 %v7176, 0.0
    %v7241 = vmax.f32 %v7177, 0.0
    %v7242 = vmax.f32 %v7178, 0.0
    %v7243 = vmax.f32 %v7179, 0.0
    %v7244 = vmax.f32 %v7180, 0.0
    %v7245 = vmax.f32 %v7181, 0.0
    %v7246 = vmax.f32 %v7182, 0.0
    %v7247 = vmax.f32 %v7183, 0.0
    %v7248 = vmax.f32 %v7184, 0.0
    %v7249 = vmax.f32 %v7185, 0.0
    %v7250 = vmax.f32 %v7186, 0.0
    %v7251 = vmax.f32 %v7187, 0.0
    %v7252 = vmax.f32 %v7188, 0.0
    %v7253 = vmax.f32 %v7189, 0.0
    %v7254 = vmax.f32 %v7190, 0.0
    %v7255 = vmax.f32 %v7191, 0.0
    %v7256 = vmax.f32 %v7192, 0.0
    %v7257 = vmax.f32 %v7193, 0.0
    %v7258 = vmax.f32 %v7194, 0.0
    %7259 = vst [vmem:[#allocation8] sm:$0xff] %v7195
    %7260 = vst [vmem:[#allocation8 + $0x8] sm:$0xff] %v7196
    %7261 = vst [vmem:[#allocation8 + $0x10] sm:$0xff] %v7197
    %7262 = vst [vmem:[#allocation8 + $0x18] sm:$0xff] %v7198
    %7263 = vst [vmem:[#allocation8 + $0x20] sm:$0xff] %v7199
    %7264 = vst [vmem:[#allocation8 + $0x28] sm:$0xff] %v7200
    %7265 = vst [vmem:[#allocation8 + $0x30] sm:$0xff] %v7201
    %7266 = vst [vmem:[#allocation8 + $0x38] sm:$0xff] %v7202
    %7267 = vst [vmem:[#allocation8 + $0x40] sm:$0xff] %v7203
    %7268 = vst [vmem:[#allocation8 + $0x48] sm:$0xff] %v7204
    %7269 = vst [vmem:[#allocation8 + $0x50] sm:$0xff] %v7205
    %7270 = vst [vmem:[#allocation8 + $0x58] sm:$0xff] %v7206
    %7271 = vst [vmem:[#allocation8 + $0x60] sm:$0xff] %v7207
    %7272 = vst [vmem:[#allocation8 + $0x68] sm:$0xff] %v7208
    %7273 = vst [vmem:[#allocation8 + $0x70] sm:$0xff] %v7209
    %7274 = vst [vmem:[#allocation8 + $0x78] sm:$0xff] %v7210
    %7275 = vst [vmem:[#allocation8 + $0x80] sm:$0xff] %v7211
    %7276 = vst [vmem:[#allocation8 + $0x88] sm:$0xff] %v7212
    %7277 = vst [vmem:[#allocation8 + $0x90] sm:$0xff] %v7213
    %7278 = vst [vmem:[#allocation8 + $0x98] sm:$0xff] %v7214
    %7279 = vst [vmem:[#allocation8 + $0xa0] sm:$0xff] %v7215
    %7280 = vst [vmem:[#allocation8 + $0xa8] sm:$0xff] %v7216
    %7281 = vst [vmem:[#allocation8 + $0xb0] sm:$0xff] %v7217
    %7282 = vst [vmem:[#allocation8 + $0xb8] sm:$0xff] %v7218
    %7283 = vst [vmem:[#allocation8 + $0xc0] sm:$0xff] %v7219
    %7284 = vst [vmem:[#allocation8 + $0xc8] sm:$0xff] %v7220
    %7285 = vst [vmem:[#allocation8 + $0xd0] sm:$0xff] %v7221
    %7286 = vst [vmem:[#allocation8 + $0xd8] sm:$0xff] %v7222
    %7287 = vst [vmem:[#allocation8 + $0xe0] sm:$0xff] %v7223
    %7288 = vst [vmem:[#allocation8 + $0xe8] sm:$0xff] %v7224
    %7289 = vst [vmem:[#allocation8 + $0xf0] sm:$0xff] %v7225
    %7290 = vst [vmem:[#allocation8 + $0xf8] sm:$0xff] %v7226
    %7291 = vst [vmem:[#allocation8 + $0x100] sm:$0xff] %v7227
    %7292 = vst [vmem:[#allocation8 + $0x108] sm:$0xff] %v7228
    %7293 = vst [vmem:[#allocation8 + $0x110] sm:$0xff] %v7229
    %7294 = vst [vmem:[#allocation8 + $0x118] sm:$0xff] %v7230
    %7295 = vst [vmem:[#allocation8 + $0x120] sm:$0xff] %v7231
    %7296 = vst [vmem:[#allocation8 + $0x128] sm:$0xff] %v7232
    %7297 = vst [vmem:[#allocation8 + $0x130] sm:$0xff] %v7233
    %7298 = vst [vmem:[#allocation8 + $0x138] sm:$0xff] %v7234
    %7299 = vst [vmem:[#allocation8 + $0x140] sm:$0xff] %v7235
    %7300 = vst [vmem:[#allocation8 + $0x148] sm:$0xff] %v7236
    %7301 = vst [vmem:[#allocation8 + $0x150] sm:$0xff] %v7237
    %7302 = vst [vmem:[#allocation8 + $0x158] sm:$0xff] %v7238
    %7303 = vst [vmem:[#allocation8 + $0x160] sm:$0xff] %v7239
    %7304 = vst [vmem:[#allocation8 + $0x168] sm:$0xff] %v7240
    %7305 = vst [vmem:[#allocation8 + $0x170] sm:$0xff] %v7241
    %7306 = vst [vmem:[#allocation8 + $0x178] sm:$0xff] %v7242
    %7307 = vst [vmem:[#allocation8 + $0x180] sm:$0xff] %v7243
    %7308 = vst [vmem:[#allocation8 + $0x188] sm:$0xff] %v7244
    %7309 = vst [vmem:[#allocation8 + $0x190] sm:$0xff] %v7245
    %7310 = vst [vmem:[#allocation8 + $0x198] sm:$0xff] %v7246
    %7311 = vst [vmem:[#allocation8 + $0x1a0] sm:$0xff] %v7247
    %7312 = vst [vmem:[#allocation8 + $0x1a8] sm:$0xff] %v7248
    %7313 = vst [vmem:[#allocation8 + $0x1b0] sm:$0xff] %v7249
    %7314 = vst [vmem:[#allocation8 + $0x1b8] sm:$0xff] %v7250
    %7315 = vst [vmem:[#allocation8 + $0x1c0] sm:$0xff] %v7251
    %7316 = vst [vmem:[#allocation8 + $0x1c8] sm:$0xff] %v7252
    %7317 = vst [vmem:[#allocation8 + $0x1d0] sm:$0xff] %v7253
    %7318 = vst [vmem:[#allocation8 + $0x1d8] sm:$0xff] %v7254
    %7319 = vst [vmem:[#allocation8 + $0x1e0] sm:$0xff] %v7255
    %7320 = vst [vmem:[#allocation8 + $0x1e8] sm:$0xff] %v7256
    %7321 = vst [vmem:[#allocation8 + $0x1f0] sm:$0xff] %v7257
    %7322 = vst [vmem:[#allocation8 + $0x1f8] sm:$0xff] %v7258
    // Predicated region
    $region54: #{tpu_custom_call.1} parent=1 // pred_check
      _
    $region55: #{tpu_custom_call.1} parent=1 // pred_check_branch
      %7324 = sbr.rel (0) target = $region57
    $region56: #{tpu_custom_call.1} parent=1 // pred_region
      %s7326 = ssub.s32 8192, 8192
      %7327 = vsyncadd [#allocation5], %s7326
      %s7328 = sshll.u32 [#allocation8], 4
      %s7329 = int_to_ptr.vmem [resolvable:$true] %s7328
      %7334 = dma.vmem_to_hbm [thread:$0]  %s7329, 8192, %s11, [#allocation5], 128, 128, 8
    $region57: #{tpu_custom_call.1} parent=1 // pred_fallthru
      _
    // Predicated region
    $region58: #{tpu_custom_call.1} parent=1 // pred_check
      _
    $region59: #{tpu_custom_call.1} parent=1 // pred_check_branch
      %7336 = sbr.rel (0) target = $region61
    $region60: #{tpu_custom_call.1} parent=1 // pred_region
      %7337 = dma.done [#allocation5], 8192
    $region61: #{tpu_custom_call.1} parent=1 // pred_fallthru
      _
    %7338 = vsyncpa [#allocation4], 1
    %7339 = vsyncpa [#allocation7], 1
    %7340 = vsyncpa [#allocation5], 1

</llo_original>
